<compile_context>
chip_gen: v7x
topology: tpu7x:2x2x1
jax: 0.10.0
libtpu: 0.0.40
codegen_flags: <defaults>
</compile_context>

<pallas_src>
import functools

import jax
import jax.numpy as jnp
from jax.experimental import pallas as pl
from jax.experimental.pallas import tpu as pltpu


_PER_BLOCK = 15  # number of prepared parameter arrays per STA_MGCN block


# --------------------------------------------------------------------------
# In-kernel computation of one STA_MGCN block for a single batch element.
# Activation layout: (T, N, C)   -- time, nodes, channels (channels on lanes).
# --------------------------------------------------------------------------
def _block_compute(xc3, a2d, p):
    (u1k, u2, u3, be, ve, wg, bg,
     wt_t, wt_s, bt_t, bt_s, wr, br, ln_g, ln_b) = p
    T, N, C = xc3.shape
    TF = wr.shape[1]

    # ---- temporal attention ------------------------------------------------
    # tmp[t, c]  = sum_n U1[n] * x[t, n, c]       (single kron(I_T, U1) matmul)
    # lhs[t, m]  = sum_c tmp[t, c] * U2[c, m]
    # rhsT[t, n] = sum_c U3[c] * x[t, n, c]
    xc2d = xc3.reshape(T * N, C)
    tmp = jnp.dot(u1k, xc2d, preferred_element_type=jnp.float32)          # (T, C)
    lhs = jnp.dot(tmp, u2, preferred_element_type=jnp.float32)            # (T, N)
    rhsT = jnp.sum(xc3 * u3, axis=-1)                                     # (T, N)
    product = jax.lax.dot_general(                                        # lhs @ rhsT.T
        lhs, rhsT, (((1,), (1,)), ((), ())),
        preferred_element_type=jnp.float32)                               # (T, T)
    e = jnp.dot(ve, jax.nn.sigmoid(product + be),
                preferred_element_type=jnp.float32)                       # (T, T)
    # F.softmax(e, dim=1) on (B, T, T)  ==  softmax over axis 0 per batch element.
    m = jnp.max(e, axis=0, keepdims=True)
    ex = jnp.exp(e - m)
    att = ex / jnp.sum(ex, axis=0, keepdims=True)                         # (T, T)

    # ---- apply temporal attention: x_att[t'] = sum_t att[t, t'] * x[t] -----
    # T*T unrolled FMAs over lane-dense (N, C) tiles (T == 3, so 9 VPU ops).
    xatt = []
    for tp in range(T):
        acc = xc3[0] * att[0:1, tp:tp + 1]
        for t in range(1, T):
            acc = acc + xc3[t] * att[t:t + 1, tp:tp + 1]
        xatt.append(acc)                                                   # (N, C)

    # ---- multi-graph GCN (3 graphs, agg='sum'), per time step --------------
    # Stacked adjacency (3N, N): one A@X matmul covers all 3 graphs, then one
    # batched (3,N,C)x(3,C,G) contraction for the per-graph weights.
    ys = []
    for t in range(T):
        ax = jnp.dot(a2d, xatt[t], preferred_element_type=jnp.float32)     # (3N, C)
        h = jnp.einsum("inc,icg->ing", ax.reshape(3, N, C), wg,
                       preferred_element_type=jnp.float32) + bg            # (3, N, G)
        ys.append(jnp.sum(jnp.maximum(h, 0.0), axis=0))                    # (N, G)

    # ---- dilated (1,3) time conv with GLU gate ------------------------------
    # GLU weights are pre-split into tanh/sigmoid halves, so each tap is two
    # lane-aligned (N,G)@(G,TF) matmuls and no in-kernel lane splitting occurs.
    T_out = T - 2                          # Conv2d(k=(1,3), pad=(0,1), dilation=2)
    gates = []
    for to in range(T_out):
        acc_t = jnp.zeros((N, TF), jnp.float32)
        acc_s = jnp.zeros((N, TF), jnp.float32)
        for k in range(3):
            ti = to - 1 + 2 * k
            if 0 <= ti < T:
                acc_t = acc_t + jnp.dot(ys[ti], wt_t[k],
                                        preferred_element_type=jnp.float32)
                acc_s = acc_s + jnp.dot(ys[ti], wt_s[k],
                                        preferred_element_type=jnp.float32)
        gates.append(jnp.tanh(acc_t + bt_t) * jax.nn.sigmoid(acc_s + bt_s))  # (N, TF)

    # ---- residual 1x1 conv + ReLU + LayerNorm(time_filter) ------------------
    outs = []
    for t in range(T):
        res = jnp.dot(xc3[t], wr, preferred_element_type=jnp.float32) + br  # (N, TF)
        if T_out == T:
            tc = gates[t]
        elif T_out == 1:
            tc = gates[0]          # same broadcast as PyTorch (.., T) + (.., 1)
        else:
            raise ValueError("time_conv output width does not broadcast with residual")
        z = jnp.maximum(res + tc, 0.0)
        mean = jnp.mean(z, axis=-1, keepdims=True)
        var = jnp.mean(jnp.square(z - mean), axis=-1, keepdims=True)
        zn = (z - mean) * jax.lax.rsqrt(var + 1e-5)
        outs.append(zn * ln_g + ln_b)                                        # (N, TF)
    return jnp.stack(outs, axis=0)                                           # (T, N, TF)


# --------------------------------------------------------------------------
# Fully fused forward kernel: all ST blocks + fc_3, one grid step per batch.
# --------------------------------------------------------------------------
def _fused_kernel(*refs, nb_block):
    x_ref, a_ref = refs[0], refs[1]
    pos = 2
    blocks = []
    for _ in range(nb_block):
        blocks.append(tuple(r[...] for r in refs[pos:pos + _PER_BLOCK]))
        pos += _PER_BLOCK
    w1_ref, b1_ref, w2_ref, b2_ref = refs[pos:pos + 4]
    out_ref = refs[pos + 4]

    _, T, N, _ = x_ref.shape
    xc3 = x_ref[0]                                  # (T, N, C0)
    a2d = a_ref[...]                                # (3N, N)
    for p in blocks:
        xc3 = _block_compute(xc3, a2d, p)           # (T, N, TF)

    # fc_3: ReLU -> node-wise dense (T*TF -> H) -> ReLU -> node-wise dense (H -> O)
    xr = jnp.maximum(xc3, 0.0)
    feat = jnp.concatenate([xr[t] for t in range(T)], axis=1)    # (N, T*TF)
    rows = []
    for n in range(N):                              # node-adaptive (MFDense) weights
        h = jnp.dot(feat[n:n + 1, :], w1_ref[n],
                    preferred_element_type=jnp.float32) + b1_ref[n]
        h = jnp.maximum(h, 0.0)
        rows.append(jnp.dot(h, w2_ref[n],
                            preferred_element_type=jnp.float32) + b2_ref[n])
    out_ref[0] = jnp.concatenate(rows, axis=0)       # (N, O) single store


# --------------------------------------------------------------------------
# Host-side parameter preparation (torch-equivalent layout -> kernel layout).
# --------------------------------------------------------------------------
def _prepare_block(p, T, N):
    TF = p["time_filter"]
    tc_w = p["tc_W"]                                                   # (2*TF, G, 1, 3)
    return [
        jnp.kron(jnp.eye(T, dtype=jnp.float32), p["U1"][None, :]),     # (T, T*N)
        p["U2"],                                                       # (C, N)
        p["U3"].reshape(1, 1, -1),                                     # (1, 1, C)
        p["be"].reshape(T, T),
        p["Ve"],
        p["gcn_W"],                                                    # (3, C, G)
        p["gcn_b"].reshape(3, 1, -1),                                  # (3, 1, G)
        jnp.transpose(tc_w[:TF, :, 0, :], (2, 1, 0)),                  # (3, G, TF) tanh half
        jnp.transpose(tc_w[TF:, :, 0, :], (2, 1, 0)),                  # (3, G, TF) sigmoid half
        p["tc_b"][:TF].reshape(1, TF),
        p["tc_b"][TF:].reshape(1, TF),
        jnp.transpose(p["res_W"][:, :, 0, 0], (1, 0)),                 # (C, TF)
        p["res_b"].reshape(1, TF),
        p["ln_g"].reshape(1, TF),
        p["ln_b"].reshape(1, TF),
    ]


def _prepare_fc(fc, T, TF):
    W1, b1, W2, b2 = fc["W1"], fc["b1"], fc["W2"], fc["b2"]
    N, Din, H = W1.shape
    O = W2.shape[-1]
    # Re-order Din = (C, T) row-major -> (T, C) so it matches the kernel's
    # time-major activation flattening  feat[n, t*TF + c].
    W1r = W1.reshape(N, TF, T, H).transpose(0, 2, 1, 3).reshape(N, T * TF, H)
    return [W1r, b1.reshape(N, 1, H), W2, b2.reshape(N, 1, O)]


def prepare_params(block_params, fc_params, *, T, N):
    flat = []
    for p in block_params:
        flat.extend(_prepare_block(p, T, N))
    TF = block_params[-1]["time_filter"]
    flat.extend(_prepare_fc(fc_params, T, TF))
    return tuple(flat)


def _const_spec(arr):
    nd = arr.ndim
    return pl.BlockSpec(arr.shape, lambda b, _n=nd: (0,) * _n)


# --------------------------------------------------------------------------
# Forward wrapper: one pallas_call for the whole submodule.
# --------------------------------------------------------------------------
def sta_mgcn_submodule_forward(x, A, flat_params):
    """x: (B, N, C0, T) ; A: (3, N, N) ; flat_params from prepare_params()."""
    B, N, C0, T = x.shape
    if (T - 2) != 1 and (T - 2) != T:
        raise ValueError("STA_MGCN: the dilated time conv output only broadcasts "
                         "with the residual when num_time_steps == 3")
    nb_block = (len(flat_params) - 4) // _PER_BLOCK
    O = flat_params[-2].shape[-1]

    xw = jnp.transpose(x, (0, 3, 1, 2))             # (B, T, N, C0): channels on lanes
    a2d = A.reshape(3 * N, N)                       # stacked adjacency

    kernel = functools.partial(_fused_kernel, nb_block=nb_block)
    in_specs = [
        pl.BlockSpec((1, T, N, C0), lambda b: (b, 0, 0, 0)),
        _const_spec(a2d),
    ] + [_const_spec(a) for a in flat_params]

    return pl.pallas_call(
        kernel,
        out_shape=jax.ShapeDtypeStruct((B, N, O), jnp.float32),
        grid=(B,),
        in_specs=in_specs,
        out_specs=pl.BlockSpec((1, N, O), lambda b: (b, 0, 0)),
        compiler_params=pltpu.CompilerParams(
            dimension_semantics=("parallel",)),     # v7x: shard batch over 2 TCs
    )(xw, a2d, *flat_params)


# --------------------------------------------------------------------------
# Parameter initialization (torch-equivalent layouts).
# --------------------------------------------------------------------------
def init_block_params(key, F, N, T, G, tf):
    ks = jax.random.split(key, 12)
    return dict(
        U1=jax.random.uniform(ks[0], (N,), jnp.float32),
        U2=jax.random.normal(ks[1], (F, N), jnp.float32) * 0.3,
        U3=jax.random.uniform(ks[2], (F,), jnp.float32),
        be=jax.random.normal(ks[3], (1, T, T), jnp.float32) * 0.3,
        Ve=jax.random.normal(ks[4], (T, T), jnp.float32) * 0.3,
        gcn_W=jax.random.normal(ks[5], (3, F, G), jnp.float32) * 0.3,
        gcn_b=jax.random.normal(ks[6], (3, G), jnp.float32) * 0.1,
        tc_W=jax.random.normal(ks[7], (2 * tf, G, 1, 3), jnp.float32) * 0.2,
        tc_b=jax.random.normal(ks[8], (2 * tf,), jnp.float32) * 0.1,
        res_W=jax.random.normal(ks[9], (tf, F, 1, 1), jnp.float32) * 0.2,
        res_b=jax.random.normal(ks[10], (tf,), jnp.float32) * 0.1,
        ln_g=jnp.ones((tf,), jnp.float32),
        ln_b=jnp.zeros((tf,), jnp.float32),
        time_filter=tf,
    )


def init_fc_params(key, N, embed_dim, d_in, d_hidden, d_out):
    ks = jax.random.split(key, 6)
    E1 = jax.random.normal(ks[0], (N, embed_dim), jnp.float32) * 0.3
    Wp1 = jax.random.normal(ks[1], (embed_dim, d_in, d_hidden), jnp.float32) * 0.1
    bp1 = jax.random.normal(ks[2], (embed_dim, d_hidden), jnp.float32) * 0.1
    E2 = jax.random.normal(ks[3], (N, embed_dim), jnp.float32) * 0.3
    Wp2 = jax.random.normal(ks[4], (embed_dim, d_hidden, d_out), jnp.float32) * 0.1
    bp2 = jax.random.normal(ks[5], (embed_dim, d_out), jnp.float32) * 0.1
    return dict(
        W1=jnp.einsum("ne,eio->nio", E1, Wp1), b1=E1 @ bp1,
        W2=jnp.einsum("ne,eio->nio", E2, Wp2), b2=E2 @ bp2,
    )


if __name__ == "__main__":
    # Small but shape-consistent configuration.
    B = 2             # batch
    N = 8             # num_nodes
    F_IN = 4          # in_channels
    G = 8             # gcn_filter
    TF = 16           # time_filter
    T = 3             # num_time_steps (must be 3 so the dilated conv output broadcasts)
    NB_BLOCK = 2      # nb_st_block
    EMBED = 4         # MFDenseLayer embed_dim
    HID = 32          # MFDenseLayer hidden dim
    OUT = 2           # num_for_predict

    key = jax.random.PRNGKey(0)
    k_x, k_a, k_b1, k_b2, k_fc = jax.random.split(key, 5)

    x = jax.random.normal(k_x, (B, N, F_IN, T), jnp.float32)
    A = jax.random.uniform(k_a, (3, N, N), jnp.float32)

    block_params = [
        init_block_params(k_b1, F_IN, N, T, G, TF),   # first block: in_channels -> TF
        init_block_params(k_b2, TF, N, T, G, TF),     # later blocks: TF -> TF
    ][:NB_BLOCK]
    fc_params = init_fc_params(k_fc, N, EMBED, T * TF, HID, OUT)
    flat_params = prepare_params(block_params, fc_params, T=T, N=N)

    fwd = jax.jit(functools.partial(sta_mgcn_submodule_forward,
                                    flat_params=flat_params))
    out = jax.block_until_ready(fwd(x, A))
    assert out.shape == (B, N, OUT), out.shape
    print("KERNEL_OK")
</pallas_src>

<mosaic_0001>
module attributes {stable_mosaic.version = 11 : i64} {
  func.func @_fused_kernel(%arg0: i32, %arg1: memref<1x3x8x4xf32, #tpu.memory_space<vmem>>, %arg2: memref<24x8xf32, #tpu.memory_space<vmem>>, %arg3: memref<3x24xf32, #tpu.memory_space<vmem>>, %arg4: memref<4x8xf32, #tpu.memory_space<vmem>>, %arg5: memref<1x1x4xf32, #tpu.memory_space<vmem>>, %arg6: memref<3x3xf32, #tpu.memory_space<vmem>>, %arg7: memref<3x3xf32, #tpu.memory_space<vmem>>, %arg8: memref<3x4x8xf32, #tpu.memory_space<vmem>>, %arg9: memref<3x1x8xf32, #tpu.memory_space<vmem>>, %arg10: memref<3x8x16xf32, #tpu.memory_space<vmem>>, %arg11: memref<3x8x16xf32, #tpu.memory_space<vmem>>, %arg12: memref<1x16xf32, #tpu.memory_space<vmem>>, %arg13: memref<1x16xf32, #tpu.memory_space<vmem>>, %arg14: memref<4x16xf32, #tpu.memory_space<vmem>>, %arg15: memref<1x16xf32, #tpu.memory_space<vmem>>, %arg16: memref<1x16xf32, #tpu.memory_space<vmem>>, %arg17: memref<1x16xf32, #tpu.memory_space<vmem>>, %arg18: memref<3x24xf32, #tpu.memory_space<vmem>>, %arg19: memref<16x8xf32, #tpu.memory_space<vmem>>, %arg20: memref<1x1x16xf32, #tpu.memory_space<vmem>>, %arg21: memref<3x3xf32, #tpu.memory_space<vmem>>, %arg22: memref<3x3xf32, #tpu.memory_space<vmem>>, %arg23: memref<3x16x8xf32, #tpu.memory_space<vmem>>, %arg24: memref<3x1x8xf32, #tpu.memory_space<vmem>>, %arg25: memref<3x8x16xf32, #tpu.memory_space<vmem>>, %arg26: memref<3x8x16xf32, #tpu.memory_space<vmem>>, %arg27: memref<1x16xf32, #tpu.memory_space<vmem>>, %arg28: memref<1x16xf32, #tpu.memory_space<vmem>>, %arg29: memref<16x16xf32, #tpu.memory_space<vmem>>, %arg30: memref<1x16xf32, #tpu.memory_space<vmem>>, %arg31: memref<1x16xf32, #tpu.memory_space<vmem>>, %arg32: memref<1x16xf32, #tpu.memory_space<vmem>>, %arg33: memref<8x48x32xf32, #tpu.memory_space<vmem>>, %arg34: memref<8x1x32xf32, #tpu.memory_space<vmem>>, %arg35: memref<8x32x2xf32, #tpu.memory_space<vmem>>, %arg36: memref<8x1x2xf32, #tpu.memory_space<vmem>>, %arg37: memref<1x8x2xf32, #tpu.memory_space<vmem>>) attributes {dimension_semantics = [#tpu.dimension_semantics<parallel>], iteration_bounds = array<i64: 2>, scalar_prefetch = 0 : i64, scratch_operands = 0 : i64, tpu.core_type = #tpu.core_type<tc>, window_params = [{transform_indices = @transform_0, window_bounds = array<i64: 1, 3, 8, 4>}, {pipeline_mode = #tpu.pipeline_mode<synchronous>, transform_indices = @transform_1, window_bounds = array<i64: 24, 8>}, {pipeline_mode = #tpu.pipeline_mode<synchronous>, transform_indices = @transform_2, window_bounds = array<i64: 3, 24>}, {pipeline_mode = #tpu.pipeline_mode<synchronous>, transform_indices = @transform_3, window_bounds = array<i64: 4, 8>}, {pipeline_mode = #tpu.pipeline_mode<synchronous>, transform_indices = @transform_4, window_bounds = array<i64: 1, 1, 4>}, {pipeline_mode = #tpu.pipeline_mode<synchronous>, transform_indices = @transform_5, window_bounds = array<i64: 3, 3>}, {pipeline_mode = #tpu.pipeline_mode<synchronous>, transform_indices = @transform_6, window_bounds = array<i64: 3, 3>}, {pipeline_mode = #tpu.pipeline_mode<synchronous>, transform_indices = @transform_7, window_bounds = array<i64: 3, 4, 8>}, {pipeline_mode = #tpu.pipeline_mode<synchronous>, transform_indices = @transform_8, window_bounds = array<i64: 3, 1, 8>}, {pipeline_mode = #tpu.pipeline_mode<synchronous>, transform_indices = @transform_9, window_bounds = array<i64: 3, 8, 16>}, {pipeline_mode = #tpu.pipeline_mode<synchronous>, transform_indices = @transform_10, window_bounds = array<i64: 3, 8, 16>}, {pipeline_mode = #tpu.pipeline_mode<synchronous>, transform_indices = @transform_11, window_bounds = array<i64: 1, 16>}, {pipeline_mode = #tpu.pipeline_mode<synchronous>, transform_indices = @transform_12, window_bounds = array<i64: 1, 16>}, {pipeline_mode = #tpu.pipeline_mode<synchronous>, transform_indices = @transform_13, window_bounds = array<i64: 4, 16>}, {pipeline_mode = #tpu.pipeline_mode<synchronous>, transform_indices = @transform_14, window_bounds = array<i64: 1, 16>}, {pipeline_mode = #tpu.pipeline_mode<synchronous>, transform_indices = @transform_15, window_bounds = array<i64: 1, 16>}, {pipeline_mode = #tpu.pipeline_mode<synchronous>, transform_indices = @transform_16, window_bounds = array<i64: 1, 16>}, {pipeline_mode = #tpu.pipeline_mode<synchronous>, transform_indices = @transform_17, window_bounds = array<i64: 3, 24>}, {pipeline_mode = #tpu.pipeline_mode<synchronous>, transform_indices = @transform_18, window_bounds = array<i64: 16, 8>}, {pipeline_mode = #tpu.pipeline_mode<synchronous>, transform_indices = @transform_19, window_bounds = array<i64: 1, 1, 16>}, {pipeline_mode = #tpu.pipeline_mode<synchronous>, transform_indices = @transform_20, window_bounds = array<i64: 3, 3>}, {pipeline_mode = #tpu.pipeline_mode<synchronous>, transform_indices = @transform_21, window_bounds = array<i64: 3, 3>}, {pipeline_mode = #tpu.pipeline_mode<synchronous>, transform_indices = @transform_22, window_bounds = array<i64: 3, 16, 8>}, {pipeline_mode = #tpu.pipeline_mode<synchronous>, transform_indices = @transform_23, window_bounds = array<i64: 3, 1, 8>}, {pipeline_mode = #tpu.pipeline_mode<synchronous>, transform_indices = @transform_24, window_bounds = array<i64: 3, 8, 16>}, {pipeline_mode = #tpu.pipeline_mode<synchronous>, transform_indices = @transform_25, window_bounds = array<i64: 3, 8, 16>}, {pipeline_mode = #tpu.pipeline_mode<synchronous>, transform_indices = @transform_26, window_bounds = array<i64: 1, 16>}, {pipeline_mode = #tpu.pipeline_mode<synchronous>, transform_indices = @transform_27, window_bounds = array<i64: 1, 16>}, {pipeline_mode = #tpu.pipeline_mode<synchronous>, transform_indices = @transform_28, window_bounds = array<i64: 16, 16>}, {pipeline_mode = #tpu.pipeline_mode<synchronous>, transform_indices = @transform_29, window_bounds = array<i64: 1, 16>}, {pipeline_mode = #tpu.pipeline_mode<synchronous>, transform_indices = @transform_30, window_bounds = array<i64: 1, 16>}, {pipeline_mode = #tpu.pipeline_mode<synchronous>, transform_indices = @transform_31, window_bounds = array<i64: 1, 16>}, {pipeline_mode = #tpu.pipeline_mode<synchronous>, transform_indices = @transform_32, window_bounds = array<i64: 8, 48, 32>}, {pipeline_mode = #tpu.pipeline_mode<synchronous>, transform_indices = @transform_33, window_bounds = array<i64: 8, 1, 32>}, {pipeline_mode = #tpu.pipeline_mode<synchronous>, transform_indices = @transform_34, window_bounds = array<i64: 8, 32, 2>}, {pipeline_mode = #tpu.pipeline_mode<synchronous>, transform_indices = @transform_35, window_bounds = array<i64: 8, 1, 2>}, {transform_indices = @transform_36, window_bounds = array<i64: 1, 8, 2>}]} {
    %c0 = arith.constant 0 : index
    %c0_0 = arith.constant 0 : index
    %0 = vector.load %arg3[%c0, %c0_0] : memref<3x24xf32, #tpu.memory_space<vmem>>, vector<3x24xf32>
    %c0_1 = arith.constant 0 : index
    %c0_2 = arith.constant 0 : index
    %1 = vector.load %arg4[%c0_1, %c0_2] : memref<4x8xf32, #tpu.memory_space<vmem>>, vector<4x8xf32>
    %c0_3 = arith.constant 0 : index
    %c0_4 = arith.constant 0 : index
    %c0_5 = arith.constant 0 : index
    %2 = vector.load %arg5[%c0_3, %c0_4, %c0_5] : memref<1x1x4xf32, #tpu.memory_space<vmem>>, vector<1x1x4xf32>
    %c0_6 = arith.constant 0 : index
    %c0_7 = arith.constant 0 : index
    %3 = vector.load %arg6[%c0_6, %c0_7] : memref<3x3xf32, #tpu.memory_space<vmem>>, vector<3x3xf32>
    %c0_8 = arith.constant 0 : index
    %c0_9 = arith.constant 0 : index
    %4 = vector.load %arg7[%c0_8, %c0_9] : memref<3x3xf32, #tpu.memory_space<vmem>>, vector<3x3xf32>
    %c0_10 = arith.constant 0 : index
    %c0_11 = arith.constant 0 : index
    %c0_12 = arith.constant 0 : index
    %5 = vector.load %arg8[%c0_10, %c0_11, %c0_12] : memref<3x4x8xf32, #tpu.memory_space<vmem>>, vector<3x4x8xf32>
    %c0_13 = arith.constant 0 : index
    %c0_14 = arith.constant 0 : index
    %c0_15 = arith.constant 0 : index
    %6 = vector.load %arg9[%c0_13, %c0_14, %c0_15] : memref<3x1x8xf32, #tpu.memory_space<vmem>>, vector<3x1x8xf32>
    %c0_16 = arith.constant 0 : index
    %c0_17 = arith.constant 0 : index
    %c0_18 = arith.constant 0 : index
    %7 = vector.load %arg10[%c0_16, %c0_17, %c0_18] : memref<3x8x16xf32, #tpu.memory_space<vmem>>, vector<3x8x16xf32>
    %c0_19 = arith.constant 0 : index
    %c0_20 = arith.constant 0 : index
    %c0_21 = arith.constant 0 : index
    %8 = vector.load %arg11[%c0_19, %c0_20, %c0_21] : memref<3x8x16xf32, #tpu.memory_space<vmem>>, vector<3x8x16xf32>
    %c0_22 = arith.constant 0 : index
    %c0_23 = arith.constant 0 : index
    %9 = vector.load %arg12[%c0_22, %c0_23] : memref<1x16xf32, #tpu.memory_space<vmem>>, vector<1x16xf32>
    %c0_24 = arith.constant 0 : index
    %c0_25 = arith.constant 0 : index
    %10 = vector.load %arg13[%c0_24, %c0_25] : memref<1x16xf32, #tpu.memory_space<vmem>>, vector<1x16xf32>
    %c0_26 = arith.constant 0 : index
    %c0_27 = arith.constant 0 : index
    %11 = vector.load %arg14[%c0_26, %c0_27] : memref<4x16xf32, #tpu.memory_space<vmem>>, vector<4x16xf32>
    %c0_28 = arith.constant 0 : index
    %c0_29 = arith.constant 0 : index
    %12 = vector.load %arg15[%c0_28, %c0_29] : memref<1x16xf32, #tpu.memory_space<vmem>>, vector<1x16xf32>
    %c0_30 = arith.constant 0 : index
    %c0_31 = arith.constant 0 : index
    %13 = vector.load %arg16[%c0_30, %c0_31] : memref<1x16xf32, #tpu.memory_space<vmem>>, vector<1x16xf32>
    %c0_32 = arith.constant 0 : index
    %c0_33 = arith.constant 0 : index
    %14 = vector.load %arg17[%c0_32, %c0_33] : memref<1x16xf32, #tpu.memory_space<vmem>>, vector<1x16xf32>
    %c0_34 = arith.constant 0 : index
    %c0_35 = arith.constant 0 : index
    %15 = vector.load %arg18[%c0_34, %c0_35] : memref<3x24xf32, #tpu.memory_space<vmem>>, vector<3x24xf32>
    %c0_36 = arith.constant 0 : index
    %c0_37 = arith.constant 0 : index
    %16 = vector.load %arg19[%c0_36, %c0_37] : memref<16x8xf32, #tpu.memory_space<vmem>>, vector<16x8xf32>
    %c0_38 = arith.constant 0 : index
    %c0_39 = arith.constant 0 : index
    %c0_40 = arith.constant 0 : index
    %17 = vector.load %arg20[%c0_38, %c0_39, %c0_40] : memref<1x1x16xf32, #tpu.memory_space<vmem>>, vector<1x1x16xf32>
    %c0_41 = arith.constant 0 : index
    %c0_42 = arith.constant 0 : index
    %18 = vector.load %arg21[%c0_41, %c0_42] : memref<3x3xf32, #tpu.memory_space<vmem>>, vector<3x3xf32>
    %c0_43 = arith.constant 0 : index
    %c0_44 = arith.constant 0 : index
    %19 = vector.load %arg22[%c0_43, %c0_44] : memref<3x3xf32, #tpu.memory_space<vmem>>, vector<3x3xf32>
    %c0_45 = arith.constant 0 : index
    %c0_46 = arith.constant 0 : index
    %c0_47 = arith.constant 0 : index
    %20 = vector.load %arg23[%c0_45, %c0_46, %c0_47] : memref<3x16x8xf32, #tpu.memory_space<vmem>>, vector<3x16x8xf32>
    %c0_48 = arith.constant 0 : index
    %c0_49 = arith.constant 0 : index
    %c0_50 = arith.constant 0 : index
    %21 = vector.load %arg24[%c0_48, %c0_49, %c0_50] : memref<3x1x8xf32, #tpu.memory_space<vmem>>, vector<3x1x8xf32>
    %c0_51 = arith.constant 0 : index
    %c0_52 = arith.constant 0 : index
    %c0_53 = arith.constant 0 : index
    %22 = vector.load %arg25[%c0_51, %c0_52, %c0_53] : memref<3x8x16xf32, #tpu.memory_space<vmem>>, vector<3x8x16xf32>
    %c0_54 = arith.constant 0 : index
    %c0_55 = arith.constant 0 : index
    %c0_56 = arith.constant 0 : index
    %23 = vector.load %arg26[%c0_54, %c0_55, %c0_56] : memref<3x8x16xf32, #tpu.memory_space<vmem>>, vector<3x8x16xf32>
    %c0_57 = arith.constant 0 : index
    %c0_58 = arith.constant 0 : index
    %24 = vector.load %arg27[%c0_57, %c0_58] : memref<1x16xf32, #tpu.memory_space<vmem>>, vector<1x16xf32>
    %c0_59 = arith.constant 0 : index
    %c0_60 = arith.constant 0 : index
    %25 = vector.load %arg28[%c0_59, %c0_60] : memref<1x16xf32, #tpu.memory_space<vmem>>, vector<1x16xf32>
    %c0_61 = arith.constant 0 : index
    %c0_62 = arith.constant 0 : index
    %26 = vector.load %arg29[%c0_61, %c0_62] : memref<16x16xf32, #tpu.memory_space<vmem>>, vector<16x16xf32>
    %c0_63 = arith.constant 0 : index
    %c0_64 = arith.constant 0 : index
    %27 = vector.load %arg30[%c0_63, %c0_64] : memref<1x16xf32, #tpu.memory_space<vmem>>, vector<1x16xf32>
    %c0_65 = arith.constant 0 : index
    %c0_66 = arith.constant 0 : index
    %28 = vector.load %arg31[%c0_65, %c0_66] : memref<1x16xf32, #tpu.memory_space<vmem>>, vector<1x16xf32>
    %c0_67 = arith.constant 0 : index
    %c0_68 = arith.constant 0 : index
    %29 = vector.load %arg32[%c0_67, %c0_68] : memref<1x16xf32, #tpu.memory_space<vmem>>, vector<1x16xf32>
    %c0_69 = arith.constant 0 : index
    %c0_70 = arith.constant 0 : index
    %c0_71 = arith.constant 0 : index
    %c0_72 = arith.constant 0 : index
    %30 = vector.load %arg1[%c0_69, %c0_70, %c0_71, %c0_72] : memref<1x3x8x4xf32, #tpu.memory_space<vmem>>, vector<1x3x8x4xf32>
    %31 = vector.shape_cast %30 : vector<1x3x8x4xf32> to vector<3x8x4xf32>
    %c0_73 = arith.constant 0 : index
    %c0_74 = arith.constant 0 : index
    %32 = vector.load %arg2[%c0_73, %c0_74] : memref<24x8xf32, #tpu.memory_space<vmem>>, vector<24x8xf32>
    %33 = vector.shape_cast %31 : vector<3x8x4xf32> to vector<24x4xf32>
    %cst = arith.constant dense<0.000000e+00> : vector<3x4xf32>
    %34 = tpu.matmul %0, %33, %cst {dimension_numbers = #tpu.dot_dimension_numbers<[1], [0], [0], [1], [0, 0, 1, 1], [], []>} : vector<3x24xf32>, vector<24x4xf32>, vector<3x4xf32> -> vector<3x4xf32>
    %cst_75 = arith.constant dense<0.000000e+00> : vector<3x8xf32>
    %35 = tpu.matmul %34, %1, %cst_75 {dimension_numbers = #tpu.dot_dimension_numbers<[1], [0], [0], [1], [0, 0, 1, 1], [], []>} : vector<3x4xf32>, vector<4x8xf32>, vector<3x8xf32> -> vector<3x8xf32>
    %36 = vector.broadcast %2 : vector<1x1x4xf32> to vector<3x8x4xf32>
    %37 = arith.mulf %31, %36 : vector<3x8x4xf32>
    %cst_76 = arith.constant dense<0.000000e+00> : vector<3x8xf32>
    %38 = vector.multi_reduction <add>, %37, %cst_76 [2] : vector<3x8x4xf32> to vector<3x8xf32>
    %cst_77 = arith.constant dense<0.000000e+00> : vector<3x3xf32>
    %39 = tpu.matmul %35, %38, %cst_77 {dimension_numbers = #tpu.dot_dimension_numbers<[1], [1], [0], [0], [0, 0, 1, 0], [], []>} : vector<3x8xf32>, vector<3x8xf32>, vector<3x3xf32> -> vector<3x3xf32>
    %40 = arith.addf %39, %3 : vector<3x3xf32>
    %41 = arith.negf %40 : vector<3x3xf32>
    %42 = math.exp %41 : vector<3x3xf32>
    %cst_78 = arith.constant 1.000000e+00 : f32
    %43 = vector.broadcast %cst_78 : f32 to vector<3x3xf32>
    %44 = arith.addf %43, %42 : vector<3x3xf32>
    %45 = arith.divf %43, %44 : vector<3x3xf32>
    %cst_79 = arith.constant dense<0.000000e+00> : vector<3x3xf32>
    %46 = tpu.matmul %4, %45, %cst_79 {dimension_numbers = #tpu.dot_dimension_numbers<[1], [0], [0], [1], [0, 0, 1, 1], [], []>} : vector<3x3xf32>, vector<3x3xf32>, vector<3x3xf32> -> vector<3x3xf32>
    %cst_80 = arith.constant dense<0xFF800000> : vector<3xf32>
    %47 = vector.multi_reduction <maximumf>, %46, %cst_80 [0] : vector<3x3xf32> to vector<3xf32>
    %48 = vector.shape_cast %47 : vector<3xf32> to vector<1x3xf32>
    %49 = vector.broadcast %48 : vector<1x3xf32> to vector<3x3xf32>
    %50 = arith.subf %46, %49 : vector<3x3xf32>
    %51 = math.exp %50 : vector<3x3xf32>
    %cst_81 = arith.constant dense<0.000000e+00> : vector<3xf32>
    %52 = vector.multi_reduction <add>, %51, %cst_81 [0] : vector<3x3xf32> to vector<3xf32>
    %53 = vector.shape_cast %52 : vector<3xf32> to vector<1x3xf32>
    %54 = vector.broadcast %53 : vector<1x3xf32> to vector<3x3xf32>
    %55 = arith.divf %51, %54 : vector<3x3xf32>
    %56 = vector.extract_strided_slice %31 {offsets = [0, 0, 0], sizes = [1, 8, 4], strides = [1, 1, 1]} : vector<3x8x4xf32> to vector<1x8x4xf32>
    %57 = vector.shape_cast %56 : vector<1x8x4xf32> to vector<8x4xf32>
    %58 = vector.extract_strided_slice %55 {offsets = [0, 1], sizes = [1, 1], strides = [1, 1]} : vector<3x3xf32> to vector<1x1xf32>
    %59 = vector.broadcast %58 : vector<1x1xf32> to vector<8x4xf32>
    %60 = arith.mulf %57, %59 : vector<8x4xf32>
    %61 = vector.extract_strided_slice %31 {offsets = [1, 0, 0], sizes = [1, 8, 4], strides = [1, 1, 1]} : vector<3x8x4xf32> to vector<1x8x4xf32>
    %62 = vector.shape_cast %61 : vector<1x8x4xf32> to vector<8x4xf32>
    %63 = vector.extract_strided_slice %55 {offsets = [1, 1], sizes = [1, 1], strides = [1, 1]} : vector<3x3xf32> to vector<1x1xf32>
    %64 = vector.broadcast %63 : vector<1x1xf32> to vector<8x4xf32>
    %65 = arith.mulf %62, %64 : vector<8x4xf32>
    %66 = arith.addf %60, %65 : vector<8x4xf32>
    %67 = vector.extract_strided_slice %31 {offsets = [2, 0, 0], sizes = [1, 8, 4], strides = [1, 1, 1]} : vector<3x8x4xf32> to vector<1x8x4xf32>
    %68 = vector.shape_cast %67 : vector<1x8x4xf32> to vector<8x4xf32>
    %69 = vector.extract_strided_slice %55 {offsets = [2, 1], sizes = [1, 1], strides = [1, 1]} : vector<3x3xf32> to vector<1x1xf32>
    %70 = vector.broadcast %69 : vector<1x1xf32> to vector<8x4xf32>
    %71 = arith.mulf %68, %70 : vector<8x4xf32>
    %72 = arith.addf %66, %71 : vector<8x4xf32>
    %cst_82 = arith.constant dense<0.000000e+00> : vector<24x4xf32>
    %73 = tpu.matmul %32, %72, %cst_82 {dimension_numbers = #tpu.dot_dimension_numbers<[1], [0], [0], [1], [0, 0, 1, 1], [], []>} : vector<24x8xf32>, vector<8x4xf32>, vector<24x4xf32> -> vector<24x4xf32>
    %74 = vector.shape_cast %73 : vector<24x4xf32> to vector<3x8x4xf32>
    "tpu.trace_start"() <{level = 10 : i32, message = "inc,icg->ing"}> : () -> ()
    %cst_83 = arith.constant dense<0.000000e+00> : vector<3x8x8xf32>
    %75 = tpu.matmul %74, %5, %cst_83 {dimension_numbers = #tpu.dot_dimension_numbers<[2], [1], [1], [2], [0, 0, 0, 1, 1, 2], [0], [0]>} : vector<3x8x4xf32>, vector<3x4x8xf32>, vector<3x8x8xf32> -> vector<3x8x8xf32>
    "tpu.trace_stop"() : () -> ()
    %76 = vector.broadcast %6 : vector<3x1x8xf32> to vector<3x8x8xf32>
    %77 = arith.addf %75, %76 : vector<3x8x8xf32>
    %cst_84 = arith.constant 0.000000e+00 : f32
    %78 = vector.broadcast %cst_84 : f32 to vector<3x8x8xf32>
    %79 = arith.maximumf %77, %78 : vector<3x8x8xf32>
    %cst_85 = arith.constant dense<0.000000e+00> : vector<8x8xf32>
    %80 = vector.multi_reduction <add>, %79, %cst_85 [0] : vector<3x8x8xf32> to vector<8x8xf32>
    %cst_86 = arith.constant 0.000000e+00 : f32
    %81 = vector.broadcast %cst_86 : f32 to vector<8x16xf32>
    %cst_87 = arith.constant 0.000000e+00 : f32
    %82 = vector.broadcast %cst_87 : f32 to vector<8x16xf32>
    %83 = vector.extract_strided_slice %7 {offsets = [1, 0, 0], sizes = [1, 8, 16], strides = [1, 1, 1]} : vector<3x8x16xf32> to vector<1x8x16xf32>
    %84 = vector.shape_cast %83 : vector<1x8x16xf32> to vector<8x16xf32>
    %cst_88 = arith.constant dense<0.000000e+00> : vector<8x16xf32>
    %85 = tpu.matmul %80, %84, %cst_88 {dimension_numbers = #tpu.dot_dimension_numbers<[1], [0], [0], [1], [0, 0, 1, 1], [], []>} : vector<8x8xf32>, vector<8x16xf32>, vector<8x16xf32> -> vector<8x16xf32>
    %86 = arith.addf %81, %85 : vector<8x16xf32>
    %87 = vector.extract_strided_slice %8 {offsets = [1, 0, 0], sizes = [1, 8, 16], strides = [1, 1, 1]} : vector<3x8x16xf32> to vector<1x8x16xf32>
    %88 = vector.shape_cast %87 : vector<1x8x16xf32> to vector<8x16xf32>
    %cst_89 = arith.constant dense<0.000000e+00> : vector<8x16xf32>
    %89 = tpu.matmul %80, %88, %cst_89 {dimension_numbers = #tpu.dot_dimension_numbers<[1], [0], [0], [1], [0, 0, 1, 1], [], []>} : vector<8x8xf32>, vector<8x16xf32>, vector<8x16xf32> -> vector<8x16xf32>
    %90 = arith.addf %82, %89 : vector<8x16xf32>
    %91 = vector.broadcast %9 : vector<1x16xf32> to vector<8x16xf32>
    %92 = arith.addf %86, %91 : vector<8x16xf32>
    %93 = math.tanh %92 : vector<8x16xf32>
    %94 = vector.broadcast %10 : vector<1x16xf32> to vector<8x16xf32>
    %95 = arith.addf %90, %94 : vector<8x16xf32>
    %96 = arith.negf %95 : vector<8x16xf32>
    %97 = math.exp %96 : vector<8x16xf32>
    %cst_90 = arith.constant 1.000000e+00 : f32
    %98 = vector.broadcast %cst_90 : f32 to vector<8x16xf32>
    %99 = arith.addf %98, %97 : vector<8x16xf32>
    %100 = arith.divf %98, %99 : vector<8x16xf32>
    %101 = arith.mulf %93, %100 : vector<8x16xf32>
    %102 = vector.extract_strided_slice %31 {offsets = [0, 0, 0], sizes = [1, 8, 4], strides = [1, 1, 1]} : vector<3x8x4xf32> to vector<1x8x4xf32>
    %103 = vector.shape_cast %102 : vector<1x8x4xf32> to vector<8x4xf32>
    %cst_91 = arith.constant dense<0.000000e+00> : vector<8x16xf32>
    %104 = tpu.matmul %103, %11, %cst_91 {dimension_numbers = #tpu.dot_dimension_numbers<[1], [0], [0], [1], [0, 0, 1, 1], [], []>} : vector<8x4xf32>, vector<4x16xf32>, vector<8x16xf32> -> vector<8x16xf32>
    %105 = vector.broadcast %12 : vector<1x16xf32> to vector<8x16xf32>
    %106 = arith.addf %104, %105 : vector<8x16xf32>
    %107 = arith.addf %106, %101 : vector<8x16xf32>
    %cst_92 = arith.constant 0.000000e+00 : f32
    %108 = vector.broadcast %cst_92 : f32 to vector<8x16xf32>
    %109 = arith.maximumf %107, %108 : vector<8x16xf32>
    %cst_93 = arith.constant dense<0.000000e+00> : vector<8xf32>
    %110 = vector.multi_reduction <add>, %109, %cst_93 [1] : vector<8x16xf32> to vector<8xf32>
    %111 = vector.shape_cast %110 : vector<8xf32> to vector<8x1xf32>
    %cst_94 = arith.constant 1.600000e+01 : f32
    %112 = vector.broadcast %cst_94 : f32 to vector<8x1xf32>
    %113 = arith.divf %111, %112 : vector<8x1xf32>
    %114 = vector.broadcast %113 : vector<8x1xf32> to vector<8x16xf32>
    %115 = arith.subf %109, %114 : vector<8x16xf32>
    %116 = arith.mulf %115, %115 : vector<8x16xf32>
    %cst_95 = arith.constant dense<0.000000e+00> : vector<8xf32>
    %117 = vector.multi_reduction <add>, %116, %cst_95 [1] : vector<8x16xf32> to vector<8xf32>
    %118 = vector.shape_cast %117 : vector<8xf32> to vector<8x1xf32>
    %cst_96 = arith.constant 1.600000e+01 : f32
    %119 = vector.broadcast %cst_96 : f32 to vector<8x1xf32>
    %120 = arith.divf %118, %119 : vector<8x1xf32>
    %121 = vector.broadcast %113 : vector<8x1xf32> to vector<8x16xf32>
    %122 = arith.subf %109, %121 : vector<8x16xf32>
    %cst_97 = arith.constant 9.99999974E-6 : f32
    %123 = vector.broadcast %cst_97 : f32 to vector<8x1xf32>
    %124 = arith.addf %120, %123 : vector<8x1xf32>
    %125 = math.rsqrt %124 : vector<8x1xf32>
    %126 = vector.broadcast %125 : vector<8x1xf32> to vector<8x16xf32>
    %127 = arith.mulf %122, %126 : vector<8x16xf32>
    %128 = vector.broadcast %13 : vector<1x16xf32> to vector<8x16xf32>
    %129 = arith.mulf %127, %128 : vector<8x16xf32>
    %130 = vector.broadcast %14 : vector<1x16xf32> to vector<8x16xf32>
    %131 = arith.addf %129, %130 : vector<8x16xf32>
    %132 = vector.extract_strided_slice %31 {offsets = [1, 0, 0], sizes = [1, 8, 4], strides = [1, 1, 1]} : vector<3x8x4xf32> to vector<1x8x4xf32>
    %133 = vector.shape_cast %132 : vector<1x8x4xf32> to vector<8x4xf32>
    %cst_98 = arith.constant dense<0.000000e+00> : vector<8x16xf32>
    %134 = tpu.matmul %133, %11, %cst_98 {dimension_numbers = #tpu.dot_dimension_numbers<[1], [0], [0], [1], [0, 0, 1, 1], [], []>} : vector<8x4xf32>, vector<4x16xf32>, vector<8x16xf32> -> vector<8x16xf32>
    %135 = vector.broadcast %12 : vector<1x16xf32> to vector<8x16xf32>
    %136 = arith.addf %134, %135 : vector<8x16xf32>
    %137 = arith.addf %136, %101 : vector<8x16xf32>
    %cst_99 = arith.constant 0.000000e+00 : f32
    %138 = vector.broadcast %cst_99 : f32 to vector<8x16xf32>
    %139 = arith.maximumf %137, %138 : vector<8x16xf32>
    %cst_100 = arith.constant dense<0.000000e+00> : vector<8xf32>
    %140 = vector.multi_reduction <add>, %139, %cst_100 [1] : vector<8x16xf32> to vector<8xf32>
    %141 = vector.shape_cast %140 : vector<8xf32> to vector<8x1xf32>
    %cst_101 = arith.constant 1.600000e+01 : f32
    %142 = vector.broadcast %cst_101 : f32 to vector<8x1xf32>
    %143 = arith.divf %141, %142 : vector<8x1xf32>
    %144 = vector.broadcast %143 : vector<8x1xf32> to vector<8x16xf32>
    %145 = arith.subf %139, %144 : vector<8x16xf32>
    %146 = arith.mulf %145, %145 : vector<8x16xf32>
    %cst_102 = arith.constant dense<0.000000e+00> : vector<8xf32>
    %147 = vector.multi_reduction <add>, %146, %cst_102 [1] : vector<8x16xf32> to vector<8xf32>
    %148 = vector.shape_cast %147 : vector<8xf32> to vector<8x1xf32>
    %cst_103 = arith.constant 1.600000e+01 : f32
    %149 = vector.broadcast %cst_103 : f32 to vector<8x1xf32>
    %150 = arith.divf %148, %149 : vector<8x1xf32>
    %151 = vector.broadcast %143 : vector<8x1xf32> to vector<8x16xf32>
    %152 = arith.subf %139, %151 : vector<8x16xf32>
    %cst_104 = arith.constant 9.99999974E-6 : f32
    %153 = vector.broadcast %cst_104 : f32 to vector<8x1xf32>
    %154 = arith.addf %150, %153 : vector<8x1xf32>
    %155 = math.rsqrt %154 : vector<8x1xf32>
    %156 = vector.broadcast %155 : vector<8x1xf32> to vector<8x16xf32>
    %157 = arith.mulf %152, %156 : vector<8x16xf32>
    %158 = vector.broadcast %13 : vector<1x16xf32> to vector<8x16xf32>
    %159 = arith.mulf %157, %158 : vector<8x16xf32>
    %160 = vector.broadcast %14 : vector<1x16xf32> to vector<8x16xf32>
    %161 = arith.addf %159, %160 : vector<8x16xf32>
    %162 = vector.extract_strided_slice %31 {offsets = [2, 0, 0], sizes = [1, 8, 4], strides = [1, 1, 1]} : vector<3x8x4xf32> to vector<1x8x4xf32>
    %163 = vector.shape_cast %162 : vector<1x8x4xf32> to vector<8x4xf32>
    %cst_105 = arith.constant dense<0.000000e+00> : vector<8x16xf32>
    %164 = tpu.matmul %163, %11, %cst_105 {dimension_numbers = #tpu.dot_dimension_numbers<[1], [0], [0], [1], [0, 0, 1, 1], [], []>} : vector<8x4xf32>, vector<4x16xf32>, vector<8x16xf32> -> vector<8x16xf32>
    %165 = vector.broadcast %12 : vector<1x16xf32> to vector<8x16xf32>
    %166 = arith.addf %164, %165 : vector<8x16xf32>
    %167 = arith.addf %166, %101 : vector<8x16xf32>
    %cst_106 = arith.constant 0.000000e+00 : f32
    %168 = vector.broadcast %cst_106 : f32 to vector<8x16xf32>
    %169 = arith.maximumf %167, %168 : vector<8x16xf32>
    %cst_107 = arith.constant dense<0.000000e+00> : vector<8xf32>
    %170 = vector.multi_reduction <add>, %169, %cst_107 [1] : vector<8x16xf32> to vector<8xf32>
    %171 = vector.shape_cast %170 : vector<8xf32> to vector<8x1xf32>
    %cst_108 = arith.constant 1.600000e+01 : f32
    %172 = vector.broadcast %cst_108 : f32 to vector<8x1xf32>
    %173 = arith.divf %171, %172 : vector<8x1xf32>
    %174 = vector.broadcast %173 : vector<8x1xf32> to vector<8x16xf32>
    %175 = arith.subf %169, %174 : vector<8x16xf32>
    %176 = arith.mulf %175, %175 : vector<8x16xf32>
    %cst_109 = arith.constant dense<0.000000e+00> : vector<8xf32>
    %177 = vector.multi_reduction <add>, %176, %cst_109 [1] : vector<8x16xf32> to vector<8xf32>
    %178 = vector.shape_cast %177 : vector<8xf32> to vector<8x1xf32>
    %cst_110 = arith.constant 1.600000e+01 : f32
    %179 = vector.broadcast %cst_110 : f32 to vector<8x1xf32>
    %180 = arith.divf %178, %179 : vector<8x1xf32>
    %181 = vector.broadcast %173 : vector<8x1xf32> to vector<8x16xf32>
    %182 = arith.subf %169, %181 : vector<8x16xf32>
    %cst_111 = arith.constant 9.99999974E-6 : f32
    %183 = vector.broadcast %cst_111 : f32 to vector<8x1xf32>
    %184 = arith.addf %180, %183 : vector<8x1xf32>
    %185 = math.rsqrt %184 : vector<8x1xf32>
    %186 = vector.broadcast %185 : vector<8x1xf32> to vector<8x16xf32>
    %187 = arith.mulf %182, %186 : vector<8x16xf32>
    %188 = vector.broadcast %13 : vector<1x16xf32> to vector<8x16xf32>
    %189 = arith.mulf %187, %188 : vector<8x16xf32>
    %190 = vector.broadcast %14 : vector<1x16xf32> to vector<8x16xf32>
    %191 = arith.addf %189, %190 : vector<8x16xf32>
    %192 = vector.shape_cast %131 : vector<8x16xf32> to vector<1x8x16xf32>
    %193 = vector.shape_cast %161 : vector<8x16xf32> to vector<1x8x16xf32>
    %194 = vector.shape_cast %191 : vector<8x16xf32> to vector<1x8x16xf32>
    %195 = tpu.concatenate %192, %193, %194 in 0 : vector<1x8x16xf32>, vector<1x8x16xf32>, vector<1x8x16xf32> -> vector<3x8x16xf32>
    %196 = vector.shape_cast %195 : vector<3x8x16xf32> to vector<24x16xf32>
    %cst_112 = arith.constant dense<0.000000e+00> : vector<3x16xf32>
    %197 = tpu.matmul %15, %196, %cst_112 {dimension_numbers = #tpu.dot_dimension_numbers<[1], [0], [0], [1], [0, 0, 1, 1], [], []>} : vector<3x24xf32>, vector<24x16xf32>, vector<3x16xf32> -> vector<3x16xf32>
    %cst_113 = arith.constant dense<0.000000e+00> : vector<3x8xf32>
    %198 = tpu.matmul %197, %16, %cst_113 {dimension_numbers = #tpu.dot_dimension_numbers<[1], [0], [0], [1], [0, 0, 1, 1], [], []>} : vector<3x16xf32>, vector<16x8xf32>, vector<3x8xf32> -> vector<3x8xf32>
    %199 = vector.broadcast %17 : vector<1x1x16xf32> to vector<3x8x16xf32>
    %200 = arith.mulf %195, %199 : vector<3x8x16xf32>
    %cst_114 = arith.constant dense<0.000000e+00> : vector<3x8xf32>
    %201 = vector.multi_reduction <add>, %200, %cst_114 [2] : vector<3x8x16xf32> to vector<3x8xf32>
    %cst_115 = arith.constant dense<0.000000e+00> : vector<3x3xf32>
    %202 = tpu.matmul %198, %201, %cst_115 {dimension_numbers = #tpu.dot_dimension_numbers<[1], [1], [0], [0], [0, 0, 1, 0], [], []>} : vector<3x8xf32>, vector<3x8xf32>, vector<3x3xf32> -> vector<3x3xf32>
    %203 = arith.addf %202, %18 : vector<3x3xf32>
    %204 = arith.negf %203 : vector<3x3xf32>
    %205 = math.exp %204 : vector<3x3xf32>
    %cst_116 = arith.constant 1.000000e+00 : f32
    %206 = vector.broadcast %cst_116 : f32 to vector<3x3xf32>
    %207 = arith.addf %206, %205 : vector<3x3xf32>
    %208 = arith.divf %206, %207 : vector<3x3xf32>
    %cst_117 = arith.constant dense<0.000000e+00> : vector<3x3xf32>
    %209 = tpu.matmul %19, %208, %cst_117 {dimension_numbers = #tpu.dot_dimension_numbers<[1], [0], [0], [1], [0, 0, 1, 1], [], []>} : vector<3x3xf32>, vector<3x3xf32>, vector<3x3xf32> -> vector<3x3xf32>
    %cst_118 = arith.constant dense<0xFF800000> : vector<3xf32>
    %210 = vector.multi_reduction <maximumf>, %209, %cst_118 [0] : vector<3x3xf32> to vector<3xf32>
    %211 = vector.shape_cast %210 : vector<3xf32> to vector<1x3xf32>
    %212 = vector.broadcast %211 : vector<1x3xf32> to vector<3x3xf32>
    %213 = arith.subf %209, %212 : vector<3x3xf32>
    %214 = math.exp %213 : vector<3x3xf32>
    %cst_119 = arith.constant dense<0.000000e+00> : vector<3xf32>
    %215 = vector.multi_reduction <add>, %214, %cst_119 [0] : vector<3x3xf32> to vector<3xf32>
    %216 = vector.shape_cast %215 : vector<3xf32> to vector<1x3xf32>
    %217 = vector.broadcast %216 : vector<1x3xf32> to vector<3x3xf32>
    %218 = arith.divf %214, %217 : vector<3x3xf32>
    %219 = vector.extract_strided_slice %195 {offsets = [0, 0, 0], sizes = [1, 8, 16], strides = [1, 1, 1]} : vector<3x8x16xf32> to vector<1x8x16xf32>
    %220 = vector.shape_cast %219 : vector<1x8x16xf32> to vector<8x16xf32>
    %221 = vector.extract_strided_slice %218 {offsets = [0, 1], sizes = [1, 1], strides = [1, 1]} : vector<3x3xf32> to vector<1x1xf32>
    %222 = vector.broadcast %221 : vector<1x1xf32> to vector<8x16xf32>
    %223 = arith.mulf %220, %222 : vector<8x16xf32>
    %224 = vector.extract_strided_slice %195 {offsets = [1, 0, 0], sizes = [1, 8, 16], strides = [1, 1, 1]} : vector<3x8x16xf32> to vector<1x8x16xf32>
    %225 = vector.shape_cast %224 : vector<1x8x16xf32> to vector<8x16xf32>
    %226 = vector.extract_strided_slice %218 {offsets = [1, 1], sizes = [1, 1], strides = [1, 1]} : vector<3x3xf32> to vector<1x1xf32>
    %227 = vector.broadcast %226 : vector<1x1xf32> to vector<8x16xf32>
    %228 = arith.mulf %225, %227 : vector<8x16xf32>
    %229 = arith.addf %223, %228 : vector<8x16xf32>
    %230 = vector.extract_strided_slice %195 {offsets = [2, 0, 0], sizes = [1, 8, 16], strides = [1, 1, 1]} : vector<3x8x16xf32> to vector<1x8x16xf32>
    %231 = vector.shape_cast %230 : vector<1x8x16xf32> to vector<8x16xf32>
    %232 = vector.extract_strided_slice %218 {offsets = [2, 1], sizes = [1, 1], strides = [1, 1]} : vector<3x3xf32> to vector<1x1xf32>
    %233 = vector.broadcast %232 : vector<1x1xf32> to vector<8x16xf32>
    %234 = arith.mulf %231, %233 : vector<8x16xf32>
    %235 = arith.addf %229, %234 : vector<8x16xf32>
    %cst_120 = arith.constant dense<0.000000e+00> : vector<24x16xf32>
    %236 = tpu.matmul %32, %235, %cst_120 {dimension_numbers = #tpu.dot_dimension_numbers<[1], [0], [0], [1], [0, 0, 1, 1], [], []>} : vector<24x8xf32>, vector<8x16xf32>, vector<24x16xf32> -> vector<24x16xf32>
    %237 = vector.shape_cast %236 : vector<24x16xf32> to vector<3x8x16xf32>
    "tpu.trace_start"() <{level = 10 : i32, message = "inc,icg->ing"}> : () -> ()
    %cst_121 = arith.constant dense<0.000000e+00> : vector<3x8x8xf32>
    %238 = tpu.matmul %237, %20, %cst_121 {dimension_numbers = #tpu.dot_dimension_numbers<[2], [1], [1], [2], [0, 0, 0, 1, 1, 2], [0], [0]>} : vector<3x8x16xf32>, vector<3x16x8xf32>, vector<3x8x8xf32> -> vector<3x8x8xf32>
    "tpu.trace_stop"() : () -> ()
    %239 = vector.broadcast %21 : vector<3x1x8xf32> to vector<3x8x8xf32>
    %240 = arith.addf %238, %239 : vector<3x8x8xf32>
    %cst_122 = arith.constant 0.000000e+00 : f32
    %241 = vector.broadcast %cst_122 : f32 to vector<3x8x8xf32>
    %242 = arith.maximumf %240, %241 : vector<3x8x8xf32>
    %cst_123 = arith.constant dense<0.000000e+00> : vector<8x8xf32>
    %243 = vector.multi_reduction <add>, %242, %cst_123 [0] : vector<3x8x8xf32> to vector<8x8xf32>
    %cst_124 = arith.constant 0.000000e+00 : f32
    %244 = vector.broadcast %cst_124 : f32 to vector<8x16xf32>
    %cst_125 = arith.constant 0.000000e+00 : f32
    %245 = vector.broadcast %cst_125 : f32 to vector<8x16xf32>
    %246 = vector.extract_strided_slice %22 {offsets = [1, 0, 0], sizes = [1, 8, 16], strides = [1, 1, 1]} : vector<3x8x16xf32> to vector<1x8x16xf32>
    %247 = vector.shape_cast %246 : vector<1x8x16xf32> to vector<8x16xf32>
    %cst_126 = arith.constant dense<0.000000e+00> : vector<8x16xf32>
    %248 = tpu.matmul %243, %247, %cst_126 {dimension_numbers = #tpu.dot_dimension_numbers<[1], [0], [0], [1], [0, 0, 1, 1], [], []>} : vector<8x8xf32>, vector<8x16xf32>, vector<8x16xf32> -> vector<8x16xf32>
    %249 = arith.addf %244, %248 : vector<8x16xf32>
    %250 = vector.extract_strided_slice %23 {offsets = [1, 0, 0], sizes = [1, 8, 16], strides = [1, 1, 1]} : vector<3x8x16xf32> to vector<1x8x16xf32>
    %251 = vector.shape_cast %250 : vector<1x8x16xf32> to vector<8x16xf32>
    %cst_127 = arith.constant dense<0.000000e+00> : vector<8x16xf32>
    %252 = tpu.matmul %243, %251, %cst_127 {dimension_numbers = #tpu.dot_dimension_numbers<[1], [0], [0], [1], [0, 0, 1, 1], [], []>} : vector<8x8xf32>, vector<8x16xf32>, vector<8x16xf32> -> vector<8x16xf32>
    %253 = arith.addf %245, %252 : vector<8x16xf32>
    %254 = vector.broadcast %24 : vector<1x16xf32> to vector<8x16xf32>
    %255 = arith.addf %249, %254 : vector<8x16xf32>
    %256 = math.tanh %255 : vector<8x16xf32>
    %257 = vector.broadcast %25 : vector<1x16xf32> to vector<8x16xf32>
    %258 = arith.addf %253, %257 : vector<8x16xf32>
    %259 = arith.negf %258 : vector<8x16xf32>
    %260 = math.exp %259 : vector<8x16xf32>
    %cst_128 = arith.constant 1.000000e+00 : f32
    %261 = vector.broadcast %cst_128 : f32 to vector<8x16xf32>
    %262 = arith.addf %261, %260 : vector<8x16xf32>
    %263 = arith.divf %261, %262 : vector<8x16xf32>
    %264 = arith.mulf %256, %263 : vector<8x16xf32>
    %265 = vector.extract_strided_slice %195 {offsets = [0, 0, 0], sizes = [1, 8, 16], strides = [1, 1, 1]} : vector<3x8x16xf32> to vector<1x8x16xf32>
    %266 = vector.shape_cast %265 : vector<1x8x16xf32> to vector<8x16xf32>
    %cst_129 = arith.constant dense<0.000000e+00> : vector<8x16xf32>
    %267 = tpu.matmul %266, %26, %cst_129 {dimension_numbers = #tpu.dot_dimension_numbers<[1], [0], [0], [1], [0, 0, 1, 1], [], []>} : vector<8x16xf32>, vector<16x16xf32>, vector<8x16xf32> -> vector<8x16xf32>
    %268 = vector.broadcast %27 : vector<1x16xf32> to vector<8x16xf32>
    %269 = arith.addf %267, %268 : vector<8x16xf32>
    %270 = arith.addf %269, %264 : vector<8x16xf32>
    %cst_130 = arith.constant 0.000000e+00 : f32
    %271 = vector.broadcast %cst_130 : f32 to vector<8x16xf32>
    %272 = arith.maximumf %270, %271 : vector<8x16xf32>
    %cst_131 = arith.constant dense<0.000000e+00> : vector<8xf32>
    %273 = vector.multi_reduction <add>, %272, %cst_131 [1] : vector<8x16xf32> to vector<8xf32>
    %274 = vector.shape_cast %273 : vector<8xf32> to vector<8x1xf32>
    %cst_132 = arith.constant 1.600000e+01 : f32
    %275 = vector.broadcast %cst_132 : f32 to vector<8x1xf32>
    %276 = arith.divf %274, %275 : vector<8x1xf32>
    %277 = vector.broadcast %276 : vector<8x1xf32> to vector<8x16xf32>
    %278 = arith.subf %272, %277 : vector<8x16xf32>
    %279 = arith.mulf %278, %278 : vector<8x16xf32>
    %cst_133 = arith.constant dense<0.000000e+00> : vector<8xf32>
    %280 = vector.multi_reduction <add>, %279, %cst_133 [1] : vector<8x16xf32> to vector<8xf32>
    %281 = vector.shape_cast %280 : vector<8xf32> to vector<8x1xf32>
    %cst_134 = arith.constant 1.600000e+01 : f32
    %282 = vector.broadcast %cst_134 : f32 to vector<8x1xf32>
    %283 = arith.divf %281, %282 : vector<8x1xf32>
    %284 = vector.broadcast %276 : vector<8x1xf32> to vector<8x16xf32>
    %285 = arith.subf %272, %284 : vector<8x16xf32>
    %cst_135 = arith.constant 9.99999974E-6 : f32
    %286 = vector.broadcast %cst_135 : f32 to vector<8x1xf32>
    %287 = arith.addf %283, %286 : vector<8x1xf32>
    %288 = math.rsqrt %287 : vector<8x1xf32>
    %289 = vector.broadcast %288 : vector<8x1xf32> to vector<8x16xf32>
    %290 = arith.mulf %285, %289 : vector<8x16xf32>
    %291 = vector.broadcast %28 : vector<1x16xf32> to vector<8x16xf32>
    %292 = arith.mulf %290, %291 : vector<8x16xf32>
    %293 = vector.broadcast %29 : vector<1x16xf32> to vector<8x16xf32>
    %294 = arith.addf %292, %293 : vector<8x16xf32>
    %295 = vector.extract_strided_slice %195 {offsets = [1, 0, 0], sizes = [1, 8, 16], strides = [1, 1, 1]} : vector<3x8x16xf32> to vector<1x8x16xf32>
    %296 = vector.shape_cast %295 : vector<1x8x16xf32> to vector<8x16xf32>
    %cst_136 = arith.constant dense<0.000000e+00> : vector<8x16xf32>
    %297 = tpu.matmul %296, %26, %cst_136 {dimension_numbers = #tpu.dot_dimension_numbers<[1], [0], [0], [1], [0, 0, 1, 1], [], []>} : vector<8x16xf32>, vector<16x16xf32>, vector<8x16xf32> -> vector<8x16xf32>
    %298 = vector.broadcast %27 : vector<1x16xf32> to vector<8x16xf32>
    %299 = arith.addf %297, %298 : vector<8x16xf32>
    %300 = arith.addf %299, %264 : vector<8x16xf32>
    %cst_137 = arith.constant 0.000000e+00 : f32
    %301 = vector.broadcast %cst_137 : f32 to vector<8x16xf32>
    %302 = arith.maximumf %300, %301 : vector<8x16xf32>
    %cst_138 = arith.constant dense<0.000000e+00> : vector<8xf32>
    %303 = vector.multi_reduction <add>, %302, %cst_138 [1] : vector<8x16xf32> to vector<8xf32>
    %304 = vector.shape_cast %303 : vector<8xf32> to vector<8x1xf32>
    %cst_139 = arith.constant 1.600000e+01 : f32
    %305 = vector.broadcast %cst_139 : f32 to vector<8x1xf32>
    %306 = arith.divf %304, %305 : vector<8x1xf32>
    %307 = vector.broadcast %306 : vector<8x1xf32> to vector<8x16xf32>
    %308 = arith.subf %302, %307 : vector<8x16xf32>
    %309 = arith.mulf %308, %308 : vector<8x16xf32>
    %cst_140 = arith.constant dense<0.000000e+00> : vector<8xf32>
    %310 = vector.multi_reduction <add>, %309, %cst_140 [1] : vector<8x16xf32> to vector<8xf32>
    %311 = vector.shape_cast %310 : vector<8xf32> to vector<8x1xf32>
    %cst_141 = arith.constant 1.600000e+01 : f32
    %312 = vector.broadcast %cst_141 : f32 to vector<8x1xf32>
    %313 = arith.divf %311, %312 : vector<8x1xf32>
    %314 = vector.broadcast %306 : vector<8x1xf32> to vector<8x16xf32>
    %315 = arith.subf %302, %314 : vector<8x16xf32>
    %cst_142 = arith.constant 9.99999974E-6 : f32
    %316 = vector.broadcast %cst_142 : f32 to vector<8x1xf32>
    %317 = arith.addf %313, %316 : vector<8x1xf32>
    %318 = math.rsqrt %317 : vector<8x1xf32>
    %319 = vector.broadcast %318 : vector<8x1xf32> to vector<8x16xf32>
    %320 = arith.mulf %315, %319 : vector<8x16xf32>
    %321 = vector.broadcast %28 : vector<1x16xf32> to vector<8x16xf32>
    %322 = arith.mulf %320, %321 : vector<8x16xf32>
    %323 = vector.broadcast %29 : vector<1x16xf32> to vector<8x16xf32>
    %324 = arith.addf %322, %323 : vector<8x16xf32>
    %325 = vector.extract_strided_slice %195 {offsets = [2, 0, 0], sizes = [1, 8, 16], strides = [1, 1, 1]} : vector<3x8x16xf32> to vector<1x8x16xf32>
    %326 = vector.shape_cast %325 : vector<1x8x16xf32> to vector<8x16xf32>
    %cst_143 = arith.constant dense<0.000000e+00> : vector<8x16xf32>
    %327 = tpu.matmul %326, %26, %cst_143 {dimension_numbers = #tpu.dot_dimension_numbers<[1], [0], [0], [1], [0, 0, 1, 1], [], []>} : vector<8x16xf32>, vector<16x16xf32>, vector<8x16xf32> -> vector<8x16xf32>
    %328 = vector.broadcast %27 : vector<1x16xf32> to vector<8x16xf32>
    %329 = arith.addf %327, %328 : vector<8x16xf32>
    %330 = arith.addf %329, %264 : vector<8x16xf32>
    %cst_144 = arith.constant 0.000000e+00 : f32
    %331 = vector.broadcast %cst_144 : f32 to vector<8x16xf32>
    %332 = arith.maximumf %330, %331 : vector<8x16xf32>
    %cst_145 = arith.constant dense<0.000000e+00> : vector<8xf32>
    %333 = vector.multi_reduction <add>, %332, %cst_145 [1] : vector<8x16xf32> to vector<8xf32>
    %334 = vector.shape_cast %333 : vector<8xf32> to vector<8x1xf32>
    %cst_146 = arith.constant 1.600000e+01 : f32
    %335 = vector.broadcast %cst_146 : f32 to vector<8x1xf32>
    %336 = arith.divf %334, %335 : vector<8x1xf32>
    %337 = vector.broadcast %336 : vector<8x1xf32> to vector<8x16xf32>
    %338 = arith.subf %332, %337 : vector<8x16xf32>
    %339 = arith.mulf %338, %338 : vector<8x16xf32>
    %cst_147 = arith.constant dense<0.000000e+00> : vector<8xf32>
    %340 = vector.multi_reduction <add>, %339, %cst_147 [1] : vector<8x16xf32> to vector<8xf32>
    %341 = vector.shape_cast %340 : vector<8xf32> to vector<8x1xf32>
    %cst_148 = arith.constant 1.600000e+01 : f32
    %342 = vector.broadcast %cst_148 : f32 to vector<8x1xf32>
    %343 = arith.divf %341, %342 : vector<8x1xf32>
    %344 = vector.broadcast %336 : vector<8x1xf32> to vector<8x16xf32>
    %345 = arith.subf %332, %344 : vector<8x16xf32>
    %cst_149 = arith.constant 9.99999974E-6 : f32
    %346 = vector.broadcast %cst_149 : f32 to vector<8x1xf32>
    %347 = arith.addf %343, %346 : vector<8x1xf32>
    %348 = math.rsqrt %347 : vector<8x1xf32>
    %349 = vector.broadcast %348 : vector<8x1xf32> to vector<8x16xf32>
    %350 = arith.mulf %345, %349 : vector<8x16xf32>
    %351 = vector.broadcast %28 : vector<1x16xf32> to vector<8x16xf32>
    %352 = arith.mulf %350, %351 : vector<8x16xf32>
    %353 = vector.broadcast %29 : vector<1x16xf32> to vector<8x16xf32>
    %354 = arith.addf %352, %353 : vector<8x16xf32>
    %355 = vector.shape_cast %294 : vector<8x16xf32> to vector<1x8x16xf32>
    %356 = vector.shape_cast %324 : vector<8x16xf32> to vector<1x8x16xf32>
    %357 = vector.shape_cast %354 : vector<8x16xf32> to vector<1x8x16xf32>
    %358 = tpu.concatenate %355, %356, %357 in 0 : vector<1x8x16xf32>, vector<1x8x16xf32>, vector<1x8x16xf32> -> vector<3x8x16xf32>
    %cst_150 = arith.constant 0.000000e+00 : f32
    %359 = vector.broadcast %cst_150 : f32 to vector<3x8x16xf32>
    %360 = arith.maximumf %358, %359 : vector<3x8x16xf32>
    %361 = vector.extract_strided_slice %360 {offsets = [0, 0, 0], sizes = [1, 8, 16], strides = [1, 1, 1]} : vector<3x8x16xf32> to vector<1x8x16xf32>
    %362 = vector.shape_cast %361 : vector<1x8x16xf32> to vector<8x16xf32>
    %363 = vector.extract_strided_slice %360 {offsets = [1, 0, 0], sizes = [1, 8, 16], strides = [1, 1, 1]} : vector<3x8x16xf32> to vector<1x8x16xf32>
    %364 = vector.shape_cast %363 : vector<1x8x16xf32> to vector<8x16xf32>
    %365 = vector.extract_strided_slice %360 {offsets = [2, 0, 0], sizes = [1, 8, 16], strides = [1, 1, 1]} : vector<3x8x16xf32> to vector<1x8x16xf32>
    %366 = vector.shape_cast %365 : vector<1x8x16xf32> to vector<8x16xf32>
    %367 = tpu.concatenate %362, %364, %366 in 1 : vector<8x16xf32>, vector<8x16xf32>, vector<8x16xf32> -> vector<8x48xf32>
    %368 = vector.extract_strided_slice %367 {offsets = [0, 0], sizes = [1, 48], strides = [1, 1]} : vector<8x48xf32> to vector<1x48xf32>
    %c0_151 = arith.constant 0 : index
    %c0_152 = arith.constant 0 : index
    %c0_153 = arith.constant 0 : index
    %369 = vector.load %arg33[%c0_151, %c0_152, %c0_153] : memref<8x48x32xf32, #tpu.memory_space<vmem>>, vector<1x48x32xf32>
    %370 = vector.shape_cast %369 : vector<1x48x32xf32> to vector<48x32xf32>
    %cst_154 = arith.constant dense<0.000000e+00> : vector<1x32xf32>
    %371 = tpu.matmul %368, %370, %cst_154 {dimension_numbers = #tpu.dot_dimension_numbers<[1], [0], [0], [1], [0, 0, 1, 1], [], []>} : vector<1x48xf32>, vector<48x32xf32>, vector<1x32xf32> -> vector<1x32xf32>
    %c0_155 = arith.constant 0 : index
    %c0_156 = arith.constant 0 : index
    %c0_157 = arith.constant 0 : index
    %372 = vector.load %arg34[%c0_155, %c0_156, %c0_157] : memref<8x1x32xf32, #tpu.memory_space<vmem>>, vector<1x1x32xf32>
    %373 = vector.shape_cast %372 : vector<1x1x32xf32> to vector<1x32xf32>
    %374 = arith.addf %371, %373 : vector<1x32xf32>
    %cst_158 = arith.constant 0.000000e+00 : f32
    %375 = vector.broadcast %cst_158 : f32 to vector<1x32xf32>
    %376 = arith.maximumf %374, %375 : vector<1x32xf32>
    %c0_159 = arith.constant 0 : index
    %c0_160 = arith.constant 0 : index
    %c0_161 = arith.constant 0 : index
    %377 = vector.load %arg35[%c0_159, %c0_160, %c0_161] : memref<8x32x2xf32, #tpu.memory_space<vmem>>, vector<1x32x2xf32>
    %378 = vector.shape_cast %377 : vector<1x32x2xf32> to vector<32x2xf32>
    %cst_162 = arith.constant dense<0.000000e+00> : vector<1x2xf32>
    %379 = tpu.matmul %376, %378, %cst_162 {dimension_numbers = #tpu.dot_dimension_numbers<[1], [0], [0], [1], [0, 0, 1, 1], [], []>} : vector<1x32xf32>, vector<32x2xf32>, vector<1x2xf32> -> vector<1x2xf32>
    %c0_163 = arith.constant 0 : index
    %c0_164 = arith.constant 0 : index
    %c0_165 = arith.constant 0 : index
    %380 = vector.load %arg36[%c0_163, %c0_164, %c0_165] : memref<8x1x2xf32, #tpu.memory_space<vmem>>, vector<1x1x2xf32>
    %381 = vector.shape_cast %380 : vector<1x1x2xf32> to vector<1x2xf32>
    %382 = arith.addf %379, %381 : vector<1x2xf32>
    %383 = vector.extract_strided_slice %367 {offsets = [1, 0], sizes = [1, 48], strides = [1, 1]} : vector<8x48xf32> to vector<1x48xf32>
    %c1 = arith.constant 1 : index
    %c0_166 = arith.constant 0 : index
    %c0_167 = arith.constant 0 : index
    %384 = vector.load %arg33[%c1, %c0_166, %c0_167] : memref<8x48x32xf32, #tpu.memory_space<vmem>>, vector<1x48x32xf32>
    %385 = vector.shape_cast %384 : vector<1x48x32xf32> to vector<48x32xf32>
    %cst_168 = arith.constant dense<0.000000e+00> : vector<1x32xf32>
    %386 = tpu.matmul %383, %385, %cst_168 {dimension_numbers = #tpu.dot_dimension_numbers<[1], [0], [0], [1], [0, 0, 1, 1], [], []>} : vector<1x48xf32>, vector<48x32xf32>, vector<1x32xf32> -> vector<1x32xf32>
    %c1_169 = arith.constant 1 : index
    %c0_170 = arith.constant 0 : index
    %c0_171 = arith.constant 0 : index
    %387 = vector.load %arg34[%c1_169, %c0_170, %c0_171] : memref<8x1x32xf32, #tpu.memory_space<vmem>>, vector<1x1x32xf32>
    %388 = vector.shape_cast %387 : vector<1x1x32xf32> to vector<1x32xf32>
    %389 = arith.addf %386, %388 : vector<1x32xf32>
    %cst_172 = arith.constant 0.000000e+00 : f32
    %390 = vector.broadcast %cst_172 : f32 to vector<1x32xf32>
    %391 = arith.maximumf %389, %390 : vector<1x32xf32>
    %c1_173 = arith.constant 1 : index
    %c0_174 = arith.constant 0 : index
    %c0_175 = arith.constant 0 : index
    %392 = vector.load %arg35[%c1_173, %c0_174, %c0_175] : memref<8x32x2xf32, #tpu.memory_space<vmem>>, vector<1x32x2xf32>
    %393 = vector.shape_cast %392 : vector<1x32x2xf32> to vector<32x2xf32>
    %cst_176 = arith.constant dense<0.000000e+00> : vector<1x2xf32>
    %394 = tpu.matmul %391, %393, %cst_176 {dimension_numbers = #tpu.dot_dimension_numbers<[1], [0], [0], [1], [0, 0, 1, 1], [], []>} : vector<1x32xf32>, vector<32x2xf32>, vector<1x2xf32> -> vector<1x2xf32>
    %c1_177 = arith.constant 1 : index
    %c0_178 = arith.constant 0 : index
    %c0_179 = arith.constant 0 : index
    %395 = vector.load %arg36[%c1_177, %c0_178, %c0_179] : memref<8x1x2xf32, #tpu.memory_space<vmem>>, vector<1x1x2xf32>
    %396 = vector.shape_cast %395 : vector<1x1x2xf32> to vector<1x2xf32>
    %397 = arith.addf %394, %396 : vector<1x2xf32>
    %398 = vector.extract_strided_slice %367 {offsets = [2, 0], sizes = [1, 48], strides = [1, 1]} : vector<8x48xf32> to vector<1x48xf32>
    %c2 = arith.constant 2 : index
    %c0_180 = arith.constant 0 : index
    %c0_181 = arith.constant 0 : index
    %399 = vector.load %arg33[%c2, %c0_180, %c0_181] : memref<8x48x32xf32, #tpu.memory_space<vmem>>, vector<1x48x32xf32>
    %400 = vector.shape_cast %399 : vector<1x48x32xf32> to vector<48x32xf32>
    %cst_182 = arith.constant dense<0.000000e+00> : vector<1x32xf32>
    %401 = tpu.matmul %398, %400, %cst_182 {dimension_numbers = #tpu.dot_dimension_numbers<[1], [0], [0], [1], [0, 0, 1, 1], [], []>} : vector<1x48xf32>, vector<48x32xf32>, vector<1x32xf32> -> vector<1x32xf32>
    %c2_183 = arith.constant 2 : index
    %c0_184 = arith.constant 0 : index
    %c0_185 = arith.constant 0 : index
    %402 = vector.load %arg34[%c2_183, %c0_184, %c0_185] : memref<8x1x32xf32, #tpu.memory_space<vmem>>, vector<1x1x32xf32>
    %403 = vector.shape_cast %402 : vector<1x1x32xf32> to vector<1x32xf32>
    %404 = arith.addf %401, %403 : vector<1x32xf32>
    %cst_186 = arith.constant 0.000000e+00 : f32
    %405 = vector.broadcast %cst_186 : f32 to vector<1x32xf32>
    %406 = arith.maximumf %404, %405 : vector<1x32xf32>
    %c2_187 = arith.constant 2 : index
    %c0_188 = arith.constant 0 : index
    %c0_189 = arith.constant 0 : index
    %407 = vector.load %arg35[%c2_187, %c0_188, %c0_189] : memref<8x32x2xf32, #tpu.memory_space<vmem>>, vector<1x32x2xf32>
    %408 = vector.shape_cast %407 : vector<1x32x2xf32> to vector<32x2xf32>
    %cst_190 = arith.constant dense<0.000000e+00> : vector<1x2xf32>
    %409 = tpu.matmul %406, %408, %cst_190 {dimension_numbers = #tpu.dot_dimension_numbers<[1], [0], [0], [1], [0, 0, 1, 1], [], []>} : vector<1x32xf32>, vector<32x2xf32>, vector<1x2xf32> -> vector<1x2xf32>
    %c2_191 = arith.constant 2 : index
    %c0_192 = arith.constant 0 : index
    %c0_193 = arith.constant 0 : index
    %410 = vector.load %arg36[%c2_191, %c0_192, %c0_193] : memref<8x1x2xf32, #tpu.memory_space<vmem>>, vector<1x1x2xf32>
    %411 = vector.shape_cast %410 : vector<1x1x2xf32> to vector<1x2xf32>
    %412 = arith.addf %409, %411 : vector<1x2xf32>
    %413 = vector.extract_strided_slice %367 {offsets = [3, 0], sizes = [1, 48], strides = [1, 1]} : vector<8x48xf32> to vector<1x48xf32>
    %c3 = arith.constant 3 : index
    %c0_194 = arith.constant 0 : index
    %c0_195 = arith.constant 0 : index
    %414 = vector.load %arg33[%c3, %c0_194, %c0_195] : memref<8x48x32xf32, #tpu.memory_space<vmem>>, vector<1x48x32xf32>
    %415 = vector.shape_cast %414 : vector<1x48x32xf32> to vector<48x32xf32>
    %cst_196 = arith.constant dense<0.000000e+00> : vector<1x32xf32>
    %416 = tpu.matmul %413, %415, %cst_196 {dimension_numbers = #tpu.dot_dimension_numbers<[1], [0], [0], [1], [0, 0, 1, 1], [], []>} : vector<1x48xf32>, vector<48x32xf32>, vector<1x32xf32> -> vector<1x32xf32>
    %c3_197 = arith.constant 3 : index
    %c0_198 = arith.constant 0 : index
    %c0_199 = arith.constant 0 : index
    %417 = vector.load %arg34[%c3_197, %c0_198, %c0_199] : memref<8x1x32xf32, #tpu.memory_space<vmem>>, vector<1x1x32xf32>
    %418 = vector.shape_cast %417 : vector<1x1x32xf32> to vector<1x32xf32>
    %419 = arith.addf %416, %418 : vector<1x32xf32>
    %cst_200 = arith.constant 0.000000e+00 : f32
    %420 = vector.broadcast %cst_200 : f32 to vector<1x32xf32>
    %421 = arith.maximumf %419, %420 : vector<1x32xf32>
    %c3_201 = arith.constant 3 : index
    %c0_202 = arith.constant 0 : index
    %c0_203 = arith.constant 0 : index
    %422 = vector.load %arg35[%c3_201, %c0_202, %c0_203] : memref<8x32x2xf32, #tpu.memory_space<vmem>>, vector<1x32x2xf32>
    %423 = vector.shape_cast %422 : vector<1x32x2xf32> to vector<32x2xf32>
    %cst_204 = arith.constant dense<0.000000e+00> : vector<1x2xf32>
    %424 = tpu.matmul %421, %423, %cst_204 {dimension_numbers = #tpu.dot_dimension_numbers<[1], [0], [0], [1], [0, 0, 1, 1], [], []>} : vector<1x32xf32>, vector<32x2xf32>, vector<1x2xf32> -> vector<1x2xf32>
    %c3_205 = arith.constant 3 : index
    %c0_206 = arith.constant 0 : index
    %c0_207 = arith.constant 0 : index
    %425 = vector.load %arg36[%c3_205, %c0_206, %c0_207] : memref<8x1x2xf32, #tpu.memory_space<vmem>>, vector<1x1x2xf32>
    %426 = vector.shape_cast %425 : vector<1x1x2xf32> to vector<1x2xf32>
    %427 = arith.addf %424, %426 : vector<1x2xf32>
    %428 = vector.extract_strided_slice %367 {offsets = [4, 0], sizes = [1, 48], strides = [1, 1]} : vector<8x48xf32> to vector<1x48xf32>
    %c4 = arith.constant 4 : index
    %c0_208 = arith.constant 0 : index
    %c0_209 = arith.constant 0 : index
    %429 = vector.load %arg33[%c4, %c0_208, %c0_209] : memref<8x48x32xf32, #tpu.memory_space<vmem>>, vector<1x48x32xf32>
    %430 = vector.shape_cast %429 : vector<1x48x32xf32> to vector<48x32xf32>
    %cst_210 = arith.constant dense<0.000000e+00> : vector<1x32xf32>
    %431 = tpu.matmul %428, %430, %cst_210 {dimension_numbers = #tpu.dot_dimension_numbers<[1], [0], [0], [1], [0, 0, 1, 1], [], []>} : vector<1x48xf32>, vector<48x32xf32>, vector<1x32xf32> -> vector<1x32xf32>
    %c4_211 = arith.constant 4 : index
    %c0_212 = arith.constant 0 : index
    %c0_213 = arith.constant 0 : index
    %432 = vector.load %arg34[%c4_211, %c0_212, %c0_213] : memref<8x1x32xf32, #tpu.memory_space<vmem>>, vector<1x1x32xf32>
    %433 = vector.shape_cast %432 : vector<1x1x32xf32> to vector<1x32xf32>
    %434 = arith.addf %431, %433 : vector<1x32xf32>
    %cst_214 = arith.constant 0.000000e+00 : f32
    %435 = vector.broadcast %cst_214 : f32 to vector<1x32xf32>
    %436 = arith.maximumf %434, %435 : vector<1x32xf32>
    %c4_215 = arith.constant 4 : index
    %c0_216 = arith.constant 0 : index
    %c0_217 = arith.constant 0 : index
    %437 = vector.load %arg35[%c4_215, %c0_216, %c0_217] : memref<8x32x2xf32, #tpu.memory_space<vmem>>, vector<1x32x2xf32>
    %438 = vector.shape_cast %437 : vector<1x32x2xf32> to vector<32x2xf32>
    %cst_218 = arith.constant dense<0.000000e+00> : vector<1x2xf32>
    %439 = tpu.matmul %436, %438, %cst_218 {dimension_numbers = #tpu.dot_dimension_numbers<[1], [0], [0], [1], [0, 0, 1, 1], [], []>} : vector<1x32xf32>, vector<32x2xf32>, vector<1x2xf32> -> vector<1x2xf32>
    %c4_219 = arith.constant 4 : index
    %c0_220 = arith.constant 0 : index
    %c0_221 = arith.constant 0 : index
    %440 = vector.load %arg36[%c4_219, %c0_220, %c0_221] : memref<8x1x2xf32, #tpu.memory_space<vmem>>, vector<1x1x2xf32>
    %441 = vector.shape_cast %440 : vector<1x1x2xf32> to vector<1x2xf32>
    %442 = arith.addf %439, %441 : vector<1x2xf32>
    %443 = vector.extract_strided_slice %367 {offsets = [5, 0], sizes = [1, 48], strides = [1, 1]} : vector<8x48xf32> to vector<1x48xf32>
    %c5 = arith.constant 5 : index
    %c0_222 = arith.constant 0 : index
    %c0_223 = arith.constant 0 : index
    %444 = vector.load %arg33[%c5, %c0_222, %c0_223] : memref<8x48x32xf32, #tpu.memory_space<vmem>>, vector<1x48x32xf32>
    %445 = vector.shape_cast %444 : vector<1x48x32xf32> to vector<48x32xf32>
    %cst_224 = arith.constant dense<0.000000e+00> : vector<1x32xf32>
    %446 = tpu.matmul %443, %445, %cst_224 {dimension_numbers = #tpu.dot_dimension_numbers<[1], [0], [0], [1], [0, 0, 1, 1], [], []>} : vector<1x48xf32>, vector<48x32xf32>, vector<1x32xf32> -> vector<1x32xf32>
    %c5_225 = arith.constant 5 : index
    %c0_226 = arith.constant 0 : index
    %c0_227 = arith.constant 0 : index
    %447 = vector.load %arg34[%c5_225, %c0_226, %c0_227] : memref<8x1x32xf32, #tpu.memory_space<vmem>>, vector<1x1x32xf32>
    %448 = vector.shape_cast %447 : vector<1x1x32xf32> to vector<1x32xf32>
    %449 = arith.addf %446, %448 : vector<1x32xf32>
    %cst_228 = arith.constant 0.000000e+00 : f32
    %450 = vector.broadcast %cst_228 : f32 to vector<1x32xf32>
    %451 = arith.maximumf %449, %450 : vector<1x32xf32>
    %c5_229 = arith.constant 5 : index
    %c0_230 = arith.constant 0 : index
    %c0_231 = arith.constant 0 : index
    %452 = vector.load %arg35[%c5_229, %c0_230, %c0_231] : memref<8x32x2xf32, #tpu.memory_space<vmem>>, vector<1x32x2xf32>
    %453 = vector.shape_cast %452 : vector<1x32x2xf32> to vector<32x2xf32>
    %cst_232 = arith.constant dense<0.000000e+00> : vector<1x2xf32>
    %454 = tpu.matmul %451, %453, %cst_232 {dimension_numbers = #tpu.dot_dimension_numbers<[1], [0], [0], [1], [0, 0, 1, 1], [], []>} : vector<1x32xf32>, vector<32x2xf32>, vector<1x2xf32> -> vector<1x2xf32>
    %c5_233 = arith.constant 5 : index
    %c0_234 = arith.constant 0 : index
    %c0_235 = arith.constant 0 : index
    %455 = vector.load %arg36[%c5_233, %c0_234, %c0_235] : memref<8x1x2xf32, #tpu.memory_space<vmem>>, vector<1x1x2xf32>
    %456 = vector.shape_cast %455 : vector<1x1x2xf32> to vector<1x2xf32>
    %457 = arith.addf %454, %456 : vector<1x2xf32>
    %458 = vector.extract_strided_slice %367 {offsets = [6, 0], sizes = [1, 48], strides = [1, 1]} : vector<8x48xf32> to vector<1x48xf32>
    %c6 = arith.constant 6 : index
    %c0_236 = arith.constant 0 : index
    %c0_237 = arith.constant 0 : index
    %459 = vector.load %arg33[%c6, %c0_236, %c0_237] : memref<8x48x32xf32, #tpu.memory_space<vmem>>, vector<1x48x32xf32>
    %460 = vector.shape_cast %459 : vector<1x48x32xf32> to vector<48x32xf32>
    %cst_238 = arith.constant dense<0.000000e+00> : vector<1x32xf32>
    %461 = tpu.matmul %458, %460, %cst_238 {dimension_numbers = #tpu.dot_dimension_numbers<[1], [0], [0], [1], [0, 0, 1, 1], [], []>} : vector<1x48xf32>, vector<48x32xf32>, vector<1x32xf32> -> vector<1x32xf32>
    %c6_239 = arith.constant 6 : index
    %c0_240 = arith.constant 0 : index
    %c0_241 = arith.constant 0 : index
    %462 = vector.load %arg34[%c6_239, %c0_240, %c0_241] : memref<8x1x32xf32, #tpu.memory_space<vmem>>, vector<1x1x32xf32>
    %463 = vector.shape_cast %462 : vector<1x1x32xf32> to vector<1x32xf32>
    %464 = arith.addf %461, %463 : vector<1x32xf32>
    %cst_242 = arith.constant 0.000000e+00 : f32
    %465 = vector.broadcast %cst_242 : f32 to vector<1x32xf32>
    %466 = arith.maximumf %464, %465 : vector<1x32xf32>
    %c6_243 = arith.constant 6 : index
    %c0_244 = arith.constant 0 : index
    %c0_245 = arith.constant 0 : index
    %467 = vector.load %arg35[%c6_243, %c0_244, %c0_245] : memref<8x32x2xf32, #tpu.memory_space<vmem>>, vector<1x32x2xf32>
    %468 = vector.shape_cast %467 : vector<1x32x2xf32> to vector<32x2xf32>
    %cst_246 = arith.constant dense<0.000000e+00> : vector<1x2xf32>
    %469 = tpu.matmul %466, %468, %cst_246 {dimension_numbers = #tpu.dot_dimension_numbers<[1], [0], [0], [1], [0, 0, 1, 1], [], []>} : vector<1x32xf32>, vector<32x2xf32>, vector<1x2xf32> -> vector<1x2xf32>
    %c6_247 = arith.constant 6 : index
    %c0_248 = arith.constant 0 : index
    %c0_249 = arith.constant 0 : index
    %470 = vector.load %arg36[%c6_247, %c0_248, %c0_249] : memref<8x1x2xf32, #tpu.memory_space<vmem>>, vector<1x1x2xf32>
    %471 = vector.shape_cast %470 : vector<1x1x2xf32> to vector<1x2xf32>
    %472 = arith.addf %469, %471 : vector<1x2xf32>
    %473 = vector.extract_strided_slice %367 {offsets = [7, 0], sizes = [1, 48], strides = [1, 1]} : vector<8x48xf32> to vector<1x48xf32>
    %c7 = arith.constant 7 : index
    %c0_250 = arith.constant 0 : index
    %c0_251 = arith.constant 0 : index
    %474 = vector.load %arg33[%c7, %c0_250, %c0_251] : memref<8x48x32xf32, #tpu.memory_space<vmem>>, vector<1x48x32xf32>
    %475 = vector.shape_cast %474 : vector<1x48x32xf32> to vector<48x32xf32>
    %cst_252 = arith.constant dense<0.000000e+00> : vector<1x32xf32>
    %476 = tpu.matmul %473, %475, %cst_252 {dimension_numbers = #tpu.dot_dimension_numbers<[1], [0], [0], [1], [0, 0, 1, 1], [], []>} : vector<1x48xf32>, vector<48x32xf32>, vector<1x32xf32> -> vector<1x32xf32>
    %c7_253 = arith.constant 7 : index
    %c0_254 = arith.constant 0 : index
    %c0_255 = arith.constant 0 : index
    %477 = vector.load %arg34[%c7_253, %c0_254, %c0_255] : memref<8x1x32xf32, #tpu.memory_space<vmem>>, vector<1x1x32xf32>
    %478 = vector.shape_cast %477 : vector<1x1x32xf32> to vector<1x32xf32>
    %479 = arith.addf %476, %478 : vector<1x32xf32>
    %cst_256 = arith.constant 0.000000e+00 : f32
    %480 = vector.broadcast %cst_256 : f32 to vector<1x32xf32>
    %481 = arith.maximumf %479, %480 : vector<1x32xf32>
    %c7_257 = arith.constant 7 : index
    %c0_258 = arith.constant 0 : index
    %c0_259 = arith.constant 0 : index
    %482 = vector.load %arg35[%c7_257, %c0_258, %c0_259] : memref<8x32x2xf32, #tpu.memory_space<vmem>>, vector<1x32x2xf32>
    %483 = vector.shape_cast %482 : vector<1x32x2xf32> to vector<32x2xf32>
    %cst_260 = arith.constant dense<0.000000e+00> : vector<1x2xf32>
    %484 = tpu.matmul %481, %483, %cst_260 {dimension_numbers = #tpu.dot_dimension_numbers<[1], [0], [0], [1], [0, 0, 1, 1], [], []>} : vector<1x32xf32>, vector<32x2xf32>, vector<1x2xf32> -> vector<1x2xf32>
    %c7_261 = arith.constant 7 : index
    %c0_262 = arith.constant 0 : index
    %c0_263 = arith.constant 0 : index
    %485 = vector.load %arg36[%c7_261, %c0_262, %c0_263] : memref<8x1x2xf32, #tpu.memory_space<vmem>>, vector<1x1x2xf32>
    %486 = vector.shape_cast %485 : vector<1x1x2xf32> to vector<1x2xf32>
    %487 = arith.addf %484, %486 : vector<1x2xf32>
    %488 = tpu.concatenate %382, %397, %412, %427, %442, %457, %472, %487 in 0 : vector<1x2xf32>, vector<1x2xf32>, vector<1x2xf32>, vector<1x2xf32>, vector<1x2xf32>, vector<1x2xf32>, vector<1x2xf32>, vector<1x2xf32> -> vector<8x2xf32>
    %c0_264 = arith.constant 0 : index
    %c0_265 = arith.constant 0 : index
    %c0_266 = arith.constant 0 : index
    %489 = vector.load %arg37[%c0_264, %c0_265, %c0_266] : memref<1x8x2xf32, #tpu.memory_space<vmem>>, vector<1x8x2xf32>
    %490 = vector.shape_cast %489 : vector<1x8x2xf32> to vector<8x2xf32>
    %491 = vector.shape_cast %488 : vector<8x2xf32> to vector<1x8x2xf32>
    tpu.vector_store %arg37[%c0_264, %c0_265, %c0_266], %491 {strides = array<i32>} : memref<1x8x2xf32, #tpu.memory_space<vmem>>, vector<1x8x2xf32>,
    return
  }
  func.func @transform_0(%arg0: i32) -> (i32, i32, i32, i32) {
    %c0_i32 = arith.constant 0 : i32
    %c0_i32_0 = arith.constant 0 : i32
    %c0_i32_1 = arith.constant 0 : i32
    %c0_i32_2 = arith.constant 0 : i32
    return %arg0, %c0_i32, %c0_i32_0, %c0_i32_1 : i32, i32, i32, i32
  }
  func.func @transform_1(%arg0: i32) -> (i32, i32) {
    %c0_i32 = arith.constant 0 : i32
    %c0_i32_0 = arith.constant 0 : i32
    %c0_i32_1 = arith.constant 0 : i32
    return %c0_i32, %c0_i32_0 : i32, i32
  }
  func.func @transform_2(%arg0: i32) -> (i32, i32) {
    %c0_i32 = arith.constant 0 : i32
    %c0_i32_0 = arith.constant 0 : i32
    %c0_i32_1 = arith.constant 0 : i32
    return %c0_i32, %c0_i32_0 : i32, i32
  }
  func.func @transform_3(%arg0: i32) -> (i32, i32) {
    %c0_i32 = arith.constant 0 : i32
    %c0_i32_0 = arith.constant 0 : i32
    %c0_i32_1 = arith.constant 0 : i32
    return %c0_i32, %c0_i32_0 : i32, i32
  }
  func.func @transform_4(%arg0: i32) -> (i32, i32, i32) {
    %c0_i32 = arith.constant 0 : i32
    %c0_i32_0 = arith.constant 0 : i32
    %c0_i32_1 = arith.constant 0 : i32
    %c0_i32_2 = arith.constant 0 : i32
    return %c0_i32, %c0_i32_0, %c0_i32_1 : i32, i32, i32
  }
  func.func @transform_5(%arg0: i32) -> (i32, i32) {
    %c0_i32 = arith.constant 0 : i32
    %c0_i32_0 = arith.constant 0 : i32
    %c0_i32_1 = arith.constant 0 : i32
    return %c0_i32, %c0_i32_0 : i32, i32
  }
  func.func @transform_6(%arg0: i32) -> (i32, i32) {
    %c0_i32 = arith.constant 0 : i32
    %c0_i32_0 = arith.constant 0 : i32
    %c0_i32_1 = arith.constant 0 : i32
    return %c0_i32, %c0_i32_0 : i32, i32
  }
  func.func @transform_7(%arg0: i32) -> (i32, i32, i32) {
    %c0_i32 = arith.constant 0 : i32
    %c0_i32_0 = arith.constant 0 : i32
    %c0_i32_1 = arith.constant 0 : i32
    %c0_i32_2 = arith.constant 0 : i32
    return %c0_i32, %c0_i32_0, %c0_i32_1 : i32, i32, i32
  }
  func.func @transform_8(%arg0: i32) -> (i32, i32, i32) {
    %c0_i32 = arith.constant 0 : i32
    %c0_i32_0 = arith.constant 0 : i32
    %c0_i32_1 = arith.constant 0 : i32
    %c0_i32_2 = arith.constant 0 : i32
    return %c0_i32, %c0_i32_0, %c0_i32_1 : i32, i32, i32
  }
  func.func @transform_9(%arg0: i32) -> (i32, i32, i32) {
    %c0_i32 = arith.constant 0 : i32
    %c0_i32_0 = arith.constant 0 : i32
    %c0_i32_1 = arith.constant 0 : i32
    %c0_i32_2 = arith.constant 0 : i32
    return %c0_i32, %c0_i32_0, %c0_i32_1 : i32, i32, i32
  }
  func.func @transform_10(%arg0: i32) -> (i32, i32, i32) {
    %c0_i32 = arith.constant 0 : i32
    %c0_i32_0 = arith.constant 0 : i32
    %c0_i32_1 = arith.constant 0 : i32
    %c0_i32_2 = arith.constant 0 : i32
    return %c0_i32, %c0_i32_0, %c0_i32_1 : i32, i32, i32
  }
  func.func @transform_11(%arg0: i32) -> (i32, i32) {
    %c0_i32 = arith.constant 0 : i32
    %c0_i32_0 = arith.constant 0 : i32
    %c0_i32_1 = arith.constant 0 : i32
    return %c0_i32, %c0_i32_0 : i32, i32
  }
  func.func @transform_12(%arg0: i32) -> (i32, i32) {
    %c0_i32 = arith.constant 0 : i32
    %c0_i32_0 = arith.constant 0 : i32
    %c0_i32_1 = arith.constant 0 : i32
    return %c0_i32, %c0_i32_0 : i32, i32
  }
  func.func @transform_13(%arg0: i32) -> (i32, i32) {
    %c0_i32 = arith.constant 0 : i32
    %c0_i32_0 = arith.constant 0 : i32
    %c0_i32_1 = arith.constant 0 : i32
    return %c0_i32, %c0_i32_0 : i32, i32
  }
  func.func @transform_14(%arg0: i32) -> (i32, i32) {
    %c0_i32 = arith.constant 0 : i32
    %c0_i32_0 = arith.constant 0 : i32
    %c0_i32_1 = arith.constant 0 : i32
    return %c0_i32, %c0_i32_0 : i32, i32
  }
  func.func @transform_15(%arg0: i32) -> (i32, i32) {
    %c0_i32 = arith.constant 0 : i32
    %c0_i32_0 = arith.constant 0 : i32
    %c0_i32_1 = arith.constant 0 : i32
    return %c0_i32, %c0_i32_0 : i32, i32
  }
  func.func @transform_16(%arg0: i32) -> (i32, i32) {
    %c0_i32 = arith.constant 0 : i32
    %c0_i32_0 = arith.constant 0 : i32
    %c0_i32_1 = arith.constant 0 : i32
    return %c0_i32, %c0_i32_0 : i32, i32
  }
  func.func @transform_17(%arg0: i32) -> (i32, i32) {
    %c0_i32 = arith.constant 0 : i32
    %c0_i32_0 = arith.constant 0 : i32
    %c0_i32_1 = arith.constant 0 : i32
    return %c0_i32, %c0_i32_0 : i32, i32
  }
  func.func @transform_18(%arg0: i32) -> (i32, i32) {
    %c0_i32 = arith.constant 0 : i32
    %c0_i32_0 = arith.constant 0 : i32
    %c0_i32_1 = arith.constant 0 : i32
    return %c0_i32, %c0_i32_0 : i32, i32
  }
  func.func @transform_19(%arg0: i32) -> (i32, i32, i32) {
    %c0_i32 = arith.constant 0 : i32
    %c0_i32_0 = arith.constant 0 : i32
    %c0_i32_1 = arith.constant 0 : i32
    %c0_i32_2 = arith.constant 0 : i32
    return %c0_i32, %c0_i32_0, %c0_i32_1 : i32, i32, i32
  }
  func.func @transform_20(%arg0: i32) -> (i32, i32) {
    %c0_i32 = arith.constant 0 : i32
    %c0_i32_0 = arith.constant 0 : i32
    %c0_i32_1 = arith.constant 0 : i32
    return %c0_i32, %c0_i32_0 : i32, i32
  }
  func.func @transform_21(%arg0: i32) -> (i32, i32) {
    %c0_i32 = arith.constant 0 : i32
    %c0_i32_0 = arith.constant 0 : i32
    %c0_i32_1 = arith.constant 0 : i32
    return %c0_i32, %c0_i32_0 : i32, i32
  }
  func.func @transform_22(%arg0: i32) -> (i32, i32, i32) {
    %c0_i32 = arith.constant 0 : i32
    %c0_i32_0 = arith.constant 0 : i32
    %c0_i32_1 = arith.constant 0 : i32
    %c0_i32_2 = arith.constant 0 : i32
    return %c0_i32, %c0_i32_0, %c0_i32_1 : i32, i32, i32
  }
  func.func @transform_23(%arg0: i32) -> (i32, i32, i32) {
    %c0_i32 = arith.constant 0 : i32
    %c0_i32_0 = arith.constant 0 : i32
    %c0_i32_1 = arith.constant 0 : i32
    %c0_i32_2 = arith.constant 0 : i32
    return %c0_i32, %c0_i32_0, %c0_i32_1 : i32, i32, i32
  }
  func.func @transform_24(%arg0: i32) -> (i32, i32, i32) {
    %c0_i32 = arith.constant 0 : i32
    %c0_i32_0 = arith.constant 0 : i32
    %c0_i32_1 = arith.constant 0 : i32
    %c0_i32_2 = arith.constant 0 : i32
    return %c0_i32, %c0_i32_0, %c0_i32_1 : i32, i32, i32
  }
  func.func @transform_25(%arg0: i32) -> (i32, i32, i32) {
    %c0_i32 = arith.constant 0 : i32
    %c0_i32_0 = arith.constant 0 : i32
    %c0_i32_1 = arith.constant 0 : i32
    %c0_i32_2 = arith.constant 0 : i32
    return %c0_i32, %c0_i32_0, %c0_i32_1 : i32, i32, i32
  }
  func.func @transform_26(%arg0: i32) -> (i32, i32) {
    %c0_i32 = arith.constant 0 : i32
    %c0_i32_0 = arith.constant 0 : i32
    %c0_i32_1 = arith.constant 0 : i32
    return %c0_i32, %c0_i32_0 : i32, i32
  }
  func.func @transform_27(%arg0: i32) -> (i32, i32) {
    %c0_i32 = arith.constant 0 : i32
    %c0_i32_0 = arith.constant 0 : i32
    %c0_i32_1 = arith.constant 0 : i32
    return %c0_i32, %c0_i32_0 : i32, i32
  }
  func.func @transform_28(%arg0: i32) -> (i32, i32) {
    %c0_i32 = arith.constant 0 : i32
    %c0_i32_0 = arith.constant 0 : i32
    %c0_i32_1 = arith.constant 0 : i32
    return %c0_i32, %c0_i32_0 : i32, i32
  }
  func.func @transform_29(%arg0: i32) -> (i32, i32) {
    %c0_i32 = arith.constant 0 : i32
    %c0_i32_0 = arith.constant 0 : i32
    %c0_i32_1 = arith.constant 0 : i32
    return %c0_i32, %c0_i32_0 : i32, i32
  }
  func.func @transform_30(%arg0: i32) -> (i32, i32) {
    %c0_i32 = arith.constant 0 : i32
    %c0_i32_0 = arith.constant 0 : i32
    %c0_i32_1 = arith.constant 0 : i32
    return %c0_i32, %c0_i32_0 : i32, i32
  }
  func.func @transform_31(%arg0: i32) -> (i32, i32) {
    %c0_i32 = arith.constant 0 : i32
    %c0_i32_0 = arith.constant 0 : i32
    %c0_i32_1 = arith.constant 0 : i32
    return %c0_i32, %c0_i32_0 : i32, i32
  }
  func.func @transform_32(%arg0: i32) -> (i32, i32, i32) {
    %c0_i32 = arith.constant 0 : i32
    %c0_i32_0 = arith.constant 0 : i32
    %c0_i32_1 = arith.constant 0 : i32
    %c0_i32_2 = arith.constant 0 : i32
    return %c0_i32, %c0_i32_0, %c0_i32_1 : i32, i32, i32
  }
  func.func @transform_33(%arg0: i32) -> (i32, i32, i32) {
    %c0_i32 = arith.constant 0 : i32
    %c0_i32_0 = arith.constant 0 : i32
    %c0_i32_1 = arith.constant 0 : i32
    %c0_i32_2 = arith.constant 0 : i32
    return %c0_i32, %c0_i32_0, %c0_i32_1 : i32, i32, i32
  }
  func.func @transform_34(%arg0: i32) -> (i32, i32, i32) {
    %c0_i32 = arith.constant 0 : i32
    %c0_i32_0 = arith.constant 0 : i32
    %c0_i32_1 = arith.constant 0 : i32
    %c0_i32_2 = arith.constant 0 : i32
    return %c0_i32, %c0_i32_0, %c0_i32_1 : i32, i32, i32
  }
  func.func @transform_35(%arg0: i32) -> (i32, i32, i32) {
    %c0_i32 = arith.constant 0 : i32
    %c0_i32_0 = arith.constant 0 : i32
    %c0_i32_1 = arith.constant 0 : i32
    %c0_i32_2 = arith.constant 0 : i32
    return %c0_i32, %c0_i32_0, %c0_i32_1 : i32, i32, i32
  }
  func.func @transform_36(%arg0: i32) -> (i32, i32, i32) {
    %c0_i32 = arith.constant 0 : i32
    %c0_i32_0 = arith.constant 0 : i32
    %c0_i32_1 = arith.constant 0 : i32
    return %arg0, %c0_i32, %c0_i32_0 : i32, i32, i32
  }
}

</mosaic_0001>

<llo_original>
// kernel: sta_mgcn_submodule_forward.1
$region0: #{sta_mgcn_submodule_forward.1}
  #allocation0 [shape = 'u32[]', space=smem, size = 0x4, offset = 0x4, fixed_abs, tag = 'smem constant byte address 0x4 - core index']
  #allocation1 [shape = 'u32[144,128]{1,0:T(1,128)}', space=vmem, size = 0x12000, scoped, tag = 'internal scratch']
  %s0 = inlined_call_operand.smem [shape: u32[37], index: -1, kind: input, shape index: {}]
  %s1 = sld [smem:[%s0]]
  %s2 = scalar_lea.smem %s0, 1
  %s3 = sld [smem:[%s2]]
  %s4 = scalar_lea.smem %s0, 2
  %s5 = sld [smem:[%s4]]
  %s6 = scalar_lea.smem %s0, 3
  %s7 = sld [smem:[%s6]]
  %s8 = scalar_lea.smem %s0, 4
  %s9 = sld [smem:[%s8]]
  %s10 = scalar_lea.smem %s0, 5
  %s11 = sld [smem:[%s10]]
  %s12 = scalar_lea.smem %s0, 6
  %s13 = sld [smem:[%s12]]
  %s14 = scalar_lea.smem %s0, 7
  %s15 = sld [smem:[%s14]]
  %s16 = scalar_lea.smem %s0, 8
  %s17 = sld [smem:[%s16]]
  %s18 = scalar_lea.smem %s0, 9
  %s19 = sld [smem:[%s18]]
  %s20 = scalar_lea.smem %s0, 10
  %s21 = sld [smem:[%s20]]
  %s22 = scalar_lea.smem %s0, 11
  %s23 = sld [smem:[%s22]]
  %s24 = scalar_lea.smem %s0, 12
  %s25 = sld [smem:[%s24]]
  %s26 = scalar_lea.smem %s0, 13
  %s27 = sld [smem:[%s26]]
  %s28 = scalar_lea.smem %s0, 14
  %s29 = sld [smem:[%s28]]
  %s30 = scalar_lea.smem %s0, 15
  %s31 = sld [smem:[%s30]]
  %s32 = scalar_lea.smem %s0, 16
  %s33 = sld [smem:[%s32]]
  %s34 = scalar_lea.smem %s0, 17
  %s35 = sld [smem:[%s34]]
  %s36 = scalar_lea.smem %s0, 18
  %s37 = sld [smem:[%s36]]
  %s38 = scalar_lea.smem %s0, 19
  %s39 = sld [smem:[%s38]]
  %s40 = scalar_lea.smem %s0, 20
  %s41 = sld [smem:[%s40]]
  %s42 = scalar_lea.smem %s0, 21
  %s43 = sld [smem:[%s42]]
  %s44 = scalar_lea.smem %s0, 22
  %s45 = sld [smem:[%s44]]
  %s46 = scalar_lea.smem %s0, 23
  %s47 = sld [smem:[%s46]]
  %s48 = scalar_lea.smem %s0, 24
  %s49 = sld [smem:[%s48]]
  %s50 = scalar_lea.smem %s0, 25
  %s51 = sld [smem:[%s50]]
  %s52 = scalar_lea.smem %s0, 26
  %s53 = sld [smem:[%s52]]
  %s54 = scalar_lea.smem %s0, 27
  %s55 = sld [smem:[%s54]]
  %s56 = scalar_lea.smem %s0, 28
  %s57 = sld [smem:[%s56]]
  %s58 = scalar_lea.smem %s0, 29
  %s59 = sld [smem:[%s58]]
  %s60 = scalar_lea.smem %s0, 30
  %s61 = sld [smem:[%s60]]
  %s62 = scalar_lea.smem %s0, 31
  %s63 = sld [smem:[%s62]]
  %s64 = scalar_lea.smem %s0, 32
  %s65 = sld [smem:[%s64]]
  %s66 = scalar_lea.smem %s0, 33
  %s67 = sld [smem:[%s66]]
  %s68 = scalar_lea.smem %s0, 34
  %s69 = sld [smem:[%s68]]
  %s70 = scalar_lea.smem %s0, 35
  %s71 = sld [smem:[%s70]]
  %s72 = scalar_lea.smem %s0, 36
  %s73 = sld [smem:[%s72]]
  %s74 = sld [smem:[#allocation0]]
  $region253: #{sta_mgcn_submodule_forward.1} parent=0
    _
  %s76 = ssub.s32 1, %s74
  %s77 = scalar_select 0, %s76, %s74
  $region1: #{sta_mgcn_submodule_forward.1} parent=0
    #allocation2 [shape = 'u8[2048]{0}', space=vmem, size = 0x800, scoped, tag = 'input window, operand 2, single buffered']
    #allocation3 [shape = 's32[2]{0}', space=sflag, size = 0x8, scoped, tag = 'scoped memory for sta_mgcn_submodule_forward.1']
    #allocation4 [shape = 'u8[2048]{0}', space=vmem, size = 0x800, scoped, tag = 'input window, operand 3, single buffered']
    #allocation5 [shape = 's32[1]{0}', space=sflag, size = 0x4, scoped, tag = 'scoped memory for sta_mgcn_submodule_forward.1']
    #allocation6 [shape = 'u8[512]{0}', space=vmem, size = 0x400, scoped, tag = 'input window, operand 4, single buffered']
    #allocation7 [shape = 'u8[2048]{0}', space=vmem, size = 0x800, scoped, tag = 'input window, operand 5, single buffered']
    #allocation8 [shape = 's32[1]{0}', space=sflag, size = 0x4, scoped, tag = 'scoped memory for sta_mgcn_submodule_forward.1']
    #allocation9 [shape = 'u8[2048]{0}', space=vmem, size = 0x800, scoped, tag = 'input window, operand 6, single buffered']
    #allocation10 [shape = 'u8[6144]{0}', space=vmem, size = 0x1800, scoped, tag = 'input window, operand 7, single buffered']
    #allocation11 [shape = 's32[1]{0}', space=sflag, size = 0x4, scoped, tag = 'scoped memory for sta_mgcn_submodule_forward.1']
    #allocation12 [shape = 'u8[1536]{0}', space=vmem, size = 0x800, scoped, tag = 'input window, operand 8, single buffered']
    #allocation13 [shape = 'u8[12288]{0}', space=vmem, size = 0x3000, scoped, tag = 'input window, operand 9, single buffered']
    #allocation14 [shape = 's32[1]{0}', space=sflag, size = 0x4, scoped, tag = 'scoped memory for sta_mgcn_submodule_forward.1']
    #allocation15 [shape = 'u8[12288]{0}', space=vmem, size = 0x3000, scoped, tag = 'input window, operand 10, single buffered']
    #allocation16 [shape = 'u8[512]{0}', space=vmem, size = 0x400, scoped, tag = 'input window, operand 11, single buffered']
    #allocation17 [shape = 's32[1]{0}', space=sflag, size = 0x4, scoped, tag = 'scoped memory for sta_mgcn_submodule_forward.1']
    #allocation18 [shape = 'u8[512]{0}', space=vmem, size = 0x400, scoped, tag = 'input window, operand 12, single buffered']
    #allocation19 [shape = 'u8[2048]{0}', space=vmem, size = 0x800, scoped, tag = 'input window, operand 13, single buffered']
    #allocation20 [shape = 's32[1]{0}', space=sflag, size = 0x4, scoped, tag = 'scoped memory for sta_mgcn_submodule_forward.1']
    #allocation21 [shape = 'u8[512]{0}', space=vmem, size = 0x400, scoped, tag = 'input window, operand 14, single buffered']
    #allocation22 [shape = 'u8[2048]{0}', space=vmem, size = 0x800, scoped, tag = 'input window, operand 17, single buffered']
    #allocation23 [shape = 's32[1]{0}', space=sflag, size = 0x4, scoped, tag = 'scoped memory for sta_mgcn_submodule_forward.1']
    #allocation24 [shape = 'u8[512]{0}', space=vmem, size = 0x400, scoped, tag = 'input window, operand 19, single buffered']
    #allocation25 [shape = 'u8[2048]{0}', space=vmem, size = 0x800, scoped, tag = 'input window, operand 20, single buffered']
    #allocation26 [shape = 's32[1]{0}', space=sflag, size = 0x4, scoped, tag = 'scoped memory for sta_mgcn_submodule_forward.1']
    #allocation27 [shape = 'u8[2048]{0}', space=vmem, size = 0x800, scoped, tag = 'input window, operand 21, single buffered']
    #allocation28 [shape = 'u8[196608]{0}', space=vmem, size = 0x30000, scoped, tag = 'input window, operand 32, single buffered']
    #allocation29 [shape = 's32[1]{0}', space=sflag, size = 0x4, scoped, tag = 'scoped memory for sta_mgcn_submodule_forward.1']
    #allocation30 [shape = 'u8[131072]{0}', space=vmem, size = 0x20000, scoped, tag = 'input window, operand 34, single buffered']
    %78 = vsyncpa [#allocation3], 0
    %79 = vsyncpa [#allocation5], 0
    %80 = vsyncpa [#allocation8], 0
    %81 = vsyncpa [#allocation11], 0
    %82 = vsyncpa [#allocation14], 0
    %83 = vsyncpa [#allocation17], 0
    %84 = vsyncpa [#allocation20], 0
    %85 = vsyncpa [#allocation23], 0
    %86 = vsyncpa [#allocation26], 0
    %87 = vsyncpa [#allocation29], 0
    loop: start=0, step=1, limit=4
    $region2: #{sta_mgcn_submodule_forward.1} parent=1 // loop_pre_header
      _
    $region3: #{sta_mgcn_submodule_forward.1} parent=1 // loop_header
      %s89 = sphi 0, %s93
      %p90 = scmp.ge.s32.totalorder %s89, 4
      %s99 = sphi 0, %s101
      %s102 = sphi 0, %s99
      %s103 = sphi 0, %s102
      %s119 = sphi 0, %s103
      %s123 = sphi 0, %s123
      %s125 = sphi 0, %s123
      %s126 = sphi 0, %s125
      %s140 = sphi 0, %s126
      %s144 = sphi 0, %s144
      %s146 = sphi 0, %s144
      %s147 = sphi 0, %s146
      %s161 = sphi 0, %s147
      %s165 = sphi 0, %s165
      %s167 = sphi 0, %s165
      %s168 = sphi 0, %s167
      %s182 = sphi 0, %s168
      %s186 = sphi 0, %s186
      %s188 = sphi 0, %s186
      %s189 = sphi 0, %s188
      %s203 = sphi 0, %s189
      %s207 = sphi 0, %s207
      %s209 = sphi 0, %s207
      %s210 = sphi 0, %s209
      %s224 = sphi 0, %s210
      %s228 = sphi 0, %s228
      %s230 = sphi 0, %s228
      %s231 = sphi 0, %s230
      %s245 = sphi 0, %s231
      %s249 = sphi 0, %s249
      %s251 = sphi 0, %s249
      %s252 = sphi 0, %s251
      %s266 = sphi 0, %s252
      %s270 = sphi 0, %s270
      %s272 = sphi 0, %s270
      %s273 = sphi 0, %s272
      %s287 = sphi 0, %s273
      %s291 = sphi 0, %s291
      %s293 = sphi 0, %s291
      %s294 = sphi 0, %s293
      %s308 = sphi 0, %s294
      %s312 = sphi 0, %s312
      %s314 = sphi 0, %s312
      %s315 = sphi 0, %s314
      %s329 = sphi 0, %s315
      %s333 = sphi 0, %s333
      %s335 = sphi 0, %s333
      %s336 = sphi 0, %s335
      %s350 = sphi 0, %s336
      %s354 = sphi 0, %s354
      %s356 = sphi 0, %s354
      %s357 = sphi 0, %s356
      %s371 = sphi 0, %s357
      %s375 = sphi 0, %s375
      %s377 = sphi 0, %s375
      %s378 = sphi 0, %s377
      %s392 = sphi 0, %s378
      %s396 = sphi 0, %s396
      %s398 = sphi 0, %s396
      %s399 = sphi 0, %s398
      %s413 = sphi 0, %s399
      %s417 = sphi 0, %s417
      %s419 = sphi 0, %s417
      %s420 = sphi 0, %s419
      %s434 = sphi 0, %s420
      %s438 = sphi 0, %s438
      %s440 = sphi 0, %s438
      %s441 = sphi 0, %s440
      %s455 = sphi 0, %s441
      %s459 = sphi 0, %s459
      %s461 = sphi 0, %s459
      %s462 = sphi 0, %s461
      %s476 = sphi 0, %s462
      %s480 = sphi 0, %s480
      %s482 = sphi 0, %s480
      %s483 = sphi 0, %s482
      %s497 = sphi 0, %s483
      %s501 = sphi 0, %s501
      %s503 = sphi 0, %s501
      %s504 = sphi 0, %s503
      %s518 = sphi 0, %s504
      %s522 = sphi 0, %s522
      %s524 = sphi 0, %s522
      %s525 = sphi 0, %s524
      %s539 = sphi 0, %s525
      %s543 = sphi 0, %s543
      %s545 = sphi 0, %s543
      %s546 = sphi 0, %s545
      %s560 = sphi 0, %s546
      %s564 = sphi 0, %s564
      %s566 = sphi 0, %s564
      %s567 = sphi 0, %s566
      %s581 = sphi 0, %s567
      %s585 = sphi 0, %s585
      %s587 = sphi 0, %s585
      %s588 = sphi 0, %s587
      %s602 = sphi 0, %s588
      %s606 = sphi 0, %s606
      %s608 = sphi 0, %s606
      %s609 = sphi 0, %s608
      %s623 = sphi 0, %s609
      %s627 = sphi 0, %s627
      %s629 = sphi 0, %s627
      %s630 = sphi 0, %s629
      %s644 = sphi 0, %s630
      %s648 = sphi 0, %s648
      %s650 = sphi 0, %s648
      %s651 = sphi 0, %s650
      %s665 = sphi 0, %s651
      %s669 = sphi 0, %s669
      %s671 = sphi 0, %s669
      %s672 = sphi 0, %s671
      %s686 = sphi 0, %s672
      %s690 = sphi 0, %s690
      %s692 = sphi 0, %s690
      %s693 = sphi 0, %s692
      %s707 = sphi 0, %s693
      %s711 = sphi 0, %s711
      %s713 = sphi 0, %s711
      %s714 = sphi 0, %s713
      %s728 = sphi 0, %s714
      %s732 = sphi 0, %s732
      %s734 = sphi 0, %s732
      %s735 = sphi 0, %s734
      %s749 = sphi 0, %s735
      %s753 = sphi 0, %s753
      %s755 = sphi 0, %s753
      %s756 = sphi 0, %s755
      %s770 = sphi 0, %s756
      %s774 = sphi 0, %s774
      %s776 = sphi 0, %s774
      %s777 = sphi 0, %s776
      %s791 = sphi 0, %s777
      %s795 = sphi 0, %s795
      %s797 = sphi 0, %s795
      %s798 = sphi 0, %s797
      %s812 = sphi 0, %s798
      %s816 = sphi 0, %s816
      %s818 = sphi 0, %s816
      %s819 = sphi 0, %s818
      %s833 = sphi 0, %s819
      %s837 = sphi 0, %s837
      %s839 = sphi 0, %s837
      %s840 = sphi 0, %s839
      %s854 = sphi 0, %s840
      %s860 = sphi 0, %s862
      %s863 = sphi 0, %s860
      %s864 = sphi 0, %s863
      %s880 = sphi 0, %s864
    $region4: #{sta_mgcn_submodule_forward.1} parent=1 // loop_header_branch
      %92 = sbr.rel (%p90) target = $region8
    $region5: #{sta_mgcn_submodule_forward.1} parent=1 // loop_body
      %s94 = ssub.s32 %s89, 1
      %s95 = ssub.s32 %s89, 2
      %s96 = sadd.s32 %s89, 1
      %s97 = ssub.s32 %s89, %s96
      %p98 = scmp.eq.s32.totalorder %s97, 0
      %s100 = sadd.s32 %s99, 1
      %s101 = scalar_select %p98, %s99, %s100
      %p104 = pneg %p98
      %p105 = scmp.eq.s32.totalorder %s89, 1
      %p106 = por %p104, %p105
      %p107 = scmp.ne.s32.totalorder %s99, %s102
      %p108 = scmp.eq.s32.totalorder %s89, 0
      %p109 = por %p107, %p108
      %p110 = scmp.ne.s32.totalorder %s99, %s102
      %p111 = scmp.eq.s32.totalorder %s94, 1
      %p112 = por %p110, %p111
      %p113 = scmp.ne.s32.totalorder %s102, %s103
      %p114 = scmp.eq.s32.totalorder %s94, 0
      %p115 = por %p113, %p114
      %p116 = scmp.ne.s32.totalorder %s102, %s103
      %p117 = scmp.eq.s32.totalorder %s95, 1
      %p118 = por %p116, %p117
      %p120 = scmp.ne.s32.totalorder %s103, %s119
      %p121 = scmp.eq.s32.totalorder %s95, 0
      %p122 = por %p120, %p121
      %s124 = sadd.s32 %s123, 1
      %p127 = scmp.eq.s32.totalorder %s89, 1
      %p128 = scmp.ne.s32.totalorder %s123, %s125
      %p129 = scmp.eq.s32.totalorder %s89, 0
      %p130 = por %p128, %p129
      %p131 = scmp.ne.s32.totalorder %s123, %s125
      %p132 = scmp.eq.s32.totalorder %s94, 1
      %p133 = por %p131, %p132
      %p134 = scmp.ne.s32.totalorder %s125, %s126
      %p135 = scmp.eq.s32.totalorder %s94, 0
      %p136 = por %p134, %p135
      %p137 = scmp.ne.s32.totalorder %s125, %s126
      %p138 = scmp.eq.s32.totalorder %s95, 1
      %p139 = por %p137, %p138
      %p141 = scmp.ne.s32.totalorder %s126, %s140
      %p142 = scmp.eq.s32.totalorder %s95, 0
      %p143 = por %p141, %p142
      %s145 = sadd.s32 %s144, 1
      %p148 = scmp.eq.s32.totalorder %s89, 1
      %p149 = scmp.ne.s32.totalorder %s144, %s146
      %p150 = scmp.eq.s32.totalorder %s89, 0
      %p151 = por %p149, %p150
      %p152 = scmp.ne.s32.totalorder %s144, %s146
      %p153 = scmp.eq.s32.totalorder %s94, 1
      %p154 = por %p152, %p153
      %p155 = scmp.ne.s32.totalorder %s146, %s147
      %p156 = scmp.eq.s32.totalorder %s94, 0
      %p157 = por %p155, %p156
      %p158 = scmp.ne.s32.totalorder %s146, %s147
      %p159 = scmp.eq.s32.totalorder %s95, 1
      %p160 = por %p158, %p159
      %p162 = scmp.ne.s32.totalorder %s147, %s161
      %p163 = scmp.eq.s32.totalorder %s95, 0
      %p164 = por %p162, %p163
      %s166 = sadd.s32 %s165, 1
      %p169 = scmp.eq.s32.totalorder %s89, 1
      %p170 = scmp.ne.s32.totalorder %s165, %s167
      %p171 = scmp.eq.s32.totalorder %s89, 0
      %p172 = por %p170, %p171
      %p173 = scmp.ne.s32.totalorder %s165, %s167
      %p174 = scmp.eq.s32.totalorder %s94, 1
      %p175 = por %p173, %p174
      %p176 = scmp.ne.s32.totalorder %s167, %s168
      %p177 = scmp.eq.s32.totalorder %s94, 0
      %p178 = por %p176, %p177
      %p179 = scmp.ne.s32.totalorder %s167, %s168
      %p180 = scmp.eq.s32.totalorder %s95, 1
      %p181 = por %p179, %p180
      %p183 = scmp.ne.s32.totalorder %s168, %s182
      %p184 = scmp.eq.s32.totalorder %s95, 0
      %p185 = por %p183, %p184
      %s187 = sadd.s32 %s186, 1
      %p190 = scmp.eq.s32.totalorder %s89, 1
      %p191 = scmp.ne.s32.totalorder %s186, %s188
      %p192 = scmp.eq.s32.totalorder %s89, 0
      %p193 = por %p191, %p192
      %p194 = scmp.ne.s32.totalorder %s186, %s188
      %p195 = scmp.eq.s32.totalorder %s94, 1
      %p196 = por %p194, %p195
      %p197 = scmp.ne.s32.totalorder %s188, %s189
      %p198 = scmp.eq.s32.totalorder %s94, 0
      %p199 = por %p197, %p198
      %p200 = scmp.ne.s32.totalorder %s188, %s189
      %p201 = scmp.eq.s32.totalorder %s95, 1
      %p202 = por %p200, %p201
      %p204 = scmp.ne.s32.totalorder %s189, %s203
      %p205 = scmp.eq.s32.totalorder %s95, 0
      %p206 = por %p204, %p205
      %s208 = sadd.s32 %s207, 1
      %p211 = scmp.eq.s32.totalorder %s89, 1
      %p212 = scmp.ne.s32.totalorder %s207, %s209
      %p213 = scmp.eq.s32.totalorder %s89, 0
      %p214 = por %p212, %p213
      %p215 = scmp.ne.s32.totalorder %s207, %s209
      %p216 = scmp.eq.s32.totalorder %s94, 1
      %p217 = por %p215, %p216
      %p218 = scmp.ne.s32.totalorder %s209, %s210
      %p219 = scmp.eq.s32.totalorder %s94, 0
      %p220 = por %p218, %p219
      %p221 = scmp.ne.s32.totalorder %s209, %s210
      %p222 = scmp.eq.s32.totalorder %s95, 1
      %p223 = por %p221, %p222
      %p225 = scmp.ne.s32.totalorder %s210, %s224
      %p226 = scmp.eq.s32.totalorder %s95, 0
      %p227 = por %p225, %p226
      %s229 = sadd.s32 %s228, 1
      %p232 = scmp.eq.s32.totalorder %s89, 1
      %p233 = scmp.ne.s32.totalorder %s228, %s230
      %p234 = scmp.eq.s32.totalorder %s89, 0
      %p235 = por %p233, %p234
      %p236 = scmp.ne.s32.totalorder %s228, %s230
      %p237 = scmp.eq.s32.totalorder %s94, 1
      %p238 = por %p236, %p237
      %p239 = scmp.ne.s32.totalorder %s230, %s231
      %p240 = scmp.eq.s32.totalorder %s94, 0
      %p241 = por %p239, %p240
      %p242 = scmp.ne.s32.totalorder %s230, %s231
      %p243 = scmp.eq.s32.totalorder %s95, 1
      %p244 = por %p242, %p243
      %p246 = scmp.ne.s32.totalorder %s231, %s245
      %p247 = scmp.eq.s32.totalorder %s95, 0
      %p248 = por %p246, %p247
      %s250 = sadd.s32 %s249, 1
      %p253 = scmp.eq.s32.totalorder %s89, 1
      %p254 = scmp.ne.s32.totalorder %s249, %s251
      %p255 = scmp.eq.s32.totalorder %s89, 0
      %p256 = por %p254, %p255
      %p257 = scmp.ne.s32.totalorder %s249, %s251
      %p258 = scmp.eq.s32.totalorder %s94, 1
      %p259 = por %p257, %p258
      %p260 = scmp.ne.s32.totalorder %s251, %s252
      %p261 = scmp.eq.s32.totalorder %s94, 0
      %p262 = por %p260, %p261
      %p263 = scmp.ne.s32.totalorder %s251, %s252
      %p264 = scmp.eq.s32.totalorder %s95, 1
      %p265 = por %p263, %p264
      %p267 = scmp.ne.s32.totalorder %s252, %s266
      %p268 = scmp.eq.s32.totalorder %s95, 0
      %p269 = por %p267, %p268
      %s271 = sadd.s32 %s270, 1
      %p274 = scmp.eq.s32.totalorder %s89, 1
      %p275 = scmp.ne.s32.totalorder %s270, %s272
      %p276 = scmp.eq.s32.totalorder %s89, 0
      %p277 = por %p275, %p276
      %p278 = scmp.ne.s32.totalorder %s270, %s272
      %p279 = scmp.eq.s32.totalorder %s94, 1
      %p280 = por %p278, %p279
      %p281 = scmp.ne.s32.totalorder %s272, %s273
      %p282 = scmp.eq.s32.totalorder %s94, 0
      %p283 = por %p281, %p282
      %p284 = scmp.ne.s32.totalorder %s272, %s273
      %p285 = scmp.eq.s32.totalorder %s95, 1
      %p286 = por %p284, %p285
      %p288 = scmp.ne.s32.totalorder %s273, %s287
      %p289 = scmp.eq.s32.totalorder %s95, 0
      %p290 = por %p288, %p289
      %s292 = sadd.s32 %s291, 1
      %p295 = scmp.eq.s32.totalorder %s89, 1
      %p296 = scmp.ne.s32.totalorder %s291, %s293
      %p297 = scmp.eq.s32.totalorder %s89, 0
      %p298 = por %p296, %p297
      %p299 = scmp.ne.s32.totalorder %s291, %s293
      %p300 = scmp.eq.s32.totalorder %s94, 1
      %p301 = por %p299, %p300
      %p302 = scmp.ne.s32.totalorder %s293, %s294
      %p303 = scmp.eq.s32.totalorder %s94, 0
      %p304 = por %p302, %p303
      %p305 = scmp.ne.s32.totalorder %s293, %s294
      %p306 = scmp.eq.s32.totalorder %s95, 1
      %p307 = por %p305, %p306
      %p309 = scmp.ne.s32.totalorder %s294, %s308
      %p310 = scmp.eq.s32.totalorder %s95, 0
      %p311 = por %p309, %p310
      %s313 = sadd.s32 %s312, 1
      %p316 = scmp.eq.s32.totalorder %s89, 1
      %p317 = scmp.ne.s32.totalorder %s312, %s314
      %p318 = scmp.eq.s32.totalorder %s89, 0
      %p319 = por %p317, %p318
      %p320 = scmp.ne.s32.totalorder %s312, %s314
      %p321 = scmp.eq.s32.totalorder %s94, 1
      %p322 = por %p320, %p321
      %p323 = scmp.ne.s32.totalorder %s314, %s315
      %p324 = scmp.eq.s32.totalorder %s94, 0
      %p325 = por %p323, %p324
      %p326 = scmp.ne.s32.totalorder %s314, %s315
      %p327 = scmp.eq.s32.totalorder %s95, 1
      %p328 = por %p326, %p327
      %p330 = scmp.ne.s32.totalorder %s315, %s329
      %p331 = scmp.eq.s32.totalorder %s95, 0
      %p332 = por %p330, %p331
      %s334 = sadd.s32 %s333, 1
      %p337 = scmp.eq.s32.totalorder %s89, 1
      %p338 = scmp.ne.s32.totalorder %s333, %s335
      %p339 = scmp.eq.s32.totalorder %s89, 0
      %p340 = por %p338, %p339
      %p341 = scmp.ne.s32.totalorder %s333, %s335
      %p342 = scmp.eq.s32.totalorder %s94, 1
      %p343 = por %p341, %p342
      %p344 = scmp.ne.s32.totalorder %s335, %s336
      %p345 = scmp.eq.s32.totalorder %s94, 0
      %p346 = por %p344, %p345
      %p347 = scmp.ne.s32.totalorder %s335, %s336
      %p348 = scmp.eq.s32.totalorder %s95, 1
      %p349 = por %p347, %p348
      %p351 = scmp.ne.s32.totalorder %s336, %s350
      %p352 = scmp.eq.s32.totalorder %s95, 0
      %p353 = por %p351, %p352
      %s355 = sadd.s32 %s354, 1
      %p358 = scmp.eq.s32.totalorder %s89, 1
      %p359 = scmp.ne.s32.totalorder %s354, %s356
      %p360 = scmp.eq.s32.totalorder %s89, 0
      %p361 = por %p359, %p360
      %p362 = scmp.ne.s32.totalorder %s354, %s356
      %p363 = scmp.eq.s32.totalorder %s94, 1
      %p364 = por %p362, %p363
      %p365 = scmp.ne.s32.totalorder %s356, %s357
      %p366 = scmp.eq.s32.totalorder %s94, 0
      %p367 = por %p365, %p366
      %p368 = scmp.ne.s32.totalorder %s356, %s357
      %p369 = scmp.eq.s32.totalorder %s95, 1
      %p370 = por %p368, %p369
      %p372 = scmp.ne.s32.totalorder %s357, %s371
      %p373 = scmp.eq.s32.totalorder %s95, 0
      %p374 = por %p372, %p373
      %s376 = sadd.s32 %s375, 1
      %p379 = scmp.eq.s32.totalorder %s89, 1
      %p380 = scmp.ne.s32.totalorder %s375, %s377
      %p381 = scmp.eq.s32.totalorder %s89, 0
      %p382 = por %p380, %p381
      %p383 = scmp.ne.s32.totalorder %s375, %s377
      %p384 = scmp.eq.s32.totalorder %s94, 1
      %p385 = por %p383, %p384
      %p386 = scmp.ne.s32.totalorder %s377, %s378
      %p387 = scmp.eq.s32.totalorder %s94, 0
      %p388 = por %p386, %p387
      %p389 = scmp.ne.s32.totalorder %s377, %s378
      %p390 = scmp.eq.s32.totalorder %s95, 1
      %p391 = por %p389, %p390
      %p393 = scmp.ne.s32.totalorder %s378, %s392
      %p394 = scmp.eq.s32.totalorder %s95, 0
      %p395 = por %p393, %p394
      %s397 = sadd.s32 %s396, 1
      %p400 = scmp.eq.s32.totalorder %s89, 1
      %p401 = scmp.ne.s32.totalorder %s396, %s398
      %p402 = scmp.eq.s32.totalorder %s89, 0
      %p403 = por %p401, %p402
      %p404 = scmp.ne.s32.totalorder %s396, %s398
      %p405 = scmp.eq.s32.totalorder %s94, 1
      %p406 = por %p404, %p405
      %p407 = scmp.ne.s32.totalorder %s398, %s399
      %p408 = scmp.eq.s32.totalorder %s94, 0
      %p409 = por %p407, %p408
      %p410 = scmp.ne.s32.totalorder %s398, %s399
      %p411 = scmp.eq.s32.totalorder %s95, 1
      %p412 = por %p410, %p411
      %p414 = scmp.ne.s32.totalorder %s399, %s413
      %p415 = scmp.eq.s32.totalorder %s95, 0
      %p416 = por %p414, %p415
      %s418 = sadd.s32 %s417, 1
      %p421 = scmp.eq.s32.totalorder %s89, 1
      %p422 = scmp.ne.s32.totalorder %s417, %s419
      %p423 = scmp.eq.s32.totalorder %s89, 0
      %p424 = por %p422, %p423
      %p425 = scmp.ne.s32.totalorder %s417, %s419
      %p426 = scmp.eq.s32.totalorder %s94, 1
      %p427 = por %p425, %p426
      %p428 = scmp.ne.s32.totalorder %s419, %s420
      %p429 = scmp.eq.s32.totalorder %s94, 0
      %p430 = por %p428, %p429
      %p431 = scmp.ne.s32.totalorder %s419, %s420
      %p432 = scmp.eq.s32.totalorder %s95, 1
      %p433 = por %p431, %p432
      %p435 = scmp.ne.s32.totalorder %s420, %s434
      %p436 = scmp.eq.s32.totalorder %s95, 0
      %p437 = por %p435, %p436
      %s439 = sadd.s32 %s438, 1
      %p442 = scmp.eq.s32.totalorder %s89, 1
      %p443 = scmp.ne.s32.totalorder %s438, %s440
      %p444 = scmp.eq.s32.totalorder %s89, 0
      %p445 = por %p443, %p444
      %p446 = scmp.ne.s32.totalorder %s438, %s440
      %p447 = scmp.eq.s32.totalorder %s94, 1
      %p448 = por %p446, %p447
      %p449 = scmp.ne.s32.totalorder %s440, %s441
      %p450 = scmp.eq.s32.totalorder %s94, 0
      %p451 = por %p449, %p450
      %p452 = scmp.ne.s32.totalorder %s440, %s441
      %p453 = scmp.eq.s32.totalorder %s95, 1
      %p454 = por %p452, %p453
      %p456 = scmp.ne.s32.totalorder %s441, %s455
      %p457 = scmp.eq.s32.totalorder %s95, 0
      %p458 = por %p456, %p457
      %s460 = sadd.s32 %s459, 1
      %p463 = scmp.eq.s32.totalorder %s89, 1
      %p464 = scmp.ne.s32.totalorder %s459, %s461
      %p465 = scmp.eq.s32.totalorder %s89, 0
      %p466 = por %p464, %p465
      %p467 = scmp.ne.s32.totalorder %s459, %s461
      %p468 = scmp.eq.s32.totalorder %s94, 1
      %p469 = por %p467, %p468
      %p470 = scmp.ne.s32.totalorder %s461, %s462
      %p471 = scmp.eq.s32.totalorder %s94, 0
      %p472 = por %p470, %p471
      %p473 = scmp.ne.s32.totalorder %s461, %s462
      %p474 = scmp.eq.s32.totalorder %s95, 1
      %p475 = por %p473, %p474
      %p477 = scmp.ne.s32.totalorder %s462, %s476
      %p478 = scmp.eq.s32.totalorder %s95, 0
      %p479 = por %p477, %p478
      %s481 = sadd.s32 %s480, 1
      %p484 = scmp.eq.s32.totalorder %s89, 1
      %p485 = scmp.ne.s32.totalorder %s480, %s482
      %p486 = scmp.eq.s32.totalorder %s89, 0
      %p487 = por %p485, %p486
      %p488 = scmp.ne.s32.totalorder %s480, %s482
      %p489 = scmp.eq.s32.totalorder %s94, 1
      %p490 = por %p488, %p489
      %p491 = scmp.ne.s32.totalorder %s482, %s483
      %p492 = scmp.eq.s32.totalorder %s94, 0
      %p493 = por %p491, %p492
      %p494 = scmp.ne.s32.totalorder %s482, %s483
      %p495 = scmp.eq.s32.totalorder %s95, 1
      %p496 = por %p494, %p495
      %p498 = scmp.ne.s32.totalorder %s483, %s497
      %p499 = scmp.eq.s32.totalorder %s95, 0
      %p500 = por %p498, %p499
      %s502 = sadd.s32 %s501, 1
      %p505 = scmp.eq.s32.totalorder %s89, 1
      %p506 = scmp.ne.s32.totalorder %s501, %s503
      %p507 = scmp.eq.s32.totalorder %s89, 0
      %p508 = por %p506, %p507
      %p509 = scmp.ne.s32.totalorder %s501, %s503
      %p510 = scmp.eq.s32.totalorder %s94, 1
      %p511 = por %p509, %p510
      %p512 = scmp.ne.s32.totalorder %s503, %s504
      %p513 = scmp.eq.s32.totalorder %s94, 0
      %p514 = por %p512, %p513
      %p515 = scmp.ne.s32.totalorder %s503, %s504
      %p516 = scmp.eq.s32.totalorder %s95, 1
      %p517 = por %p515, %p516
      %p519 = scmp.ne.s32.totalorder %s504, %s518
      %p520 = scmp.eq.s32.totalorder %s95, 0
      %p521 = por %p519, %p520
      %s523 = sadd.s32 %s522, 1
      %p526 = scmp.eq.s32.totalorder %s89, 1
      %p527 = scmp.ne.s32.totalorder %s522, %s524
      %p528 = scmp.eq.s32.totalorder %s89, 0
      %p529 = por %p527, %p528
      %p530 = scmp.ne.s32.totalorder %s522, %s524
      %p531 = scmp.eq.s32.totalorder %s94, 1
      %p532 = por %p530, %p531
      %p533 = scmp.ne.s32.totalorder %s524, %s525
      %p534 = scmp.eq.s32.totalorder %s94, 0
      %p535 = por %p533, %p534
      %p536 = scmp.ne.s32.totalorder %s524, %s525
      %p537 = scmp.eq.s32.totalorder %s95, 1
      %p538 = por %p536, %p537
      %p540 = scmp.ne.s32.totalorder %s525, %s539
      %p541 = scmp.eq.s32.totalorder %s95, 0
      %p542 = por %p540, %p541
      %s544 = sadd.s32 %s543, 1
      %p547 = scmp.eq.s32.totalorder %s89, 1
      %p548 = scmp.ne.s32.totalorder %s543, %s545
      %p549 = scmp.eq.s32.totalorder %s89, 0
      %p550 = por %p548, %p549
      %p551 = scmp.ne.s32.totalorder %s543, %s545
      %p552 = scmp.eq.s32.totalorder %s94, 1
      %p553 = por %p551, %p552
      %p554 = scmp.ne.s32.totalorder %s545, %s546
      %p555 = scmp.eq.s32.totalorder %s94, 0
      %p556 = por %p554, %p555
      %p557 = scmp.ne.s32.totalorder %s545, %s546
      %p558 = scmp.eq.s32.totalorder %s95, 1
      %p559 = por %p557, %p558
      %p561 = scmp.ne.s32.totalorder %s546, %s560
      %p562 = scmp.eq.s32.totalorder %s95, 0
      %p563 = por %p561, %p562
      %s565 = sadd.s32 %s564, 1
      %p568 = scmp.eq.s32.totalorder %s89, 1
      %p569 = scmp.ne.s32.totalorder %s564, %s566
      %p570 = scmp.eq.s32.totalorder %s89, 0
      %p571 = por %p569, %p570
      %p572 = scmp.ne.s32.totalorder %s564, %s566
      %p573 = scmp.eq.s32.totalorder %s94, 1
      %p574 = por %p572, %p573
      %p575 = scmp.ne.s32.totalorder %s566, %s567
      %p576 = scmp.eq.s32.totalorder %s94, 0
      %p577 = por %p575, %p576
      %p578 = scmp.ne.s32.totalorder %s566, %s567
      %p579 = scmp.eq.s32.totalorder %s95, 1
      %p580 = por %p578, %p579
      %p582 = scmp.ne.s32.totalorder %s567, %s581
      %p583 = scmp.eq.s32.totalorder %s95, 0
      %p584 = por %p582, %p583
      %s586 = sadd.s32 %s585, 1
      %p589 = scmp.eq.s32.totalorder %s89, 1
      %p590 = scmp.ne.s32.totalorder %s585, %s587
      %p591 = scmp.eq.s32.totalorder %s89, 0
      %p592 = por %p590, %p591
      %p593 = scmp.ne.s32.totalorder %s585, %s587
      %p594 = scmp.eq.s32.totalorder %s94, 1
      %p595 = por %p593, %p594
      %p596 = scmp.ne.s32.totalorder %s587, %s588
      %p597 = scmp.eq.s32.totalorder %s94, 0
      %p598 = por %p596, %p597
      %p599 = scmp.ne.s32.totalorder %s587, %s588
      %p600 = scmp.eq.s32.totalorder %s95, 1
      %p601 = por %p599, %p600
      %p603 = scmp.ne.s32.totalorder %s588, %s602
      %p604 = scmp.eq.s32.totalorder %s95, 0
      %p605 = por %p603, %p604
      %s607 = sadd.s32 %s606, 1
      %p610 = scmp.eq.s32.totalorder %s89, 1
      %p611 = scmp.ne.s32.totalorder %s606, %s608
      %p612 = scmp.eq.s32.totalorder %s89, 0
      %p613 = por %p611, %p612
      %p614 = scmp.ne.s32.totalorder %s606, %s608
      %p615 = scmp.eq.s32.totalorder %s94, 1
      %p616 = por %p614, %p615
      %p617 = scmp.ne.s32.totalorder %s608, %s609
      %p618 = scmp.eq.s32.totalorder %s94, 0
      %p619 = por %p617, %p618
      %p620 = scmp.ne.s32.totalorder %s608, %s609
      %p621 = scmp.eq.s32.totalorder %s95, 1
      %p622 = por %p620, %p621
      %p624 = scmp.ne.s32.totalorder %s609, %s623
      %p625 = scmp.eq.s32.totalorder %s95, 0
      %p626 = por %p624, %p625
      %s628 = sadd.s32 %s627, 1
      %p631 = scmp.eq.s32.totalorder %s89, 1
      %p632 = scmp.ne.s32.totalorder %s627, %s629
      %p633 = scmp.eq.s32.totalorder %s89, 0
      %p634 = por %p632, %p633
      %p635 = scmp.ne.s32.totalorder %s627, %s629
      %p636 = scmp.eq.s32.totalorder %s94, 1
      %p637 = por %p635, %p636
      %p638 = scmp.ne.s32.totalorder %s629, %s630
      %p639 = scmp.eq.s32.totalorder %s94, 0
      %p640 = por %p638, %p639
      %p641 = scmp.ne.s32.totalorder %s629, %s630
      %p642 = scmp.eq.s32.totalorder %s95, 1
      %p643 = por %p641, %p642
      %p645 = scmp.ne.s32.totalorder %s630, %s644
      %p646 = scmp.eq.s32.totalorder %s95, 0
      %p647 = por %p645, %p646
      %s649 = sadd.s32 %s648, 1
      %p652 = scmp.eq.s32.totalorder %s89, 1
      %p653 = scmp.ne.s32.totalorder %s648, %s650
      %p654 = scmp.eq.s32.totalorder %s89, 0
      %p655 = por %p653, %p654
      %p656 = scmp.ne.s32.totalorder %s648, %s650
      %p657 = scmp.eq.s32.totalorder %s94, 1
      %p658 = por %p656, %p657
      %p659 = scmp.ne.s32.totalorder %s650, %s651
      %p660 = scmp.eq.s32.totalorder %s94, 0
      %p661 = por %p659, %p660
      %p662 = scmp.ne.s32.totalorder %s650, %s651
      %p663 = scmp.eq.s32.totalorder %s95, 1
      %p664 = por %p662, %p663
      %p666 = scmp.ne.s32.totalorder %s651, %s665
      %p667 = scmp.eq.s32.totalorder %s95, 0
      %p668 = por %p666, %p667
      %s670 = sadd.s32 %s669, 1
      %p673 = scmp.eq.s32.totalorder %s89, 1
      %p674 = scmp.ne.s32.totalorder %s669, %s671
      %p675 = scmp.eq.s32.totalorder %s89, 0
      %p676 = por %p674, %p675
      %p677 = scmp.ne.s32.totalorder %s669, %s671
      %p678 = scmp.eq.s32.totalorder %s94, 1
      %p679 = por %p677, %p678
      %p680 = scmp.ne.s32.totalorder %s671, %s672
      %p681 = scmp.eq.s32.totalorder %s94, 0
      %p682 = por %p680, %p681
      %p683 = scmp.ne.s32.totalorder %s671, %s672
      %p684 = scmp.eq.s32.totalorder %s95, 1
      %p685 = por %p683, %p684
      %p687 = scmp.ne.s32.totalorder %s672, %s686
      %p688 = scmp.eq.s32.totalorder %s95, 0
      %p689 = por %p687, %p688
      %s691 = sadd.s32 %s690, 1
      %p694 = scmp.eq.s32.totalorder %s89, 1
      %p695 = scmp.ne.s32.totalorder %s690, %s692
      %p696 = scmp.eq.s32.totalorder %s89, 0
      %p697 = por %p695, %p696
      %p698 = scmp.ne.s32.totalorder %s690, %s692
      %p699 = scmp.eq.s32.totalorder %s94, 1
      %p700 = por %p698, %p699
      %p701 = scmp.ne.s32.totalorder %s692, %s693
      %p702 = scmp.eq.s32.totalorder %s94, 0
      %p703 = por %p701, %p702
      %p704 = scmp.ne.s32.totalorder %s692, %s693
      %p705 = scmp.eq.s32.totalorder %s95, 1
      %p706 = por %p704, %p705
      %p708 = scmp.ne.s32.totalorder %s693, %s707
      %p709 = scmp.eq.s32.totalorder %s95, 0
      %p710 = por %p708, %p709
      %s712 = sadd.s32 %s711, 1
      %p715 = scmp.eq.s32.totalorder %s89, 1
      %p716 = scmp.ne.s32.totalorder %s711, %s713
      %p717 = scmp.eq.s32.totalorder %s89, 0
      %p718 = por %p716, %p717
      %p719 = scmp.ne.s32.totalorder %s711, %s713
      %p720 = scmp.eq.s32.totalorder %s94, 1
      %p721 = por %p719, %p720
      %p722 = scmp.ne.s32.totalorder %s713, %s714
      %p723 = scmp.eq.s32.totalorder %s94, 0
      %p724 = por %p722, %p723
      %p725 = scmp.ne.s32.totalorder %s713, %s714
      %p726 = scmp.eq.s32.totalorder %s95, 1
      %p727 = por %p725, %p726
      %p729 = scmp.ne.s32.totalorder %s714, %s728
      %p730 = scmp.eq.s32.totalorder %s95, 0
      %p731 = por %p729, %p730
      %s733 = sadd.s32 %s732, 1
      %p736 = scmp.eq.s32.totalorder %s89, 1
      %p737 = scmp.ne.s32.totalorder %s732, %s734
      %p738 = scmp.eq.s32.totalorder %s89, 0
      %p739 = por %p737, %p738
      %p740 = scmp.ne.s32.totalorder %s732, %s734
      %p741 = scmp.eq.s32.totalorder %s94, 1
      %p742 = por %p740, %p741
      %p743 = scmp.ne.s32.totalorder %s734, %s735
      %p744 = scmp.eq.s32.totalorder %s94, 0
      %p745 = por %p743, %p744
      %p746 = scmp.ne.s32.totalorder %s734, %s735
      %p747 = scmp.eq.s32.totalorder %s95, 1
      %p748 = por %p746, %p747
      %p750 = scmp.ne.s32.totalorder %s735, %s749
      %p751 = scmp.eq.s32.totalorder %s95, 0
      %p752 = por %p750, %p751
      %s754 = sadd.s32 %s753, 1
      %p757 = scmp.eq.s32.totalorder %s89, 1
      %p758 = scmp.ne.s32.totalorder %s753, %s755
      %p759 = scmp.eq.s32.totalorder %s89, 0
      %p760 = por %p758, %p759
      %p761 = scmp.ne.s32.totalorder %s753, %s755
      %p762 = scmp.eq.s32.totalorder %s94, 1
      %p763 = por %p761, %p762
      %p764 = scmp.ne.s32.totalorder %s755, %s756
      %p765 = scmp.eq.s32.totalorder %s94, 0
      %p766 = por %p764, %p765
      %p767 = scmp.ne.s32.totalorder %s755, %s756
      %p768 = scmp.eq.s32.totalorder %s95, 1
      %p769 = por %p767, %p768
      %p771 = scmp.ne.s32.totalorder %s756, %s770
      %p772 = scmp.eq.s32.totalorder %s95, 0
      %p773 = por %p771, %p772
      %s775 = sadd.s32 %s774, 1
      %p778 = scmp.eq.s32.totalorder %s89, 1
      %p779 = scmp.ne.s32.totalorder %s774, %s776
      %p780 = scmp.eq.s32.totalorder %s89, 0
      %p781 = por %p779, %p780
      %p782 = scmp.ne.s32.totalorder %s774, %s776
      %p783 = scmp.eq.s32.totalorder %s94, 1
      %p784 = por %p782, %p783
      %p785 = scmp.ne.s32.totalorder %s776, %s777
      %p786 = scmp.eq.s32.totalorder %s94, 0
      %p787 = por %p785, %p786
      %p788 = scmp.ne.s32.totalorder %s776, %s777
      %p789 = scmp.eq.s32.totalorder %s95, 1
      %p790 = por %p788, %p789
      %p792 = scmp.ne.s32.totalorder %s777, %s791
      %p793 = scmp.eq.s32.totalorder %s95, 0
      %p794 = por %p792, %p793
      %s796 = sadd.s32 %s795, 1
      %p799 = scmp.eq.s32.totalorder %s89, 1
      %p800 = scmp.ne.s32.totalorder %s795, %s797
      %p801 = scmp.eq.s32.totalorder %s89, 0
      %p802 = por %p800, %p801
      %p803 = scmp.ne.s32.totalorder %s795, %s797
      %p804 = scmp.eq.s32.totalorder %s94, 1
      %p805 = por %p803, %p804
      %p806 = scmp.ne.s32.totalorder %s797, %s798
      %p807 = scmp.eq.s32.totalorder %s94, 0
      %p808 = por %p806, %p807
      %p809 = scmp.ne.s32.totalorder %s797, %s798
      %p810 = scmp.eq.s32.totalorder %s95, 1
      %p811 = por %p809, %p810
      %p813 = scmp.ne.s32.totalorder %s798, %s812
      %p814 = scmp.eq.s32.totalorder %s95, 0
      %p815 = por %p813, %p814
      %s817 = sadd.s32 %s816, 1
      %p820 = scmp.eq.s32.totalorder %s89, 1
      %p821 = scmp.ne.s32.totalorder %s816, %s818
      %p822 = scmp.eq.s32.totalorder %s89, 0
      %p823 = por %p821, %p822
      %p824 = scmp.ne.s32.totalorder %s816, %s818
      %p825 = scmp.eq.s32.totalorder %s94, 1
      %p826 = por %p824, %p825
      %p827 = scmp.ne.s32.totalorder %s818, %s819
      %p828 = scmp.eq.s32.totalorder %s94, 0
      %p829 = por %p827, %p828
      %p830 = scmp.ne.s32.totalorder %s818, %s819
      %p831 = scmp.eq.s32.totalorder %s95, 1
      %p832 = por %p830, %p831
      %p834 = scmp.ne.s32.totalorder %s819, %s833
      %p835 = scmp.eq.s32.totalorder %s95, 0
      %p836 = por %p834, %p835
      %s838 = sadd.s32 %s837, 1
      %p841 = scmp.eq.s32.totalorder %s89, 1
      %p842 = scmp.ne.s32.totalorder %s837, %s839
      %p843 = scmp.eq.s32.totalorder %s89, 0
      %p844 = por %p842, %p843
      %p845 = scmp.ne.s32.totalorder %s837, %s839
      %p846 = scmp.eq.s32.totalorder %s94, 1
      %p847 = por %p845, %p846
      %p848 = scmp.ne.s32.totalorder %s839, %s840
      %p849 = scmp.eq.s32.totalorder %s94, 0
      %p850 = por %p848, %p849
      %p851 = scmp.ne.s32.totalorder %s839, %s840
      %p852 = scmp.eq.s32.totalorder %s95, 1
      %p853 = por %p851, %p852
      %p855 = scmp.ne.s32.totalorder %s840, %s854
      %p856 = scmp.eq.s32.totalorder %s95, 0
      %p857 = por %p855, %p856
      %s858 = ssub.s32 %s89, %s96
      %p859 = scmp.eq.s32.totalorder %s858, 0
      %s861 = sadd.s32 %s860, 1
      %s862 = scalar_select %p859, %s860, %s861
      %p865 = pneg %p859
      %p866 = scmp.eq.s32.totalorder %s89, 1
      %p867 = por %p865, %p866
      %p868 = scmp.ne.s32.totalorder %s860, %s863
      %p869 = scmp.eq.s32.totalorder %s89, 0
      %p870 = por %p868, %p869
      %p871 = scmp.ne.s32.totalorder %s860, %s863
      %p872 = scmp.eq.s32.totalorder %s94, 1
      %p873 = por %p871, %p872
      %p874 = scmp.ne.s32.totalorder %s863, %s864
      %p875 = scmp.eq.s32.totalorder %s94, 0
      %p876 = por %p874, %p875
      %p877 = scmp.ne.s32.totalorder %s863, %s864
      %p878 = scmp.eq.s32.totalorder %s95, 1
      %p879 = por %p877, %p878
      %p881 = scmp.ne.s32.totalorder %s864, %s880
      %p882 = scmp.eq.s32.totalorder %s95, 0
      %p883 = por %p881, %p882
      %p884 = scmp.le.s32.totalorder 1, %s89
      %p885 = scmp.lt.s32.totalorder %s89, 3
      %p886 = pnand %p884, %p885
      %p887 = pneg %p886
      // Predicated region
      $region9: #{sta_mgcn_submodule_forward.1} parent=5 // pred_check
        _
      $region10: #{sta_mgcn_submodule_forward.1} parent=5 // pred_check_branch
        %889 = sbr.rel (%p886) target = $region12
      $region11: #{sta_mgcn_submodule_forward.1} parent=5 // pred_region
        %s890 = ssub.s32 %s89, 1
        // Predicated region
        $region13: #{sta_mgcn_submodule_forward.1} parent=11 // pred_check
          %p891 = pneg %p136
        $region14: #{sta_mgcn_submodule_forward.1} parent=11 // pred_check_branch
          %893 = sbr.rel (%p891) target = $region16
        $region15: #{sta_mgcn_submodule_forward.1} parent=11 // pred_region
          _
        $region16: #{sta_mgcn_submodule_forward.1} parent=11 // pred_fallthru
          _
        // Predicated region
        $region17: #{sta_mgcn_submodule_forward.1} parent=11 // pred_check
          %p894 = pneg %p157
        $region18: #{sta_mgcn_submodule_forward.1} parent=11 // pred_check_branch
          %896 = sbr.rel (%p894) target = $region20
        $region19: #{sta_mgcn_submodule_forward.1} parent=11 // pred_region
          %s898 = ssub.s32 64, 64
          %899 = vsyncadd [#allocation3], %s898
          %s901 = sshll.u32 [#allocation2], 4
          %s902 = int_to_ptr.vmem [resolvable:$true] %s901
          %904 = dma.hbm_to_vmem [thread:$0]  %s5, 64, %s902, [#allocation3]
        $region20: #{sta_mgcn_submodule_forward.1} parent=11 // pred_fallthru
          _
        // Predicated region
        $region21: #{sta_mgcn_submodule_forward.1} parent=11 // pred_check
          %p905 = pneg %p178
        $region22: #{sta_mgcn_submodule_forward.1} parent=11 // pred_check_branch
          %907 = sbr.rel (%p905) target = $region24
        $region23: #{sta_mgcn_submodule_forward.1} parent=11 // pred_region
          %s909 = ssub.s32 64, 64
          %910 = vsyncadd [#allocation5], %s909
          %s912 = sshll.u32 [#allocation4], 4
          %s913 = int_to_ptr.vmem [resolvable:$true] %s912
          %915 = dma.hbm_to_vmem [thread:$0]  %s7, 64, %s913, [#allocation5]
        $region24: #{sta_mgcn_submodule_forward.1} parent=11 // pred_fallthru
          _
        // Predicated region
        $region25: #{sta_mgcn_submodule_forward.1} parent=11 // pred_check
          %p916 = pneg %p199
        $region26: #{sta_mgcn_submodule_forward.1} parent=11 // pred_check_branch
          %918 = sbr.rel (%p916) target = $region28
        $region27: #{sta_mgcn_submodule_forward.1} parent=11 // pred_region
          %s920 = ssub.s32 16, 16
          %921 = vsyncadd [#allocation5], %s920
          %s923 = sshll.u32 [#allocation6], 4
          %s924 = int_to_ptr.vmem [resolvable:$true] %s923
          %926 = dma.hbm_to_vmem [thread:$0]  %s9, 16, %s924, [#allocation5]
        $region28: #{sta_mgcn_submodule_forward.1} parent=11 // pred_fallthru
          _
        // Predicated region
        $region29: #{sta_mgcn_submodule_forward.1} parent=11 // pred_check
          %p927 = pneg %p220
        $region30: #{sta_mgcn_submodule_forward.1} parent=11 // pred_check_branch
          %929 = sbr.rel (%p927) target = $region32
        $region31: #{sta_mgcn_submodule_forward.1} parent=11 // pred_region
          %s931 = ssub.s32 64, 64
          %932 = vsyncadd [#allocation8], %s931
          %s934 = sshll.u32 [#allocation7], 4
          %s935 = int_to_ptr.vmem [resolvable:$true] %s934
          %937 = dma.hbm_to_vmem [thread:$0]  %s11, 64, %s935, [#allocation8]
        $region32: #{sta_mgcn_submodule_forward.1} parent=11 // pred_fallthru
          _
        // Predicated region
        $region33: #{sta_mgcn_submodule_forward.1} parent=11 // pred_check
          %p938 = pneg %p241
        $region34: #{sta_mgcn_submodule_forward.1} parent=11 // pred_check_branch
          %940 = sbr.rel (%p938) target = $region36
        $region35: #{sta_mgcn_submodule_forward.1} parent=11 // pred_region
          %s942 = ssub.s32 64, 64
          %943 = vsyncadd [#allocation8], %s942
          %s945 = sshll.u32 [#allocation9], 4
          %s946 = int_to_ptr.vmem [resolvable:$true] %s945
          %948 = dma.hbm_to_vmem [thread:$0]  %s13, 64, %s946, [#allocation8]
        $region36: #{sta_mgcn_submodule_forward.1} parent=11 // pred_fallthru
          _
        // Predicated region
        $region37: #{sta_mgcn_submodule_forward.1} parent=11 // pred_check
          %p949 = pneg %p262
        $region38: #{sta_mgcn_submodule_forward.1} parent=11 // pred_check_branch
          %951 = sbr.rel (%p949) target = $region40
        $region39: #{sta_mgcn_submodule_forward.1} parent=11 // pred_region
          %s953 = ssub.s32 192, 192
          %954 = vsyncadd [#allocation11], %s953
          %s955 = sshll.u32 [#allocation10], 4
          %s956 = int_to_ptr.vmem [resolvable:$true] %s955
          %961 = dma.hbm_to_vmem [thread:$0]  %s15, 192, %s956, [#allocation11], 64, 64, 4
        $region40: #{sta_mgcn_submodule_forward.1} parent=11 // pred_fallthru
          _
        // Predicated region
        $region41: #{sta_mgcn_submodule_forward.1} parent=11 // pred_check
          %p962 = pneg %p283
        $region42: #{sta_mgcn_submodule_forward.1} parent=11 // pred_check_branch
          %964 = sbr.rel (%p962) target = $region44
        $region43: #{sta_mgcn_submodule_forward.1} parent=11 // pred_region
          %s966 = ssub.s32 48, 48
          %967 = vsyncadd [#allocation11], %s966
          %s968 = sshll.u32 [#allocation12], 4
          %s969 = int_to_ptr.vmem [resolvable:$true] %s968
          %974 = dma.hbm_to_vmem [thread:$0]  %s17, 48, %s969, [#allocation11], 16, 16, 1
        $region44: #{sta_mgcn_submodule_forward.1} parent=11 // pred_fallthru
          _
        // Predicated region
        $region45: #{sta_mgcn_submodule_forward.1} parent=11 // pred_check
          %p975 = pneg %p304
        $region46: #{sta_mgcn_submodule_forward.1} parent=11 // pred_check_branch
          %977 = sbr.rel (%p975) target = $region48
        $region47: #{sta_mgcn_submodule_forward.1} parent=11 // pred_region
          %s979 = ssub.s32 384, 384
          %980 = vsyncadd [#allocation14], %s979
          %s981 = sshll.u32 [#allocation13], 4
          %s982 = int_to_ptr.vmem [resolvable:$true] %s981
          %987 = dma.hbm_to_vmem [thread:$0]  %s19, 384, %s982, [#allocation14], 128, 128, 8
        $region48: #{sta_mgcn_submodule_forward.1} parent=11 // pred_fallthru
          _
        // Predicated region
        $region49: #{sta_mgcn_submodule_forward.1} parent=11 // pred_check
          %p988 = pneg %p325
        $region50: #{sta_mgcn_submodule_forward.1} parent=11 // pred_check_branch
          %990 = sbr.rel (%p988) target = $region52
        $region51: #{sta_mgcn_submodule_forward.1} parent=11 // pred_region
          %s992 = ssub.s32 384, 384
          %993 = vsyncadd [#allocation14], %s992
          %s994 = sshll.u32 [#allocation15], 4
          %s995 = int_to_ptr.vmem [resolvable:$true] %s994
          %1000 = dma.hbm_to_vmem [thread:$0]  %s21, 384, %s995, [#allocation14], 128, 128, 8
        $region52: #{sta_mgcn_submodule_forward.1} parent=11 // pred_fallthru
          _
        // Predicated region
        $region53: #{sta_mgcn_submodule_forward.1} parent=11 // pred_check
          %p1001 = pneg %p346
        $region54: #{sta_mgcn_submodule_forward.1} parent=11 // pred_check_branch
          %1003 = sbr.rel (%p1001) target = $region56
        $region55: #{sta_mgcn_submodule_forward.1} parent=11 // pred_region
          %s1005 = ssub.s32 16, 16
          %1006 = vsyncadd [#allocation17], %s1005
          %s1008 = sshll.u32 [#allocation16], 4
          %s1009 = int_to_ptr.vmem [resolvable:$true] %s1008
          %1011 = dma.hbm_to_vmem [thread:$0]  %s23, 16, %s1009, [#allocation17]
        $region56: #{sta_mgcn_submodule_forward.1} parent=11 // pred_fallthru
          _
        // Predicated region
        $region57: #{sta_mgcn_submodule_forward.1} parent=11 // pred_check
          %p1012 = pneg %p367
        $region58: #{sta_mgcn_submodule_forward.1} parent=11 // pred_check_branch
          %1014 = sbr.rel (%p1012) target = $region60
        $region59: #{sta_mgcn_submodule_forward.1} parent=11 // pred_region
          %s1016 = ssub.s32 16, 16
          %1017 = vsyncadd [#allocation17], %s1016
          %s1019 = sshll.u32 [#allocation18], 4
          %s1020 = int_to_ptr.vmem [resolvable:$true] %s1019
          %1022 = dma.hbm_to_vmem [thread:$0]  %s25, 16, %s1020, [#allocation17]
        $region60: #{sta_mgcn_submodule_forward.1} parent=11 // pred_fallthru
          _
        // Predicated region
        $region61: #{sta_mgcn_submodule_forward.1} parent=11 // pred_check
          %p1023 = pneg %p388
        $region62: #{sta_mgcn_submodule_forward.1} parent=11 // pred_check_branch
          %1025 = sbr.rel (%p1023) target = $region64
        $region63: #{sta_mgcn_submodule_forward.1} parent=11 // pred_region
          %s1027 = ssub.s32 64, 64
          %1028 = vsyncadd [#allocation20], %s1027
          %s1030 = sshll.u32 [#allocation19], 4
          %s1031 = int_to_ptr.vmem [resolvable:$true] %s1030
          %1033 = dma.hbm_to_vmem [thread:$0]  %s27, 64, %s1031, [#allocation20]
        $region64: #{sta_mgcn_submodule_forward.1} parent=11 // pred_fallthru
          _
        // Predicated region
        $region65: #{sta_mgcn_submodule_forward.1} parent=11 // pred_check
          %p1034 = pneg %p409
        $region66: #{sta_mgcn_submodule_forward.1} parent=11 // pred_check_branch
          %1036 = sbr.rel (%p1034) target = $region68
        $region67: #{sta_mgcn_submodule_forward.1} parent=11 // pred_region
          %s1038 = ssub.s32 16, 16
          %1039 = vsyncadd [#allocation20], %s1038
          %s1041 = sshll.u32 [#allocation21], 4
          %s1042 = int_to_ptr.vmem [resolvable:$true] %s1041
          %1044 = dma.hbm_to_vmem [thread:$0]  %s29, 16, %s1042, [#allocation20]
        $region68: #{sta_mgcn_submodule_forward.1} parent=11 // pred_fallthru
          _
        // Predicated region
        $region69: #{sta_mgcn_submodule_forward.1} parent=11 // pred_check
          %p1045 = pneg %p430
        $region70: #{sta_mgcn_submodule_forward.1} parent=11 // pred_check_branch
          %1047 = sbr.rel (%p1045) target = $region72
        $region71: #{sta_mgcn_submodule_forward.1} parent=11 // pred_region
          _
        $region72: #{sta_mgcn_submodule_forward.1} parent=11 // pred_fallthru
          _
        // Predicated region
        $region73: #{sta_mgcn_submodule_forward.1} parent=11 // pred_check
          %p1048 = pneg %p451
        $region74: #{sta_mgcn_submodule_forward.1} parent=11 // pred_check_branch
          %1050 = sbr.rel (%p1048) target = $region76
        $region75: #{sta_mgcn_submodule_forward.1} parent=11 // pred_region
          _
        $region76: #{sta_mgcn_submodule_forward.1} parent=11 // pred_fallthru
          _
        // Predicated region
        $region77: #{sta_mgcn_submodule_forward.1} parent=11 // pred_check
          %p1051 = pneg %p472
        $region78: #{sta_mgcn_submodule_forward.1} parent=11 // pred_check_branch
          %1053 = sbr.rel (%p1051) target = $region80
        $region79: #{sta_mgcn_submodule_forward.1} parent=11 // pred_region
          %s1055 = ssub.s32 64, 64
          %1056 = vsyncadd [#allocation23], %s1055
          %s1058 = sshll.u32 [#allocation22], 4
          %s1059 = int_to_ptr.vmem [resolvable:$true] %s1058
          %1061 = dma.hbm_to_vmem [thread:$0]  %s35, 64, %s1059, [#allocation23]
        $region80: #{sta_mgcn_submodule_forward.1} parent=11 // pred_fallthru
          _
        // Predicated region
        $region81: #{sta_mgcn_submodule_forward.1} parent=11 // pred_check
          %p1062 = pneg %p493
        $region82: #{sta_mgcn_submodule_forward.1} parent=11 // pred_check_branch
          %1064 = sbr.rel (%p1062) target = $region84
        $region83: #{sta_mgcn_submodule_forward.1} parent=11 // pred_region
          _
        $region84: #{sta_mgcn_submodule_forward.1} parent=11 // pred_fallthru
          _
        // Predicated region
        $region85: #{sta_mgcn_submodule_forward.1} parent=11 // pred_check
          %p1065 = pneg %p514
        $region86: #{sta_mgcn_submodule_forward.1} parent=11 // pred_check_branch
          %1067 = sbr.rel (%p1065) target = $region88
        $region87: #{sta_mgcn_submodule_forward.1} parent=11 // pred_region
          %s1069 = ssub.s32 16, 16
          %1070 = vsyncadd [#allocation23], %s1069
          %s1072 = sshll.u32 [#allocation24], 4
          %s1073 = int_to_ptr.vmem [resolvable:$true] %s1072
          %1075 = dma.hbm_to_vmem [thread:$0]  %s39, 16, %s1073, [#allocation23]
        $region88: #{sta_mgcn_submodule_forward.1} parent=11 // pred_fallthru
          _
        // Predicated region
        $region89: #{sta_mgcn_submodule_forward.1} parent=11 // pred_check
          %p1076 = pneg %p535
        $region90: #{sta_mgcn_submodule_forward.1} parent=11 // pred_check_branch
          %1078 = sbr.rel (%p1076) target = $region92
        $region91: #{sta_mgcn_submodule_forward.1} parent=11 // pred_region
          %s1080 = ssub.s32 64, 64
          %1081 = vsyncadd [#allocation26], %s1080
          %s1083 = sshll.u32 [#allocation25], 4
          %s1084 = int_to_ptr.vmem [resolvable:$true] %s1083
          %1086 = dma.hbm_to_vmem [thread:$0]  %s41, 64, %s1084, [#allocation26]
        $region92: #{sta_mgcn_submodule_forward.1} parent=11 // pred_fallthru
          _
        // Predicated region
        $region93: #{sta_mgcn_submodule_forward.1} parent=11 // pred_check
          %p1087 = pneg %p556
        $region94: #{sta_mgcn_submodule_forward.1} parent=11 // pred_check_branch
          %1089 = sbr.rel (%p1087) target = $region96
        $region95: #{sta_mgcn_submodule_forward.1} parent=11 // pred_region
          %s1091 = ssub.s32 64, 64
          %1092 = vsyncadd [#allocation26], %s1091
          %s1094 = sshll.u32 [#allocation27], 4
          %s1095 = int_to_ptr.vmem [resolvable:$true] %s1094
          %1097 = dma.hbm_to_vmem [thread:$0]  %s43, 64, %s1095, [#allocation26]
        $region96: #{sta_mgcn_submodule_forward.1} parent=11 // pred_fallthru
          _
        // Predicated region
        $region97: #{sta_mgcn_submodule_forward.1} parent=11 // pred_check
          %p1098 = pneg %p577
        $region98: #{sta_mgcn_submodule_forward.1} parent=11 // pred_check_branch
          %1100 = sbr.rel (%p1098) target = $region100
        $region99: #{sta_mgcn_submodule_forward.1} parent=11 // pred_region
          _
        $region100: #{sta_mgcn_submodule_forward.1} parent=11 // pred_fallthru
          _
        // Predicated region
        $region101: #{sta_mgcn_submodule_forward.1} parent=11 // pred_check
          %p1101 = pneg %p598
        $region102: #{sta_mgcn_submodule_forward.1} parent=11 // pred_check_branch
          %1103 = sbr.rel (%p1101) target = $region104
        $region103: #{sta_mgcn_submodule_forward.1} parent=11 // pred_region
          _
        $region104: #{sta_mgcn_submodule_forward.1} parent=11 // pred_fallthru
          _
        // Predicated region
        $region105: #{sta_mgcn_submodule_forward.1} parent=11 // pred_check
          %p1104 = pneg %p619
        $region106: #{sta_mgcn_submodule_forward.1} parent=11 // pred_check_branch
          %1106 = sbr.rel (%p1104) target = $region108
        $region107: #{sta_mgcn_submodule_forward.1} parent=11 // pred_region
          _
        $region108: #{sta_mgcn_submodule_forward.1} parent=11 // pred_fallthru
          _
        // Predicated region
        $region109: #{sta_mgcn_submodule_forward.1} parent=11 // pred_check
          %p1107 = pneg %p640
        $region110: #{sta_mgcn_submodule_forward.1} parent=11 // pred_check_branch
          %1109 = sbr.rel (%p1107) target = $region112
        $region111: #{sta_mgcn_submodule_forward.1} parent=11 // pred_region
          _
        $region112: #{sta_mgcn_submodule_forward.1} parent=11 // pred_fallthru
          _
        // Predicated region
        $region113: #{sta_mgcn_submodule_forward.1} parent=11 // pred_check
          %p1110 = pneg %p661
        $region114: #{sta_mgcn_submodule_forward.1} parent=11 // pred_check_branch
          %1112 = sbr.rel (%p1110) target = $region116
        $region115: #{sta_mgcn_submodule_forward.1} parent=11 // pred_region
          _
        $region116: #{sta_mgcn_submodule_forward.1} parent=11 // pred_fallthru
          _
        // Predicated region
        $region117: #{sta_mgcn_submodule_forward.1} parent=11 // pred_check
          %p1113 = pneg %p682
        $region118: #{sta_mgcn_submodule_forward.1} parent=11 // pred_check_branch
          %1115 = sbr.rel (%p1113) target = $region120
        $region119: #{sta_mgcn_submodule_forward.1} parent=11 // pred_region
          _
        $region120: #{sta_mgcn_submodule_forward.1} parent=11 // pred_fallthru
          _
        // Predicated region
        $region121: #{sta_mgcn_submodule_forward.1} parent=11 // pred_check
          %p1116 = pneg %p703
        $region122: #{sta_mgcn_submodule_forward.1} parent=11 // pred_check_branch
          %1118 = sbr.rel (%p1116) target = $region124
        $region123: #{sta_mgcn_submodule_forward.1} parent=11 // pred_region
          _
        $region124: #{sta_mgcn_submodule_forward.1} parent=11 // pred_fallthru
          _
        // Predicated region
        $region125: #{sta_mgcn_submodule_forward.1} parent=11 // pred_check
          %p1119 = pneg %p724
        $region126: #{sta_mgcn_submodule_forward.1} parent=11 // pred_check_branch
          %1121 = sbr.rel (%p1119) target = $region128
        $region127: #{sta_mgcn_submodule_forward.1} parent=11 // pred_region
          _
        $region128: #{sta_mgcn_submodule_forward.1} parent=11 // pred_fallthru
          _
        // Predicated region
        $region129: #{sta_mgcn_submodule_forward.1} parent=11 // pred_check
          %p1122 = pneg %p745
        $region130: #{sta_mgcn_submodule_forward.1} parent=11 // pred_check_branch
          %1124 = sbr.rel (%p1122) target = $region132
        $region131: #{sta_mgcn_submodule_forward.1} parent=11 // pred_region
          _
        $region132: #{sta_mgcn_submodule_forward.1} parent=11 // pred_fallthru
          _
        // Predicated region
        $region133: #{sta_mgcn_submodule_forward.1} parent=11 // pred_check
          %p1125 = pneg %p766
        $region134: #{sta_mgcn_submodule_forward.1} parent=11 // pred_check_branch
          %1127 = sbr.rel (%p1125) target = $region136
        $region135: #{sta_mgcn_submodule_forward.1} parent=11 // pred_region
          _
        $region136: #{sta_mgcn_submodule_forward.1} parent=11 // pred_fallthru
          _
        // Predicated region
        $region137: #{sta_mgcn_submodule_forward.1} parent=11 // pred_check
          %p1128 = pneg %p787
        $region138: #{sta_mgcn_submodule_forward.1} parent=11 // pred_check_branch
          %1130 = sbr.rel (%p1128) target = $region140
        $region139: #{sta_mgcn_submodule_forward.1} parent=11 // pred_region
          %s1132 = ssub.s32 6144, 6144
          %1133 = vsyncadd [#allocation29], %s1132
          %s1134 = sshll.u32 [#allocation28], 4
          %s1135 = int_to_ptr.vmem [resolvable:$true] %s1134
          %1140 = dma.hbm_to_vmem [thread:$0]  %s65, 6144, %s1135, [#allocation29], 128, 128, 8
        $region140: #{sta_mgcn_submodule_forward.1} parent=11 // pred_fallthru
          _
        // Predicated region
        $region141: #{sta_mgcn_submodule_forward.1} parent=11 // pred_check
          %p1141 = pneg %p808
        $region142: #{sta_mgcn_submodule_forward.1} parent=11 // pred_check_branch
          %1143 = sbr.rel (%p1141) target = $region144
        $region143: #{sta_mgcn_submodule_forward.1} parent=11 // pred_region
          _
        $region144: #{sta_mgcn_submodule_forward.1} parent=11 // pred_fallthru
          _
        // Predicated region
        $region145: #{sta_mgcn_submodule_forward.1} parent=11 // pred_check
          %p1144 = pneg %p829
        $region146: #{sta_mgcn_submodule_forward.1} parent=11 // pred_check_branch
          %1146 = sbr.rel (%p1144) target = $region148
        $region147: #{sta_mgcn_submodule_forward.1} parent=11 // pred_region
          %s1148 = ssub.s32 4096, 4096
          %1149 = vsyncadd [#allocation29], %s1148
          %s1150 = sshll.u32 [#allocation30], 4
          %s1151 = int_to_ptr.vmem [resolvable:$true] %s1150
          %1156 = dma.hbm_to_vmem [thread:$0]  %s69, 4096, %s1151, [#allocation29], 128, 128, 8
        $region148: #{sta_mgcn_submodule_forward.1} parent=11 // pred_fallthru
          _
        // Predicated region
        $region149: #{sta_mgcn_submodule_forward.1} parent=11 // pred_check
          %p1157 = pneg %p850
        $region150: #{sta_mgcn_submodule_forward.1} parent=11 // pred_check_branch
          %1159 = sbr.rel (%p1157) target = $region152
        $region151: #{sta_mgcn_submodule_forward.1} parent=11 // pred_region
          _
        $region152: #{sta_mgcn_submodule_forward.1} parent=11 // pred_fallthru
          _
      $region12: #{sta_mgcn_submodule_forward.1} parent=5 // pred_fallthru
        _
      %p1160 = scmp.lt.s32.totalorder %s89, 2
      // Predicated region
      $region153: #{sta_mgcn_submodule_forward.1} parent=5 // pred_check
        %p1161 = pneg %p1160
      $region154: #{sta_mgcn_submodule_forward.1} parent=5 // pred_check_branch
        %1163 = sbr.rel (%p1161) target = $region156
      $region155: #{sta_mgcn_submodule_forward.1} parent=5 // pred_region
        // Predicated region
        $region157: #{sta_mgcn_submodule_forward.1} parent=155 // pred_check
          %p1164 = pneg %p109
        $region158: #{sta_mgcn_submodule_forward.1} parent=155 // pred_check_branch
          %1166 = sbr.rel (%p1164) target = $region160
        $region159: #{sta_mgcn_submodule_forward.1} parent=155 // pred_region
          %p1167 = scmp.lt.s32.totalorder %s89, 1
          %s1168 = scalar_select %p1167, %s89, 1
          %s1169 = smul.addr %s1168, 3
          %s1170 = smul.addr %s1169, 8
          %s1171 = scalar_lea.vmem %s1, %s1170
        $region160: #{sta_mgcn_submodule_forward.1} parent=155 // pred_fallthru
          _
      $region156: #{sta_mgcn_submodule_forward.1} parent=5 // pred_fallthru
        _
      %p1172 = scmp.le.s32.totalorder 1, %s89
      %p1173 = scmp.lt.s32.totalorder %s89, 3
      %p1174 = pnand %p1172, %p1173
      %p1175 = pneg %p1174
      // Predicated region
      $region161: #{sta_mgcn_submodule_forward.1} parent=5 // pred_check
        _
      $region162: #{sta_mgcn_submodule_forward.1} parent=5 // pred_check_branch
        %1177 = sbr.rel (%p1174) target = $region164
      $region163: #{sta_mgcn_submodule_forward.1} parent=5 // pred_region
        %s1178 = ssub.s32 %s89, 1
        // Predicated region
        $region165: #{sta_mgcn_submodule_forward.1} parent=163 // pred_check
          %p1179 = pneg %p157
        $region166: #{sta_mgcn_submodule_forward.1} parent=163 // pred_check_branch
          %1181 = sbr.rel (%p1179) target = $region168
        $region167: #{sta_mgcn_submodule_forward.1} parent=163 // pred_region
          %1182 = dma.done [#allocation3], 64
        $region168: #{sta_mgcn_submodule_forward.1} parent=163 // pred_fallthru
          _
        // Predicated region
        $region169: #{sta_mgcn_submodule_forward.1} parent=163 // pred_check
          %p1183 = pneg %p178
        $region170: #{sta_mgcn_submodule_forward.1} parent=163 // pred_check_branch
          %1185 = sbr.rel (%p1183) target = $region172
        $region171: #{sta_mgcn_submodule_forward.1} parent=163 // pred_region
          %1186 = dma.done [#allocation5], 64
        $region172: #{sta_mgcn_submodule_forward.1} parent=163 // pred_fallthru
          _
        // Predicated region
        $region173: #{sta_mgcn_submodule_forward.1} parent=163 // pred_check
          %p1187 = pneg %p199
        $region174: #{sta_mgcn_submodule_forward.1} parent=163 // pred_check_branch
          %1189 = sbr.rel (%p1187) target = $region176
        $region175: #{sta_mgcn_submodule_forward.1} parent=163 // pred_region
          %1190 = dma.done [#allocation5], 16
        $region176: #{sta_mgcn_submodule_forward.1} parent=163 // pred_fallthru
          _
        // Predicated region
        $region177: #{sta_mgcn_submodule_forward.1} parent=163 // pred_check
          %p1191 = pneg %p220
        $region178: #{sta_mgcn_submodule_forward.1} parent=163 // pred_check_branch
          %1193 = sbr.rel (%p1191) target = $region180
        $region179: #{sta_mgcn_submodule_forward.1} parent=163 // pred_region
          %1194 = dma.done [#allocation8], 64
        $region180: #{sta_mgcn_submodule_forward.1} parent=163 // pred_fallthru
          _
        // Predicated region
        $region181: #{sta_mgcn_submodule_forward.1} parent=163 // pred_check
          %p1195 = pneg %p241
        $region182: #{sta_mgcn_submodule_forward.1} parent=163 // pred_check_branch
          %1197 = sbr.rel (%p1195) target = $region184
        $region183: #{sta_mgcn_submodule_forward.1} parent=163 // pred_region
          %1198 = dma.done [#allocation8], 64
        $region184: #{sta_mgcn_submodule_forward.1} parent=163 // pred_fallthru
          _
        // Predicated region
        $region185: #{sta_mgcn_submodule_forward.1} parent=163 // pred_check
          %p1199 = pneg %p262
        $region186: #{sta_mgcn_submodule_forward.1} parent=163 // pred_check_branch
          %1201 = sbr.rel (%p1199) target = $region188
        $region187: #{sta_mgcn_submodule_forward.1} parent=163 // pred_region
          %1202 = dma.done [#allocation11], 192
        $region188: #{sta_mgcn_submodule_forward.1} parent=163 // pred_fallthru
          _
        // Predicated region
        $region189: #{sta_mgcn_submodule_forward.1} parent=163 // pred_check
          %p1203 = pneg %p283
        $region190: #{sta_mgcn_submodule_forward.1} parent=163 // pred_check_branch
          %1205 = sbr.rel (%p1203) target = $region192
        $region191: #{sta_mgcn_submodule_forward.1} parent=163 // pred_region
          %1206 = dma.done [#allocation11], 48
        $region192: #{sta_mgcn_submodule_forward.1} parent=163 // pred_fallthru
          _
        // Predicated region
        $region193: #{sta_mgcn_submodule_forward.1} parent=163 // pred_check
          %p1207 = pneg %p304
        $region194: #{sta_mgcn_submodule_forward.1} parent=163 // pred_check_branch
          %1209 = sbr.rel (%p1207) target = $region196
        $region195: #{sta_mgcn_submodule_forward.1} parent=163 // pred_region
          %1210 = dma.done [#allocation14], 384
        $region196: #{sta_mgcn_submodule_forward.1} parent=163 // pred_fallthru
          _
        // Predicated region
        $region197: #{sta_mgcn_submodule_forward.1} parent=163 // pred_check
          %p1211 = pneg %p325
        $region198: #{sta_mgcn_submodule_forward.1} parent=163 // pred_check_branch
          %1213 = sbr.rel (%p1211) target = $region200
        $region199: #{sta_mgcn_submodule_forward.1} parent=163 // pred_region
          %1214 = dma.done [#allocation14], 384
        $region200: #{sta_mgcn_submodule_forward.1} parent=163 // pred_fallthru
          _
        // Predicated region
        $region201: #{sta_mgcn_submodule_forward.1} parent=163 // pred_check
          %p1215 = pneg %p346
        $region202: #{sta_mgcn_submodule_forward.1} parent=163 // pred_check_branch
          %1217 = sbr.rel (%p1215) target = $region204
        $region203: #{sta_mgcn_submodule_forward.1} parent=163 // pred_region
          %1218 = dma.done [#allocation17], 16
        $region204: #{sta_mgcn_submodule_forward.1} parent=163 // pred_fallthru
          _
        // Predicated region
        $region205: #{sta_mgcn_submodule_forward.1} parent=163 // pred_check
          %p1219 = pneg %p367
        $region206: #{sta_mgcn_submodule_forward.1} parent=163 // pred_check_branch
          %1221 = sbr.rel (%p1219) target = $region208
        $region207: #{sta_mgcn_submodule_forward.1} parent=163 // pred_region
          %1222 = dma.done [#allocation17], 16
        $region208: #{sta_mgcn_submodule_forward.1} parent=163 // pred_fallthru
          _
        // Predicated region
        $region209: #{sta_mgcn_submodule_forward.1} parent=163 // pred_check
          %p1223 = pneg %p388
        $region210: #{sta_mgcn_submodule_forward.1} parent=163 // pred_check_branch
          %1225 = sbr.rel (%p1223) target = $region212
        $region211: #{sta_mgcn_submodule_forward.1} parent=163 // pred_region
          %1226 = dma.done [#allocation20], 64
        $region212: #{sta_mgcn_submodule_forward.1} parent=163 // pred_fallthru
          _
        // Predicated region
        $region213: #{sta_mgcn_submodule_forward.1} parent=163 // pred_check
          %p1227 = pneg %p409
        $region214: #{sta_mgcn_submodule_forward.1} parent=163 // pred_check_branch
          %1229 = sbr.rel (%p1227) target = $region216
        $region215: #{sta_mgcn_submodule_forward.1} parent=163 // pred_region
          %1230 = dma.done [#allocation20], 16
        $region216: #{sta_mgcn_submodule_forward.1} parent=163 // pred_fallthru
          _
        // Predicated region
        $region217: #{sta_mgcn_submodule_forward.1} parent=163 // pred_check
          %p1231 = pneg %p472
        $region218: #{sta_mgcn_submodule_forward.1} parent=163 // pred_check_branch
          %1233 = sbr.rel (%p1231) target = $region220
        $region219: #{sta_mgcn_submodule_forward.1} parent=163 // pred_region
          %1234 = dma.done [#allocation23], 64
        $region220: #{sta_mgcn_submodule_forward.1} parent=163 // pred_fallthru
          _
        // Predicated region
        $region221: #{sta_mgcn_submodule_forward.1} parent=163 // pred_check
          %p1235 = pneg %p514
        $region222: #{sta_mgcn_submodule_forward.1} parent=163 // pred_check_branch
          %1237 = sbr.rel (%p1235) target = $region224
        $region223: #{sta_mgcn_submodule_forward.1} parent=163 // pred_region
          %1238 = dma.done [#allocation23], 16
        $region224: #{sta_mgcn_submodule_forward.1} parent=163 // pred_fallthru
          _
        // Predicated region
        $region225: #{sta_mgcn_submodule_forward.1} parent=163 // pred_check
          %p1239 = pneg %p535
        $region226: #{sta_mgcn_submodule_forward.1} parent=163 // pred_check_branch
          %1241 = sbr.rel (%p1239) target = $region228
        $region227: #{sta_mgcn_submodule_forward.1} parent=163 // pred_region
          %1242 = dma.done [#allocation26], 64
        $region228: #{sta_mgcn_submodule_forward.1} parent=163 // pred_fallthru
          _
        // Predicated region
        $region229: #{sta_mgcn_submodule_forward.1} parent=163 // pred_check
          %p1243 = pneg %p556
        $region230: #{sta_mgcn_submodule_forward.1} parent=163 // pred_check_branch
          %1245 = sbr.rel (%p1243) target = $region232
        $region231: #{sta_mgcn_submodule_forward.1} parent=163 // pred_region
          %1246 = dma.done [#allocation26], 64
        $region232: #{sta_mgcn_submodule_forward.1} parent=163 // pred_fallthru
          _
        // Predicated region
        $region233: #{sta_mgcn_submodule_forward.1} parent=163 // pred_check
          %p1247 = pneg %p787
        $region234: #{sta_mgcn_submodule_forward.1} parent=163 // pred_check_branch
          %1249 = sbr.rel (%p1247) target = $region236
        $region235: #{sta_mgcn_submodule_forward.1} parent=163 // pred_region
          %1250 = dma.done [#allocation29], 6144
        $region236: #{sta_mgcn_submodule_forward.1} parent=163 // pred_fallthru
          _
        // Predicated region
        $region237: #{sta_mgcn_submodule_forward.1} parent=163 // pred_check
          %p1251 = pneg %p829
        $region238: #{sta_mgcn_submodule_forward.1} parent=163 // pred_check_branch
          %1253 = sbr.rel (%p1251) target = $region240
        $region239: #{sta_mgcn_submodule_forward.1} parent=163 // pred_region
          %1254 = dma.done [#allocation29], 4096
        $region240: #{sta_mgcn_submodule_forward.1} parent=163 // pred_fallthru
          _
        %p1255 = scmp.lt.s32.totalorder %s94, 1
        %s1256 = scalar_select %p1255, %s94, 1
        %s1257 = smul.addr %s1256, 3
        %s1258 = smul.addr %s1257, 8
        %s1259 = scalar_lea.vmem %s1, %s1258
        %p1260 = pneg %p115
        %p1261 = pneg %p112
        %p1262 = pneg %p136
        %p1263 = pneg %p133
        %p1264 = pneg %p157
        %p1265 = pneg %p154
        %p1266 = pneg %p178
        %p1267 = pneg %p175
        %p1268 = pneg %p199
        %p1269 = pneg %p196
        %p1270 = pneg %p220
        %p1271 = pneg %p217
        %p1272 = pneg %p241
        %p1273 = pneg %p238
        %p1274 = pneg %p262
        %p1275 = pneg %p259
        %p1276 = pneg %p283
        %p1277 = pneg %p280
        %p1278 = pneg %p304
        %p1279 = pneg %p301
        %p1280 = pneg %p325
        %p1281 = pneg %p322
        %p1282 = pneg %p346
        %p1283 = pneg %p343
        %p1284 = pneg %p367
        %p1285 = pneg %p364
        %p1286 = pneg %p388
        %p1287 = pneg %p385
        %p1288 = pneg %p409
        %p1289 = pneg %p406
        %p1290 = pneg %p430
        %p1291 = pneg %p427
        %p1292 = pneg %p451
        %p1293 = pneg %p448
        %p1294 = pneg %p472
        %p1295 = pneg %p469
        %p1296 = pneg %p493
        %p1297 = pneg %p490
        %p1298 = pneg %p514
        %p1299 = pneg %p511
        %p1300 = pneg %p535
        %p1301 = pneg %p532
        %p1302 = pneg %p556
        %p1303 = pneg %p553
        %p1304 = pneg %p577
        %p1305 = pneg %p574
        %p1306 = pneg %p598
        %p1307 = pneg %p595
        %p1308 = pneg %p619
        %p1309 = pneg %p616
        %p1310 = pneg %p640
        %p1311 = pneg %p637
        %p1312 = pneg %p661
        %p1313 = pneg %p658
        %p1314 = pneg %p682
        %p1315 = pneg %p679
        %p1316 = pneg %p703
        %p1317 = pneg %p700
        %p1318 = pneg %p724
        %p1319 = pneg %p721
        %p1320 = pneg %p745
        %p1321 = pneg %p742
        %p1322 = pneg %p766
        %p1323 = pneg %p763
        %p1324 = pneg %p787
        %p1325 = pneg %p784
        %p1326 = pneg %p808
        %p1327 = pneg %p805
        %p1328 = pneg %p829
        %p1329 = pneg %p826
        %p1330 = pneg %p850
        %p1331 = pneg %p847
        %p1332 = pneg %p876
        %p1333 = pneg %p873
        %p1334 = scmp.lt.s32.totalorder %s94, 1
        %s1335 = scalar_select %p1334, %s94, 1
        %s1336 = smul.addr %s1335, 8
        %s1337 = scalar_lea.vmem %s73, %s1336
        %p1338 = scmp.lt.s32.totalorder %s94, 1
        %s1339 = scalar_select %p1338, %s94, 1
        %s1340 = smul.addr %s1339, 3
        %s1341 = smul.addr %s1340, 8
        %s1342 = scalar_lea.vmem %s1, %s1341
        %p1343 = scmp.lt.s32.totalorder %s94, 1
        %s1344 = scalar_select %p1343, %s94, 1
        %s1345 = smul.addr %s1344, 8
        %s1346 = scalar_lea.vmem %s73, %s1345
        %v1347 = vld [vmem:[#allocation2] sm:$0x7]
        %v1348 = vld [vmem:[#allocation4] sm:$0xf]
        %v1349 = vld [vmem:[#allocation6] sm:$0x1]
        %v1350 = vld [vmem:[#allocation7] sm:$0x7]
        %v1351 = vld [vmem:[#allocation9] sm:$0x7]
        %v1352 = vld [vmem:[#allocation10] sm:$0xf]
        %v1353 = vld [vmem:[#allocation10 + $0x4] sm:$0xf]
        %v1354 = vld [vmem:[#allocation10 + $0x8] sm:$0xf]
        %v1355 = vld [vmem:[#allocation12] sm:$0x1]
        %v1356 = vld [vmem:[#allocation12 + $0x1] sm:$0x1]
        %v1357 = vld [vmem:[#allocation12 + $0x2] sm:$0x1]
        %v1358 = vld [vmem:[#allocation13 + $0x8] sm:$0xff]
        %v1359 = vld [vmem:[#allocation15 + $0x8] sm:$0xff]
        %v1360 = vld [vmem:[#allocation16] sm:$0x1]
        %v1361 = vld [vmem:[#allocation18] sm:$0x1]
        %v1362 = vld [vmem:[#allocation19] sm:$0xf]
        %v1363 = vld [vmem:[#allocation21] sm:$0x1]
        %v1364 = vld [vmem:[%s31] sm:$0x1]
        %v1365 = vld [vmem:[%s33] sm:$0x1]
        %v1366 = vld [vmem:[#allocation22] sm:$0x7]
        %v1367 = vld [vmem:[%s37] sm:$0xff]
        %v1368 = vld [vmem:[%s37 + $0x8] sm:$0xff]
        %v1369 = vld [vmem:[#allocation24] sm:$0x1]
        %v1370 = vld [vmem:[#allocation25] sm:$0x7]
        %v1371 = vld [vmem:[#allocation27] sm:$0x7]
        %v1372 = vld [vmem:[%s45] sm:$0xff]
        %v1373 = vld [vmem:[%s45 + $0x8] sm:$0xff]
        %v1374 = vld [vmem:[%s45 + $0x10] sm:$0xff]
        %v1375 = vld [vmem:[%s45 + $0x18] sm:$0xff]
        %v1376 = vld [vmem:[%s45 + $0x20] sm:$0xff]
        %v1377 = vld [vmem:[%s45 + $0x28] sm:$0xff]
        %v1378 = vld [vmem:[%s47] sm:$0x1]
        %v1379 = vld [vmem:[%s47 + $0x1] sm:$0x1]
        %v1380 = vld [vmem:[%s47 + $0x2] sm:$0x1]
        %v1381 = vld [vmem:[%s49 + $0x8] sm:$0xff]
        %v1382 = vld [vmem:[%s51 + $0x8] sm:$0xff]
        %v1383 = vld [vmem:[%s53] sm:$0x1]
        %v1384 = vld [vmem:[%s55] sm:$0x1]
        %v1385 = vld [vmem:[%s57] sm:$0xff]
        %v1386 = vld [vmem:[%s57 + $0x8] sm:$0xff]
        %v1387 = vld [vmem:[%s59] sm:$0x1]
        %v1388 = vld [vmem:[%s61] sm:$0x1]
        %v1389 = vld [vmem:[%s63] sm:$0x1]
        %v1390 = vld [vmem:[%s1342] sm:$0xff]
        %v1391 = vld [vmem:[%s1342 + $0x8] sm:$0xff]
        %v1392 = vld [vmem:[%s1342 + $0x10] sm:$0xff]
        %v1393 = vld [vmem:[%s3] sm:$0xff]
        %v1394 = vld [vmem:[%s3 + $0x8] sm:$0xff]
        %v1395 = vld [vmem:[%s3 + $0x10] sm:$0xff]
        %vm1396 = vcmask 195584
        %v1398 = vsel %vm1396, %v1347, 0
        %1400 = vmatprep.subr.mxu0 0.0
        %1401 = vmatpush1.msra.mxu0 %v1390
        %1402 = vmatprep.subr.mxu0 0.0
        %1403 = vmatpush1.msra.mxu0 %v1391
        %1404 = vmatprep.subr.mxu0 0.0
        %1405 = vmatpush1.msra.mxu0 %v1392
        %1406 = vmatprep.subr.mxu0 0.0
        %1407 = vmatpush1.msra.mxu0 0.0
        %1408 = vmatprep.subr.mxu0 0.0
        %1409 = vmatpush1.msra.mxu0 0.0
        %1410 = vmatprep.subr.mxu0 0.0
        %1411 = vmatpush1.msra.mxu0 0.0
        %1412 = vmatprep.subr.mxu0 0.0
        %1413 = vmatpush1.msra.mxu0 0.0
        %1414 = vmatprep.subr.mxu0 0.0
        %1415 = vmatpush1.msra.mxu0 0.0
        %1416 = vmatprep.subr.mxu0 0.0
        %1417 = vmatpush1.msra.mxu0 0.0
        %1418 = vmatprep.subr.mxu0 0.0
        %1419 = vmatpush1.msra.mxu0 0.0
        %1420 = vmatprep.subr.mxu0 0.0
        %1421 = vmatpush1.msra.mxu0 0.0
        %1422 = vmatprep.subr.mxu0 0.0
        %1423 = vmatpush1.msra.mxu0 0.0
        %1424 = vmatprep.subr.mxu0 0.0
        %1425 = vmatpush1.msra.mxu0 0.0
        %1426 = vmatprep.subr.mxu0 0.0
        %1427 = vmatpush1.msra.mxu0 0.0
        %1428 = vmatprep.subr.mxu0 0.0
        %1429 = vmatpush1.msra.mxu0 0.0
        %1430 = vmatprep.subr.mxu0 0.0
        %1431 = vmatpush1.msra.mxu0 0.0
        %1432 = vmatprep.subr.mxu0 0.0
        %1433 = vmatpush1.msra.mxu0 0.0
        %1434 = vmatprep.subr.mxu0 0.0
        %1435 = vmatpush1.msra.mxu0 0.0
        %1436 = vmatprep.subr.mxu0 0.0
        %1437 = vmatpush1.msra.mxu0 0.0
        %1438 = vmatprep.subr.mxu0 0.0
        %1439 = vmatpush1.msra.mxu0 0.0
        %1440 = vmatprep.subr.mxu0 0.0
        %1441 = vmatpush1.msra.mxu0 0.0
        %1442 = vmatprep.subr.mxu0 0.0
        %1443 = vmatpush1.msra.mxu0 0.0
        %1444 = vmatprep.subr.mxu0 0.0
        %1445 = vmatpush1.msra.mxu0 0.0
        %1446 = vmatprep.subr.mxu0 0.0
        %1447 = vmatpush1.msra.mxu0 0.0
        %1448 = vmatprep.subr.mxu0 0.0
        %1449 = vmatpush1.msra.mxu0 0.0
        %1450 = vmatprep.subr.mxu0 0.0
        %1451 = vmatpush1.msra.mxu0 0.0
        %1452 = vmatprep.subr.mxu0 0.0
        %1453 = vmatpush1.msra.mxu0 0.0
        %1454 = vmatprep.subr.mxu0 0.0
        %1455 = vmatpush1.msra.mxu0 0.0
        %1456 = vmatprep.subr.mxu0 0.0
        %1457 = vmatpush1.msra.mxu0 0.0
        %1458 = vmatprep.subr.mxu0 0.0
        %1459 = vmatpush1.msra.mxu0 0.0
        %1460 = vmatprep.subr.mxu0 0.0
        %1461 = vmatpush1.msra.mxu0 0.0
        %1462 = vmatprep.subr.mxu0 0.0
        %1463 = vmatpush1.msra.mxu0 0.0
        %1464 = vmatprep.mubr.f32.mxu0 0.0
        %1465 = vmatmul.mubr.f32.gmra.mrb[0].mxu0 %v1398
        %v1466 = vpop.f32.mrb[0].mxu0
        %v1467 = vadd.f32 0.0, %v1466
        %v1468 = vpop.f32.mrb[0].mxu0
        %1469 = vdwg.mxu0
        %vm1470 = vcmask 31744
        %v1472 = vsel %vm1470, %v1467, 0
        %vm1474 = vcmask 1043456
        %v1476 = vsel %vm1474, %v1348, 0
        %1478 = vmatprep.subr.mxu0 0.0
        %1479 = vmatpush1.msra.mxu0 %v1476
        %1480 = vmatprep.subr.mxu0 0.0
        %1481 = vmatpush1.msra.mxu0 0.0
        %1482 = vmatprep.subr.mxu0 0.0
        %1483 = vmatpush1.msra.mxu0 0.0
        %1484 = vmatprep.subr.mxu0 0.0
        %1485 = vmatpush1.msra.mxu0 0.0
        %1486 = vmatprep.subr.mxu0 0.0
        %1487 = vmatpush1.msra.mxu0 0.0
        %1488 = vmatprep.subr.mxu0 0.0
        %1489 = vmatpush1.msra.mxu0 0.0
        %1490 = vmatprep.subr.mxu0 0.0
        %1491 = vmatpush1.msra.mxu0 0.0
        %1492 = vmatprep.subr.mxu0 0.0
        %1493 = vmatpush1.msra.mxu0 0.0
        %1494 = vmatprep.subr.mxu0 0.0
        %1495 = vmatpush1.msra.mxu0 0.0
        %1496 = vmatprep.subr.mxu0 0.0
        %1497 = vmatpush1.msra.mxu0 0.0
        %1498 = vmatprep.subr.mxu0 0.0
        %1499 = vmatpush1.msra.mxu0 0.0
        %1500 = vmatprep.subr.mxu0 0.0
        %1501 = vmatpush1.msra.mxu0 0.0
        %1502 = vmatprep.subr.mxu0 0.0
        %1503 = vmatpush1.msra.mxu0 0.0
        %1504 = vmatprep.subr.mxu0 0.0
        %1505 = vmatpush1.msra.mxu0 0.0
        %1506 = vmatprep.subr.mxu0 0.0
        %1507 = vmatpush1.msra.mxu0 0.0
        %1508 = vmatprep.subr.mxu0 0.0
        %1509 = vmatpush1.msra.mxu0 0.0
        %1510 = vmatprep.subr.mxu0 0.0
        %1511 = vmatpush1.msra.mxu0 0.0
        %1512 = vmatprep.subr.mxu0 0.0
        %1513 = vmatpush1.msra.mxu0 0.0
        %1514 = vmatprep.subr.mxu0 0.0
        %1515 = vmatpush1.msra.mxu0 0.0
        %1516 = vmatprep.subr.mxu0 0.0
        %1517 = vmatpush1.msra.mxu0 0.0
        %1518 = vmatprep.subr.mxu0 0.0
        %1519 = vmatpush1.msra.mxu0 0.0
        %1520 = vmatprep.subr.mxu0 0.0
        %1521 = vmatpush1.msra.mxu0 0.0
        %1522 = vmatprep.subr.mxu0 0.0
        %1523 = vmatpush1.msra.mxu0 0.0
        %1524 = vmatprep.subr.mxu0 0.0
        %1525 = vmatpush1.msra.mxu0 0.0
        %1526 = vmatprep.subr.mxu0 0.0
        %1527 = vmatpush1.msra.mxu0 0.0
        %1528 = vmatprep.subr.mxu0 0.0
        %1529 = vmatpush1.msra.mxu0 0.0
        %1530 = vmatprep.subr.mxu0 0.0
        %1531 = vmatpush1.msra.mxu0 0.0
        %1532 = vmatprep.subr.mxu0 0.0
        %1533 = vmatpush1.msra.mxu0 0.0
        %1534 = vmatprep.subr.mxu0 0.0
        %1535 = vmatpush1.msra.mxu0 0.0
        %1536 = vmatprep.subr.mxu0 0.0
        %1537 = vmatpush1.msra.mxu0 0.0
        %1538 = vmatprep.subr.mxu0 0.0
        %1539 = vmatpush1.msra.mxu0 0.0
        %1540 = vmatprep.subr.mxu0 0.0
        %1541 = vmatpush1.msra.mxu0 0.0
        %1542 = vmatprep.mubr.f32.mxu0 0.0
        %1543 = vmatmul.mubr.f32.gmra.mrb[0].mxu0 %v1472
        %v1544 = vpop.f32.mrb[0].mxu0
        %v1545 = vadd.f32 0.0, %v1544
        %v1546 = vpop.f32.mrb[0].mxu0
        %1547 = vdwg.mxu0
        %v1549 = vlaneseq
        %v1550 = vshrl.u32 %v1549, 7
        %v1551 = vsub.s32 0, %v1550
        %v1552 = vrot.slane %v1349, %v1551
        %v1554 = vmul.f32 %v1390, %v1552
        %v1555 = vmul.f32 %v1391, %v1552
        %v1556 = vmul.f32 %v1392, %v1552
        %v1557 = vsel %vm1470, %v1554, 0.0
        %1558 = vadd.xlane.f32.xlu0 %v1557
        %v1559 = vpop.xlane.xlu0 %1558
        %v1560 = vsel %vm1470, %v1555, 0.0
        %1561 = vadd.xlane.f32.xlu0 %v1560
        %v1562 = vpop.xlane.xlu0 %1561
        %v1563 = vsel %vm1470, %v1556, 0.0
        %1564 = vadd.xlane.f32.xlu0 %v1563
        %v1565 = vpop.xlane.xlu0 %1564
        %v1569 = vlaneseq
        %v1570 = vand.u32 %v1569, 127
        %v1571 = vlaneseq
        %v1572 = vshrl.u32 %v1571, 7
        %v1573 = vsub.s32 %v1570, %v1572
        %v1574 = vrot.slane %v1559, %v1573
        %v1575 = vlaneseq
        %v1576 = vshrl.u32 %v1575, 7
        %v1577 = vsub.s32 %v1570, %v1576
        %v1578 = vrot.slane %v1562, %v1577
        %v1579 = vlaneseq
        %v1580 = vshrl.u32 %v1579, 7
        %v1581 = vsub.s32 %v1570, %v1580
        %v1582 = vrot.slane %v1565, %v1581
        %vm1583 = vcmask 1041409
        %v1584 = vsel %vm1583, %v1578, %v1574
        %vm1585 = vcmask 1042434
        %v1586 = vsel %vm1585, %v1582, %v1584
        %vm1587 = vcmask 64512
        %v1589 = vsel %vm1587, %v1545, 0
        %v1591 = vsel %vm1587, %v1586, 0
        %1593 = vmatprep.subr.mxu0 0.0
        %1594 = vmatpush1.xpose.msra.mxu0 %v1591
        %1595 = vmatprep.subr.mxu0 0.0
        %1596 = vmatpush1.xpose.msra.mxu0 0.0
        %1597 = vmatprep.subr.mxu0 0.0
        %1598 = vmatpush1.xpose.msra.mxu0 0.0
        %1599 = vmatprep.subr.mxu0 0.0
        %1600 = vmatpush1.xpose.msra.mxu0 0.0
        %1601 = vmatprep.subr.mxu0 0.0
        %1602 = vmatpush1.xpose.msra.mxu0 0.0
        %1603 = vmatprep.subr.mxu0 0.0
        %1604 = vmatpush1.xpose.msra.mxu0 0.0
        %1605 = vmatprep.subr.mxu0 0.0
        %1606 = vmatpush1.xpose.msra.mxu0 0.0
        %1607 = vmatprep.subr.mxu0 0.0
        %1608 = vmatpush1.xpose.msra.mxu0 0.0
        %1609 = vmatprep.subr.mxu0 0.0
        %1610 = vmatpush1.xpose.msra.mxu0 0.0
        %1611 = vmatprep.subr.mxu0 0.0
        %1612 = vmatpush1.xpose.msra.mxu0 0.0
        %1613 = vmatprep.subr.mxu0 0.0
        %1614 = vmatpush1.xpose.msra.mxu0 0.0
        %1615 = vmatprep.subr.mxu0 0.0
        %1616 = vmatpush1.xpose.msra.mxu0 0.0
        %1617 = vmatprep.subr.mxu0 0.0
        %1618 = vmatpush1.xpose.msra.mxu0 0.0
        %1619 = vmatprep.subr.mxu0 0.0
        %1620 = vmatpush1.xpose.msra.mxu0 0.0
        %1621 = vmatprep.subr.mxu0 0.0
        %1622 = vmatpush1.xpose.msra.mxu0 0.0
        %1623 = vmatprep.subr.mxu0 0.0
        %1624 = vmatpush1.xpose.msra.mxu0 0.0
        %1625 = vmatprep.subr.mxu0 0.0
        %1626 = vmatpush1.xpose.msra.mxu0 0.0
        %1627 = vmatprep.subr.mxu0 0.0
        %1628 = vmatpush1.xpose.msra.mxu0 0.0
        %1629 = vmatprep.subr.mxu0 0.0
        %1630 = vmatpush1.xpose.msra.mxu0 0.0
        %1631 = vmatprep.subr.mxu0 0.0
        %1632 = vmatpush1.xpose.msra.mxu0 0.0
        %1633 = vmatprep.subr.mxu0 0.0
        %1634 = vmatpush1.xpose.msra.mxu0 0.0
        %1635 = vmatprep.subr.mxu0 0.0
        %1636 = vmatpush1.xpose.msra.mxu0 0.0
        %1637 = vmatprep.subr.mxu0 0.0
        %1638 = vmatpush1.xpose.msra.mxu0 0.0
        %1639 = vmatprep.subr.mxu0 0.0
        %1640 = vmatpush1.xpose.msra.mxu0 0.0
        %1641 = vmatprep.subr.mxu0 0.0
        %1642 = vmatpush1.xpose.msra.mxu0 0.0
        %1643 = vmatprep.subr.mxu0 0.0
        %1644 = vmatpush1.xpose.msra.mxu0 0.0
        %1645 = vmatprep.subr.mxu0 0.0
        %1646 = vmatpush1.xpose.msra.mxu0 0.0
        %1647 = vmatprep.subr.mxu0 0.0
        %1648 = vmatpush1.xpose.msra.mxu0 0.0
        %1649 = vmatprep.subr.mxu0 0.0
        %1650 = vmatpush1.xpose.msra.mxu0 0.0
        %1651 = vmatprep.subr.mxu0 0.0
        %1652 = vmatpush1.xpose.msra.mxu0 0.0
        %1653 = vmatprep.subr.mxu0 0.0
        %1654 = vmatpush1.xpose.msra.mxu0 0.0
        %1655 = vmatprep.subr.mxu0 0.0
        %1656 = vmatpush1.xpose.msra.mxu0 0.0
        %1657 = vmatprep.mubr.f32.mxu0 0.0
        %1658 = vmatmul.mubr.f32.gmra.mrb[0].mxu0 %v1589
        %v1659 = vpop.f32.mrb[0].mxu0
        %v1660 = vadd.f32 %v1350, %v1659
        %v1661 = vpop.f32.mrb[0].mxu0
        %1662 = vdwg.mxu0
        %v1663 = vxor.u32 %v1660, 2147483648
        %v1664 = vmul.f32 %v1663, 1.442695
        %v1665 = vpow.pop %v1664
        %v1666 = vadd.f32 %v1665, 1.0
        %v1667 = vrcp.pop %v1666
        %v1668 = vmul.f32 1.0, %v1667
        %vm1669 = vcmask 23552
        %v1671 = vsel %vm1669, %v1351, 0
        %vm1673 = vcmask 1042432
        %v1675 = vsel %vm1673, %v1668, 0
        %1677 = vmatprep.subr.mxu0 0.0
        %1678 = vmatpush1.msra.mxu0 %v1675
        %1679 = vmatprep.subr.mxu0 0.0
        %1680 = vmatpush1.msra.mxu0 0.0
        %1681 = vmatprep.subr.mxu0 0.0
        %1682 = vmatpush1.msra.mxu0 0.0
        %1683 = vmatprep.subr.mxu0 0.0
        %1684 = vmatpush1.msra.mxu0 0.0
        %1685 = vmatprep.subr.mxu0 0.0
        %1686 = vmatpush1.msra.mxu0 0.0
        %1687 = vmatprep.subr.mxu0 0.0
        %1688 = vmatpush1.msra.mxu0 0.0
        %1689 = vmatprep.subr.mxu0 0.0
        %1690 = vmatpush1.msra.mxu0 0.0
        %1691 = vmatprep.subr.mxu0 0.0
        %1692 = vmatpush1.msra.mxu0 0.0
        %1693 = vmatprep.subr.mxu0 0.0
        %1694 = vmatpush1.msra.mxu0 0.0
        %1695 = vmatprep.subr.mxu0 0.0
        %1696 = vmatpush1.msra.mxu0 0.0
        %1697 = vmatprep.subr.mxu0 0.0
        %1698 = vmatpush1.msra.mxu0 0.0
        %1699 = vmatprep.subr.mxu0 0.0
        %1700 = vmatpush1.msra.mxu0 0.0
        %1701 = vmatprep.subr.mxu0 0.0
        %1702 = vmatpush1.msra.mxu0 0.0
        %1703 = vmatprep.subr.mxu0 0.0
        %1704 = vmatpush1.msra.mxu0 0.0
        %1705 = vmatprep.subr.mxu0 0.0
        %1706 = vmatpush1.msra.mxu0 0.0
        %1707 = vmatprep.subr.mxu0 0.0
        %1708 = vmatpush1.msra.mxu0 0.0
        %1709 = vmatprep.subr.mxu0 0.0
        %1710 = vmatpush1.msra.mxu0 0.0
        %1711 = vmatprep.subr.mxu0 0.0
        %1712 = vmatpush1.msra.mxu0 0.0
        %1713 = vmatprep.subr.mxu0 0.0
        %1714 = vmatpush1.msra.mxu0 0.0
        %1715 = vmatprep.subr.mxu0 0.0
        %1716 = vmatpush1.msra.mxu0 0.0
        %1717 = vmatprep.subr.mxu0 0.0
        %1718 = vmatpush1.msra.mxu0 0.0
        %1719 = vmatprep.subr.mxu0 0.0
        %1720 = vmatpush1.msra.mxu0 0.0
        %1721 = vmatprep.subr.mxu0 0.0
        %1722 = vmatpush1.msra.mxu0 0.0
        %1723 = vmatprep.subr.mxu0 0.0
        %1724 = vmatpush1.msra.mxu0 0.0
        %1725 = vmatprep.subr.mxu0 0.0
        %1726 = vmatpush1.msra.mxu0 0.0
        %1727 = vmatprep.subr.mxu0 0.0
        %1728 = vmatpush1.msra.mxu0 0.0
        %1729 = vmatprep.subr.mxu0 0.0
        %1730 = vmatpush1.msra.mxu0 0.0
        %1731 = vmatprep.subr.mxu0 0.0
        %1732 = vmatpush1.msra.mxu0 0.0
        %1733 = vmatprep.subr.mxu0 0.0
        %1734 = vmatpush1.msra.mxu0 0.0
        %1735 = vmatprep.subr.mxu0 0.0
        %1736 = vmatpush1.msra.mxu0 0.0
        %1737 = vmatprep.subr.mxu0 0.0
        %1738 = vmatpush1.msra.mxu0 0.0
        %1739 = vmatprep.subr.mxu0 0.0
        %1740 = vmatpush1.msra.mxu0 0.0
        %1741 = vmatprep.mubr.f32.mxu0 0.0
        %1742 = vmatmul.mubr.f32.gmra.mrb[0].mxu0 %v1671
        %v1743 = vpop.f32.mrb[0].mxu0
        %v1744 = vadd.f32 0.0, %v1743
        %v1745 = vpop.f32.mrb[0].mxu0
        %1746 = vdwg.mxu0
        %vm1747 = vcmask 18432
        %v1748 = vsel %vm1747, %v1744, -inf
        %v1749 = vrot.slane %v1748, 4
        %v1750 = vmax.f32 %v1748, %v1749
        %v1751 = vrot.slane %v1750, 2
        %v1752 = vmax.f32 %v1750, %v1751
        %v1753 = vrot.slane %v1752, 1
        %v1754 = vmax.f32 %v1752, %v1753
        %v1755 = vsub.f32 %v1744, %v1754
        %v1756 = vmul.f32 %v1755, 1.442695
        %v1757 = vpow.pop %v1756
        %v1758 = vsel %vm1747, %v1757, 0.0
        %v1759 = vrot.slane %v1758, 4
        %v1760 = vadd.f32 %v1758, %v1759
        %v1761 = vrot.slane %v1760, 2
        %v1762 = vadd.f32 %v1760, %v1761
        %v1763 = vrot.slane %v1762, 1
        %v1764 = vadd.f32 %v1762, %v1763
        %v1765 = vrcp.pop %v1764
        %v1766 = vmul.f32 %v1757, %v1765
        %1768 = vrot.lane.b32.xlu0 %v1766, 127
        %v1769 = vpop.permute.xlu0 %1768
        %s1770 = vtos %v1769
        %v1771 = vstv %s1770
        %v1773 = vmul.f32 %v1390, %v1771
        %v1774 = vrot.slane %v1766, 1
        %1775 = vrot.lane.b32.xlu0 %v1774, 127
        %v1776 = vpop.permute.xlu0 %1775
        %s1777 = vtos %v1776
        %v1778 = vstv %s1777
        %v1780 = vmul.f32 %v1391, %v1778
        %v1781 = vadd.f32 %v1773, %v1780
        %v1782 = vrot.slane %v1766, 2
        %1783 = vrot.lane.b32.xlu0 %v1782, 127
        %v1784 = vpop.permute.xlu0 %1783
        %s1785 = vtos %v1784
        %v1786 = vstv %s1785
        %v1788 = vmul.f32 %v1392, %v1786
        %v1789 = vadd.f32 %v1781, %v1788
        %v1791 = vsel %vm1587, %v1393, 0
        %v1794 = vsel %vm1587, %v1394, 0
        %v1797 = vsel %vm1587, %v1395, 0
        %1799 = vmatprep.subr.mxu0 0.0
        %1800 = vmatpush1.msra.mxu0 %v1789
        %1801 = vmatprep.subr.mxu0 0.0
        %1802 = vmatpush1.msra.mxu0 0.0
        %1803 = vmatprep.subr.mxu0 0.0
        %1804 = vmatpush1.msra.mxu0 0.0
        %1805 = vmatprep.subr.mxu0 0.0
        %1806 = vmatpush1.msra.mxu0 0.0
        %1807 = vmatprep.subr.mxu0 0.0
        %1808 = vmatpush1.msra.mxu0 0.0
        %1809 = vmatprep.subr.mxu0 0.0
        %1810 = vmatpush1.msra.mxu0 0.0
        %1811 = vmatprep.subr.mxu0 0.0
        %1812 = vmatpush1.msra.mxu0 0.0
        %1813 = vmatprep.subr.mxu0 0.0
        %1814 = vmatpush1.msra.mxu0 0.0
        %1815 = vmatprep.subr.mxu0 0.0
        %1816 = vmatpush1.msra.mxu0 0.0
        %1817 = vmatprep.subr.mxu0 0.0
        %1818 = vmatpush1.msra.mxu0 0.0
        %1819 = vmatprep.subr.mxu0 0.0
        %1820 = vmatpush1.msra.mxu0 0.0
        %1821 = vmatprep.subr.mxu0 0.0
        %1822 = vmatpush1.msra.mxu0 0.0
        %1823 = vmatprep.subr.mxu0 0.0
        %1824 = vmatpush1.msra.mxu0 0.0
        %1825 = vmatprep.subr.mxu0 0.0
        %1826 = vmatpush1.msra.mxu0 0.0
        %1827 = vmatprep.subr.mxu0 0.0
        %1828 = vmatpush1.msra.mxu0 0.0
        %1829 = vmatprep.subr.mxu0 0.0
        %1830 = vmatpush1.msra.mxu0 0.0
        %1831 = vmatprep.subr.mxu0 0.0
        %1832 = vmatpush1.msra.mxu0 0.0
        %1833 = vmatprep.subr.mxu0 0.0
        %1834 = vmatpush1.msra.mxu0 0.0
        %1835 = vmatprep.subr.mxu0 0.0
        %1836 = vmatpush1.msra.mxu0 0.0
        %1837 = vmatprep.subr.mxu0 0.0
        %1838 = vmatpush1.msra.mxu0 0.0
        %1839 = vmatprep.subr.mxu0 0.0
        %1840 = vmatpush1.msra.mxu0 0.0
        %1841 = vmatprep.subr.mxu0 0.0
        %1842 = vmatpush1.msra.mxu0 0.0
        %1843 = vmatprep.subr.mxu0 0.0
        %1844 = vmatpush1.msra.mxu0 0.0
        %1845 = vmatprep.subr.mxu0 0.0
        %1846 = vmatpush1.msra.mxu0 0.0
        %1847 = vmatprep.subr.mxu0 0.0
        %1848 = vmatpush1.msra.mxu0 0.0
        %1849 = vmatprep.subr.mxu0 0.0
        %1850 = vmatpush1.msra.mxu0 0.0
        %1851 = vmatprep.subr.mxu0 0.0
        %1852 = vmatpush1.msra.mxu0 0.0
        %1853 = vmatprep.subr.mxu0 0.0
        %1854 = vmatpush1.msra.mxu0 0.0
        %1855 = vmatprep.subr.mxu0 0.0
        %1856 = vmatpush1.msra.mxu0 0.0
        %1857 = vmatprep.subr.mxu0 0.0
        %1858 = vmatpush1.msra.mxu0 0.0
        %1859 = vmatprep.subr.mxu0 0.0
        %1860 = vmatpush1.msra.mxu0 0.0
        %1861 = vmatprep.subr.mxu0 0.0
        %1862 = vmatpush1.msra.mxu0 0.0
        %1863 = vmatprep.mubr.f32.mxu0 0.0
        %1864 = vmatmul.mubr.f32.gmra.mrb[0].mxu0 %v1791
        %v1865 = vpop.f32.mrb[0].mxu0
        %v1866 = vadd.f32 0.0, %v1865
        %v1867 = vpop.f32.mrb[0].mxu0
        %1868 = vmatprep.mubr.f32.mxu0 0.0
        %1869 = vmatmul.mubr.f32.gmra.mrb[0].mxu0 %v1794
        %v1870 = vpop.f32.mrb[0].mxu0
        %v1871 = vadd.f32 0.0, %v1870
        %v1872 = vpop.f32.mrb[0].mxu0
        %1873 = vmatprep.mubr.f32.mxu0 0.0
        %1874 = vmatmul.mubr.f32.gmra.mrb[0].mxu0 %v1797
        %v1875 = vpop.f32.mrb[0].mxu0
        %v1876 = vadd.f32 0.0, %v1875
        %v1877 = vpop.f32.mrb[0].mxu0
        %1878 = vdwg.mxu0
        %v1882 = vlaneseq
        %v1883 = vshrl.u32 %v1882, 7
        %v1884 = vsub.s32 0, %v1883
        %v1885 = vrot.slane %v1355, %v1884
        %v1886 = vlaneseq
        %v1887 = vshrl.u32 %v1886, 7
        %v1888 = vsub.s32 0, %v1887
        %v1889 = vrot.slane %v1356, %v1888
        %v1890 = vlaneseq
        %v1891 = vshrl.u32 %v1890, 7
        %v1892 = vsub.s32 0, %v1891
        %v1893 = vrot.slane %v1357, %v1892
        %v1898 = vsel %vm1470, %v1866, 0
        %v1901 = vsel %vm1474, %v1352, 0
        %1903 = vmatprep.subr.mxu0 0.0
        %1904 = vmatpush1.msra.mxu0 %v1901
        %1905 = vmatprep.subr.mxu0 0.0
        %1906 = vmatpush1.msra.mxu0 0.0
        %1907 = vmatprep.subr.mxu0 0.0
        %1908 = vmatpush1.msra.mxu0 0.0
        %1909 = vmatprep.subr.mxu0 0.0
        %1910 = vmatpush1.msra.mxu0 0.0
        %1911 = vmatprep.subr.mxu0 0.0
        %1912 = vmatpush1.msra.mxu0 0.0
        %1913 = vmatprep.subr.mxu0 0.0
        %1914 = vmatpush1.msra.mxu0 0.0
        %1915 = vmatprep.subr.mxu0 0.0
        %1916 = vmatpush1.msra.mxu0 0.0
        %1917 = vmatprep.subr.mxu0 0.0
        %1918 = vmatpush1.msra.mxu0 0.0
        %1919 = vmatprep.subr.mxu0 0.0
        %1920 = vmatpush1.msra.mxu0 0.0
        %1921 = vmatprep.subr.mxu0 0.0
        %1922 = vmatpush1.msra.mxu0 0.0
        %1923 = vmatprep.subr.mxu0 0.0
        %1924 = vmatpush1.msra.mxu0 0.0
        %1925 = vmatprep.subr.mxu0 0.0
        %1926 = vmatpush1.msra.mxu0 0.0
        %1927 = vmatprep.subr.mxu0 0.0
        %1928 = vmatpush1.msra.mxu0 0.0
        %1929 = vmatprep.subr.mxu0 0.0
        %1930 = vmatpush1.msra.mxu0 0.0
        %1931 = vmatprep.subr.mxu0 0.0
        %1932 = vmatpush1.msra.mxu0 0.0
        %1933 = vmatprep.subr.mxu0 0.0
        %1934 = vmatpush1.msra.mxu0 0.0
        %1935 = vmatprep.subr.mxu0 0.0
        %1936 = vmatpush1.msra.mxu0 0.0
        %1937 = vmatprep.subr.mxu0 0.0
        %1938 = vmatpush1.msra.mxu0 0.0
        %1939 = vmatprep.subr.mxu0 0.0
        %1940 = vmatpush1.msra.mxu0 0.0
        %1941 = vmatprep.subr.mxu0 0.0
        %1942 = vmatpush1.msra.mxu0 0.0
        %1943 = vmatprep.subr.mxu0 0.0
        %1944 = vmatpush1.msra.mxu0 0.0
        %1945 = vmatprep.subr.mxu0 0.0
        %1946 = vmatpush1.msra.mxu0 0.0
        %1947 = vmatprep.subr.mxu0 0.0
        %1948 = vmatpush1.msra.mxu0 0.0
        %1949 = vmatprep.subr.mxu0 0.0
        %1950 = vmatpush1.msra.mxu0 0.0
        %1951 = vmatprep.subr.mxu0 0.0
        %1952 = vmatpush1.msra.mxu0 0.0
        %1953 = vmatprep.subr.mxu0 0.0
        %1954 = vmatpush1.msra.mxu0 0.0
        %1955 = vmatprep.subr.mxu0 0.0
        %1956 = vmatpush1.msra.mxu0 0.0
        %1957 = vmatprep.subr.mxu0 0.0
        %1958 = vmatpush1.msra.mxu0 0.0
        %1959 = vmatprep.subr.mxu0 0.0
        %1960 = vmatpush1.msra.mxu0 0.0
        %1961 = vmatprep.subr.mxu0 0.0
        %1962 = vmatpush1.msra.mxu0 0.0
        %1963 = vmatprep.subr.mxu0 0.0
        %1964 = vmatpush1.msra.mxu0 0.0
        %1965 = vmatprep.subr.mxu0 0.0
        %1966 = vmatpush1.msra.mxu0 0.0
        %1967 = vmatprep.mubr.f32.mxu0 0.0
        %1968 = vmatmul.mubr.f32.gmra.mrb[0].mxu0 %v1898
        %v1969 = vpop.f32.mrb[0].mxu0
        %v1970 = vadd.f32 %v1885, %v1969
        %v1971 = vpop.f32.mrb[0].mxu0
        %1972 = vdwg.mxu0
        %v1974 = vsel %vm1470, %v1871, 0
        %v1977 = vsel %vm1474, %v1353, 0
        %1979 = vmatprep.subr.mxu0 0.0
        %1980 = vmatpush1.msra.mxu0 %v1977
        %1981 = vmatprep.subr.mxu0 0.0
        %1982 = vmatpush1.msra.mxu0 0.0
        %1983 = vmatprep.subr.mxu0 0.0
        %1984 = vmatpush1.msra.mxu0 0.0
        %1985 = vmatprep.subr.mxu0 0.0
        %1986 = vmatpush1.msra.mxu0 0.0
        %1987 = vmatprep.subr.mxu0 0.0
        %1988 = vmatpush1.msra.mxu0 0.0
        %1989 = vmatprep.subr.mxu0 0.0
        %1990 = vmatpush1.msra.mxu0 0.0
        %1991 = vmatprep.subr.mxu0 0.0
        %1992 = vmatpush1.msra.mxu0 0.0
        %1993 = vmatprep.subr.mxu0 0.0
        %1994 = vmatpush1.msra.mxu0 0.0
        %1995 = vmatprep.subr.mxu0 0.0
        %1996 = vmatpush1.msra.mxu0 0.0
        %1997 = vmatprep.subr.mxu0 0.0
        %1998 = vmatpush1.msra.mxu0 0.0
        %1999 = vmatprep.subr.mxu0 0.0
        %2000 = vmatpush1.msra.mxu0 0.0
        %2001 = vmatprep.subr.mxu0 0.0
        %2002 = vmatpush1.msra.mxu0 0.0
        %2003 = vmatprep.subr.mxu0 0.0
        %2004 = vmatpush1.msra.mxu0 0.0
        %2005 = vmatprep.subr.mxu0 0.0
        %2006 = vmatpush1.msra.mxu0 0.0
        %2007 = vmatprep.subr.mxu0 0.0
        %2008 = vmatpush1.msra.mxu0 0.0
        %2009 = vmatprep.subr.mxu0 0.0
        %2010 = vmatpush1.msra.mxu0 0.0
        %2011 = vmatprep.subr.mxu0 0.0
        %2012 = vmatpush1.msra.mxu0 0.0
        %2013 = vmatprep.subr.mxu0 0.0
        %2014 = vmatpush1.msra.mxu0 0.0
        %2015 = vmatprep.subr.mxu0 0.0
        %2016 = vmatpush1.msra.mxu0 0.0
        %2017 = vmatprep.subr.mxu0 0.0
        %2018 = vmatpush1.msra.mxu0 0.0
        %2019 = vmatprep.subr.mxu0 0.0
        %2020 = vmatpush1.msra.mxu0 0.0
        %2021 = vmatprep.subr.mxu0 0.0
        %2022 = vmatpush1.msra.mxu0 0.0
        %2023 = vmatprep.subr.mxu0 0.0
        %2024 = vmatpush1.msra.mxu0 0.0
        %2025 = vmatprep.subr.mxu0 0.0
        %2026 = vmatpush1.msra.mxu0 0.0
        %2027 = vmatprep.subr.mxu0 0.0
        %2028 = vmatpush1.msra.mxu0 0.0
        %2029 = vmatprep.subr.mxu0 0.0
        %2030 = vmatpush1.msra.mxu0 0.0
        %2031 = vmatprep.subr.mxu0 0.0
        %2032 = vmatpush1.msra.mxu0 0.0
        %2033 = vmatprep.subr.mxu0 0.0
        %2034 = vmatpush1.msra.mxu0 0.0
        %2035 = vmatprep.subr.mxu0 0.0
        %2036 = vmatpush1.msra.mxu0 0.0
        %2037 = vmatprep.subr.mxu0 0.0
        %2038 = vmatpush1.msra.mxu0 0.0
        %2039 = vmatprep.subr.mxu0 0.0
        %2040 = vmatpush1.msra.mxu0 0.0
        %2041 = vmatprep.subr.mxu0 0.0
        %2042 = vmatpush1.msra.mxu0 0.0
        %2043 = vmatprep.mubr.f32.mxu0 0.0
        %2044 = vmatmul.mubr.f32.gmra.mrb[0].mxu0 %v1974
        %v2045 = vpop.f32.mrb[0].mxu0
        %v2046 = vadd.f32 %v1889, %v2045
        %v2047 = vpop.f32.mrb[0].mxu0
        %2048 = vdwg.mxu0
        %v2050 = vsel %vm1470, %v1876, 0
        %v2053 = vsel %vm1474, %v1354, 0
        %2055 = vmatprep.subr.mxu0 0.0
        %2056 = vmatpush1.msra.mxu0 %v2053
        %2057 = vmatprep.subr.mxu0 0.0
        %2058 = vmatpush1.msra.mxu0 0.0
        %2059 = vmatprep.subr.mxu0 0.0
        %2060 = vmatpush1.msra.mxu0 0.0
        %2061 = vmatprep.subr.mxu0 0.0
        %2062 = vmatpush1.msra.mxu0 0.0
        %2063 = vmatprep.subr.mxu0 0.0
        %2064 = vmatpush1.msra.mxu0 0.0
        %2065 = vmatprep.subr.mxu0 0.0
        %2066 = vmatpush1.msra.mxu0 0.0
        %2067 = vmatprep.subr.mxu0 0.0
        %2068 = vmatpush1.msra.mxu0 0.0
        %2069 = vmatprep.subr.mxu0 0.0
        %2070 = vmatpush1.msra.mxu0 0.0
        %2071 = vmatprep.subr.mxu0 0.0
        %2072 = vmatpush1.msra.mxu0 0.0
        %2073 = vmatprep.subr.mxu0 0.0
        %2074 = vmatpush1.msra.mxu0 0.0
        %2075 = vmatprep.subr.mxu0 0.0
        %2076 = vmatpush1.msra.mxu0 0.0
        %2077 = vmatprep.subr.mxu0 0.0
        %2078 = vmatpush1.msra.mxu0 0.0
        %2079 = vmatprep.subr.mxu0 0.0
        %2080 = vmatpush1.msra.mxu0 0.0
        %2081 = vmatprep.subr.mxu0 0.0
        %2082 = vmatpush1.msra.mxu0 0.0
        %2083 = vmatprep.subr.mxu0 0.0
        %2084 = vmatpush1.msra.mxu0 0.0
        %2085 = vmatprep.subr.mxu0 0.0
        %2086 = vmatpush1.msra.mxu0 0.0
        %2087 = vmatprep.subr.mxu0 0.0
        %2088 = vmatpush1.msra.mxu0 0.0
        %2089 = vmatprep.subr.mxu0 0.0
        %2090 = vmatpush1.msra.mxu0 0.0
        %2091 = vmatprep.subr.mxu0 0.0
        %2092 = vmatpush1.msra.mxu0 0.0
        %2093 = vmatprep.subr.mxu0 0.0
        %2094 = vmatpush1.msra.mxu0 0.0
        %2095 = vmatprep.subr.mxu0 0.0
        %2096 = vmatpush1.msra.mxu0 0.0
        %2097 = vmatprep.subr.mxu0 0.0
        %2098 = vmatpush1.msra.mxu0 0.0
        %2099 = vmatprep.subr.mxu0 0.0
        %2100 = vmatpush1.msra.mxu0 0.0
        %2101 = vmatprep.subr.mxu0 0.0
        %2102 = vmatpush1.msra.mxu0 0.0
        %2103 = vmatprep.subr.mxu0 0.0
        %2104 = vmatpush1.msra.mxu0 0.0
        %2105 = vmatprep.subr.mxu0 0.0
        %2106 = vmatpush1.msra.mxu0 0.0
        %2107 = vmatprep.subr.mxu0 0.0
        %2108 = vmatpush1.msra.mxu0 0.0
        %2109 = vmatprep.subr.mxu0 0.0
        %2110 = vmatpush1.msra.mxu0 0.0
        %2111 = vmatprep.subr.mxu0 0.0
        %2112 = vmatpush1.msra.mxu0 0.0
        %2113 = vmatprep.subr.mxu0 0.0
        %2114 = vmatpush1.msra.mxu0 0.0
        %2115 = vmatprep.subr.mxu0 0.0
        %2116 = vmatpush1.msra.mxu0 0.0
        %2117 = vmatprep.subr.mxu0 0.0
        %2118 = vmatpush1.msra.mxu0 0.0
        %2119 = vmatprep.mubr.f32.mxu0 0.0
        %2120 = vmatmul.mubr.f32.gmra.mrb[0].mxu0 %v2050
        %v2121 = vpop.f32.mrb[0].mxu0
        %v2122 = vadd.f32 %v1893, %v2121
        %v2123 = vpop.f32.mrb[0].mxu0
        %2124 = vdwg.mxu0
        %v2125 = vmax.f32 %v1970, 0.0
        %v2126 = vmax.f32 %v2046, 0.0
        %v2127 = vmax.f32 %v2122, 0.0
        %v2128 = vsel %vm1587, %v2125, 0.0
        %v2129 = vsel %vm1587, %v2126, 0.0
        %v2130 = vadd.f32 %v2128, %v2129
        %v2131 = vsel %vm1587, %v2127, 0.0
        %v2132 = vadd.f32 %v2130, %v2131
        %v2134 = vlaneseq
        %v2135 = vshrl.u32 %v2134, 7
        %v2136 = vsub.s32 0, %v2135
        %v2137 = vrot.slane %v1360, %v2136
        %v2140 = vsel %vm1587, %v2132, 0
        %2142 = vmatprep.subr.mxu0 0.0
        %2143 = vmatpush1.msra.mxu0 %v1358
        %2144 = vmatprep.subr.mxu0 0.0
        %2145 = vmatpush1.msra.mxu0 0.0
        %2146 = vmatprep.subr.mxu0 0.0
        %2147 = vmatpush1.msra.mxu0 0.0
        %2148 = vmatprep.subr.mxu0 0.0
        %2149 = vmatpush1.msra.mxu0 0.0
        %2150 = vmatprep.subr.mxu0 0.0
        %2151 = vmatpush1.msra.mxu0 0.0
        %2152 = vmatprep.subr.mxu0 0.0
        %2153 = vmatpush1.msra.mxu0 0.0
        %2154 = vmatprep.subr.mxu0 0.0
        %2155 = vmatpush1.msra.mxu0 0.0
        %2156 = vmatprep.subr.mxu0 0.0
        %2157 = vmatpush1.msra.mxu0 0.0
        %2158 = vmatprep.subr.mxu0 0.0
        %2159 = vmatpush1.msra.mxu0 0.0
        %2160 = vmatprep.subr.mxu0 0.0
        %2161 = vmatpush1.msra.mxu0 0.0
        %2162 = vmatprep.subr.mxu0 0.0
        %2163 = vmatpush1.msra.mxu0 0.0
        %2164 = vmatprep.subr.mxu0 0.0
        %2165 = vmatpush1.msra.mxu0 0.0
        %2166 = vmatprep.subr.mxu0 0.0
        %2167 = vmatpush1.msra.mxu0 0.0
        %2168 = vmatprep.subr.mxu0 0.0
        %2169 = vmatpush1.msra.mxu0 0.0
        %2170 = vmatprep.subr.mxu0 0.0
        %2171 = vmatpush1.msra.mxu0 0.0
        %2172 = vmatprep.subr.mxu0 0.0
        %2173 = vmatpush1.msra.mxu0 0.0
        %2174 = vmatprep.subr.mxu0 0.0
        %2175 = vmatpush1.msra.mxu0 0.0
        %2176 = vmatprep.subr.mxu0 0.0
        %2177 = vmatpush1.msra.mxu0 0.0
        %2178 = vmatprep.subr.mxu0 0.0
        %2179 = vmatpush1.msra.mxu0 0.0
        %2180 = vmatprep.subr.mxu0 0.0
        %2181 = vmatpush1.msra.mxu0 0.0
        %2182 = vmatprep.subr.mxu0 0.0
        %2183 = vmatpush1.msra.mxu0 0.0
        %2184 = vmatprep.subr.mxu0 0.0
        %2185 = vmatpush1.msra.mxu0 0.0
        %2186 = vmatprep.subr.mxu0 0.0
        %2187 = vmatpush1.msra.mxu0 0.0
        %2188 = vmatprep.subr.mxu0 0.0
        %2189 = vmatpush1.msra.mxu0 0.0
        %2190 = vmatprep.subr.mxu0 0.0
        %2191 = vmatpush1.msra.mxu0 0.0
        %2192 = vmatprep.subr.mxu0 0.0
        %2193 = vmatpush1.msra.mxu0 0.0
        %2194 = vmatprep.subr.mxu0 0.0
        %2195 = vmatpush1.msra.mxu0 0.0
        %2196 = vmatprep.subr.mxu0 0.0
        %2197 = vmatpush1.msra.mxu0 0.0
        %2198 = vmatprep.subr.mxu0 0.0
        %2199 = vmatpush1.msra.mxu0 0.0
        %2200 = vmatprep.subr.mxu0 0.0
        %2201 = vmatpush1.msra.mxu0 0.0
        %2202 = vmatprep.subr.mxu0 0.0
        %2203 = vmatpush1.msra.mxu0 0.0
        %2204 = vmatprep.subr.mxu0 0.0
        %2205 = vmatpush1.msra.mxu0 0.0
        %2206 = vmatprep.mubr.f32.mxu0 0.0
        %2207 = vmatmul.mubr.f32.gmra.mrb[0].mxu0 %v2140
        %v2208 = vpop.f32.mrb[0].mxu0
        %v2209 = vadd.f32 %v2137, %v2208
        %v2210 = vpop.f32.mrb[0].mxu0
        %2211 = vdwg.mxu0
        %v2212 = vtanh.pop %v2209
        %v2214 = vlaneseq
        %v2215 = vshrl.u32 %v2214, 7
        %v2216 = vsub.s32 0, %v2215
        %v2217 = vrot.slane %v1361, %v2216
        %2219 = vmatprep.subr.mxu0 0.0
        %2220 = vmatpush1.msra.mxu0 %v1359
        %2221 = vmatprep.subr.mxu0 0.0
        %2222 = vmatpush1.msra.mxu0 0.0
        %2223 = vmatprep.subr.mxu0 0.0
        %2224 = vmatpush1.msra.mxu0 0.0
        %2225 = vmatprep.subr.mxu0 0.0
        %2226 = vmatpush1.msra.mxu0 0.0
        %2227 = vmatprep.subr.mxu0 0.0
        %2228 = vmatpush1.msra.mxu0 0.0
        %2229 = vmatprep.subr.mxu0 0.0
        %2230 = vmatpush1.msra.mxu0 0.0
        %2231 = vmatprep.subr.mxu0 0.0
        %2232 = vmatpush1.msra.mxu0 0.0
        %2233 = vmatprep.subr.mxu0 0.0
        %2234 = vmatpush1.msra.mxu0 0.0
        %2235 = vmatprep.subr.mxu0 0.0
        %2236 = vmatpush1.msra.mxu0 0.0
        %2237 = vmatprep.subr.mxu0 0.0
        %2238 = vmatpush1.msra.mxu0 0.0
        %2239 = vmatprep.subr.mxu0 0.0
        %2240 = vmatpush1.msra.mxu0 0.0
        %2241 = vmatprep.subr.mxu0 0.0
        %2242 = vmatpush1.msra.mxu0 0.0
        %2243 = vmatprep.subr.mxu0 0.0
        %2244 = vmatpush1.msra.mxu0 0.0
        %2245 = vmatprep.subr.mxu0 0.0
        %2246 = vmatpush1.msra.mxu0 0.0
        %2247 = vmatprep.subr.mxu0 0.0
        %2248 = vmatpush1.msra.mxu0 0.0
        %2249 = vmatprep.subr.mxu0 0.0
        %2250 = vmatpush1.msra.mxu0 0.0
        %2251 = vmatprep.subr.mxu0 0.0
        %2252 = vmatpush1.msra.mxu0 0.0
        %2253 = vmatprep.subr.mxu0 0.0
        %2254 = vmatpush1.msra.mxu0 0.0
        %2255 = vmatprep.subr.mxu0 0.0
        %2256 = vmatpush1.msra.mxu0 0.0
        %2257 = vmatprep.subr.mxu0 0.0
        %2258 = vmatpush1.msra.mxu0 0.0
        %2259 = vmatprep.subr.mxu0 0.0
        %2260 = vmatpush1.msra.mxu0 0.0
        %2261 = vmatprep.subr.mxu0 0.0
        %2262 = vmatpush1.msra.mxu0 0.0
        %2263 = vmatprep.subr.mxu0 0.0
        %2264 = vmatpush1.msra.mxu0 0.0
        %2265 = vmatprep.subr.mxu0 0.0
        %2266 = vmatpush1.msra.mxu0 0.0
        %2267 = vmatprep.subr.mxu0 0.0
        %2268 = vmatpush1.msra.mxu0 0.0
        %2269 = vmatprep.subr.mxu0 0.0
        %2270 = vmatpush1.msra.mxu0 0.0
        %2271 = vmatprep.subr.mxu0 0.0
        %2272 = vmatpush1.msra.mxu0 0.0
        %2273 = vmatprep.subr.mxu0 0.0
        %2274 = vmatpush1.msra.mxu0 0.0
        %2275 = vmatprep.subr.mxu0 0.0
        %2276 = vmatpush1.msra.mxu0 0.0
        %2277 = vmatprep.subr.mxu0 0.0
        %2278 = vmatpush1.msra.mxu0 0.0
        %2279 = vmatprep.subr.mxu0 0.0
        %2280 = vmatpush1.msra.mxu0 0.0
        %2281 = vmatprep.subr.mxu0 0.0
        %2282 = vmatpush1.msra.mxu0 0.0
        %2283 = vmatprep.mubr.f32.mxu0 0.0
        %2284 = vmatmul.mubr.f32.gmra.mrb[0].mxu0 %v2140
        %v2285 = vpop.f32.mrb[0].mxu0
        %v2286 = vadd.f32 %v2217, %v2285
        %v2287 = vpop.f32.mrb[0].mxu0
        %2288 = vdwg.mxu0
        %v2289 = vxor.u32 %v2286, 2147483648
        %v2290 = vmul.f32 %v2289, 1.442695
        %v2291 = vpow.pop %v2290
        %v2292 = vadd.f32 %v2291, 1.0
        %v2293 = vrcp.pop %v2292
        %v2294 = vmul.f32 1.0, %v2293
        %v2295 = vmul.f32 %v2212, %v2294
        %v2297 = vlaneseq
        %v2298 = vshrl.u32 %v2297, 7
        %v2299 = vsub.s32 0, %v2298
        %v2300 = vrot.slane %v1363, %v2299
        %v2303 = vsel %vm1470, %v1390, 0
        %v2306 = vsel %vm1474, %v1362, 0
        %2308 = vmatprep.subr.mxu0 0.0
        %2309 = vmatpush1.msra.mxu0 %v2306
        %2310 = vmatprep.subr.mxu0 0.0
        %2311 = vmatpush1.msra.mxu0 0.0
        %2312 = vmatprep.subr.mxu0 0.0
        %2313 = vmatpush1.msra.mxu0 0.0
        %2314 = vmatprep.subr.mxu0 0.0
        %2315 = vmatpush1.msra.mxu0 0.0
        %2316 = vmatprep.subr.mxu0 0.0
        %2317 = vmatpush1.msra.mxu0 0.0
        %2318 = vmatprep.subr.mxu0 0.0
        %2319 = vmatpush1.msra.mxu0 0.0
        %2320 = vmatprep.subr.mxu0 0.0
        %2321 = vmatpush1.msra.mxu0 0.0
        %2322 = vmatprep.subr.mxu0 0.0
        %2323 = vmatpush1.msra.mxu0 0.0
        %2324 = vmatprep.subr.mxu0 0.0
        %2325 = vmatpush1.msra.mxu0 0.0
        %2326 = vmatprep.subr.mxu0 0.0
        %2327 = vmatpush1.msra.mxu0 0.0
        %2328 = vmatprep.subr.mxu0 0.0
        %2329 = vmatpush1.msra.mxu0 0.0
        %2330 = vmatprep.subr.mxu0 0.0
        %2331 = vmatpush1.msra.mxu0 0.0
        %2332 = vmatprep.subr.mxu0 0.0
        %2333 = vmatpush1.msra.mxu0 0.0
        %2334 = vmatprep.subr.mxu0 0.0
        %2335 = vmatpush1.msra.mxu0 0.0
        %2336 = vmatprep.subr.mxu0 0.0
        %2337 = vmatpush1.msra.mxu0 0.0
        %2338 = vmatprep.subr.mxu0 0.0
        %2339 = vmatpush1.msra.mxu0 0.0
        %2340 = vmatprep.subr.mxu0 0.0
        %2341 = vmatpush1.msra.mxu0 0.0
        %2342 = vmatprep.subr.mxu0 0.0
        %2343 = vmatpush1.msra.mxu0 0.0
        %2344 = vmatprep.subr.mxu0 0.0
        %2345 = vmatpush1.msra.mxu0 0.0
        %2346 = vmatprep.subr.mxu0 0.0
        %2347 = vmatpush1.msra.mxu0 0.0
        %2348 = vmatprep.subr.mxu0 0.0
        %2349 = vmatpush1.msra.mxu0 0.0
        %2350 = vmatprep.subr.mxu0 0.0
        %2351 = vmatpush1.msra.mxu0 0.0
        %2352 = vmatprep.subr.mxu0 0.0
        %2353 = vmatpush1.msra.mxu0 0.0
        %2354 = vmatprep.subr.mxu0 0.0
        %2355 = vmatpush1.msra.mxu0 0.0
        %2356 = vmatprep.subr.mxu0 0.0
        %2357 = vmatpush1.msra.mxu0 0.0
        %2358 = vmatprep.subr.mxu0 0.0
        %2359 = vmatpush1.msra.mxu0 0.0
        %2360 = vmatprep.subr.mxu0 0.0
        %2361 = vmatpush1.msra.mxu0 0.0
        %2362 = vmatprep.subr.mxu0 0.0
        %2363 = vmatpush1.msra.mxu0 0.0
        %2364 = vmatprep.subr.mxu0 0.0
        %2365 = vmatpush1.msra.mxu0 0.0
        %2366 = vmatprep.subr.mxu0 0.0
        %2367 = vmatpush1.msra.mxu0 0.0
        %2368 = vmatprep.subr.mxu0 0.0
        %2369 = vmatpush1.msra.mxu0 0.0
        %2370 = vmatprep.subr.mxu0 0.0
        %2371 = vmatpush1.msra.mxu0 0.0
        %2372 = vmatprep.mubr.f32.mxu0 0.0
        %2373 = vmatmul.mubr.f32.gmra.mrb[0].mxu0 %v2303
        %v2374 = vpop.f32.mrb[0].mxu0
        %v2375 = vadd.f32 %v2300, %v2374
        %v2376 = vpop.f32.mrb[0].mxu0
        %2377 = vdwg.mxu0
        %v2378 = vadd.f32 %v2375, %v2295
        %v2379 = vmax.f32 %v2378, 0.0
        %vm2380 = vcmask 130048
        %v2381 = vsel %vm2380, %v2379, 0.0
        %2382 = vadd.xlane.f32.xlu0 %v2381
        %v2383 = vpop.xlane.xlu0 %2382
        %v2384 = vrcp.pop 16.0
        %v2385 = vmul.f32 %v2383, %v2384
        %v2386 = vsub.f32 %v2379, %v2385
        %v2387 = vmul.f32 %v2386, %v2386
        %v2388 = vsel %vm2380, %v2387, 0.0
        %2389 = vadd.xlane.f32.xlu0 %v2388
        %v2390 = vpop.xlane.xlu0 %2389
        %v2391 = vmul.f32 %v2390, %v2384
        %v2392 = vadd.f32 %v2391, 1e-05
        %v2393 = vrsqrt.pop %v2392
        %v2394 = vmul.f32 %v2386, %v2393
        %v2396 = vlaneseq
        %v2397 = vshrl.u32 %v2396, 7
        %v2398 = vsub.s32 0, %v2397
        %v2399 = vrot.slane %v1364, %v2398
        %v2401 = vmul.f32 %v2394, %v2399
        %v2403 = vlaneseq
        %v2404 = vshrl.u32 %v2403, 7
        %v2405 = vsub.s32 0, %v2404
        %v2406 = vrot.slane %v1365, %v2405
        %v2408 = vadd.f32 %v2401, %v2406
        %v2410 = vsel %vm1470, %v1391, 0
        %2412 = vmatprep.subr.mxu0 0.0
        %2413 = vmatpush1.msra.mxu0 %v2306
        %2414 = vmatprep.subr.mxu0 0.0
        %2415 = vmatpush1.msra.mxu0 0.0
        %2416 = vmatprep.subr.mxu0 0.0
        %2417 = vmatpush1.msra.mxu0 0.0
        %2418 = vmatprep.subr.mxu0 0.0
        %2419 = vmatpush1.msra.mxu0 0.0
        %2420 = vmatprep.subr.mxu0 0.0
        %2421 = vmatpush1.msra.mxu0 0.0
        %2422 = vmatprep.subr.mxu0 0.0
        %2423 = vmatpush1.msra.mxu0 0.0
        %2424 = vmatprep.subr.mxu0 0.0
        %2425 = vmatpush1.msra.mxu0 0.0
        %2426 = vmatprep.subr.mxu0 0.0
        %2427 = vmatpush1.msra.mxu0 0.0
        %2428 = vmatprep.subr.mxu0 0.0
        %2429 = vmatpush1.msra.mxu0 0.0
        %2430 = vmatprep.subr.mxu0 0.0
        %2431 = vmatpush1.msra.mxu0 0.0
        %2432 = vmatprep.subr.mxu0 0.0
        %2433 = vmatpush1.msra.mxu0 0.0
        %2434 = vmatprep.subr.mxu0 0.0
        %2435 = vmatpush1.msra.mxu0 0.0
        %2436 = vmatprep.subr.mxu0 0.0
        %2437 = vmatpush1.msra.mxu0 0.0
        %2438 = vmatprep.subr.mxu0 0.0
        %2439 = vmatpush1.msra.mxu0 0.0
        %2440 = vmatprep.subr.mxu0 0.0
        %2441 = vmatpush1.msra.mxu0 0.0
        %2442 = vmatprep.subr.mxu0 0.0
        %2443 = vmatpush1.msra.mxu0 0.0
        %2444 = vmatprep.subr.mxu0 0.0
        %2445 = vmatpush1.msra.mxu0 0.0
        %2446 = vmatprep.subr.mxu0 0.0
        %2447 = vmatpush1.msra.mxu0 0.0
        %2448 = vmatprep.subr.mxu0 0.0
        %2449 = vmatpush1.msra.mxu0 0.0
        %2450 = vmatprep.subr.mxu0 0.0
        %2451 = vmatpush1.msra.mxu0 0.0
        %2452 = vmatprep.subr.mxu0 0.0
        %2453 = vmatpush1.msra.mxu0 0.0
        %2454 = vmatprep.subr.mxu0 0.0
        %2455 = vmatpush1.msra.mxu0 0.0
        %2456 = vmatprep.subr.mxu0 0.0
        %2457 = vmatpush1.msra.mxu0 0.0
        %2458 = vmatprep.subr.mxu0 0.0
        %2459 = vmatpush1.msra.mxu0 0.0
        %2460 = vmatprep.subr.mxu0 0.0
        %2461 = vmatpush1.msra.mxu0 0.0
        %2462 = vmatprep.subr.mxu0 0.0
        %2463 = vmatpush1.msra.mxu0 0.0
        %2464 = vmatprep.subr.mxu0 0.0
        %2465 = vmatpush1.msra.mxu0 0.0
        %2466 = vmatprep.subr.mxu0 0.0
        %2467 = vmatpush1.msra.mxu0 0.0
        %2468 = vmatprep.subr.mxu0 0.0
        %2469 = vmatpush1.msra.mxu0 0.0
        %2470 = vmatprep.subr.mxu0 0.0
        %2471 = vmatpush1.msra.mxu0 0.0
        %2472 = vmatprep.subr.mxu0 0.0
        %2473 = vmatpush1.msra.mxu0 0.0
        %2474 = vmatprep.subr.mxu0 0.0
        %2475 = vmatpush1.msra.mxu0 0.0
        %2476 = vmatprep.mubr.f32.mxu0 0.0
        %2477 = vmatmul.mubr.f32.gmra.mrb[0].mxu0 %v2410
        %v2478 = vpop.f32.mrb[0].mxu0
        %v2479 = vadd.f32 %v2300, %v2478
        %v2480 = vpop.f32.mrb[0].mxu0
        %2481 = vdwg.mxu0
        %v2482 = vadd.f32 %v2479, %v2295
        %v2483 = vmax.f32 %v2482, 0.0
        %v2484 = vsel %vm2380, %v2483, 0.0
        %2485 = vadd.xlane.f32.xlu0 %v2484
        %v2486 = vpop.xlane.xlu0 %2485
        %v2487 = vmul.f32 %v2486, %v2384
        %v2488 = vsub.f32 %v2483, %v2487
        %v2489 = vmul.f32 %v2488, %v2488
        %v2490 = vsel %vm2380, %v2489, 0.0
        %2491 = vadd.xlane.f32.xlu0 %v2490
        %v2492 = vpop.xlane.xlu0 %2491
        %v2493 = vmul.f32 %v2492, %v2384
        %v2494 = vadd.f32 %v2493, 1e-05
        %v2495 = vrsqrt.pop %v2494
        %v2496 = vmul.f32 %v2488, %v2495
        %v2497 = vmul.f32 %v2496, %v2399
        %v2498 = vadd.f32 %v2497, %v2406
        %v2500 = vsel %vm1470, %v1392, 0
        %2502 = vmatprep.subr.mxu0 0.0
        %2503 = vmatpush1.msra.mxu0 %v2306
        %2504 = vmatprep.subr.mxu0 0.0
        %2505 = vmatpush1.msra.mxu0 0.0
        %2506 = vmatprep.subr.mxu0 0.0
        %2507 = vmatpush1.msra.mxu0 0.0
        %2508 = vmatprep.subr.mxu0 0.0
        %2509 = vmatpush1.msra.mxu0 0.0
        %2510 = vmatprep.subr.mxu0 0.0
        %2511 = vmatpush1.msra.mxu0 0.0
        %2512 = vmatprep.subr.mxu0 0.0
        %2513 = vmatpush1.msra.mxu0 0.0
        %2514 = vmatprep.subr.mxu0 0.0
        %2515 = vmatpush1.msra.mxu0 0.0
        %2516 = vmatprep.subr.mxu0 0.0
        %2517 = vmatpush1.msra.mxu0 0.0
        %2518 = vmatprep.subr.mxu0 0.0
        %2519 = vmatpush1.msra.mxu0 0.0
        %2520 = vmatprep.subr.mxu0 0.0
        %2521 = vmatpush1.msra.mxu0 0.0
        %2522 = vmatprep.subr.mxu0 0.0
        %2523 = vmatpush1.msra.mxu0 0.0
        %2524 = vmatprep.subr.mxu0 0.0
        %2525 = vmatpush1.msra.mxu0 0.0
        %2526 = vmatprep.subr.mxu0 0.0
        %2527 = vmatpush1.msra.mxu0 0.0
        %2528 = vmatprep.subr.mxu0 0.0
        %2529 = vmatpush1.msra.mxu0 0.0
        %2530 = vmatprep.subr.mxu0 0.0
        %2531 = vmatpush1.msra.mxu0 0.0
        %2532 = vmatprep.subr.mxu0 0.0
        %2533 = vmatpush1.msra.mxu0 0.0
        %2534 = vmatprep.subr.mxu0 0.0
        %2535 = vmatpush1.msra.mxu0 0.0
        %2536 = vmatprep.subr.mxu0 0.0
        %2537 = vmatpush1.msra.mxu0 0.0
        %2538 = vmatprep.subr.mxu0 0.0
        %2539 = vmatpush1.msra.mxu0 0.0
        %2540 = vmatprep.subr.mxu0 0.0
        %2541 = vmatpush1.msra.mxu0 0.0
        %2542 = vmatprep.subr.mxu0 0.0
        %2543 = vmatpush1.msra.mxu0 0.0
        %2544 = vmatprep.subr.mxu0 0.0
        %2545 = vmatpush1.msra.mxu0 0.0
        %2546 = vmatprep.subr.mxu0 0.0
        %2547 = vmatpush1.msra.mxu0 0.0
        %2548 = vmatprep.subr.mxu0 0.0
        %2549 = vmatpush1.msra.mxu0 0.0
        %2550 = vmatprep.subr.mxu0 0.0
        %2551 = vmatpush1.msra.mxu0 0.0
        %2552 = vmatprep.subr.mxu0 0.0
        %2553 = vmatpush1.msra.mxu0 0.0
        %2554 = vmatprep.subr.mxu0 0.0
        %2555 = vmatpush1.msra.mxu0 0.0
        %2556 = vmatprep.subr.mxu0 0.0
        %2557 = vmatpush1.msra.mxu0 0.0
        %2558 = vmatprep.subr.mxu0 0.0
        %2559 = vmatpush1.msra.mxu0 0.0
        %2560 = vmatprep.subr.mxu0 0.0
        %2561 = vmatpush1.msra.mxu0 0.0
        %2562 = vmatprep.subr.mxu0 0.0
        %2563 = vmatpush1.msra.mxu0 0.0
        %2564 = vmatprep.subr.mxu0 0.0
        %2565 = vmatpush1.msra.mxu0 0.0
        %2566 = vmatprep.mubr.f32.mxu0 0.0
        %2567 = vmatmul.mubr.f32.gmra.mrb[0].mxu0 %v2500
        %v2568 = vpop.f32.mrb[0].mxu0
        %v2569 = vadd.f32 %v2300, %v2568
        %v2570 = vpop.f32.mrb[0].mxu0
        %2571 = vdwg.mxu0
        %v2572 = vadd.f32 %v2569, %v2295
        %v2573 = vmax.f32 %v2572, 0.0
        %v2574 = vsel %vm2380, %v2573, 0.0
        %2575 = vadd.xlane.f32.xlu0 %v2574
        %v2576 = vpop.xlane.xlu0 %2575
        %v2577 = vmul.f32 %v2576, %v2384
        %v2578 = vsub.f32 %v2573, %v2577
        %v2579 = vmul.f32 %v2578, %v2578
        %v2580 = vsel %vm2380, %v2579, 0.0
        %2581 = vadd.xlane.f32.xlu0 %v2580
        %v2582 = vpop.xlane.xlu0 %2581
        %v2583 = vmul.f32 %v2582, %v2384
        %v2584 = vadd.f32 %v2583, 1e-05
        %v2585 = vrsqrt.pop %v2584
        %v2586 = vmul.f32 %v2578, %v2585
        %v2587 = vmul.f32 %v2586, %v2399
        %v2588 = vadd.f32 %v2587, %v2406
        %v2590 = vsel %vm1396, %v1366, 0
        %2592 = vmatprep.subr.mxu0 0.0
        %2593 = vmatpush1.msra.mxu0 %v2408
        %2594 = vmatprep.subr.mxu0 0.0
        %2595 = vmatpush1.msra.mxu0 %v2498
        %2596 = vmatprep.subr.mxu0 0.0
        %2597 = vmatpush1.msra.mxu0 %v2588
        %2598 = vmatprep.subr.mxu0 0.0
        %2599 = vmatpush1.msra.mxu0 0.0
        %2600 = vmatprep.subr.mxu0 0.0
        %2601 = vmatpush1.msra.mxu0 0.0
        %2602 = vmatprep.subr.mxu0 0.0
        %2603 = vmatpush1.msra.mxu0 0.0
        %2604 = vmatprep.subr.mxu0 0.0
        %2605 = vmatpush1.msra.mxu0 0.0
        %2606 = vmatprep.subr.mxu0 0.0
        %2607 = vmatpush1.msra.mxu0 0.0
        %2608 = vmatprep.subr.mxu0 0.0
        %2609 = vmatpush1.msra.mxu0 0.0
        %2610 = vmatprep.subr.mxu0 0.0
        %2611 = vmatpush1.msra.mxu0 0.0
        %2612 = vmatprep.subr.mxu0 0.0
        %2613 = vmatpush1.msra.mxu0 0.0
        %2614 = vmatprep.subr.mxu0 0.0
        %2615 = vmatpush1.msra.mxu0 0.0
        %2616 = vmatprep.subr.mxu0 0.0
        %2617 = vmatpush1.msra.mxu0 0.0
        %2618 = vmatprep.subr.mxu0 0.0
        %2619 = vmatpush1.msra.mxu0 0.0
        %2620 = vmatprep.subr.mxu0 0.0
        %2621 = vmatpush1.msra.mxu0 0.0
        %2622 = vmatprep.subr.mxu0 0.0
        %2623 = vmatpush1.msra.mxu0 0.0
        %2624 = vmatprep.subr.mxu0 0.0
        %2625 = vmatpush1.msra.mxu0 0.0
        %2626 = vmatprep.subr.mxu0 0.0
        %2627 = vmatpush1.msra.mxu0 0.0
        %2628 = vmatprep.subr.mxu0 0.0
        %2629 = vmatpush1.msra.mxu0 0.0
        %2630 = vmatprep.subr.mxu0 0.0
        %2631 = vmatpush1.msra.mxu0 0.0
        %2632 = vmatprep.subr.mxu0 0.0
        %2633 = vmatpush1.msra.mxu0 0.0
        %2634 = vmatprep.subr.mxu0 0.0
        %2635 = vmatpush1.msra.mxu0 0.0
        %2636 = vmatprep.subr.mxu0 0.0
        %2637 = vmatpush1.msra.mxu0 0.0
        %2638 = vmatprep.subr.mxu0 0.0
        %2639 = vmatpush1.msra.mxu0 0.0
        %2640 = vmatprep.subr.mxu0 0.0
        %2641 = vmatpush1.msra.mxu0 0.0
        %2642 = vmatprep.subr.mxu0 0.0
        %2643 = vmatpush1.msra.mxu0 0.0
        %2644 = vmatprep.subr.mxu0 0.0
        %2645 = vmatpush1.msra.mxu0 0.0
        %2646 = vmatprep.subr.mxu0 0.0
        %2647 = vmatpush1.msra.mxu0 0.0
        %2648 = vmatprep.subr.mxu0 0.0
        %2649 = vmatpush1.msra.mxu0 0.0
        %2650 = vmatprep.subr.mxu0 0.0
        %2651 = vmatpush1.msra.mxu0 0.0
        %2652 = vmatprep.subr.mxu0 0.0
        %2653 = vmatpush1.msra.mxu0 0.0
        %2654 = vmatprep.subr.mxu0 0.0
        %2655 = vmatpush1.msra.mxu0 0.0
        %2656 = vmatprep.mubr.f32.mxu0 0.0
        %2657 = vmatmul.mubr.f32.gmra.mrb[0].mxu0 %v2590
        %v2658 = vpop.f32.mrb[0].mxu0
        %v2659 = vadd.f32 0.0, %v2658
        %v2660 = vpop.f32.mrb[0].mxu0
        %2661 = vdwg.mxu0
        %v2663 = vsel %vm2380, %v2659, 0
        %2665 = vmatprep.subr.mxu0 0.0
        %2666 = vmatpush1.msra.mxu0 %v1367
        %2667 = vmatprep.subr.mxu0 0.0
        %2668 = vmatpush1.msra.mxu0 %v1368
        %2669 = vmatprep.subr.mxu0 0.0
        %2670 = vmatpush1.msra.mxu0 0.0
        %2671 = vmatprep.subr.mxu0 0.0
        %2672 = vmatpush1.msra.mxu0 0.0
        %2673 = vmatprep.subr.mxu0 0.0
        %2674 = vmatpush1.msra.mxu0 0.0
        %2675 = vmatprep.subr.mxu0 0.0
        %2676 = vmatpush1.msra.mxu0 0.0
        %2677 = vmatprep.subr.mxu0 0.0
        %2678 = vmatpush1.msra.mxu0 0.0
        %2679 = vmatprep.subr.mxu0 0.0
        %2680 = vmatpush1.msra.mxu0 0.0
        %2681 = vmatprep.subr.mxu0 0.0
        %2682 = vmatpush1.msra.mxu0 0.0
        %2683 = vmatprep.subr.mxu0 0.0
        %2684 = vmatpush1.msra.mxu0 0.0
        %2685 = vmatprep.subr.mxu0 0.0
        %2686 = vmatpush1.msra.mxu0 0.0
        %2687 = vmatprep.subr.mxu0 0.0
        %2688 = vmatpush1.msra.mxu0 0.0
        %2689 = vmatprep.subr.mxu0 0.0
        %2690 = vmatpush1.msra.mxu0 0.0
        %2691 = vmatprep.subr.mxu0 0.0
        %2692 = vmatpush1.msra.mxu0 0.0
        %2693 = vmatprep.subr.mxu0 0.0
        %2694 = vmatpush1.msra.mxu0 0.0
        %2695 = vmatprep.subr.mxu0 0.0
        %2696 = vmatpush1.msra.mxu0 0.0
        %2697 = vmatprep.subr.mxu0 0.0
        %2698 = vmatpush1.msra.mxu0 0.0
        %2699 = vmatprep.subr.mxu0 0.0
        %2700 = vmatpush1.msra.mxu0 0.0
        %2701 = vmatprep.subr.mxu0 0.0
        %2702 = vmatpush1.msra.mxu0 0.0
        %2703 = vmatprep.subr.mxu0 0.0
        %2704 = vmatpush1.msra.mxu0 0.0
        %2705 = vmatprep.subr.mxu0 0.0
        %2706 = vmatpush1.msra.mxu0 0.0
        %2707 = vmatprep.subr.mxu0 0.0
        %2708 = vmatpush1.msra.mxu0 0.0
        %2709 = vmatprep.subr.mxu0 0.0
        %2710 = vmatpush1.msra.mxu0 0.0
        %2711 = vmatprep.subr.mxu0 0.0
        %2712 = vmatpush1.msra.mxu0 0.0
        %2713 = vmatprep.subr.mxu0 0.0
        %2714 = vmatpush1.msra.mxu0 0.0
        %2715 = vmatprep.subr.mxu0 0.0
        %2716 = vmatpush1.msra.mxu0 0.0
        %2717 = vmatprep.subr.mxu0 0.0
        %2718 = vmatpush1.msra.mxu0 0.0
        %2719 = vmatprep.subr.mxu0 0.0
        %2720 = vmatpush1.msra.mxu0 0.0
        %2721 = vmatprep.subr.mxu0 0.0
        %2722 = vmatpush1.msra.mxu0 0.0
        %2723 = vmatprep.subr.mxu0 0.0
        %2724 = vmatpush1.msra.mxu0 0.0
        %2725 = vmatprep.subr.mxu0 0.0
        %2726 = vmatpush1.msra.mxu0 0.0
        %2727 = vmatprep.subr.mxu0 0.0
        %2728 = vmatpush1.msra.mxu0 0.0
        %2729 = vmatprep.mubr.f32.mxu0 0.0
        %2730 = vmatmul.mubr.f32.gmra.mrb[0].mxu0 %v2663
        %v2731 = vpop.f32.mrb[0].mxu0
        %v2732 = vadd.f32 0.0, %v2731
        %v2733 = vpop.f32.mrb[0].mxu0
        %2734 = vdwg.mxu0
        %v2736 = vlaneseq
        %v2737 = vshrl.u32 %v2736, 7
        %v2738 = vsub.s32 0, %v2737
        %v2739 = vrot.slane %v1369, %v2738
        %v2741 = vmul.f32 %v2408, %v2739
        %v2742 = vmul.f32 %v2498, %v2739
        %v2743 = vmul.f32 %v2588, %v2739
        %v2744 = vsel %vm2380, %v2741, 0.0
        %2745 = vadd.xlane.f32.xlu0 %v2744
        %v2746 = vpop.xlane.xlu0 %2745
        %v2747 = vsel %vm2380, %v2742, 0.0
        %2748 = vadd.xlane.f32.xlu0 %v2747
        %v2749 = vpop.xlane.xlu0 %2748
        %v2750 = vsel %vm2380, %v2743, 0.0
        %2751 = vadd.xlane.f32.xlu0 %v2750
        %v2752 = vpop.xlane.xlu0 %2751
        %v2756 = vlaneseq
        %v2757 = vshrl.u32 %v2756, 7
        %v2758 = vsub.s32 %v1570, %v2757
        %v2759 = vrot.slane %v2746, %v2758
        %v2760 = vlaneseq
        %v2761 = vshrl.u32 %v2760, 7
        %v2762 = vsub.s32 %v1570, %v2761
        %v2763 = vrot.slane %v2749, %v2762
        %v2764 = vlaneseq
        %v2765 = vshrl.u32 %v2764, 7
        %v2766 = vsub.s32 %v1570, %v2765
        %v2767 = vrot.slane %v2752, %v2766
        %v2768 = vsel %vm1583, %v2763, %v2759
        %v2769 = vsel %vm1585, %v2767, %v2768
        %v2771 = vsel %vm1587, %v2732, 0
        %v2773 = vsel %vm1587, %v2769, 0
        %2775 = vmatprep.subr.mxu0 0.0
        %2776 = vmatpush1.xpose.msra.mxu0 %v2773
        %2777 = vmatprep.subr.mxu0 0.0
        %2778 = vmatpush1.xpose.msra.mxu0 0.0
        %2779 = vmatprep.subr.mxu0 0.0
        %2780 = vmatpush1.xpose.msra.mxu0 0.0
        %2781 = vmatprep.subr.mxu0 0.0
        %2782 = vmatpush1.xpose.msra.mxu0 0.0
        %2783 = vmatprep.subr.mxu0 0.0
        %2784 = vmatpush1.xpose.msra.mxu0 0.0
        %2785 = vmatprep.subr.mxu0 0.0
        %2786 = vmatpush1.xpose.msra.mxu0 0.0
        %2787 = vmatprep.subr.mxu0 0.0
        %2788 = vmatpush1.xpose.msra.mxu0 0.0
        %2789 = vmatprep.subr.mxu0 0.0
        %2790 = vmatpush1.xpose.msra.mxu0 0.0
        %2791 = vmatprep.subr.mxu0 0.0
        %2792 = vmatpush1.xpose.msra.mxu0 0.0
        %2793 = vmatprep.subr.mxu0 0.0
        %2794 = vmatpush1.xpose.msra.mxu0 0.0
        %2795 = vmatprep.subr.mxu0 0.0
        %2796 = vmatpush1.xpose.msra.mxu0 0.0
        %2797 = vmatprep.subr.mxu0 0.0
        %2798 = vmatpush1.xpose.msra.mxu0 0.0
        %2799 = vmatprep.subr.mxu0 0.0
        %2800 = vmatpush1.xpose.msra.mxu0 0.0
        %2801 = vmatprep.subr.mxu0 0.0
        %2802 = vmatpush1.xpose.msra.mxu0 0.0
        %2803 = vmatprep.subr.mxu0 0.0
        %2804 = vmatpush1.xpose.msra.mxu0 0.0
        %2805 = vmatprep.subr.mxu0 0.0
        %2806 = vmatpush1.xpose.msra.mxu0 0.0
        %2807 = vmatprep.subr.mxu0 0.0
        %2808 = vmatpush1.xpose.msra.mxu0 0.0
        %2809 = vmatprep.subr.mxu0 0.0
        %2810 = vmatpush1.xpose.msra.mxu0 0.0
        %2811 = vmatprep.subr.mxu0 0.0
        %2812 = vmatpush1.xpose.msra.mxu0 0.0
        %2813 = vmatprep.subr.mxu0 0.0
        %2814 = vmatpush1.xpose.msra.mxu0 0.0
        %2815 = vmatprep.subr.mxu0 0.0
        %2816 = vmatpush1.xpose.msra.mxu0 0.0
        %2817 = vmatprep.subr.mxu0 0.0
        %2818 = vmatpush1.xpose.msra.mxu0 0.0
        %2819 = vmatprep.subr.mxu0 0.0
        %2820 = vmatpush1.xpose.msra.mxu0 0.0
        %2821 = vmatprep.subr.mxu0 0.0
        %2822 = vmatpush1.xpose.msra.mxu0 0.0
        %2823 = vmatprep.subr.mxu0 0.0
        %2824 = vmatpush1.xpose.msra.mxu0 0.0
        %2825 = vmatprep.subr.mxu0 0.0
        %2826 = vmatpush1.xpose.msra.mxu0 0.0
        %2827 = vmatprep.subr.mxu0 0.0
        %2828 = vmatpush1.xpose.msra.mxu0 0.0
        %2829 = vmatprep.subr.mxu0 0.0
        %2830 = vmatpush1.xpose.msra.mxu0 0.0
        %2831 = vmatprep.subr.mxu0 0.0
        %2832 = vmatpush1.xpose.msra.mxu0 0.0
        %2833 = vmatprep.subr.mxu0 0.0
        %2834 = vmatpush1.xpose.msra.mxu0 0.0
        %2835 = vmatprep.subr.mxu0 0.0
        %2836 = vmatpush1.xpose.msra.mxu0 0.0
        %2837 = vmatprep.subr.mxu0 0.0
        %2838 = vmatpush1.xpose.msra.mxu0 0.0
        %2839 = vmatprep.mubr.f32.mxu0 0.0
        %2840 = vmatmul.mubr.f32.gmra.mrb[0].mxu0 %v2771
        %v2841 = vpop.f32.mrb[0].mxu0
        %v2842 = vadd.f32 %v1370, %v2841
        %v2843 = vpop.f32.mrb[0].mxu0
        %2844 = vdwg.mxu0
        %v2845 = vxor.u32 %v2842, 2147483648
        %v2846 = vmul.f32 %v2845, 1.442695
        %v2847 = vpow.pop %v2846
        %v2848 = vadd.f32 %v2847, 1.0
        %v2849 = vrcp.pop %v2848
        %v2850 = vmul.f32 1.0, %v2849
        %v2852 = vsel %vm1669, %v1371, 0
        %v2855 = vsel %vm1673, %v2850, 0
        %2857 = vmatprep.subr.mxu0 0.0
        %2858 = vmatpush1.msra.mxu0 %v2855
        %2859 = vmatprep.subr.mxu0 0.0
        %2860 = vmatpush1.msra.mxu0 0.0
        %2861 = vmatprep.subr.mxu0 0.0
        %2862 = vmatpush1.msra.mxu0 0.0
        %2863 = vmatprep.subr.mxu0 0.0
        %2864 = vmatpush1.msra.mxu0 0.0
        %2865 = vmatprep.subr.mxu0 0.0
        %2866 = vmatpush1.msra.mxu0 0.0
        %2867 = vmatprep.subr.mxu0 0.0
        %2868 = vmatpush1.msra.mxu0 0.0
        %2869 = vmatprep.subr.mxu0 0.0
        %2870 = vmatpush1.msra.mxu0 0.0
        %2871 = vmatprep.subr.mxu0 0.0
        %2872 = vmatpush1.msra.mxu0 0.0
        %2873 = vmatprep.subr.mxu0 0.0
        %2874 = vmatpush1.msra.mxu0 0.0
        %2875 = vmatprep.subr.mxu0 0.0
        %2876 = vmatpush1.msra.mxu0 0.0
        %2877 = vmatprep.subr.mxu0 0.0
        %2878 = vmatpush1.msra.mxu0 0.0
        %2879 = vmatprep.subr.mxu0 0.0
        %2880 = vmatpush1.msra.mxu0 0.0
        %2881 = vmatprep.subr.mxu0 0.0
        %2882 = vmatpush1.msra.mxu0 0.0
        %2883 = vmatprep.subr.mxu0 0.0
        %2884 = vmatpush1.msra.mxu0 0.0
        %2885 = vmatprep.subr.mxu0 0.0
        %2886 = vmatpush1.msra.mxu0 0.0
        %2887 = vmatprep.subr.mxu0 0.0
        %2888 = vmatpush1.msra.mxu0 0.0
        %2889 = vmatprep.subr.mxu0 0.0
        %2890 = vmatpush1.msra.mxu0 0.0
        %2891 = vmatprep.subr.mxu0 0.0
        %2892 = vmatpush1.msra.mxu0 0.0
        %2893 = vmatprep.subr.mxu0 0.0
        %2894 = vmatpush1.msra.mxu0 0.0
        %2895 = vmatprep.subr.mxu0 0.0
        %2896 = vmatpush1.msra.mxu0 0.0
        %2897 = vmatprep.subr.mxu0 0.0
        %2898 = vmatpush1.msra.mxu0 0.0
        %2899 = vmatprep.subr.mxu0 0.0
        %2900 = vmatpush1.msra.mxu0 0.0
        %2901 = vmatprep.subr.mxu0 0.0
        %2902 = vmatpush1.msra.mxu0 0.0
        %2903 = vmatprep.subr.mxu0 0.0
        %2904 = vmatpush1.msra.mxu0 0.0
        %2905 = vmatprep.subr.mxu0 0.0
        %2906 = vmatpush1.msra.mxu0 0.0
        %2907 = vmatprep.subr.mxu0 0.0
        %2908 = vmatpush1.msra.mxu0 0.0
        %2909 = vmatprep.subr.mxu0 0.0
        %2910 = vmatpush1.msra.mxu0 0.0
        %2911 = vmatprep.subr.mxu0 0.0
        %2912 = vmatpush1.msra.mxu0 0.0
        %2913 = vmatprep.subr.mxu0 0.0
        %2914 = vmatpush1.msra.mxu0 0.0
        %2915 = vmatprep.subr.mxu0 0.0
        %2916 = vmatpush1.msra.mxu0 0.0
        %2917 = vmatprep.subr.mxu0 0.0
        %2918 = vmatpush1.msra.mxu0 0.0
        %2919 = vmatprep.subr.mxu0 0.0
        %2920 = vmatpush1.msra.mxu0 0.0
        %2921 = vmatprep.mubr.f32.mxu0 0.0
        %2922 = vmatmul.mubr.f32.gmra.mrb[0].mxu0 %v2852
        %v2923 = vpop.f32.mrb[0].mxu0
        %v2924 = vadd.f32 0.0, %v2923
        %v2925 = vpop.f32.mrb[0].mxu0
        %2926 = vdwg.mxu0
        %v2927 = vsel %vm1747, %v2924, -inf
        %v2928 = vrot.slane %v2927, 4
        %v2929 = vmax.f32 %v2927, %v2928
        %v2930 = vrot.slane %v2929, 2
        %v2931 = vmax.f32 %v2929, %v2930
        %v2932 = vrot.slane %v2931, 1
        %v2933 = vmax.f32 %v2931, %v2932
        %v2934 = vsub.f32 %v2924, %v2933
        %v2935 = vmul.f32 %v2934, 1.442695
        %v2936 = vpow.pop %v2935
        %v2937 = vsel %vm1747, %v2936, 0.0
        %v2938 = vrot.slane %v2937, 4
        %v2939 = vadd.f32 %v2937, %v2938
        %v2940 = vrot.slane %v2939, 2
        %v2941 = vadd.f32 %v2939, %v2940
        %v2942 = vrot.slane %v2941, 1
        %v2943 = vadd.f32 %v2941, %v2942
        %v2944 = vrcp.pop %v2943
        %v2945 = vmul.f32 %v2936, %v2944
        %2947 = vrot.lane.b32.xlu0 %v2945, 127
        %v2948 = vpop.permute.xlu0 %2947
        %s2949 = vtos %v2948
        %v2950 = vstv %s2949
        %v2952 = vmul.f32 %v2408, %v2950
        %v2953 = vrot.slane %v2945, 1
        %2954 = vrot.lane.b32.xlu0 %v2953, 127
        %v2955 = vpop.permute.xlu0 %2954
        %s2956 = vtos %v2955
        %v2957 = vstv %s2956
        %v2959 = vmul.f32 %v2498, %v2957
        %v2960 = vadd.f32 %v2952, %v2959
        %v2961 = vrot.slane %v2945, 2
        %2962 = vrot.lane.b32.xlu0 %v2961, 127
        %v2963 = vpop.permute.xlu0 %2962
        %s2964 = vtos %v2963
        %v2965 = vstv %s2964
        %v2967 = vmul.f32 %v2588, %v2965
        %v2968 = vadd.f32 %v2960, %v2967
        %2969 = vmatprep.subr.mxu0 0.0
        %2970 = vmatpush1.msra.mxu0 %v2968
        %2971 = vmatprep.subr.mxu0 0.0
        %2972 = vmatpush1.msra.mxu0 0.0
        %2973 = vmatprep.subr.mxu0 0.0
        %2974 = vmatpush1.msra.mxu0 0.0
        %2975 = vmatprep.subr.mxu0 0.0
        %2976 = vmatpush1.msra.mxu0 0.0
        %2977 = vmatprep.subr.mxu0 0.0
        %2978 = vmatpush1.msra.mxu0 0.0
        %2979 = vmatprep.subr.mxu0 0.0
        %2980 = vmatpush1.msra.mxu0 0.0
        %2981 = vmatprep.subr.mxu0 0.0
        %2982 = vmatpush1.msra.mxu0 0.0
        %2983 = vmatprep.subr.mxu0 0.0
        %2984 = vmatpush1.msra.mxu0 0.0
        %2985 = vmatprep.subr.mxu0 0.0
        %2986 = vmatpush1.msra.mxu0 0.0
        %2987 = vmatprep.subr.mxu0 0.0
        %2988 = vmatpush1.msra.mxu0 0.0
        %2989 = vmatprep.subr.mxu0 0.0
        %2990 = vmatpush1.msra.mxu0 0.0
        %2991 = vmatprep.subr.mxu0 0.0
        %2992 = vmatpush1.msra.mxu0 0.0
        %2993 = vmatprep.subr.mxu0 0.0
        %2994 = vmatpush1.msra.mxu0 0.0
        %2995 = vmatprep.subr.mxu0 0.0
        %2996 = vmatpush1.msra.mxu0 0.0
        %2997 = vmatprep.subr.mxu0 0.0
        %2998 = vmatpush1.msra.mxu0 0.0
        %2999 = vmatprep.subr.mxu0 0.0
        %3000 = vmatpush1.msra.mxu0 0.0
        %3001 = vmatprep.subr.mxu0 0.0
        %3002 = vmatpush1.msra.mxu0 0.0
        %3003 = vmatprep.subr.mxu0 0.0
        %3004 = vmatpush1.msra.mxu0 0.0
        %3005 = vmatprep.subr.mxu0 0.0
        %3006 = vmatpush1.msra.mxu0 0.0
        %3007 = vmatprep.subr.mxu0 0.0
        %3008 = vmatpush1.msra.mxu0 0.0
        %3009 = vmatprep.subr.mxu0 0.0
        %3010 = vmatpush1.msra.mxu0 0.0
        %3011 = vmatprep.subr.mxu0 0.0
        %3012 = vmatpush1.msra.mxu0 0.0
        %3013 = vmatprep.subr.mxu0 0.0
        %3014 = vmatpush1.msra.mxu0 0.0
        %3015 = vmatprep.subr.mxu0 0.0
        %3016 = vmatpush1.msra.mxu0 0.0
        %3017 = vmatprep.subr.mxu0 0.0
        %3018 = vmatpush1.msra.mxu0 0.0
        %3019 = vmatprep.subr.mxu0 0.0
        %3020 = vmatpush1.msra.mxu0 0.0
        %3021 = vmatprep.subr.mxu0 0.0
        %3022 = vmatpush1.msra.mxu0 0.0
        %3023 = vmatprep.subr.mxu0 0.0
        %3024 = vmatpush1.msra.mxu0 0.0
        %3025 = vmatprep.subr.mxu0 0.0
        %3026 = vmatpush1.msra.mxu0 0.0
        %3027 = vmatprep.subr.mxu0 0.0
        %3028 = vmatpush1.msra.mxu0 0.0
        %3029 = vmatprep.subr.mxu0 0.0
        %3030 = vmatpush1.msra.mxu0 0.0
        %3031 = vmatprep.subr.mxu0 0.0
        %3032 = vmatpush1.msra.mxu0 0.0
        %3033 = vmatprep.mubr.f32.mxu0 0.0
        %3034 = vmatmul.mubr.f32.gmra.mrb[0].mxu0 %v1791
        %v3035 = vpop.f32.mrb[0].mxu0
        %v3036 = vadd.f32 0.0, %v3035
        %v3037 = vpop.f32.mrb[0].mxu0
        %3038 = vmatprep.mubr.f32.mxu0 0.0
        %3039 = vmatmul.mubr.f32.gmra.mrb[0].mxu0 %v1794
        %v3040 = vpop.f32.mrb[0].mxu0
        %v3041 = vadd.f32 0.0, %v3040
        %v3042 = vpop.f32.mrb[0].mxu0
        %3043 = vmatprep.mubr.f32.mxu0 0.0
        %3044 = vmatmul.mubr.f32.gmra.mrb[0].mxu0 %v1797
        %v3045 = vpop.f32.mrb[0].mxu0
        %v3046 = vadd.f32 0.0, %v3045
        %v3047 = vpop.f32.mrb[0].mxu0
        %3048 = vdwg.mxu0
        %v3052 = vlaneseq
        %v3053 = vshrl.u32 %v3052, 7
        %v3054 = vsub.s32 0, %v3053
        %v3055 = vrot.slane %v1378, %v3054
        %v3056 = vlaneseq
        %v3057 = vshrl.u32 %v3056, 7
        %v3058 = vsub.s32 0, %v3057
        %v3059 = vrot.slane %v1379, %v3058
        %v3060 = vlaneseq
        %v3061 = vshrl.u32 %v3060, 7
        %v3062 = vsub.s32 0, %v3061
        %v3063 = vrot.slane %v1380, %v3062
        %v3068 = vsel %vm2380, %v3036, 0
        %3070 = vmatprep.subr.mxu0 0.0
        %3071 = vmatpush1.msra.mxu0 %v1372
        %3072 = vmatprep.subr.mxu0 0.0
        %3073 = vmatpush1.msra.mxu0 %v1373
        %3074 = vmatprep.subr.mxu0 0.0
        %3075 = vmatpush1.msra.mxu0 0.0
        %3076 = vmatprep.subr.mxu0 0.0
        %3077 = vmatpush1.msra.mxu0 0.0
        %3078 = vmatprep.subr.mxu0 0.0
        %3079 = vmatpush1.msra.mxu0 0.0
        %3080 = vmatprep.subr.mxu0 0.0
        %3081 = vmatpush1.msra.mxu0 0.0
        %3082 = vmatprep.subr.mxu0 0.0
        %3083 = vmatpush1.msra.mxu0 0.0
        %3084 = vmatprep.subr.mxu0 0.0
        %3085 = vmatpush1.msra.mxu0 0.0
        %3086 = vmatprep.subr.mxu0 0.0
        %3087 = vmatpush1.msra.mxu0 0.0
        %3088 = vmatprep.subr.mxu0 0.0
        %3089 = vmatpush1.msra.mxu0 0.0
        %3090 = vmatprep.subr.mxu0 0.0
        %3091 = vmatpush1.msra.mxu0 0.0
        %3092 = vmatprep.subr.mxu0 0.0
        %3093 = vmatpush1.msra.mxu0 0.0
        %3094 = vmatprep.subr.mxu0 0.0
        %3095 = vmatpush1.msra.mxu0 0.0
        %3096 = vmatprep.subr.mxu0 0.0
        %3097 = vmatpush1.msra.mxu0 0.0
        %3098 = vmatprep.subr.mxu0 0.0
        %3099 = vmatpush1.msra.mxu0 0.0
        %3100 = vmatprep.subr.mxu0 0.0
        %3101 = vmatpush1.msra.mxu0 0.0
        %3102 = vmatprep.subr.mxu0 0.0
        %3103 = vmatpush1.msra.mxu0 0.0
        %3104 = vmatprep.subr.mxu0 0.0
        %3105 = vmatpush1.msra.mxu0 0.0
        %3106 = vmatprep.subr.mxu0 0.0
        %3107 = vmatpush1.msra.mxu0 0.0
        %3108 = vmatprep.subr.mxu0 0.0
        %3109 = vmatpush1.msra.mxu0 0.0
        %3110 = vmatprep.subr.mxu0 0.0
        %3111 = vmatpush1.msra.mxu0 0.0
        %3112 = vmatprep.subr.mxu0 0.0
        %3113 = vmatpush1.msra.mxu0 0.0
        %3114 = vmatprep.subr.mxu0 0.0
        %3115 = vmatpush1.msra.mxu0 0.0
        %3116 = vmatprep.subr.mxu0 0.0
        %3117 = vmatpush1.msra.mxu0 0.0
        %3118 = vmatprep.subr.mxu0 0.0
        %3119 = vmatpush1.msra.mxu0 0.0
        %3120 = vmatprep.subr.mxu0 0.0
        %3121 = vmatpush1.msra.mxu0 0.0
        %3122 = vmatprep.subr.mxu0 0.0
        %3123 = vmatpush1.msra.mxu0 0.0
        %3124 = vmatprep.subr.mxu0 0.0
        %3125 = vmatpush1.msra.mxu0 0.0
        %3126 = vmatprep.subr.mxu0 0.0
        %3127 = vmatpush1.msra.mxu0 0.0
        %3128 = vmatprep.subr.mxu0 0.0
        %3129 = vmatpush1.msra.mxu0 0.0
        %3130 = vmatprep.subr.mxu0 0.0
        %3131 = vmatpush1.msra.mxu0 0.0
        %3132 = vmatprep.subr.mxu0 0.0
        %3133 = vmatpush1.msra.mxu0 0.0
        %3134 = vmatprep.mubr.f32.mxu0 0.0
        %3135 = vmatmul.mubr.f32.gmra.mrb[0].mxu0 %v3068
        %v3136 = vpop.f32.mrb[0].mxu0
        %v3137 = vadd.f32 %v3055, %v3136
        %v3138 = vpop.f32.mrb[0].mxu0
        %3139 = vdwg.mxu0
        %v3141 = vsel %vm2380, %v3041, 0
        %3143 = vmatprep.subr.mxu0 0.0
        %3144 = vmatpush1.msra.mxu0 %v1374
        %3145 = vmatprep.subr.mxu0 0.0
        %3146 = vmatpush1.msra.mxu0 %v1375
        %3147 = vmatprep.subr.mxu0 0.0
        %3148 = vmatpush1.msra.mxu0 0.0
        %3149 = vmatprep.subr.mxu0 0.0
        %3150 = vmatpush1.msra.mxu0 0.0
        %3151 = vmatprep.subr.mxu0 0.0
        %3152 = vmatpush1.msra.mxu0 0.0
        %3153 = vmatprep.subr.mxu0 0.0
        %3154 = vmatpush1.msra.mxu0 0.0
        %3155 = vmatprep.subr.mxu0 0.0
        %3156 = vmatpush1.msra.mxu0 0.0
        %3157 = vmatprep.subr.mxu0 0.0
        %3158 = vmatpush1.msra.mxu0 0.0
        %3159 = vmatprep.subr.mxu0 0.0
        %3160 = vmatpush1.msra.mxu0 0.0
        %3161 = vmatprep.subr.mxu0 0.0
        %3162 = vmatpush1.msra.mxu0 0.0
        %3163 = vmatprep.subr.mxu0 0.0
        %3164 = vmatpush1.msra.mxu0 0.0
        %3165 = vmatprep.subr.mxu0 0.0
        %3166 = vmatpush1.msra.mxu0 0.0
        %3167 = vmatprep.subr.mxu0 0.0
        %3168 = vmatpush1.msra.mxu0 0.0
        %3169 = vmatprep.subr.mxu0 0.0
        %3170 = vmatpush1.msra.mxu0 0.0
        %3171 = vmatprep.subr.mxu0 0.0
        %3172 = vmatpush1.msra.mxu0 0.0
        %3173 = vmatprep.subr.mxu0 0.0
        %3174 = vmatpush1.msra.mxu0 0.0
        %3175 = vmatprep.subr.mxu0 0.0
        %3176 = vmatpush1.msra.mxu0 0.0
        %3177 = vmatprep.subr.mxu0 0.0
        %3178 = vmatpush1.msra.mxu0 0.0
        %3179 = vmatprep.subr.mxu0 0.0
        %3180 = vmatpush1.msra.mxu0 0.0
        %3181 = vmatprep.subr.mxu0 0.0
        %3182 = vmatpush1.msra.mxu0 0.0
        %3183 = vmatprep.subr.mxu0 0.0
        %3184 = vmatpush1.msra.mxu0 0.0
        %3185 = vmatprep.subr.mxu0 0.0
        %3186 = vmatpush1.msra.mxu0 0.0
        %3187 = vmatprep.subr.mxu0 0.0
        %3188 = vmatpush1.msra.mxu0 0.0
        %3189 = vmatprep.subr.mxu0 0.0
        %3190 = vmatpush1.msra.mxu0 0.0
        %3191 = vmatprep.subr.mxu0 0.0
        %3192 = vmatpush1.msra.mxu0 0.0
        %3193 = vmatprep.subr.mxu0 0.0
        %3194 = vmatpush1.msra.mxu0 0.0
        %3195 = vmatprep.subr.mxu0 0.0
        %3196 = vmatpush1.msra.mxu0 0.0
        %3197 = vmatprep.subr.mxu0 0.0
        %3198 = vmatpush1.msra.mxu0 0.0
        %3199 = vmatprep.subr.mxu0 0.0
        %3200 = vmatpush1.msra.mxu0 0.0
        %3201 = vmatprep.subr.mxu0 0.0
        %3202 = vmatpush1.msra.mxu0 0.0
        %3203 = vmatprep.subr.mxu0 0.0
        %3204 = vmatpush1.msra.mxu0 0.0
        %3205 = vmatprep.subr.mxu0 0.0
        %3206 = vmatpush1.msra.mxu0 0.0
        %3207 = vmatprep.mubr.f32.mxu0 0.0
        %3208 = vmatmul.mubr.f32.gmra.mrb[0].mxu0 %v3141
        %v3209 = vpop.f32.mrb[0].mxu0
        %v3210 = vadd.f32 %v3059, %v3209
        %v3211 = vpop.f32.mrb[0].mxu0
        %3212 = vdwg.mxu0
        %v3214 = vsel %vm2380, %v3046, 0
        %3216 = vmatprep.subr.mxu0 0.0
        %3217 = vmatpush1.msra.mxu0 %v1376
        %3218 = vmatprep.subr.mxu0 0.0
        %3219 = vmatpush1.msra.mxu0 %v1377
        %3220 = vmatprep.subr.mxu0 0.0
        %3221 = vmatpush1.msra.mxu0 0.0
        %3222 = vmatprep.subr.mxu0 0.0
        %3223 = vmatpush1.msra.mxu0 0.0
        %3224 = vmatprep.subr.mxu0 0.0
        %3225 = vmatpush1.msra.mxu0 0.0
        %3226 = vmatprep.subr.mxu0 0.0
        %3227 = vmatpush1.msra.mxu0 0.0
        %3228 = vmatprep.subr.mxu0 0.0
        %3229 = vmatpush1.msra.mxu0 0.0
        %3230 = vmatprep.subr.mxu0 0.0
        %3231 = vmatpush1.msra.mxu0 0.0
        %3232 = vmatprep.subr.mxu0 0.0
        %3233 = vmatpush1.msra.mxu0 0.0
        %3234 = vmatprep.subr.mxu0 0.0
        %3235 = vmatpush1.msra.mxu0 0.0
        %3236 = vmatprep.subr.mxu0 0.0
        %3237 = vmatpush1.msra.mxu0 0.0
        %3238 = vmatprep.subr.mxu0 0.0
        %3239 = vmatpush1.msra.mxu0 0.0
        %3240 = vmatprep.subr.mxu0 0.0
        %3241 = vmatpush1.msra.mxu0 0.0
        %3242 = vmatprep.subr.mxu0 0.0
        %3243 = vmatpush1.msra.mxu0 0.0
        %3244 = vmatprep.subr.mxu0 0.0
        %3245 = vmatpush1.msra.mxu0 0.0
        %3246 = vmatprep.subr.mxu0 0.0
        %3247 = vmatpush1.msra.mxu0 0.0
        %3248 = vmatprep.subr.mxu0 0.0
        %3249 = vmatpush1.msra.mxu0 0.0
        %3250 = vmatprep.subr.mxu0 0.0
        %3251 = vmatpush1.msra.mxu0 0.0
        %3252 = vmatprep.subr.mxu0 0.0
        %3253 = vmatpush1.msra.mxu0 0.0
        %3254 = vmatprep.subr.mxu0 0.0
        %3255 = vmatpush1.msra.mxu0 0.0
        %3256 = vmatprep.subr.mxu0 0.0
        %3257 = vmatpush1.msra.mxu0 0.0
        %3258 = vmatprep.subr.mxu0 0.0
        %3259 = vmatpush1.msra.mxu0 0.0
        %3260 = vmatprep.subr.mxu0 0.0
        %3261 = vmatpush1.msra.mxu0 0.0
        %3262 = vmatprep.subr.mxu0 0.0
        %3263 = vmatpush1.msra.mxu0 0.0
        %3264 = vmatprep.subr.mxu0 0.0
        %3265 = vmatpush1.msra.mxu0 0.0
        %3266 = vmatprep.subr.mxu0 0.0
        %3267 = vmatpush1.msra.mxu0 0.0
        %3268 = vmatprep.subr.mxu0 0.0
        %3269 = vmatpush1.msra.mxu0 0.0
        %3270 = vmatprep.subr.mxu0 0.0
        %3271 = vmatpush1.msra.mxu0 0.0
        %3272 = vmatprep.subr.mxu0 0.0
        %3273 = vmatpush1.msra.mxu0 0.0
        %3274 = vmatprep.subr.mxu0 0.0
        %3275 = vmatpush1.msra.mxu0 0.0
        %3276 = vmatprep.subr.mxu0 0.0
        %3277 = vmatpush1.msra.mxu0 0.0
        %3278 = vmatprep.subr.mxu0 0.0
        %3279 = vmatpush1.msra.mxu0 0.0
        %3280 = vmatprep.mubr.f32.mxu0 0.0
        %3281 = vmatmul.mubr.f32.gmra.mrb[0].mxu0 %v3214
        %v3282 = vpop.f32.mrb[0].mxu0
        %v3283 = vadd.f32 %v3063, %v3282
        %v3284 = vpop.f32.mrb[0].mxu0
        %3285 = vdwg.mxu0
        %v3286 = vmax.f32 %v3137, 0.0
        %v3287 = vmax.f32 %v3210, 0.0
        %v3288 = vmax.f32 %v3283, 0.0
        %v3289 = vsel %vm1587, %v3286, 0.0
        %v3290 = vsel %vm1587, %v3287, 0.0
        %v3291 = vadd.f32 %v3289, %v3290
        %v3292 = vsel %vm1587, %v3288, 0.0
        %v3293 = vadd.f32 %v3291, %v3292
        %v3295 = vlaneseq
        %v3296 = vshrl.u32 %v3295, 7
        %v3297 = vsub.s32 0, %v3296
        %v3298 = vrot.slane %v1383, %v3297
        %v3301 = vsel %vm1587, %v3293, 0
        %3303 = vmatprep.subr.mxu0 0.0
        %3304 = vmatpush1.msra.mxu0 %v1381
        %3305 = vmatprep.subr.mxu0 0.0
        %3306 = vmatpush1.msra.mxu0 0.0
        %3307 = vmatprep.subr.mxu0 0.0
        %3308 = vmatpush1.msra.mxu0 0.0
        %3309 = vmatprep.subr.mxu0 0.0
        %3310 = vmatpush1.msra.mxu0 0.0
        %3311 = vmatprep.subr.mxu0 0.0
        %3312 = vmatpush1.msra.mxu0 0.0
        %3313 = vmatprep.subr.mxu0 0.0
        %3314 = vmatpush1.msra.mxu0 0.0
        %3315 = vmatprep.subr.mxu0 0.0
        %3316 = vmatpush1.msra.mxu0 0.0
        %3317 = vmatprep.subr.mxu0 0.0
        %3318 = vmatpush1.msra.mxu0 0.0
        %3319 = vmatprep.subr.mxu0 0.0
        %3320 = vmatpush1.msra.mxu0 0.0
        %3321 = vmatprep.subr.mxu0 0.0
        %3322 = vmatpush1.msra.mxu0 0.0
        %3323 = vmatprep.subr.mxu0 0.0
        %3324 = vmatpush1.msra.mxu0 0.0
        %3325 = vmatprep.subr.mxu0 0.0
        %3326 = vmatpush1.msra.mxu0 0.0
        %3327 = vmatprep.subr.mxu0 0.0
        %3328 = vmatpush1.msra.mxu0 0.0
        %3329 = vmatprep.subr.mxu0 0.0
        %3330 = vmatpush1.msra.mxu0 0.0
        %3331 = vmatprep.subr.mxu0 0.0
        %3332 = vmatpush1.msra.mxu0 0.0
        %3333 = vmatprep.subr.mxu0 0.0
        %3334 = vmatpush1.msra.mxu0 0.0
        %3335 = vmatprep.subr.mxu0 0.0
        %3336 = vmatpush1.msra.mxu0 0.0
        %3337 = vmatprep.subr.mxu0 0.0
        %3338 = vmatpush1.msra.mxu0 0.0
        %3339 = vmatprep.subr.mxu0 0.0
        %3340 = vmatpush1.msra.mxu0 0.0
        %3341 = vmatprep.subr.mxu0 0.0
        %3342 = vmatpush1.msra.mxu0 0.0
        %3343 = vmatprep.subr.mxu0 0.0
        %3344 = vmatpush1.msra.mxu0 0.0
        %3345 = vmatprep.subr.mxu0 0.0
        %3346 = vmatpush1.msra.mxu0 0.0
        %3347 = vmatprep.subr.mxu0 0.0
        %3348 = vmatpush1.msra.mxu0 0.0
        %3349 = vmatprep.subr.mxu0 0.0
        %3350 = vmatpush1.msra.mxu0 0.0
        %3351 = vmatprep.subr.mxu0 0.0
        %3352 = vmatpush1.msra.mxu0 0.0
        %3353 = vmatprep.subr.mxu0 0.0
        %3354 = vmatpush1.msra.mxu0 0.0
        %3355 = vmatprep.subr.mxu0 0.0
        %3356 = vmatpush1.msra.mxu0 0.0
        %3357 = vmatprep.subr.mxu0 0.0
        %3358 = vmatpush1.msra.mxu0 0.0
        %3359 = vmatprep.subr.mxu0 0.0
        %3360 = vmatpush1.msra.mxu0 0.0
        %3361 = vmatprep.subr.mxu0 0.0
        %3362 = vmatpush1.msra.mxu0 0.0
        %3363 = vmatprep.subr.mxu0 0.0
        %3364 = vmatpush1.msra.mxu0 0.0
        %3365 = vmatprep.subr.mxu0 0.0
        %3366 = vmatpush1.msra.mxu0 0.0
        %3367 = vmatprep.mubr.f32.mxu0 0.0
        %3368 = vmatmul.mubr.f32.gmra.mrb[0].mxu0 %v3301
        %v3369 = vpop.f32.mrb[0].mxu0
        %v3370 = vadd.f32 %v3298, %v3369
        %v3371 = vpop.f32.mrb[0].mxu0
        %3372 = vdwg.mxu0
        %v3373 = vtanh.pop %v3370
        %v3375 = vlaneseq
        %v3376 = vshrl.u32 %v3375, 7
        %v3377 = vsub.s32 0, %v3376
        %v3378 = vrot.slane %v1384, %v3377
        %3380 = vmatprep.subr.mxu0 0.0
        %3381 = vmatpush1.msra.mxu0 %v1382
        %3382 = vmatprep.subr.mxu0 0.0
        %3383 = vmatpush1.msra.mxu0 0.0
        %3384 = vmatprep.subr.mxu0 0.0
        %3385 = vmatpush1.msra.mxu0 0.0
        %3386 = vmatprep.subr.mxu0 0.0
        %3387 = vmatpush1.msra.mxu0 0.0
        %3388 = vmatprep.subr.mxu0 0.0
        %3389 = vmatpush1.msra.mxu0 0.0
        %3390 = vmatprep.subr.mxu0 0.0
        %3391 = vmatpush1.msra.mxu0 0.0
        %3392 = vmatprep.subr.mxu0 0.0
        %3393 = vmatpush1.msra.mxu0 0.0
        %3394 = vmatprep.subr.mxu0 0.0
        %3395 = vmatpush1.msra.mxu0 0.0
        %3396 = vmatprep.subr.mxu0 0.0
        %3397 = vmatpush1.msra.mxu0 0.0
        %3398 = vmatprep.subr.mxu0 0.0
        %3399 = vmatpush1.msra.mxu0 0.0
        %3400 = vmatprep.subr.mxu0 0.0
        %3401 = vmatpush1.msra.mxu0 0.0
        %3402 = vmatprep.subr.mxu0 0.0
        %3403 = vmatpush1.msra.mxu0 0.0
        %3404 = vmatprep.subr.mxu0 0.0
        %3405 = vmatpush1.msra.mxu0 0.0
        %3406 = vmatprep.subr.mxu0 0.0
        %3407 = vmatpush1.msra.mxu0 0.0
        %3408 = vmatprep.subr.mxu0 0.0
        %3409 = vmatpush1.msra.mxu0 0.0
        %3410 = vmatprep.subr.mxu0 0.0
        %3411 = vmatpush1.msra.mxu0 0.0
        %3412 = vmatprep.subr.mxu0 0.0
        %3413 = vmatpush1.msra.mxu0 0.0
        %3414 = vmatprep.subr.mxu0 0.0
        %3415 = vmatpush1.msra.mxu0 0.0
        %3416 = vmatprep.subr.mxu0 0.0
        %3417 = vmatpush1.msra.mxu0 0.0
        %3418 = vmatprep.subr.mxu0 0.0
        %3419 = vmatpush1.msra.mxu0 0.0
        %3420 = vmatprep.subr.mxu0 0.0
        %3421 = vmatpush1.msra.mxu0 0.0
        %3422 = vmatprep.subr.mxu0 0.0
        %3423 = vmatpush1.msra.mxu0 0.0
        %3424 = vmatprep.subr.mxu0 0.0
        %3425 = vmatpush1.msra.mxu0 0.0
        %3426 = vmatprep.subr.mxu0 0.0
        %3427 = vmatpush1.msra.mxu0 0.0
        %3428 = vmatprep.subr.mxu0 0.0
        %3429 = vmatpush1.msra.mxu0 0.0
        %3430 = vmatprep.subr.mxu0 0.0
        %3431 = vmatpush1.msra.mxu0 0.0
        %3432 = vmatprep.subr.mxu0 0.0
        %3433 = vmatpush1.msra.mxu0 0.0
        %3434 = vmatprep.subr.mxu0 0.0
        %3435 = vmatpush1.msra.mxu0 0.0
        %3436 = vmatprep.subr.mxu0 0.0
        %3437 = vmatpush1.msra.mxu0 0.0
        %3438 = vmatprep.subr.mxu0 0.0
        %3439 = vmatpush1.msra.mxu0 0.0
        %3440 = vmatprep.subr.mxu0 0.0
        %3441 = vmatpush1.msra.mxu0 0.0
        %3442 = vmatprep.subr.mxu0 0.0
        %3443 = vmatpush1.msra.mxu0 0.0
        %3444 = vmatprep.mubr.f32.mxu0 0.0
        %3445 = vmatmul.mubr.f32.gmra.mrb[0].mxu0 %v3301
        %v3446 = vpop.f32.mrb[0].mxu0
        %v3447 = vadd.f32 %v3378, %v3446
        %v3448 = vpop.f32.mrb[0].mxu0
        %3449 = vdwg.mxu0
        %v3450 = vxor.u32 %v3447, 2147483648
        %v3451 = vmul.f32 %v3450, 1.442695
        %v3452 = vpow.pop %v3451
        %v3453 = vadd.f32 %v3452, 1.0
        %v3454 = vrcp.pop %v3453
        %v3455 = vmul.f32 1.0, %v3454
        %v3456 = vmul.f32 %v3373, %v3455
        %v3458 = vlaneseq
        %v3459 = vshrl.u32 %v3458, 7
        %v3460 = vsub.s32 0, %v3459
        %v3461 = vrot.slane %v1387, %v3460
        %v3464 = vsel %vm2380, %v2408, 0
        %3466 = vmatprep.subr.mxu0 0.0
        %3467 = vmatpush1.msra.mxu0 %v1385
        %3468 = vmatprep.subr.mxu0 0.0
        %3469 = vmatpush1.msra.mxu0 %v1386
        %3470 = vmatprep.subr.mxu0 0.0
        %3471 = vmatpush1.msra.mxu0 0.0
        %3472 = vmatprep.subr.mxu0 0.0
        %3473 = vmatpush1.msra.mxu0 0.0
        %3474 = vmatprep.subr.mxu0 0.0
        %3475 = vmatpush1.msra.mxu0 0.0
        %3476 = vmatprep.subr.mxu0 0.0
        %3477 = vmatpush1.msra.mxu0 0.0
        %3478 = vmatprep.subr.mxu0 0.0
        %3479 = vmatpush1.msra.mxu0 0.0
        %3480 = vmatprep.subr.mxu0 0.0
        %3481 = vmatpush1.msra.mxu0 0.0
        %3482 = vmatprep.subr.mxu0 0.0
        %3483 = vmatpush1.msra.mxu0 0.0
        %3484 = vmatprep.subr.mxu0 0.0
        %3485 = vmatpush1.msra.mxu0 0.0
        %3486 = vmatprep.subr.mxu0 0.0
        %3487 = vmatpush1.msra.mxu0 0.0
        %3488 = vmatprep.subr.mxu0 0.0
        %3489 = vmatpush1.msra.mxu0 0.0
        %3490 = vmatprep.subr.mxu0 0.0
        %3491 = vmatpush1.msra.mxu0 0.0
        %3492 = vmatprep.subr.mxu0 0.0
        %3493 = vmatpush1.msra.mxu0 0.0
        %3494 = vmatprep.subr.mxu0 0.0
        %3495 = vmatpush1.msra.mxu0 0.0
        %3496 = vmatprep.subr.mxu0 0.0
        %3497 = vmatpush1.msra.mxu0 0.0
        %3498 = vmatprep.subr.mxu0 0.0
        %3499 = vmatpush1.msra.mxu0 0.0
        %3500 = vmatprep.subr.mxu0 0.0
        %3501 = vmatpush1.msra.mxu0 0.0
        %3502 = vmatprep.subr.mxu0 0.0
        %3503 = vmatpush1.msra.mxu0 0.0
        %3504 = vmatprep.subr.mxu0 0.0
        %3505 = vmatpush1.msra.mxu0 0.0
        %3506 = vmatprep.subr.mxu0 0.0
        %3507 = vmatpush1.msra.mxu0 0.0
        %3508 = vmatprep.subr.mxu0 0.0
        %3509 = vmatpush1.msra.mxu0 0.0
        %3510 = vmatprep.subr.mxu0 0.0
        %3511 = vmatpush1.msra.mxu0 0.0
        %3512 = vmatprep.subr.mxu0 0.0
        %3513 = vmatpush1.msra.mxu0 0.0
        %3514 = vmatprep.subr.mxu0 0.0
        %3515 = vmatpush1.msra.mxu0 0.0
        %3516 = vmatprep.subr.mxu0 0.0
        %3517 = vmatpush1.msra.mxu0 0.0
        %3518 = vmatprep.subr.mxu0 0.0
        %3519 = vmatpush1.msra.mxu0 0.0
        %3520 = vmatprep.subr.mxu0 0.0
        %3521 = vmatpush1.msra.mxu0 0.0
        %3522 = vmatprep.subr.mxu0 0.0
        %3523 = vmatpush1.msra.mxu0 0.0
        %3524 = vmatprep.subr.mxu0 0.0
        %3525 = vmatpush1.msra.mxu0 0.0
        %3526 = vmatprep.subr.mxu0 0.0
        %3527 = vmatpush1.msra.mxu0 0.0
        %3528 = vmatprep.subr.mxu0 0.0
        %3529 = vmatpush1.msra.mxu0 0.0
        %3530 = vmatprep.mubr.f32.mxu0 0.0
        %3531 = vmatmul.mubr.f32.gmra.mrb[0].mxu0 %v3464
        %v3532 = vpop.f32.mrb[0].mxu0
        %v3533 = vadd.f32 %v3461, %v3532
        %v3534 = vpop.f32.mrb[0].mxu0
        %3535 = vdwg.mxu0
        %v3536 = vadd.f32 %v3533, %v3456
        %v3537 = vmax.f32 %v3536, 0.0
        %v3538 = vsel %vm2380, %v3537, 0.0
        %3539 = vadd.xlane.f32.xlu0 %v3538
        %v3540 = vpop.xlane.xlu0 %3539
        %v3541 = vmul.f32 %v3540, %v2384
        %v3542 = vsub.f32 %v3537, %v3541
        %v3543 = vmul.f32 %v3542, %v3542
        %v3544 = vsel %vm2380, %v3543, 0.0
        %3545 = vadd.xlane.f32.xlu0 %v3544
        %v3546 = vpop.xlane.xlu0 %3545
        %v3547 = vmul.f32 %v3546, %v2384
        %v3548 = vadd.f32 %v3547, 1e-05
        %v3549 = vrsqrt.pop %v3548
        %v3550 = vmul.f32 %v3542, %v3549
        %v3552 = vlaneseq
        %v3553 = vshrl.u32 %v3552, 7
        %v3554 = vsub.s32 0, %v3553
        %v3555 = vrot.slane %v1388, %v3554
        %v3557 = vmul.f32 %v3550, %v3555
        %v3559 = vlaneseq
        %v3560 = vshrl.u32 %v3559, 7
        %v3561 = vsub.s32 0, %v3560
        %v3562 = vrot.slane %v1389, %v3561
        %v3564 = vadd.f32 %v3557, %v3562
        %v3566 = vsel %vm2380, %v2498, 0
        %3568 = vmatprep.subr.mxu0 0.0
        %3569 = vmatpush1.msra.mxu0 %v1385
        %3570 = vmatprep.subr.mxu0 0.0
        %3571 = vmatpush1.msra.mxu0 %v1386
        %3572 = vmatprep.subr.mxu0 0.0
        %3573 = vmatpush1.msra.mxu0 0.0
        %3574 = vmatprep.subr.mxu0 0.0
        %3575 = vmatpush1.msra.mxu0 0.0
        %3576 = vmatprep.subr.mxu0 0.0
        %3577 = vmatpush1.msra.mxu0 0.0
        %3578 = vmatprep.subr.mxu0 0.0
        %3579 = vmatpush1.msra.mxu0 0.0
        %3580 = vmatprep.subr.mxu0 0.0
        %3581 = vmatpush1.msra.mxu0 0.0
        %3582 = vmatprep.subr.mxu0 0.0
        %3583 = vmatpush1.msra.mxu0 0.0
        %3584 = vmatprep.subr.mxu0 0.0
        %3585 = vmatpush1.msra.mxu0 0.0
        %3586 = vmatprep.subr.mxu0 0.0
        %3587 = vmatpush1.msra.mxu0 0.0
        %3588 = vmatprep.subr.mxu0 0.0
        %3589 = vmatpush1.msra.mxu0 0.0
        %3590 = vmatprep.subr.mxu0 0.0
        %3591 = vmatpush1.msra.mxu0 0.0
        %3592 = vmatprep.subr.mxu0 0.0
        %3593 = vmatpush1.msra.mxu0 0.0
        %3594 = vmatprep.subr.mxu0 0.0
        %3595 = vmatpush1.msra.mxu0 0.0
        %3596 = vmatprep.subr.mxu0 0.0
        %3597 = vmatpush1.msra.mxu0 0.0
        %3598 = vmatprep.subr.mxu0 0.0
        %3599 = vmatpush1.msra.mxu0 0.0
        %3600 = vmatprep.subr.mxu0 0.0
        %3601 = vmatpush1.msra.mxu0 0.0
        %3602 = vmatprep.subr.mxu0 0.0
        %3603 = vmatpush1.msra.mxu0 0.0
        %3604 = vmatprep.subr.mxu0 0.0
        %3605 = vmatpush1.msra.mxu0 0.0
        %3606 = vmatprep.subr.mxu0 0.0
        %3607 = vmatpush1.msra.mxu0 0.0
        %3608 = vmatprep.subr.mxu0 0.0
        %3609 = vmatpush1.msra.mxu0 0.0
        %3610 = vmatprep.subr.mxu0 0.0
        %3611 = vmatpush1.msra.mxu0 0.0
        %3612 = vmatprep.subr.mxu0 0.0
        %3613 = vmatpush1.msra.mxu0 0.0
        %3614 = vmatprep.subr.mxu0 0.0
        %3615 = vmatpush1.msra.mxu0 0.0
        %3616 = vmatprep.subr.mxu0 0.0
        %3617 = vmatpush1.msra.mxu0 0.0
        %3618 = vmatprep.subr.mxu0 0.0
        %3619 = vmatpush1.msra.mxu0 0.0
        %3620 = vmatprep.subr.mxu0 0.0
        %3621 = vmatpush1.msra.mxu0 0.0
        %3622 = vmatprep.subr.mxu0 0.0
        %3623 = vmatpush1.msra.mxu0 0.0
        %3624 = vmatprep.subr.mxu0 0.0
        %3625 = vmatpush1.msra.mxu0 0.0
        %3626 = vmatprep.subr.mxu0 0.0
        %3627 = vmatpush1.msra.mxu0 0.0
        %3628 = vmatprep.subr.mxu0 0.0
        %3629 = vmatpush1.msra.mxu0 0.0
        %3630 = vmatprep.subr.mxu0 0.0
        %3631 = vmatpush1.msra.mxu0 0.0
        %3632 = vmatprep.mubr.f32.mxu0 0.0
        %3633 = vmatmul.mubr.f32.gmra.mrb[0].mxu0 %v3566
        %v3634 = vpop.f32.mrb[0].mxu0
        %v3635 = vadd.f32 %v3461, %v3634
        %v3636 = vpop.f32.mrb[0].mxu0
        %3637 = vdwg.mxu0
        %v3638 = vadd.f32 %v3635, %v3456
        %v3639 = vmax.f32 %v3638, 0.0
        %v3640 = vsel %vm2380, %v3639, 0.0
        %3641 = vadd.xlane.f32.xlu0 %v3640
        %v3642 = vpop.xlane.xlu0 %3641
        %v3643 = vmul.f32 %v3642, %v2384
        %v3644 = vsub.f32 %v3639, %v3643
        %v3645 = vmul.f32 %v3644, %v3644
        %v3646 = vsel %vm2380, %v3645, 0.0
        %3647 = vadd.xlane.f32.xlu0 %v3646
        %v3648 = vpop.xlane.xlu0 %3647
        %v3649 = vmul.f32 %v3648, %v2384
        %v3650 = vadd.f32 %v3649, 1e-05
        %v3651 = vrsqrt.pop %v3650
        %v3652 = vmul.f32 %v3644, %v3651
        %v3653 = vmul.f32 %v3652, %v3555
        %v3654 = vadd.f32 %v3653, %v3562
        %v3656 = vsel %vm2380, %v2588, 0
        %3658 = vmatprep.subr.mxu0 0.0
        %3659 = vmatpush1.msra.mxu0 %v1385
        %3660 = vmatprep.subr.mxu0 0.0
        %3661 = vmatpush1.msra.mxu0 %v1386
        %3662 = vmatprep.subr.mxu0 0.0
        %3663 = vmatpush1.msra.mxu0 0.0
        %3664 = vmatprep.subr.mxu0 0.0
        %3665 = vmatpush1.msra.mxu0 0.0
        %3666 = vmatprep.subr.mxu0 0.0
        %3667 = vmatpush1.msra.mxu0 0.0
        %3668 = vmatprep.subr.mxu0 0.0
        %3669 = vmatpush1.msra.mxu0 0.0
        %3670 = vmatprep.subr.mxu0 0.0
        %3671 = vmatpush1.msra.mxu0 0.0
        %3672 = vmatprep.subr.mxu0 0.0
        %3673 = vmatpush1.msra.mxu0 0.0
        %3674 = vmatprep.subr.mxu0 0.0
        %3675 = vmatpush1.msra.mxu0 0.0
        %3676 = vmatprep.subr.mxu0 0.0
        %3677 = vmatpush1.msra.mxu0 0.0
        %3678 = vmatprep.subr.mxu0 0.0
        %3679 = vmatpush1.msra.mxu0 0.0
        %3680 = vmatprep.subr.mxu0 0.0
        %3681 = vmatpush1.msra.mxu0 0.0
        %3682 = vmatprep.subr.mxu0 0.0
        %3683 = vmatpush1.msra.mxu0 0.0
        %3684 = vmatprep.subr.mxu0 0.0
        %3685 = vmatpush1.msra.mxu0 0.0
        %3686 = vmatprep.subr.mxu0 0.0
        %3687 = vmatpush1.msra.mxu0 0.0
        %3688 = vmatprep.subr.mxu0 0.0
        %3689 = vmatpush1.msra.mxu0 0.0
        %3690 = vmatprep.subr.mxu0 0.0
        %3691 = vmatpush1.msra.mxu0 0.0
        %3692 = vmatprep.subr.mxu0 0.0
        %3693 = vmatpush1.msra.mxu0 0.0
        %3694 = vmatprep.subr.mxu0 0.0
        %3695 = vmatpush1.msra.mxu0 0.0
        %3696 = vmatprep.subr.mxu0 0.0
        %3697 = vmatpush1.msra.mxu0 0.0
        %3698 = vmatprep.subr.mxu0 0.0
        %3699 = vmatpush1.msra.mxu0 0.0
        %3700 = vmatprep.subr.mxu0 0.0
        %3701 = vmatpush1.msra.mxu0 0.0
        %3702 = vmatprep.subr.mxu0 0.0
        %3703 = vmatpush1.msra.mxu0 0.0
        %3704 = vmatprep.subr.mxu0 0.0
        %3705 = vmatpush1.msra.mxu0 0.0
        %3706 = vmatprep.subr.mxu0 0.0
        %3707 = vmatpush1.msra.mxu0 0.0
        %3708 = vmatprep.subr.mxu0 0.0
        %3709 = vmatpush1.msra.mxu0 0.0
        %3710 = vmatprep.subr.mxu0 0.0
        %3711 = vmatpush1.msra.mxu0 0.0
        %3712 = vmatprep.subr.mxu0 0.0
        %3713 = vmatpush1.msra.mxu0 0.0
        %3714 = vmatprep.subr.mxu0 0.0
        %3715 = vmatpush1.msra.mxu0 0.0
        %3716 = vmatprep.subr.mxu0 0.0
        %3717 = vmatpush1.msra.mxu0 0.0
        %3718 = vmatprep.subr.mxu0 0.0
        %3719 = vmatpush1.msra.mxu0 0.0
        %3720 = vmatprep.subr.mxu0 0.0
        %3721 = vmatpush1.msra.mxu0 0.0
        %3722 = vmatprep.mubr.f32.mxu0 0.0
        %3723 = vmatmul.mubr.f32.gmra.mrb[0].mxu0 %v3656
        %v3724 = vpop.f32.mrb[0].mxu0
        %v3725 = vadd.f32 %v3461, %v3724
        %v3726 = vpop.f32.mrb[0].mxu0
        %3727 = vdwg.mxu0
        %v3728 = vadd.f32 %v3725, %v3456
        %v3729 = vmax.f32 %v3728, 0.0
        %v3730 = vsel %vm2380, %v3729, 0.0
        %3731 = vadd.xlane.f32.xlu0 %v3730
        %v3732 = vpop.xlane.xlu0 %3731
        %v3733 = vmul.f32 %v3732, %v2384
        %v3734 = vsub.f32 %v3729, %v3733
        %v3735 = vmul.f32 %v3734, %v3734
        %v3736 = vsel %vm2380, %v3735, 0.0
        %3737 = vadd.xlane.f32.xlu0 %v3736
        %v3738 = vpop.xlane.xlu0 %3737
        %v3739 = vmul.f32 %v3738, %v2384
        %v3740 = vadd.f32 %v3739, 1e-05
        %v3741 = vrsqrt.pop %v3740
        %v3742 = vmul.f32 %v3734, %v3741
        %v3743 = vmul.f32 %v3742, %v3555
        %v3744 = vadd.f32 %v3743, %v3562
        %v3745 = vmax.f32 %v3564, 0.0
        %v3746 = vmax.f32 %v3654, 0.0
        %v3747 = vmax.f32 %v3744, 0.0
        %3749 = vrot.lane.b32.xlu0 %v3746, 16
        %v3750 = vpop.permute.xlu0 %3749
        %3753 = vrot.lane.b32.xlu0 %v3747, 32
        %v3754 = vpop.permute.xlu0 %3753
        %v3756 = vsel %vm2380, %v3745, %v3750
        %vm3757 = vcmask 261120
        %v3758 = vsel %vm3757, %v3756, %v3754
        %v3759 = vld [vmem:[#allocation28] sm:$0xff]
        %v3760 = vld [vmem:[#allocation28 + $0x8] sm:$0xff]
        %v3761 = vld [vmem:[#allocation28 + $0x10] sm:$0xff]
        %v3762 = vld [vmem:[#allocation28 + $0x18] sm:$0xff]
        %v3763 = vld [vmem:[#allocation28 + $0x20] sm:$0xff]
        %v3764 = vld [vmem:[#allocation28 + $0x28] sm:$0xff]
        %v3765 = vld [vmem:[%s67] sm:$0x1]
        %vm3766 = vcmask 392192
        %v3768 = vsel %vm3766, %v3758, 0
        %3770 = vmatprep.subr.mxu0 0.0
        %3771 = vmatpush1.msra.mxu0 %v3759
        %3772 = vmatprep.subr.mxu0 0.0
        %3773 = vmatpush1.msra.mxu0 %v3760
        %3774 = vmatprep.subr.mxu0 0.0
        %3775 = vmatpush1.msra.mxu0 %v3761
        %3776 = vmatprep.subr.mxu0 0.0
        %3777 = vmatpush1.msra.mxu0 %v3762
        %3778 = vmatprep.subr.mxu0 0.0
        %3779 = vmatpush1.msra.mxu0 %v3763
        %3780 = vmatprep.subr.mxu0 0.0
        %3781 = vmatpush1.msra.mxu0 %v3764
        %3782 = vmatprep.subr.mxu0 0.0
        %3783 = vmatpush1.msra.mxu0 0.0
        %3784 = vmatprep.subr.mxu0 0.0
        %3785 = vmatpush1.msra.mxu0 0.0
        %3786 = vmatprep.subr.mxu0 0.0
        %3787 = vmatpush1.msra.mxu0 0.0
        %3788 = vmatprep.subr.mxu0 0.0
        %3789 = vmatpush1.msra.mxu0 0.0
        %3790 = vmatprep.subr.mxu0 0.0
        %3791 = vmatpush1.msra.mxu0 0.0
        %3792 = vmatprep.subr.mxu0 0.0
        %3793 = vmatpush1.msra.mxu0 0.0
        %3794 = vmatprep.subr.mxu0 0.0
        %3795 = vmatpush1.msra.mxu0 0.0
        %3796 = vmatprep.subr.mxu0 0.0
        %3797 = vmatpush1.msra.mxu0 0.0
        %3798 = vmatprep.subr.mxu0 0.0
        %3799 = vmatpush1.msra.mxu0 0.0
        %3800 = vmatprep.subr.mxu0 0.0
        %3801 = vmatpush1.msra.mxu0 0.0
        %3802 = vmatprep.subr.mxu0 0.0
        %3803 = vmatpush1.msra.mxu0 0.0
        %3804 = vmatprep.subr.mxu0 0.0
        %3805 = vmatpush1.msra.mxu0 0.0
        %3806 = vmatprep.subr.mxu0 0.0
        %3807 = vmatpush1.msra.mxu0 0.0
        %3808 = vmatprep.subr.mxu0 0.0
        %3809 = vmatpush1.msra.mxu0 0.0
        %3810 = vmatprep.subr.mxu0 0.0
        %3811 = vmatpush1.msra.mxu0 0.0
        %3812 = vmatprep.subr.mxu0 0.0
        %3813 = vmatpush1.msra.mxu0 0.0
        %3814 = vmatprep.subr.mxu0 0.0
        %3815 = vmatpush1.msra.mxu0 0.0
        %3816 = vmatprep.subr.mxu0 0.0
        %3817 = vmatpush1.msra.mxu0 0.0
        %3818 = vmatprep.subr.mxu0 0.0
        %3819 = vmatpush1.msra.mxu0 0.0
        %3820 = vmatprep.subr.mxu0 0.0
        %3821 = vmatpush1.msra.mxu0 0.0
        %3822 = vmatprep.subr.mxu0 0.0
        %3823 = vmatpush1.msra.mxu0 0.0
        %3824 = vmatprep.subr.mxu0 0.0
        %3825 = vmatpush1.msra.mxu0 0.0
        %3826 = vmatprep.subr.mxu0 0.0
        %3827 = vmatpush1.msra.mxu0 0.0
        %3828 = vmatprep.subr.mxu0 0.0
        %3829 = vmatpush1.msra.mxu0 0.0
        %3830 = vmatprep.subr.mxu0 0.0
        %3831 = vmatpush1.msra.mxu0 0.0
        %3832 = vmatprep.subr.mxu0 0.0
        %3833 = vmatpush1.msra.mxu0 0.0
        %3834 = vmatprep.mubr.f32.mxu0 0.0
        %3835 = vmatmul.mubr.f32.gmra.mrb[0].mxu0 %v3768
        %v3836 = vpop.f32.mrb[0].mxu0
        %v3837 = vadd.f32 %v3765, %v3836
        %v3838 = vpop.f32.mrb[0].mxu0
        %3839 = vdwg.mxu0
        %v3840 = vmax.f32 %v3837, 0.0
        %v3841 = vld [vmem:[#allocation30] sm:$0xff]
        %v3842 = vld [vmem:[#allocation30 + $0x8] sm:$0xff]
        %v3843 = vld [vmem:[#allocation30 + $0x10] sm:$0xff]
        %v3844 = vld [vmem:[#allocation30 + $0x18] sm:$0xff]
        %v3845 = vld [vmem:[%s71] sm:$0x1]
        %v3847 = vsel %vm3757, %v3840, 0
        %3849 = vmatprep.subr.mxu0 0.0
        %3850 = vmatpush1.msra.mxu0 %v3841
        %3851 = vmatprep.subr.mxu0 0.0
        %3852 = vmatpush1.msra.mxu0 %v3842
        %3853 = vmatprep.subr.mxu0 0.0
        %3854 = vmatpush1.msra.mxu0 %v3843
        %3855 = vmatprep.subr.mxu0 0.0
        %3856 = vmatpush1.msra.mxu0 %v3844
        %3857 = vmatprep.subr.mxu0 0.0
        %3858 = vmatpush1.msra.mxu0 0.0
        %3859 = vmatprep.subr.mxu0 0.0
        %3860 = vmatpush1.msra.mxu0 0.0
        %3861 = vmatprep.subr.mxu0 0.0
        %3862 = vmatpush1.msra.mxu0 0.0
        %3863 = vmatprep.subr.mxu0 0.0
        %3864 = vmatpush1.msra.mxu0 0.0
        %3865 = vmatprep.subr.mxu0 0.0
        %3866 = vmatpush1.msra.mxu0 0.0
        %3867 = vmatprep.subr.mxu0 0.0
        %3868 = vmatpush1.msra.mxu0 0.0
        %3869 = vmatprep.subr.mxu0 0.0
        %3870 = vmatpush1.msra.mxu0 0.0
        %3871 = vmatprep.subr.mxu0 0.0
        %3872 = vmatpush1.msra.mxu0 0.0
        %3873 = vmatprep.subr.mxu0 0.0
        %3874 = vmatpush1.msra.mxu0 0.0
        %3875 = vmatprep.subr.mxu0 0.0
        %3876 = vmatpush1.msra.mxu0 0.0
        %3877 = vmatprep.subr.mxu0 0.0
        %3878 = vmatpush1.msra.mxu0 0.0
        %3879 = vmatprep.subr.mxu0 0.0
        %3880 = vmatpush1.msra.mxu0 0.0
        %3881 = vmatprep.subr.mxu0 0.0
        %3882 = vmatpush1.msra.mxu0 0.0
        %3883 = vmatprep.subr.mxu0 0.0
        %3884 = vmatpush1.msra.mxu0 0.0
        %3885 = vmatprep.subr.mxu0 0.0
        %3886 = vmatpush1.msra.mxu0 0.0
        %3887 = vmatprep.subr.mxu0 0.0
        %3888 = vmatpush1.msra.mxu0 0.0
        %3889 = vmatprep.subr.mxu0 0.0
        %3890 = vmatpush1.msra.mxu0 0.0
        %3891 = vmatprep.subr.mxu0 0.0
        %3892 = vmatpush1.msra.mxu0 0.0
        %3893 = vmatprep.subr.mxu0 0.0
        %3894 = vmatpush1.msra.mxu0 0.0
        %3895 = vmatprep.subr.mxu0 0.0
        %3896 = vmatpush1.msra.mxu0 0.0
        %3897 = vmatprep.subr.mxu0 0.0
        %3898 = vmatpush1.msra.mxu0 0.0
        %3899 = vmatprep.subr.mxu0 0.0
        %3900 = vmatpush1.msra.mxu0 0.0
        %3901 = vmatprep.subr.mxu0 0.0
        %3902 = vmatpush1.msra.mxu0 0.0
        %3903 = vmatprep.subr.mxu0 0.0
        %3904 = vmatpush1.msra.mxu0 0.0
        %3905 = vmatprep.subr.mxu0 0.0
        %3906 = vmatpush1.msra.mxu0 0.0
        %3907 = vmatprep.subr.mxu0 0.0
        %3908 = vmatpush1.msra.mxu0 0.0
        %3909 = vmatprep.subr.mxu0 0.0
        %3910 = vmatpush1.msra.mxu0 0.0
        %3911 = vmatprep.subr.mxu0 0.0
        %3912 = vmatpush1.msra.mxu0 0.0
        %3913 = vmatprep.mubr.f32.mxu0 0.0
        %3914 = vmatmul.mubr.f32.gmra.mrb[0].mxu0 %v3847
        %v3915 = vpop.f32.mrb[0].mxu0
        %v3916 = vadd.f32 %v3845, %v3915
        %v3917 = vpop.f32.mrb[0].mxu0
        %3918 = vdwg.mxu0
        %s3919 = scalar_lea.vmem [#allocation28], 48
        %v3920 = vld [vmem:[%s3919] sm:$0xff]
        %v3921 = vld [vmem:[%s3919 + $0x8] sm:$0xff]
        %v3922 = vld [vmem:[%s3919 + $0x10] sm:$0xff]
        %v3923 = vld [vmem:[%s3919 + $0x18] sm:$0xff]
        %v3924 = vld [vmem:[%s3919 + $0x20] sm:$0xff]
        %v3925 = vld [vmem:[%s3919 + $0x28] sm:$0xff]
        %s3926 = scalar_lea.vmem %s67, 1
        %v3927 = vld [vmem:[%s3926] sm:$0x1]
        %v3928 = vrot.slane %v3758, 1
        %v3929 = vsel %vm3766, %v3928, 0
        %3931 = vmatprep.subr.mxu0 0.0
        %3932 = vmatpush1.msra.mxu0 %v3920
        %3933 = vmatprep.subr.mxu0 0.0
        %3934 = vmatpush1.msra.mxu0 %v3921
        %3935 = vmatprep.subr.mxu0 0.0
        %3936 = vmatpush1.msra.mxu0 %v3922
        %3937 = vmatprep.subr.mxu0 0.0
        %3938 = vmatpush1.msra.mxu0 %v3923
        %3939 = vmatprep.subr.mxu0 0.0
        %3940 = vmatpush1.msra.mxu0 %v3924
        %3941 = vmatprep.subr.mxu0 0.0
        %3942 = vmatpush1.msra.mxu0 %v3925
        %3943 = vmatprep.subr.mxu0 0.0
        %3944 = vmatpush1.msra.mxu0 0.0
        %3945 = vmatprep.subr.mxu0 0.0
        %3946 = vmatpush1.msra.mxu0 0.0
        %3947 = vmatprep.subr.mxu0 0.0
        %3948 = vmatpush1.msra.mxu0 0.0
        %3949 = vmatprep.subr.mxu0 0.0
        %3950 = vmatpush1.msra.mxu0 0.0
        %3951 = vmatprep.subr.mxu0 0.0
        %3952 = vmatpush1.msra.mxu0 0.0
        %3953 = vmatprep.subr.mxu0 0.0
        %3954 = vmatpush1.msra.mxu0 0.0
        %3955 = vmatprep.subr.mxu0 0.0
        %3956 = vmatpush1.msra.mxu0 0.0
        %3957 = vmatprep.subr.mxu0 0.0
        %3958 = vmatpush1.msra.mxu0 0.0
        %3959 = vmatprep.subr.mxu0 0.0
        %3960 = vmatpush1.msra.mxu0 0.0
        %3961 = vmatprep.subr.mxu0 0.0
        %3962 = vmatpush1.msra.mxu0 0.0
        %3963 = vmatprep.subr.mxu0 0.0
        %3964 = vmatpush1.msra.mxu0 0.0
        %3965 = vmatprep.subr.mxu0 0.0
        %3966 = vmatpush1.msra.mxu0 0.0
        %3967 = vmatprep.subr.mxu0 0.0
        %3968 = vmatpush1.msra.mxu0 0.0
        %3969 = vmatprep.subr.mxu0 0.0
        %3970 = vmatpush1.msra.mxu0 0.0
        %3971 = vmatprep.subr.mxu0 0.0
        %3972 = vmatpush1.msra.mxu0 0.0
        %3973 = vmatprep.subr.mxu0 0.0
        %3974 = vmatpush1.msra.mxu0 0.0
        %3975 = vmatprep.subr.mxu0 0.0
        %3976 = vmatpush1.msra.mxu0 0.0
        %3977 = vmatprep.subr.mxu0 0.0
        %3978 = vmatpush1.msra.mxu0 0.0
        %3979 = vmatprep.subr.mxu0 0.0
        %3980 = vmatpush1.msra.mxu0 0.0
        %3981 = vmatprep.subr.mxu0 0.0
        %3982 = vmatpush1.msra.mxu0 0.0
        %3983 = vmatprep.subr.mxu0 0.0
        %3984 = vmatpush1.msra.mxu0 0.0
        %3985 = vmatprep.subr.mxu0 0.0
        %3986 = vmatpush1.msra.mxu0 0.0
        %3987 = vmatprep.subr.mxu0 0.0
        %3988 = vmatpush1.msra.mxu0 0.0
        %3989 = vmatprep.subr.mxu0 0.0
        %3990 = vmatpush1.msra.mxu0 0.0
        %3991 = vmatprep.subr.mxu0 0.0
        %3992 = vmatpush1.msra.mxu0 0.0
        %3993 = vmatprep.subr.mxu0 0.0
        %3994 = vmatpush1.msra.mxu0 0.0
        %3995 = vmatprep.mubr.f32.mxu0 0.0
        %3996 = vmatmul.mubr.f32.gmra.mrb[0].mxu0 %v3929
        %v3997 = vpop.f32.mrb[0].mxu0
        %v3998 = vadd.f32 %v3927, %v3997
        %v3999 = vpop.f32.mrb[0].mxu0
        %4000 = vdwg.mxu0
        %v4001 = vmax.f32 %v3998, 0.0
        %s4002 = scalar_lea.vmem [#allocation30], 32
        %v4003 = vld [vmem:[%s4002] sm:$0xff]
        %v4004 = vld [vmem:[%s4002 + $0x8] sm:$0xff]
        %v4005 = vld [vmem:[%s4002 + $0x10] sm:$0xff]
        %v4006 = vld [vmem:[%s4002 + $0x18] sm:$0xff]
        %s4007 = scalar_lea.vmem %s71, 1
        %v4008 = vld [vmem:[%s4007] sm:$0x1]
        %v4010 = vsel %vm3757, %v4001, 0
        %4012 = vmatprep.subr.mxu0 0.0
        %4013 = vmatpush1.msra.mxu0 %v4003
        %4014 = vmatprep.subr.mxu0 0.0
        %4015 = vmatpush1.msra.mxu0 %v4004
        %4016 = vmatprep.subr.mxu0 0.0
        %4017 = vmatpush1.msra.mxu0 %v4005
        %4018 = vmatprep.subr.mxu0 0.0
        %4019 = vmatpush1.msra.mxu0 %v4006
        %4020 = vmatprep.subr.mxu0 0.0
        %4021 = vmatpush1.msra.mxu0 0.0
        %4022 = vmatprep.subr.mxu0 0.0
        %4023 = vmatpush1.msra.mxu0 0.0
        %4024 = vmatprep.subr.mxu0 0.0
        %4025 = vmatpush1.msra.mxu0 0.0
        %4026 = vmatprep.subr.mxu0 0.0
        %4027 = vmatpush1.msra.mxu0 0.0
        %4028 = vmatprep.subr.mxu0 0.0
        %4029 = vmatpush1.msra.mxu0 0.0
        %4030 = vmatprep.subr.mxu0 0.0
        %4031 = vmatpush1.msra.mxu0 0.0
        %4032 = vmatprep.subr.mxu0 0.0
        %4033 = vmatpush1.msra.mxu0 0.0
        %4034 = vmatprep.subr.mxu0 0.0
        %4035 = vmatpush1.msra.mxu0 0.0
        %4036 = vmatprep.subr.mxu0 0.0
        %4037 = vmatpush1.msra.mxu0 0.0
        %4038 = vmatprep.subr.mxu0 0.0
        %4039 = vmatpush1.msra.mxu0 0.0
        %4040 = vmatprep.subr.mxu0 0.0
        %4041 = vmatpush1.msra.mxu0 0.0
        %4042 = vmatprep.subr.mxu0 0.0
        %4043 = vmatpush1.msra.mxu0 0.0
        %4044 = vmatprep.subr.mxu0 0.0
        %4045 = vmatpush1.msra.mxu0 0.0
        %4046 = vmatprep.subr.mxu0 0.0
        %4047 = vmatpush1.msra.mxu0 0.0
        %4048 = vmatprep.subr.mxu0 0.0
        %4049 = vmatpush1.msra.mxu0 0.0
        %4050 = vmatprep.subr.mxu0 0.0
        %4051 = vmatpush1.msra.mxu0 0.0
        %4052 = vmatprep.subr.mxu0 0.0
        %4053 = vmatpush1.msra.mxu0 0.0
        %4054 = vmatprep.subr.mxu0 0.0
        %4055 = vmatpush1.msra.mxu0 0.0
        %4056 = vmatprep.subr.mxu0 0.0
        %4057 = vmatpush1.msra.mxu0 0.0
        %4058 = vmatprep.subr.mxu0 0.0
        %4059 = vmatpush1.msra.mxu0 0.0
        %4060 = vmatprep.subr.mxu0 0.0
        %4061 = vmatpush1.msra.mxu0 0.0
        %4062 = vmatprep.subr.mxu0 0.0
        %4063 = vmatpush1.msra.mxu0 0.0
        %4064 = vmatprep.subr.mxu0 0.0
        %4065 = vmatpush1.msra.mxu0 0.0
        %4066 = vmatprep.subr.mxu0 0.0
        %4067 = vmatpush1.msra.mxu0 0.0
        %4068 = vmatprep.subr.mxu0 0.0
        %4069 = vmatpush1.msra.mxu0 0.0
        %4070 = vmatprep.subr.mxu0 0.0
        %4071 = vmatpush1.msra.mxu0 0.0
        %4072 = vmatprep.subr.mxu0 0.0
        %4073 = vmatpush1.msra.mxu0 0.0
        %4074 = vmatprep.subr.mxu0 0.0
        %4075 = vmatpush1.msra.mxu0 0.0
        %4076 = vmatprep.mubr.f32.mxu0 0.0
        %4077 = vmatmul.mubr.f32.gmra.mrb[0].mxu0 %v4010
        %v4078 = vpop.f32.mrb[0].mxu0
        %v4079 = vadd.f32 %v4008, %v4078
        %v4080 = vpop.f32.mrb[0].mxu0
        %4081 = vdwg.mxu0
        %s4082 = scalar_lea.vmem [#allocation28], 96
        %v4083 = vld [vmem:[%s4082] sm:$0xff]
        %v4084 = vld [vmem:[%s4082 + $0x8] sm:$0xff]
        %v4085 = vld [vmem:[%s4082 + $0x10] sm:$0xff]
        %v4086 = vld [vmem:[%s4082 + $0x18] sm:$0xff]
        %v4087 = vld [vmem:[%s4082 + $0x20] sm:$0xff]
        %v4088 = vld [vmem:[%s4082 + $0x28] sm:$0xff]
        %s4089 = scalar_lea.vmem %s67, 2
        %v4090 = vld [vmem:[%s4089] sm:$0x1]
        %v4091 = vrot.slane %v3758, 2
        %v4092 = vsel %vm3766, %v4091, 0
        %4094 = vmatprep.subr.mxu0 0.0
        %4095 = vmatpush1.msra.mxu0 %v4083
        %4096 = vmatprep.subr.mxu0 0.0
        %4097 = vmatpush1.msra.mxu0 %v4084
        %4098 = vmatprep.subr.mxu0 0.0
        %4099 = vmatpush1.msra.mxu0 %v4085
        %4100 = vmatprep.subr.mxu0 0.0
        %4101 = vmatpush1.msra.mxu0 %v4086
        %4102 = vmatprep.subr.mxu0 0.0
        %4103 = vmatpush1.msra.mxu0 %v4087
        %4104 = vmatprep.subr.mxu0 0.0
        %4105 = vmatpush1.msra.mxu0 %v4088
        %4106 = vmatprep.subr.mxu0 0.0
        %4107 = vmatpush1.msra.mxu0 0.0
        %4108 = vmatprep.subr.mxu0 0.0
        %4109 = vmatpush1.msra.mxu0 0.0
        %4110 = vmatprep.subr.mxu0 0.0
        %4111 = vmatpush1.msra.mxu0 0.0
        %4112 = vmatprep.subr.mxu0 0.0
        %4113 = vmatpush1.msra.mxu0 0.0
        %4114 = vmatprep.subr.mxu0 0.0
        %4115 = vmatpush1.msra.mxu0 0.0
        %4116 = vmatprep.subr.mxu0 0.0
        %4117 = vmatpush1.msra.mxu0 0.0
        %4118 = vmatprep.subr.mxu0 0.0
        %4119 = vmatpush1.msra.mxu0 0.0
        %4120 = vmatprep.subr.mxu0 0.0
        %4121 = vmatpush1.msra.mxu0 0.0
        %4122 = vmatprep.subr.mxu0 0.0
        %4123 = vmatpush1.msra.mxu0 0.0
        %4124 = vmatprep.subr.mxu0 0.0
        %4125 = vmatpush1.msra.mxu0 0.0
        %4126 = vmatprep.subr.mxu0 0.0
        %4127 = vmatpush1.msra.mxu0 0.0
        %4128 = vmatprep.subr.mxu0 0.0
        %4129 = vmatpush1.msra.mxu0 0.0
        %4130 = vmatprep.subr.mxu0 0.0
        %4131 = vmatpush1.msra.mxu0 0.0
        %4132 = vmatprep.subr.mxu0 0.0
        %4133 = vmatpush1.msra.mxu0 0.0
        %4134 = vmatprep.subr.mxu0 0.0
        %4135 = vmatpush1.msra.mxu0 0.0
        %4136 = vmatprep.subr.mxu0 0.0
        %4137 = vmatpush1.msra.mxu0 0.0
        %4138 = vmatprep.subr.mxu0 0.0
        %4139 = vmatpush1.msra.mxu0 0.0
        %4140 = vmatprep.subr.mxu0 0.0
        %4141 = vmatpush1.msra.mxu0 0.0
        %4142 = vmatprep.subr.mxu0 0.0
        %4143 = vmatpush1.msra.mxu0 0.0
        %4144 = vmatprep.subr.mxu0 0.0
        %4145 = vmatpush1.msra.mxu0 0.0
        %4146 = vmatprep.subr.mxu0 0.0
        %4147 = vmatpush1.msra.mxu0 0.0
        %4148 = vmatprep.subr.mxu0 0.0
        %4149 = vmatpush1.msra.mxu0 0.0
        %4150 = vmatprep.subr.mxu0 0.0
        %4151 = vmatpush1.msra.mxu0 0.0
        %4152 = vmatprep.subr.mxu0 0.0
        %4153 = vmatpush1.msra.mxu0 0.0
        %4154 = vmatprep.subr.mxu0 0.0
        %4155 = vmatpush1.msra.mxu0 0.0
        %4156 = vmatprep.subr.mxu0 0.0
        %4157 = vmatpush1.msra.mxu0 0.0
        %4158 = vmatprep.mubr.f32.mxu0 0.0
        %4159 = vmatmul.mubr.f32.gmra.mrb[0].mxu0 %v4092
        %v4160 = vpop.f32.mrb[0].mxu0
        %v4161 = vadd.f32 %v4090, %v4160
        %v4162 = vpop.f32.mrb[0].mxu0
        %4163 = vdwg.mxu0
        %v4164 = vmax.f32 %v4161, 0.0
        %s4165 = scalar_lea.vmem [#allocation30], 64
        %v4166 = vld [vmem:[%s4165] sm:$0xff]
        %v4167 = vld [vmem:[%s4165 + $0x8] sm:$0xff]
        %v4168 = vld [vmem:[%s4165 + $0x10] sm:$0xff]
        %v4169 = vld [vmem:[%s4165 + $0x18] sm:$0xff]
        %s4170 = scalar_lea.vmem %s71, 2
        %v4171 = vld [vmem:[%s4170] sm:$0x1]
        %v4173 = vsel %vm3757, %v4164, 0
        %4175 = vmatprep.subr.mxu0 0.0
        %4176 = vmatpush1.msra.mxu0 %v4166
        %4177 = vmatprep.subr.mxu0 0.0
        %4178 = vmatpush1.msra.mxu0 %v4167
        %4179 = vmatprep.subr.mxu0 0.0
        %4180 = vmatpush1.msra.mxu0 %v4168
        %4181 = vmatprep.subr.mxu0 0.0
        %4182 = vmatpush1.msra.mxu0 %v4169
        %4183 = vmatprep.subr.mxu0 0.0
        %4184 = vmatpush1.msra.mxu0 0.0
        %4185 = vmatprep.subr.mxu0 0.0
        %4186 = vmatpush1.msra.mxu0 0.0
        %4187 = vmatprep.subr.mxu0 0.0
        %4188 = vmatpush1.msra.mxu0 0.0
        %4189 = vmatprep.subr.mxu0 0.0
        %4190 = vmatpush1.msra.mxu0 0.0
        %4191 = vmatprep.subr.mxu0 0.0
        %4192 = vmatpush1.msra.mxu0 0.0
        %4193 = vmatprep.subr.mxu0 0.0
        %4194 = vmatpush1.msra.mxu0 0.0
        %4195 = vmatprep.subr.mxu0 0.0
        %4196 = vmatpush1.msra.mxu0 0.0
        %4197 = vmatprep.subr.mxu0 0.0
        %4198 = vmatpush1.msra.mxu0 0.0
        %4199 = vmatprep.subr.mxu0 0.0
        %4200 = vmatpush1.msra.mxu0 0.0
        %4201 = vmatprep.subr.mxu0 0.0
        %4202 = vmatpush1.msra.mxu0 0.0
        %4203 = vmatprep.subr.mxu0 0.0
        %4204 = vmatpush1.msra.mxu0 0.0
        %4205 = vmatprep.subr.mxu0 0.0
        %4206 = vmatpush1.msra.mxu0 0.0
        %4207 = vmatprep.subr.mxu0 0.0
        %4208 = vmatpush1.msra.mxu0 0.0
        %4209 = vmatprep.subr.mxu0 0.0
        %4210 = vmatpush1.msra.mxu0 0.0
        %4211 = vmatprep.subr.mxu0 0.0
        %4212 = vmatpush1.msra.mxu0 0.0
        %4213 = vmatprep.subr.mxu0 0.0
        %4214 = vmatpush1.msra.mxu0 0.0
        %4215 = vmatprep.subr.mxu0 0.0
        %4216 = vmatpush1.msra.mxu0 0.0
        %4217 = vmatprep.subr.mxu0 0.0
        %4218 = vmatpush1.msra.mxu0 0.0
        %4219 = vmatprep.subr.mxu0 0.0
        %4220 = vmatpush1.msra.mxu0 0.0
        %4221 = vmatprep.subr.mxu0 0.0
        %4222 = vmatpush1.msra.mxu0 0.0
        %4223 = vmatprep.subr.mxu0 0.0
        %4224 = vmatpush1.msra.mxu0 0.0
        %4225 = vmatprep.subr.mxu0 0.0
        %4226 = vmatpush1.msra.mxu0 0.0
        %4227 = vmatprep.subr.mxu0 0.0
        %4228 = vmatpush1.msra.mxu0 0.0
        %4229 = vmatprep.subr.mxu0 0.0
        %4230 = vmatpush1.msra.mxu0 0.0
        %4231 = vmatprep.subr.mxu0 0.0
        %4232 = vmatpush1.msra.mxu0 0.0
        %4233 = vmatprep.subr.mxu0 0.0
        %4234 = vmatpush1.msra.mxu0 0.0
        %4235 = vmatprep.subr.mxu0 0.0
        %4236 = vmatpush1.msra.mxu0 0.0
        %4237 = vmatprep.subr.mxu0 0.0
        %4238 = vmatpush1.msra.mxu0 0.0
        %4239 = vmatprep.mubr.f32.mxu0 0.0
        %4240 = vmatmul.mubr.f32.gmra.mrb[0].mxu0 %v4173
        %v4241 = vpop.f32.mrb[0].mxu0
        %v4242 = vadd.f32 %v4171, %v4241
        %v4243 = vpop.f32.mrb[0].mxu0
        %4244 = vdwg.mxu0
        %s4245 = scalar_lea.vmem [#allocation28], 144
        %v4246 = vld [vmem:[%s4245] sm:$0xff]
        %v4247 = vld [vmem:[%s4245 + $0x8] sm:$0xff]
        %v4248 = vld [vmem:[%s4245 + $0x10] sm:$0xff]
        %v4249 = vld [vmem:[%s4245 + $0x18] sm:$0xff]
        %v4250 = vld [vmem:[%s4245 + $0x20] sm:$0xff]
        %v4251 = vld [vmem:[%s4245 + $0x28] sm:$0xff]
        %s4252 = scalar_lea.vmem %s67, 3
        %v4253 = vld [vmem:[%s4252] sm:$0x1]
        %v4254 = vrot.slane %v3758, 3
        %v4255 = vsel %vm3766, %v4254, 0
        %4257 = vmatprep.subr.mxu0 0.0
        %4258 = vmatpush1.msra.mxu0 %v4246
        %4259 = vmatprep.subr.mxu0 0.0
        %4260 = vmatpush1.msra.mxu0 %v4247
        %4261 = vmatprep.subr.mxu0 0.0
        %4262 = vmatpush1.msra.mxu0 %v4248
        %4263 = vmatprep.subr.mxu0 0.0
        %4264 = vmatpush1.msra.mxu0 %v4249
        %4265 = vmatprep.subr.mxu0 0.0
        %4266 = vmatpush1.msra.mxu0 %v4250
        %4267 = vmatprep.subr.mxu0 0.0
        %4268 = vmatpush1.msra.mxu0 %v4251
        %4269 = vmatprep.subr.mxu0 0.0
        %4270 = vmatpush1.msra.mxu0 0.0
        %4271 = vmatprep.subr.mxu0 0.0
        %4272 = vmatpush1.msra.mxu0 0.0
        %4273 = vmatprep.subr.mxu0 0.0
        %4274 = vmatpush1.msra.mxu0 0.0
        %4275 = vmatprep.subr.mxu0 0.0
        %4276 = vmatpush1.msra.mxu0 0.0
        %4277 = vmatprep.subr.mxu0 0.0
        %4278 = vmatpush1.msra.mxu0 0.0
        %4279 = vmatprep.subr.mxu0 0.0
        %4280 = vmatpush1.msra.mxu0 0.0
        %4281 = vmatprep.subr.mxu0 0.0
        %4282 = vmatpush1.msra.mxu0 0.0
        %4283 = vmatprep.subr.mxu0 0.0
        %4284 = vmatpush1.msra.mxu0 0.0
        %4285 = vmatprep.subr.mxu0 0.0
        %4286 = vmatpush1.msra.mxu0 0.0
        %4287 = vmatprep.subr.mxu0 0.0
        %4288 = vmatpush1.msra.mxu0 0.0
        %4289 = vmatprep.subr.mxu0 0.0
        %4290 = vmatpush1.msra.mxu0 0.0
        %4291 = vmatprep.subr.mxu0 0.0
        %4292 = vmatpush1.msra.mxu0 0.0
        %4293 = vmatprep.subr.mxu0 0.0
        %4294 = vmatpush1.msra.mxu0 0.0
        %4295 = vmatprep.subr.mxu0 0.0
        %4296 = vmatpush1.msra.mxu0 0.0
        %4297 = vmatprep.subr.mxu0 0.0
        %4298 = vmatpush1.msra.mxu0 0.0
        %4299 = vmatprep.subr.mxu0 0.0
        %4300 = vmatpush1.msra.mxu0 0.0
        %4301 = vmatprep.subr.mxu0 0.0
        %4302 = vmatpush1.msra.mxu0 0.0
        %4303 = vmatprep.subr.mxu0 0.0
        %4304 = vmatpush1.msra.mxu0 0.0
        %4305 = vmatprep.subr.mxu0 0.0
        %4306 = vmatpush1.msra.mxu0 0.0
        %4307 = vmatprep.subr.mxu0 0.0
        %4308 = vmatpush1.msra.mxu0 0.0
        %4309 = vmatprep.subr.mxu0 0.0
        %4310 = vmatpush1.msra.mxu0 0.0
        %4311 = vmatprep.subr.mxu0 0.0
        %4312 = vmatpush1.msra.mxu0 0.0
        %4313 = vmatprep.subr.mxu0 0.0
        %4314 = vmatpush1.msra.mxu0 0.0
        %4315 = vmatprep.subr.mxu0 0.0
        %4316 = vmatpush1.msra.mxu0 0.0
        %4317 = vmatprep.subr.mxu0 0.0
        %4318 = vmatpush1.msra.mxu0 0.0
        %4319 = vmatprep.subr.mxu0 0.0
        %4320 = vmatpush1.msra.mxu0 0.0
        %4321 = vmatprep.mubr.f32.mxu0 0.0
        %4322 = vmatmul.mubr.f32.gmra.mrb[0].mxu0 %v4255
        %v4323 = vpop.f32.mrb[0].mxu0
        %v4324 = vadd.f32 %v4253, %v4323
        %v4325 = vpop.f32.mrb[0].mxu0
        %4326 = vdwg.mxu0
        %v4327 = vmax.f32 %v4324, 0.0
        %s4328 = scalar_lea.vmem [#allocation30], 96
        %v4329 = vld [vmem:[%s4328] sm:$0xff]
        %v4330 = vld [vmem:[%s4328 + $0x8] sm:$0xff]
        %v4331 = vld [vmem:[%s4328 + $0x10] sm:$0xff]
        %v4332 = vld [vmem:[%s4328 + $0x18] sm:$0xff]
        %s4333 = scalar_lea.vmem %s71, 3
        %v4334 = vld [vmem:[%s4333] sm:$0x1]
        %v4336 = vsel %vm3757, %v4327, 0
        %4338 = vmatprep.subr.mxu0 0.0
        %4339 = vmatpush1.msra.mxu0 %v4329
        %4340 = vmatprep.subr.mxu0 0.0
        %4341 = vmatpush1.msra.mxu0 %v4330
        %4342 = vmatprep.subr.mxu0 0.0
        %4343 = vmatpush1.msra.mxu0 %v4331
        %4344 = vmatprep.subr.mxu0 0.0
        %4345 = vmatpush1.msra.mxu0 %v4332
        %4346 = vmatprep.subr.mxu0 0.0
        %4347 = vmatpush1.msra.mxu0 0.0
        %4348 = vmatprep.subr.mxu0 0.0
        %4349 = vmatpush1.msra.mxu0 0.0
        %4350 = vmatprep.subr.mxu0 0.0
        %4351 = vmatpush1.msra.mxu0 0.0
        %4352 = vmatprep.subr.mxu0 0.0
        %4353 = vmatpush1.msra.mxu0 0.0
        %4354 = vmatprep.subr.mxu0 0.0
        %4355 = vmatpush1.msra.mxu0 0.0
        %4356 = vmatprep.subr.mxu0 0.0
        %4357 = vmatpush1.msra.mxu0 0.0
        %4358 = vmatprep.subr.mxu0 0.0
        %4359 = vmatpush1.msra.mxu0 0.0
        %4360 = vmatprep.subr.mxu0 0.0
        %4361 = vmatpush1.msra.mxu0 0.0
        %4362 = vmatprep.subr.mxu0 0.0
        %4363 = vmatpush1.msra.mxu0 0.0
        %4364 = vmatprep.subr.mxu0 0.0
        %4365 = vmatpush1.msra.mxu0 0.0
        %4366 = vmatprep.subr.mxu0 0.0
        %4367 = vmatpush1.msra.mxu0 0.0
        %4368 = vmatprep.subr.mxu0 0.0
        %4369 = vmatpush1.msra.mxu0 0.0
        %4370 = vmatprep.subr.mxu0 0.0
        %4371 = vmatpush1.msra.mxu0 0.0
        %4372 = vmatprep.subr.mxu0 0.0
        %4373 = vmatpush1.msra.mxu0 0.0
        %4374 = vmatprep.subr.mxu0 0.0
        %4375 = vmatpush1.msra.mxu0 0.0
        %4376 = vmatprep.subr.mxu0 0.0
        %4377 = vmatpush1.msra.mxu0 0.0
        %4378 = vmatprep.subr.mxu0 0.0
        %4379 = vmatpush1.msra.mxu0 0.0
        %4380 = vmatprep.subr.mxu0 0.0
        %4381 = vmatpush1.msra.mxu0 0.0
        %4382 = vmatprep.subr.mxu0 0.0
        %4383 = vmatpush1.msra.mxu0 0.0
        %4384 = vmatprep.subr.mxu0 0.0
        %4385 = vmatpush1.msra.mxu0 0.0
        %4386 = vmatprep.subr.mxu0 0.0
        %4387 = vmatpush1.msra.mxu0 0.0
        %4388 = vmatprep.subr.mxu0 0.0
        %4389 = vmatpush1.msra.mxu0 0.0
        %4390 = vmatprep.subr.mxu0 0.0
        %4391 = vmatpush1.msra.mxu0 0.0
        %4392 = vmatprep.subr.mxu0 0.0
        %4393 = vmatpush1.msra.mxu0 0.0
        %4394 = vmatprep.subr.mxu0 0.0
        %4395 = vmatpush1.msra.mxu0 0.0
        %4396 = vmatprep.subr.mxu0 0.0
        %4397 = vmatpush1.msra.mxu0 0.0
        %4398 = vmatprep.subr.mxu0 0.0
        %4399 = vmatpush1.msra.mxu0 0.0
        %4400 = vmatprep.subr.mxu0 0.0
        %4401 = vmatpush1.msra.mxu0 0.0
        %4402 = vmatprep.mubr.f32.mxu0 0.0
        %4403 = vmatmul.mubr.f32.gmra.mrb[0].mxu0 %v4336
        %v4404 = vpop.f32.mrb[0].mxu0
        %v4405 = vadd.f32 %v4334, %v4404
        %v4406 = vpop.f32.mrb[0].mxu0
        %4407 = vdwg.mxu0
        %s4408 = scalar_lea.vmem [#allocation28], 192
        %v4409 = vld [vmem:[%s4408] sm:$0xff]
        %v4410 = vld [vmem:[%s4408 + $0x8] sm:$0xff]
        %v4411 = vld [vmem:[%s4408 + $0x10] sm:$0xff]
        %v4412 = vld [vmem:[%s4408 + $0x18] sm:$0xff]
        %v4413 = vld [vmem:[%s4408 + $0x20] sm:$0xff]
        %v4414 = vld [vmem:[%s4408 + $0x28] sm:$0xff]
        %s4415 = scalar_lea.vmem %s67, 4
        %v4416 = vld [vmem:[%s4415] sm:$0x1]
        %v4417 = vrot.slane %v3758, 4
        %v4418 = vsel %vm3766, %v4417, 0
        %4420 = vmatprep.subr.mxu0 0.0
        %4421 = vmatpush1.msra.mxu0 %v4409
        %4422 = vmatprep.subr.mxu0 0.0
        %4423 = vmatpush1.msra.mxu0 %v4410
        %4424 = vmatprep.subr.mxu0 0.0
        %4425 = vmatpush1.msra.mxu0 %v4411
        %4426 = vmatprep.subr.mxu0 0.0
        %4427 = vmatpush1.msra.mxu0 %v4412
        %4428 = vmatprep.subr.mxu0 0.0
        %4429 = vmatpush1.msra.mxu0 %v4413
        %4430 = vmatprep.subr.mxu0 0.0
        %4431 = vmatpush1.msra.mxu0 %v4414
        %4432 = vmatprep.subr.mxu0 0.0
        %4433 = vmatpush1.msra.mxu0 0.0
        %4434 = vmatprep.subr.mxu0 0.0
        %4435 = vmatpush1.msra.mxu0 0.0
        %4436 = vmatprep.subr.mxu0 0.0
        %4437 = vmatpush1.msra.mxu0 0.0
        %4438 = vmatprep.subr.mxu0 0.0
        %4439 = vmatpush1.msra.mxu0 0.0
        %4440 = vmatprep.subr.mxu0 0.0
        %4441 = vmatpush1.msra.mxu0 0.0
        %4442 = vmatprep.subr.mxu0 0.0
        %4443 = vmatpush1.msra.mxu0 0.0
        %4444 = vmatprep.subr.mxu0 0.0
        %4445 = vmatpush1.msra.mxu0 0.0
        %4446 = vmatprep.subr.mxu0 0.0
        %4447 = vmatpush1.msra.mxu0 0.0
        %4448 = vmatprep.subr.mxu0 0.0
        %4449 = vmatpush1.msra.mxu0 0.0
        %4450 = vmatprep.subr.mxu0 0.0
        %4451 = vmatpush1.msra.mxu0 0.0
        %4452 = vmatprep.subr.mxu0 0.0
        %4453 = vmatpush1.msra.mxu0 0.0
        %4454 = vmatprep.subr.mxu0 0.0
        %4455 = vmatpush1.msra.mxu0 0.0
        %4456 = vmatprep.subr.mxu0 0.0
        %4457 = vmatpush1.msra.mxu0 0.0
        %4458 = vmatprep.subr.mxu0 0.0
        %4459 = vmatpush1.msra.mxu0 0.0
        %4460 = vmatprep.subr.mxu0 0.0
        %4461 = vmatpush1.msra.mxu0 0.0
        %4462 = vmatprep.subr.mxu0 0.0
        %4463 = vmatpush1.msra.mxu0 0.0
        %4464 = vmatprep.subr.mxu0 0.0
        %4465 = vmatpush1.msra.mxu0 0.0
        %4466 = vmatprep.subr.mxu0 0.0
        %4467 = vmatpush1.msra.mxu0 0.0
        %4468 = vmatprep.subr.mxu0 0.0
        %4469 = vmatpush1.msra.mxu0 0.0
        %4470 = vmatprep.subr.mxu0 0.0
        %4471 = vmatpush1.msra.mxu0 0.0
        %4472 = vmatprep.subr.mxu0 0.0
        %4473 = vmatpush1.msra.mxu0 0.0
        %4474 = vmatprep.subr.mxu0 0.0
        %4475 = vmatpush1.msra.mxu0 0.0
        %4476 = vmatprep.subr.mxu0 0.0
        %4477 = vmatpush1.msra.mxu0 0.0
        %4478 = vmatprep.subr.mxu0 0.0
        %4479 = vmatpush1.msra.mxu0 0.0
        %4480 = vmatprep.subr.mxu0 0.0
        %4481 = vmatpush1.msra.mxu0 0.0
        %4482 = vmatprep.subr.mxu0 0.0
        %4483 = vmatpush1.msra.mxu0 0.0
        %4484 = vmatprep.mubr.f32.mxu0 0.0
        %4485 = vmatmul.mubr.f32.gmra.mrb[0].mxu0 %v4418
        %v4486 = vpop.f32.mrb[0].mxu0
        %v4487 = vadd.f32 %v4416, %v4486
        %v4488 = vpop.f32.mrb[0].mxu0
        %4489 = vdwg.mxu0
        %v4490 = vmax.f32 %v4487, 0.0
        %s4491 = scalar_lea.vmem [#allocation30], 128
        %v4492 = vld [vmem:[%s4491] sm:$0xff]
        %v4493 = vld [vmem:[%s4491 + $0x8] sm:$0xff]
        %v4494 = vld [vmem:[%s4491 + $0x10] sm:$0xff]
        %v4495 = vld [vmem:[%s4491 + $0x18] sm:$0xff]
        %s4496 = scalar_lea.vmem %s71, 4
        %v4497 = vld [vmem:[%s4496] sm:$0x1]
        %v4499 = vsel %vm3757, %v4490, 0
        %4501 = vmatprep.subr.mxu0 0.0
        %4502 = vmatpush1.msra.mxu0 %v4492
        %4503 = vmatprep.subr.mxu0 0.0
        %4504 = vmatpush1.msra.mxu0 %v4493
        %4505 = vmatprep.subr.mxu0 0.0
        %4506 = vmatpush1.msra.mxu0 %v4494
        %4507 = vmatprep.subr.mxu0 0.0
        %4508 = vmatpush1.msra.mxu0 %v4495
        %4509 = vmatprep.subr.mxu0 0.0
        %4510 = vmatpush1.msra.mxu0 0.0
        %4511 = vmatprep.subr.mxu0 0.0
        %4512 = vmatpush1.msra.mxu0 0.0
        %4513 = vmatprep.subr.mxu0 0.0
        %4514 = vmatpush1.msra.mxu0 0.0
        %4515 = vmatprep.subr.mxu0 0.0
        %4516 = vmatpush1.msra.mxu0 0.0
        %4517 = vmatprep.subr.mxu0 0.0
        %4518 = vmatpush1.msra.mxu0 0.0
        %4519 = vmatprep.subr.mxu0 0.0
        %4520 = vmatpush1.msra.mxu0 0.0
        %4521 = vmatprep.subr.mxu0 0.0
        %4522 = vmatpush1.msra.mxu0 0.0
        %4523 = vmatprep.subr.mxu0 0.0
        %4524 = vmatpush1.msra.mxu0 0.0
        %4525 = vmatprep.subr.mxu0 0.0
        %4526 = vmatpush1.msra.mxu0 0.0
        %4527 = vmatprep.subr.mxu0 0.0
        %4528 = vmatpush1.msra.mxu0 0.0
        %4529 = vmatprep.subr.mxu0 0.0
        %4530 = vmatpush1.msra.mxu0 0.0
        %4531 = vmatprep.subr.mxu0 0.0
        %4532 = vmatpush1.msra.mxu0 0.0
        %4533 = vmatprep.subr.mxu0 0.0
        %4534 = vmatpush1.msra.mxu0 0.0
        %4535 = vmatprep.subr.mxu0 0.0
        %4536 = vmatpush1.msra.mxu0 0.0
        %4537 = vmatprep.subr.mxu0 0.0
        %4538 = vmatpush1.msra.mxu0 0.0
        %4539 = vmatprep.subr.mxu0 0.0
        %4540 = vmatpush1.msra.mxu0 0.0
        %4541 = vmatprep.subr.mxu0 0.0
        %4542 = vmatpush1.msra.mxu0 0.0
        %4543 = vmatprep.subr.mxu0 0.0
        %4544 = vmatpush1.msra.mxu0 0.0
        %4545 = vmatprep.subr.mxu0 0.0
        %4546 = vmatpush1.msra.mxu0 0.0
        %4547 = vmatprep.subr.mxu0 0.0
        %4548 = vmatpush1.msra.mxu0 0.0
        %4549 = vmatprep.subr.mxu0 0.0
        %4550 = vmatpush1.msra.mxu0 0.0
        %4551 = vmatprep.subr.mxu0 0.0
        %4552 = vmatpush1.msra.mxu0 0.0
        %4553 = vmatprep.subr.mxu0 0.0
        %4554 = vmatpush1.msra.mxu0 0.0
        %4555 = vmatprep.subr.mxu0 0.0
        %4556 = vmatpush1.msra.mxu0 0.0
        %4557 = vmatprep.subr.mxu0 0.0
        %4558 = vmatpush1.msra.mxu0 0.0
        %4559 = vmatprep.subr.mxu0 0.0
        %4560 = vmatpush1.msra.mxu0 0.0
        %4561 = vmatprep.subr.mxu0 0.0
        %4562 = vmatpush1.msra.mxu0 0.0
        %4563 = vmatprep.subr.mxu0 0.0
        %4564 = vmatpush1.msra.mxu0 0.0
        %4565 = vmatprep.mubr.f32.mxu0 0.0
        %4566 = vmatmul.mubr.f32.gmra.mrb[0].mxu0 %v4499
        %v4567 = vpop.f32.mrb[0].mxu0
        %v4568 = vadd.f32 %v4497, %v4567
        %v4569 = vpop.f32.mrb[0].mxu0
        %4570 = vdwg.mxu0
        %s4571 = scalar_lea.vmem [#allocation28], 240
        %v4572 = vld [vmem:[%s4571] sm:$0xff]
        %v4573 = vld [vmem:[%s4571 + $0x8] sm:$0xff]
        %v4574 = vld [vmem:[%s4571 + $0x10] sm:$0xff]
        %v4575 = vld [vmem:[%s4571 + $0x18] sm:$0xff]
        %v4576 = vld [vmem:[%s4571 + $0x20] sm:$0xff]
        %v4577 = vld [vmem:[%s4571 + $0x28] sm:$0xff]
        %s4578 = scalar_lea.vmem %s67, 5
        %v4579 = vld [vmem:[%s4578] sm:$0x1]
        %v4580 = vrot.slane %v3758, 5
        %v4581 = vsel %vm3766, %v4580, 0
        %4583 = vmatprep.subr.mxu0 0.0
        %4584 = vmatpush1.msra.mxu0 %v4572
        %4585 = vmatprep.subr.mxu0 0.0
        %4586 = vmatpush1.msra.mxu0 %v4573
        %4587 = vmatprep.subr.mxu0 0.0
        %4588 = vmatpush1.msra.mxu0 %v4574
        %4589 = vmatprep.subr.mxu0 0.0
        %4590 = vmatpush1.msra.mxu0 %v4575
        %4591 = vmatprep.subr.mxu0 0.0
        %4592 = vmatpush1.msra.mxu0 %v4576
        %4593 = vmatprep.subr.mxu0 0.0
        %4594 = vmatpush1.msra.mxu0 %v4577
        %4595 = vmatprep.subr.mxu0 0.0
        %4596 = vmatpush1.msra.mxu0 0.0
        %4597 = vmatprep.subr.mxu0 0.0
        %4598 = vmatpush1.msra.mxu0 0.0
        %4599 = vmatprep.subr.mxu0 0.0
        %4600 = vmatpush1.msra.mxu0 0.0
        %4601 = vmatprep.subr.mxu0 0.0
        %4602 = vmatpush1.msra.mxu0 0.0
        %4603 = vmatprep.subr.mxu0 0.0
        %4604 = vmatpush1.msra.mxu0 0.0
        %4605 = vmatprep.subr.mxu0 0.0
        %4606 = vmatpush1.msra.mxu0 0.0
        %4607 = vmatprep.subr.mxu0 0.0
        %4608 = vmatpush1.msra.mxu0 0.0
        %4609 = vmatprep.subr.mxu0 0.0
        %4610 = vmatpush1.msra.mxu0 0.0
        %4611 = vmatprep.subr.mxu0 0.0
        %4612 = vmatpush1.msra.mxu0 0.0
        %4613 = vmatprep.subr.mxu0 0.0
        %4614 = vmatpush1.msra.mxu0 0.0
        %4615 = vmatprep.subr.mxu0 0.0
        %4616 = vmatpush1.msra.mxu0 0.0
        %4617 = vmatprep.subr.mxu0 0.0
        %4618 = vmatpush1.msra.mxu0 0.0
        %4619 = vmatprep.subr.mxu0 0.0
        %4620 = vmatpush1.msra.mxu0 0.0
        %4621 = vmatprep.subr.mxu0 0.0
        %4622 = vmatpush1.msra.mxu0 0.0
        %4623 = vmatprep.subr.mxu0 0.0
        %4624 = vmatpush1.msra.mxu0 0.0
        %4625 = vmatprep.subr.mxu0 0.0
        %4626 = vmatpush1.msra.mxu0 0.0
        %4627 = vmatprep.subr.mxu0 0.0
        %4628 = vmatpush1.msra.mxu0 0.0
        %4629 = vmatprep.subr.mxu0 0.0
        %4630 = vmatpush1.msra.mxu0 0.0
        %4631 = vmatprep.subr.mxu0 0.0
        %4632 = vmatpush1.msra.mxu0 0.0
        %4633 = vmatprep.subr.mxu0 0.0
        %4634 = vmatpush1.msra.mxu0 0.0
        %4635 = vmatprep.subr.mxu0 0.0
        %4636 = vmatpush1.msra.mxu0 0.0
        %4637 = vmatprep.subr.mxu0 0.0
        %4638 = vmatpush1.msra.mxu0 0.0
        %4639 = vmatprep.subr.mxu0 0.0
        %4640 = vmatpush1.msra.mxu0 0.0
        %4641 = vmatprep.subr.mxu0 0.0
        %4642 = vmatpush1.msra.mxu0 0.0
        %4643 = vmatprep.subr.mxu0 0.0
        %4644 = vmatpush1.msra.mxu0 0.0
        %4645 = vmatprep.subr.mxu0 0.0
        %4646 = vmatpush1.msra.mxu0 0.0
        %4647 = vmatprep.mubr.f32.mxu0 0.0
        %4648 = vmatmul.mubr.f32.gmra.mrb[0].mxu0 %v4581
        %v4649 = vpop.f32.mrb[0].mxu0
        %v4650 = vadd.f32 %v4579, %v4649
        %v4651 = vpop.f32.mrb[0].mxu0
        %4652 = vdwg.mxu0
        %v4653 = vmax.f32 %v4650, 0.0
        %s4654 = scalar_lea.vmem [#allocation30], 160
        %v4655 = vld [vmem:[%s4654] sm:$0xff]
        %v4656 = vld [vmem:[%s4654 + $0x8] sm:$0xff]
        %v4657 = vld [vmem:[%s4654 + $0x10] sm:$0xff]
        %v4658 = vld [vmem:[%s4654 + $0x18] sm:$0xff]
        %s4659 = scalar_lea.vmem %s71, 5
        %v4660 = vld [vmem:[%s4659] sm:$0x1]
        %v4662 = vsel %vm3757, %v4653, 0
        %4664 = vmatprep.subr.mxu0 0.0
        %4665 = vmatpush1.msra.mxu0 %v4655
        %4666 = vmatprep.subr.mxu0 0.0
        %4667 = vmatpush1.msra.mxu0 %v4656
        %4668 = vmatprep.subr.mxu0 0.0
        %4669 = vmatpush1.msra.mxu0 %v4657
        %4670 = vmatprep.subr.mxu0 0.0
        %4671 = vmatpush1.msra.mxu0 %v4658
        %4672 = vmatprep.subr.mxu0 0.0
        %4673 = vmatpush1.msra.mxu0 0.0
        %4674 = vmatprep.subr.mxu0 0.0
        %4675 = vmatpush1.msra.mxu0 0.0
        %4676 = vmatprep.subr.mxu0 0.0
        %4677 = vmatpush1.msra.mxu0 0.0
        %4678 = vmatprep.subr.mxu0 0.0
        %4679 = vmatpush1.msra.mxu0 0.0
        %4680 = vmatprep.subr.mxu0 0.0
        %4681 = vmatpush1.msra.mxu0 0.0
        %4682 = vmatprep.subr.mxu0 0.0
        %4683 = vmatpush1.msra.mxu0 0.0
        %4684 = vmatprep.subr.mxu0 0.0
        %4685 = vmatpush1.msra.mxu0 0.0
        %4686 = vmatprep.subr.mxu0 0.0
        %4687 = vmatpush1.msra.mxu0 0.0
        %4688 = vmatprep.subr.mxu0 0.0
        %4689 = vmatpush1.msra.mxu0 0.0
        %4690 = vmatprep.subr.mxu0 0.0
        %4691 = vmatpush1.msra.mxu0 0.0
        %4692 = vmatprep.subr.mxu0 0.0
        %4693 = vmatpush1.msra.mxu0 0.0
        %4694 = vmatprep.subr.mxu0 0.0
        %4695 = vmatpush1.msra.mxu0 0.0
        %4696 = vmatprep.subr.mxu0 0.0
        %4697 = vmatpush1.msra.mxu0 0.0
        %4698 = vmatprep.subr.mxu0 0.0
        %4699 = vmatpush1.msra.mxu0 0.0
        %4700 = vmatprep.subr.mxu0 0.0
        %4701 = vmatpush1.msra.mxu0 0.0
        %4702 = vmatprep.subr.mxu0 0.0
        %4703 = vmatpush1.msra.mxu0 0.0
        %4704 = vmatprep.subr.mxu0 0.0
        %4705 = vmatpush1.msra.mxu0 0.0
        %4706 = vmatprep.subr.mxu0 0.0
        %4707 = vmatpush1.msra.mxu0 0.0
        %4708 = vmatprep.subr.mxu0 0.0
        %4709 = vmatpush1.msra.mxu0 0.0
        %4710 = vmatprep.subr.mxu0 0.0
        %4711 = vmatpush1.msra.mxu0 0.0
        %4712 = vmatprep.subr.mxu0 0.0
        %4713 = vmatpush1.msra.mxu0 0.0
        %4714 = vmatprep.subr.mxu0 0.0
        %4715 = vmatpush1.msra.mxu0 0.0
        %4716 = vmatprep.subr.mxu0 0.0
        %4717 = vmatpush1.msra.mxu0 0.0
        %4718 = vmatprep.subr.mxu0 0.0
        %4719 = vmatpush1.msra.mxu0 0.0
        %4720 = vmatprep.subr.mxu0 0.0
        %4721 = vmatpush1.msra.mxu0 0.0
        %4722 = vmatprep.subr.mxu0 0.0
        %4723 = vmatpush1.msra.mxu0 0.0
        %4724 = vmatprep.subr.mxu0 0.0
        %4725 = vmatpush1.msra.mxu0 0.0
        %4726 = vmatprep.subr.mxu0 0.0
        %4727 = vmatpush1.msra.mxu0 0.0
        %4728 = vmatprep.mubr.f32.mxu0 0.0
        %4729 = vmatmul.mubr.f32.gmra.mrb[0].mxu0 %v4662
        %v4730 = vpop.f32.mrb[0].mxu0
        %v4731 = vadd.f32 %v4660, %v4730
        %v4732 = vpop.f32.mrb[0].mxu0
        %4733 = vdwg.mxu0
        %s4734 = scalar_lea.vmem [#allocation28], 288
        %v4735 = vld [vmem:[%s4734] sm:$0xff]
        %v4736 = vld [vmem:[%s4734 + $0x8] sm:$0xff]
        %v4737 = vld [vmem:[%s4734 + $0x10] sm:$0xff]
        %v4738 = vld [vmem:[%s4734 + $0x18] sm:$0xff]
        %v4739 = vld [vmem:[%s4734 + $0x20] sm:$0xff]
        %v4740 = vld [vmem:[%s4734 + $0x28] sm:$0xff]
        %s4741 = scalar_lea.vmem %s67, 6
        %v4742 = vld [vmem:[%s4741] sm:$0x1]
        %v4743 = vrot.slane %v3758, 6
        %v4744 = vsel %vm3766, %v4743, 0
        %4746 = vmatprep.subr.mxu0 0.0
        %4747 = vmatpush1.msra.mxu0 %v4735
        %4748 = vmatprep.subr.mxu0 0.0
        %4749 = vmatpush1.msra.mxu0 %v4736
        %4750 = vmatprep.subr.mxu0 0.0
        %4751 = vmatpush1.msra.mxu0 %v4737
        %4752 = vmatprep.subr.mxu0 0.0
        %4753 = vmatpush1.msra.mxu0 %v4738
        %4754 = vmatprep.subr.mxu0 0.0
        %4755 = vmatpush1.msra.mxu0 %v4739
        %4756 = vmatprep.subr.mxu0 0.0
        %4757 = vmatpush1.msra.mxu0 %v4740
        %4758 = vmatprep.subr.mxu0 0.0
        %4759 = vmatpush1.msra.mxu0 0.0
        %4760 = vmatprep.subr.mxu0 0.0
        %4761 = vmatpush1.msra.mxu0 0.0
        %4762 = vmatprep.subr.mxu0 0.0
        %4763 = vmatpush1.msra.mxu0 0.0
        %4764 = vmatprep.subr.mxu0 0.0
        %4765 = vmatpush1.msra.mxu0 0.0
        %4766 = vmatprep.subr.mxu0 0.0
        %4767 = vmatpush1.msra.mxu0 0.0
        %4768 = vmatprep.subr.mxu0 0.0
        %4769 = vmatpush1.msra.mxu0 0.0
        %4770 = vmatprep.subr.mxu0 0.0
        %4771 = vmatpush1.msra.mxu0 0.0
        %4772 = vmatprep.subr.mxu0 0.0
        %4773 = vmatpush1.msra.mxu0 0.0
        %4774 = vmatprep.subr.mxu0 0.0
        %4775 = vmatpush1.msra.mxu0 0.0
        %4776 = vmatprep.subr.mxu0 0.0
        %4777 = vmatpush1.msra.mxu0 0.0
        %4778 = vmatprep.subr.mxu0 0.0
        %4779 = vmatpush1.msra.mxu0 0.0
        %4780 = vmatprep.subr.mxu0 0.0
        %4781 = vmatpush1.msra.mxu0 0.0
        %4782 = vmatprep.subr.mxu0 0.0
        %4783 = vmatpush1.msra.mxu0 0.0
        %4784 = vmatprep.subr.mxu0 0.0
        %4785 = vmatpush1.msra.mxu0 0.0
        %4786 = vmatprep.subr.mxu0 0.0
        %4787 = vmatpush1.msra.mxu0 0.0
        %4788 = vmatprep.subr.mxu0 0.0
        %4789 = vmatpush1.msra.mxu0 0.0
        %4790 = vmatprep.subr.mxu0 0.0
        %4791 = vmatpush1.msra.mxu0 0.0
        %4792 = vmatprep.subr.mxu0 0.0
        %4793 = vmatpush1.msra.mxu0 0.0
        %4794 = vmatprep.subr.mxu0 0.0
        %4795 = vmatpush1.msra.mxu0 0.0
        %4796 = vmatprep.subr.mxu0 0.0
        %4797 = vmatpush1.msra.mxu0 0.0
        %4798 = vmatprep.subr.mxu0 0.0
        %4799 = vmatpush1.msra.mxu0 0.0
        %4800 = vmatprep.subr.mxu0 0.0
        %4801 = vmatpush1.msra.mxu0 0.0
        %4802 = vmatprep.subr.mxu0 0.0
        %4803 = vmatpush1.msra.mxu0 0.0
        %4804 = vmatprep.subr.mxu0 0.0
        %4805 = vmatpush1.msra.mxu0 0.0
        %4806 = vmatprep.subr.mxu0 0.0
        %4807 = vmatpush1.msra.mxu0 0.0
        %4808 = vmatprep.subr.mxu0 0.0
        %4809 = vmatpush1.msra.mxu0 0.0
        %4810 = vmatprep.mubr.f32.mxu0 0.0
        %4811 = vmatmul.mubr.f32.gmra.mrb[0].mxu0 %v4744
        %v4812 = vpop.f32.mrb[0].mxu0
        %v4813 = vadd.f32 %v4742, %v4812
        %v4814 = vpop.f32.mrb[0].mxu0
        %4815 = vdwg.mxu0
        %v4816 = vmax.f32 %v4813, 0.0
        %s4817 = scalar_lea.vmem [#allocation30], 192
        %v4818 = vld [vmem:[%s4817] sm:$0xff]
        %v4819 = vld [vmem:[%s4817 + $0x8] sm:$0xff]
        %v4820 = vld [vmem:[%s4817 + $0x10] sm:$0xff]
        %v4821 = vld [vmem:[%s4817 + $0x18] sm:$0xff]
        %s4822 = scalar_lea.vmem %s71, 6
        %v4823 = vld [vmem:[%s4822] sm:$0x1]
        %v4825 = vsel %vm3757, %v4816, 0
        %4827 = vmatprep.subr.mxu0 0.0
        %4828 = vmatpush1.msra.mxu0 %v4818
        %4829 = vmatprep.subr.mxu0 0.0
        %4830 = vmatpush1.msra.mxu0 %v4819
        %4831 = vmatprep.subr.mxu0 0.0
        %4832 = vmatpush1.msra.mxu0 %v4820
        %4833 = vmatprep.subr.mxu0 0.0
        %4834 = vmatpush1.msra.mxu0 %v4821
        %4835 = vmatprep.subr.mxu0 0.0
        %4836 = vmatpush1.msra.mxu0 0.0
        %4837 = vmatprep.subr.mxu0 0.0
        %4838 = vmatpush1.msra.mxu0 0.0
        %4839 = vmatprep.subr.mxu0 0.0
        %4840 = vmatpush1.msra.mxu0 0.0
        %4841 = vmatprep.subr.mxu0 0.0
        %4842 = vmatpush1.msra.mxu0 0.0
        %4843 = vmatprep.subr.mxu0 0.0
        %4844 = vmatpush1.msra.mxu0 0.0
        %4845 = vmatprep.subr.mxu0 0.0
        %4846 = vmatpush1.msra.mxu0 0.0
        %4847 = vmatprep.subr.mxu0 0.0
        %4848 = vmatpush1.msra.mxu0 0.0
        %4849 = vmatprep.subr.mxu0 0.0
        %4850 = vmatpush1.msra.mxu0 0.0
        %4851 = vmatprep.subr.mxu0 0.0
        %4852 = vmatpush1.msra.mxu0 0.0
        %4853 = vmatprep.subr.mxu0 0.0
        %4854 = vmatpush1.msra.mxu0 0.0
        %4855 = vmatprep.subr.mxu0 0.0
        %4856 = vmatpush1.msra.mxu0 0.0
        %4857 = vmatprep.subr.mxu0 0.0
        %4858 = vmatpush1.msra.mxu0 0.0
        %4859 = vmatprep.subr.mxu0 0.0
        %4860 = vmatpush1.msra.mxu0 0.0
        %4861 = vmatprep.subr.mxu0 0.0
        %4862 = vmatpush1.msra.mxu0 0.0
        %4863 = vmatprep.subr.mxu0 0.0
        %4864 = vmatpush1.msra.mxu0 0.0
        %4865 = vmatprep.subr.mxu0 0.0
        %4866 = vmatpush1.msra.mxu0 0.0
        %4867 = vmatprep.subr.mxu0 0.0
        %4868 = vmatpush1.msra.mxu0 0.0
        %4869 = vmatprep.subr.mxu0 0.0
        %4870 = vmatpush1.msra.mxu0 0.0
        %4871 = vmatprep.subr.mxu0 0.0
        %4872 = vmatpush1.msra.mxu0 0.0
        %4873 = vmatprep.subr.mxu0 0.0
        %4874 = vmatpush1.msra.mxu0 0.0
        %4875 = vmatprep.subr.mxu0 0.0
        %4876 = vmatpush1.msra.mxu0 0.0
        %4877 = vmatprep.subr.mxu0 0.0
        %4878 = vmatpush1.msra.mxu0 0.0
        %4879 = vmatprep.subr.mxu0 0.0
        %4880 = vmatpush1.msra.mxu0 0.0
        %4881 = vmatprep.subr.mxu0 0.0
        %4882 = vmatpush1.msra.mxu0 0.0
        %4883 = vmatprep.subr.mxu0 0.0
        %4884 = vmatpush1.msra.mxu0 0.0
        %4885 = vmatprep.subr.mxu0 0.0
        %4886 = vmatpush1.msra.mxu0 0.0
        %4887 = vmatprep.subr.mxu0 0.0
        %4888 = vmatpush1.msra.mxu0 0.0
        %4889 = vmatprep.subr.mxu0 0.0
        %4890 = vmatpush1.msra.mxu0 0.0
        %4891 = vmatprep.mubr.f32.mxu0 0.0
        %4892 = vmatmul.mubr.f32.gmra.mrb[0].mxu0 %v4825
        %v4893 = vpop.f32.mrb[0].mxu0
        %v4894 = vadd.f32 %v4823, %v4893
        %v4895 = vpop.f32.mrb[0].mxu0
        %4896 = vdwg.mxu0
        %s4897 = scalar_lea.vmem [#allocation28], 336
        %v4898 = vld [vmem:[%s4897] sm:$0xff]
        %v4899 = vld [vmem:[%s4897 + $0x8] sm:$0xff]
        %v4900 = vld [vmem:[%s4897 + $0x10] sm:$0xff]
        %v4901 = vld [vmem:[%s4897 + $0x18] sm:$0xff]
        %v4902 = vld [vmem:[%s4897 + $0x20] sm:$0xff]
        %v4903 = vld [vmem:[%s4897 + $0x28] sm:$0xff]
        %s4904 = scalar_lea.vmem %s67, 7
        %v4905 = vld [vmem:[%s4904] sm:$0x1]
        %v4906 = vrot.slane %v3758, 7
        %v4907 = vsel %vm3766, %v4906, 0
        %4909 = vmatprep.subr.mxu0 0.0
        %4910 = vmatpush1.msra.mxu0 %v4898
        %4911 = vmatprep.subr.mxu0 0.0
        %4912 = vmatpush1.msra.mxu0 %v4899
        %4913 = vmatprep.subr.mxu0 0.0
        %4914 = vmatpush1.msra.mxu0 %v4900
        %4915 = vmatprep.subr.mxu0 0.0
        %4916 = vmatpush1.msra.mxu0 %v4901
        %4917 = vmatprep.subr.mxu0 0.0
        %4918 = vmatpush1.msra.mxu0 %v4902
        %4919 = vmatprep.subr.mxu0 0.0
        %4920 = vmatpush1.msra.mxu0 %v4903
        %4921 = vmatprep.subr.mxu0 0.0
        %4922 = vmatpush1.msra.mxu0 0.0
        %4923 = vmatprep.subr.mxu0 0.0
        %4924 = vmatpush1.msra.mxu0 0.0
        %4925 = vmatprep.subr.mxu0 0.0
        %4926 = vmatpush1.msra.mxu0 0.0
        %4927 = vmatprep.subr.mxu0 0.0
        %4928 = vmatpush1.msra.mxu0 0.0
        %4929 = vmatprep.subr.mxu0 0.0
        %4930 = vmatpush1.msra.mxu0 0.0
        %4931 = vmatprep.subr.mxu0 0.0
        %4932 = vmatpush1.msra.mxu0 0.0
        %4933 = vmatprep.subr.mxu0 0.0
        %4934 = vmatpush1.msra.mxu0 0.0
        %4935 = vmatprep.subr.mxu0 0.0
        %4936 = vmatpush1.msra.mxu0 0.0
        %4937 = vmatprep.subr.mxu0 0.0
        %4938 = vmatpush1.msra.mxu0 0.0
        %4939 = vmatprep.subr.mxu0 0.0
        %4940 = vmatpush1.msra.mxu0 0.0
        %4941 = vmatprep.subr.mxu0 0.0
        %4942 = vmatpush1.msra.mxu0 0.0
        %4943 = vmatprep.subr.mxu0 0.0
        %4944 = vmatpush1.msra.mxu0 0.0
        %4945 = vmatprep.subr.mxu0 0.0
        %4946 = vmatpush1.msra.mxu0 0.0
        %4947 = vmatprep.subr.mxu0 0.0
        %4948 = vmatpush1.msra.mxu0 0.0
        %4949 = vmatprep.subr.mxu0 0.0
        %4950 = vmatpush1.msra.mxu0 0.0
        %4951 = vmatprep.subr.mxu0 0.0
        %4952 = vmatpush1.msra.mxu0 0.0
        %4953 = vmatprep.subr.mxu0 0.0
        %4954 = vmatpush1.msra.mxu0 0.0
        %4955 = vmatprep.subr.mxu0 0.0
        %4956 = vmatpush1.msra.mxu0 0.0
        %4957 = vmatprep.subr.mxu0 0.0
        %4958 = vmatpush1.msra.mxu0 0.0
        %4959 = vmatprep.subr.mxu0 0.0
        %4960 = vmatpush1.msra.mxu0 0.0
        %4961 = vmatprep.subr.mxu0 0.0
        %4962 = vmatpush1.msra.mxu0 0.0
        %4963 = vmatprep.subr.mxu0 0.0
        %4964 = vmatpush1.msra.mxu0 0.0
        %4965 = vmatprep.subr.mxu0 0.0
        %4966 = vmatpush1.msra.mxu0 0.0
        %4967 = vmatprep.subr.mxu0 0.0
        %4968 = vmatpush1.msra.mxu0 0.0
        %4969 = vmatprep.subr.mxu0 0.0
        %4970 = vmatpush1.msra.mxu0 0.0
        %4971 = vmatprep.subr.mxu0 0.0
        %4972 = vmatpush1.msra.mxu0 0.0
        %4973 = vmatprep.mubr.f32.mxu0 0.0
        %4974 = vmatmul.mubr.f32.gmra.mrb[0].mxu0 %v4907
        %v4975 = vpop.f32.mrb[0].mxu0
        %v4976 = vadd.f32 %v4905, %v4975
        %v4977 = vpop.f32.mrb[0].mxu0
        %4978 = vdwg.mxu0
        %v4979 = vmax.f32 %v4976, 0.0
        %s4980 = scalar_lea.vmem [#allocation30], 224
        %v4981 = vld [vmem:[%s4980] sm:$0xff]
        %v4982 = vld [vmem:[%s4980 + $0x8] sm:$0xff]
        %v4983 = vld [vmem:[%s4980 + $0x10] sm:$0xff]
        %v4984 = vld [vmem:[%s4980 + $0x18] sm:$0xff]
        %s4985 = scalar_lea.vmem %s71, 7
        %v4986 = vld [vmem:[%s4985] sm:$0x1]
        %v4988 = vsel %vm3757, %v4979, 0
        %4990 = vmatprep.subr.mxu0 0.0
        %4991 = vmatpush1.msra.mxu0 %v4981
        %4992 = vmatprep.subr.mxu0 0.0
        %4993 = vmatpush1.msra.mxu0 %v4982
        %4994 = vmatprep.subr.mxu0 0.0
        %4995 = vmatpush1.msra.mxu0 %v4983
        %4996 = vmatprep.subr.mxu0 0.0
        %4997 = vmatpush1.msra.mxu0 %v4984
        %4998 = vmatprep.subr.mxu0 0.0
        %4999 = vmatpush1.msra.mxu0 0.0
        %5000 = vmatprep.subr.mxu0 0.0
        %5001 = vmatpush1.msra.mxu0 0.0
        %5002 = vmatprep.subr.mxu0 0.0
        %5003 = vmatpush1.msra.mxu0 0.0
        %5004 = vmatprep.subr.mxu0 0.0
        %5005 = vmatpush1.msra.mxu0 0.0
        %5006 = vmatprep.subr.mxu0 0.0
        %5007 = vmatpush1.msra.mxu0 0.0
        %5008 = vmatprep.subr.mxu0 0.0
        %5009 = vmatpush1.msra.mxu0 0.0
        %5010 = vmatprep.subr.mxu0 0.0
        %5011 = vmatpush1.msra.mxu0 0.0
        %5012 = vmatprep.subr.mxu0 0.0
        %5013 = vmatpush1.msra.mxu0 0.0
        %5014 = vmatprep.subr.mxu0 0.0
        %5015 = vmatpush1.msra.mxu0 0.0
        %5016 = vmatprep.subr.mxu0 0.0
        %5017 = vmatpush1.msra.mxu0 0.0
        %5018 = vmatprep.subr.mxu0 0.0
        %5019 = vmatpush1.msra.mxu0 0.0
        %5020 = vmatprep.subr.mxu0 0.0
        %5021 = vmatpush1.msra.mxu0 0.0
        %5022 = vmatprep.subr.mxu0 0.0
        %5023 = vmatpush1.msra.mxu0 0.0
        %5024 = vmatprep.subr.mxu0 0.0
        %5025 = vmatpush1.msra.mxu0 0.0
        %5026 = vmatprep.subr.mxu0 0.0
        %5027 = vmatpush1.msra.mxu0 0.0
        %5028 = vmatprep.subr.mxu0 0.0
        %5029 = vmatpush1.msra.mxu0 0.0
        %5030 = vmatprep.subr.mxu0 0.0
        %5031 = vmatpush1.msra.mxu0 0.0
        %5032 = vmatprep.subr.mxu0 0.0
        %5033 = vmatpush1.msra.mxu0 0.0
        %5034 = vmatprep.subr.mxu0 0.0
        %5035 = vmatpush1.msra.mxu0 0.0
        %5036 = vmatprep.subr.mxu0 0.0
        %5037 = vmatpush1.msra.mxu0 0.0
        %5038 = vmatprep.subr.mxu0 0.0
        %5039 = vmatpush1.msra.mxu0 0.0
        %5040 = vmatprep.subr.mxu0 0.0
        %5041 = vmatpush1.msra.mxu0 0.0
        %5042 = vmatprep.subr.mxu0 0.0
        %5043 = vmatpush1.msra.mxu0 0.0
        %5044 = vmatprep.subr.mxu0 0.0
        %5045 = vmatpush1.msra.mxu0 0.0
        %5046 = vmatprep.subr.mxu0 0.0
        %5047 = vmatpush1.msra.mxu0 0.0
        %5048 = vmatprep.subr.mxu0 0.0
        %5049 = vmatpush1.msra.mxu0 0.0
        %5050 = vmatprep.subr.mxu0 0.0
        %5051 = vmatpush1.msra.mxu0 0.0
        %5052 = vmatprep.subr.mxu0 0.0
        %5053 = vmatpush1.msra.mxu0 0.0
        %5054 = vmatprep.mubr.f32.mxu0 0.0
        %5055 = vmatmul.mubr.f32.gmra.mrb[0].mxu0 %v4988
        %v5056 = vpop.f32.mrb[0].mxu0
        %v5057 = vadd.f32 %v4986, %v5056
        %v5058 = vpop.f32.mrb[0].mxu0
        %5059 = vdwg.mxu0
        %v5061 = vrot.slane %v4079, 7
        %v5064 = vrot.slane %v4242, 6
        %v5067 = vrot.slane %v4405, 5
        %v5070 = vrot.slane %v4568, 4
        %v5073 = vrot.slane %v4731, 3
        %v5076 = vrot.slane %v4894, 2
        %v5079 = vrot.slane %v5057, 1
        %vm5081 = vcmask 1040384
        %v5082 = vsel %vm5081, %v3916, %v5061
        %vm5083 = vcmask 1041408
        %v5084 = vsel %vm5083, %v5082, %v5064
        %v5085 = vsel %vm1673, %v5084, %v5067
        %v5086 = vsel %vm1474, %v5085, %v5070
        %vm5087 = vcmask 1044480
        %v5088 = vsel %vm5087, %v5086, %v5073
        %vm5089 = vcmask 1045504
        %v5090 = vsel %vm5089, %v5088, %v5076
        %vm5091 = vcmask 1046528
        %v5092 = vsel %vm5091, %v5090, %v5079
        %vm5093 = vcmask 15360
        %5094 = vst.msk [vmem:[%s1346] sm:$0xff] %vm5093, %v5092
        %p5095 = scmp.lt.s32.totalorder %s94, 1
        %s5096 = scalar_select %p5095, %s94, 1
        %s5097 = smul.addr %s5096, 8
        %s5098 = scalar_lea.vmem %s73, %s5097
        // Predicated region
        $region241: #{sta_mgcn_submodule_forward.1} parent=163 // pred_check
          %p5099 = pneg %p873
        $region242: #{sta_mgcn_submodule_forward.1} parent=163 // pred_check_branch
          %5101 = sbr.rel (%p5099) target = $region244
        $region243: #{sta_mgcn_submodule_forward.1} parent=163 // pred_region
          _
        $region244: #{sta_mgcn_submodule_forward.1} parent=163 // pred_fallthru
          _
      $region164: #{sta_mgcn_submodule_forward.1} parent=5 // pred_fallthru
        _
      %p5102 = scmp.le.s32.totalorder 2, %s89
      // Predicated region
      $region245: #{sta_mgcn_submodule_forward.1} parent=5 // pred_check
        %p5103 = pneg %p5102
      $region246: #{sta_mgcn_submodule_forward.1} parent=5 // pred_check_branch
        %5105 = sbr.rel (%p5103) target = $region248
      $region247: #{sta_mgcn_submodule_forward.1} parent=5 // pred_region
        %s5106 = ssub.s32 %s89, 2
        // Predicated region
        $region249: #{sta_mgcn_submodule_forward.1} parent=247 // pred_check
          %p5107 = pneg %p879
        $region250: #{sta_mgcn_submodule_forward.1} parent=247 // pred_check_branch
          %5109 = sbr.rel (%p5107) target = $region252
        $region251: #{sta_mgcn_submodule_forward.1} parent=247 // pred_region
          %p5110 = scmp.lt.s32.totalorder %s95, 1
          %s5111 = scalar_select %p5110, %s95, 1
          %s5112 = smul.addr %s5111, 8
          %s5113 = scalar_lea.vmem %s73, %s5112
        $region252: #{sta_mgcn_submodule_forward.1} parent=247 // pred_fallthru
          _
      $region248: #{sta_mgcn_submodule_forward.1} parent=5 // pred_fallthru
        _
    $region6: #{sta_mgcn_submodule_forward.1} parent=1 // loop_footer
      %s93 = sadd.s32 1, %s89
    $region7: #{sta_mgcn_submodule_forward.1} parent=1 // loop_footer_branch
      %88 = sbr.rel target = $region3
    $region8: #{sta_mgcn_submodule_forward.1} parent=1 // loop_exit
      _
    %5114 = vsyncpa [#allocation3], 1
    %s5115 = scalar_lea.sflag [#allocation3], 1
    %5116 = vsyncpa %s5115, 1
    %5117 = vsyncpa [#allocation5], 1
    %5118 = vsyncpa [#allocation8], 1
    %5119 = vsyncpa [#allocation11], 1
    %5120 = vsyncpa [#allocation14], 1
    %5121 = vsyncpa [#allocation17], 1
    %5122 = vsyncpa [#allocation20], 1
    %5123 = vsyncpa [#allocation23], 1
    %5124 = vsyncpa [#allocation26], 1
    %5125 = vsyncpa [#allocation29], 1

</llo_original>
